<compile_context>
chip_gen: v6e
topology: v6e:2x2x1
jax: 0.10.0
libtpu: 0.0.40
codegen_flags: <defaults>
</compile_context>

<pallas_src>
import functools

import jax
import jax.numpy as jnp
from jax import lax
from jax.experimental import pallas as pl
from jax.experimental.pallas import tpu as pltpu

# ----------------------------- hyper-parameters ------------------------------
IMG_SIZE = 64            # multiple of PATCH; the real module uses 1024
PATCH = 16
IN_CHANS = 3
EMBED_DIM = 32
DEPTH = 2
NUM_HEADS = 4
MLP_RATIO = 4
OUT_CHANS = 16           # SAM neck output channels (256 in the real model)
WINDOW_SIZES = (2, 0)    # per-block window size; 0 = global attention block
LN_EPS = 1e-6

HEAD_DIM = EMBED_DIM // NUM_HEADS
GRID = IMG_SIZE // PATCH

# MXU operand dtype: bf16 operands (f32 accumulation / LayerNorm statistics)
# ~2x the MXU rate on v6e/v7x and halve weight DMA + double-buffered VMEM.
MM_DT = jnp.bfloat16

# Windows processed per attention-block grid step (amortizes per-step overhead;
# the window loop is an in-kernel fori_loop so traced code size is constant).
WINDOW_BATCH = 4

_PAR1 = pltpu.CompilerParams(dimension_semantics=("parallel",))


def _largest_divisor_leq(n, cap):
    for d in range(min(n, cap), 0, -1):
        if n % d == 0:
            return d
    return 1


# ------------------------------ Pallas kernels -------------------------------
def _patch_embed_kernel(x_ref, w_ref, b_ref, pos_ref, o_ref):
    # per-patch matmul (== Conv2d k=16 s=16) + bias + pos_embed, one batch/step
    y = jnp.dot(x_ref[0], w_ref[...], preferred_element_type=jnp.float32)
    o_ref[0] = (y + b_ref[...] + pos_ref[...]).astype(o_ref.dtype)


def _block_kernel(x_ref, g1_ref, b1_ref, qkvw_ref, qkvb_ref, rhE_ref, rwE_ref,
                  mh_ref, mw_ref, projw_ref, projb_ref, g2_ref, b2_ref,
                  fc1w_ref, fc1b_ref, fc2w_ref, fc2b_ref, o_ref,
                  *, num_heads, head_dim, qh, qw, wb, eps):
    # One grid step = `wb` windows; whole transformer block fused per window:
    # LN1 -> qkv -> MHA (+decomposed rel-pos) -> proj -> res -> LN2 -> MLP -> res.
    C = num_heads * head_dim
    N = qh * qw

    # hoist loop-invariant weight loads out of the window loop
    g1, b1 = g1_ref[...], b1_ref[...]
    qkvw, qkvb = qkvw_ref[...], qkvb_ref[...]
    projb = projb_ref[...]
    g2, b2 = g2_ref[...], b2_ref[...]
    fc1w, fc1b = fc1w_ref[...], fc1b_ref[...]
    fc2w, fc2b = fc2w_ref[...], fc2b_ref[...]
    rhE = [rhE_ref[i] for i in range(qh)]
    rwE = [rwE_ref[j] for j in range(qw)]
    mh = [mh_ref[i].astype(MM_DT) for i in range(qh)]
    mw = [mw_ref[j].astype(MM_DT) for j in range(qw)]
    pw = [projw_ref[h] for h in range(num_heads)]

    def one_window(w, carry):
        x = x_ref[w].astype(jnp.float32)                     # (N, C)
        # ---- LayerNorm1 ----
        mu = jnp.mean(x, axis=-1, keepdims=True)
        xc = x - mu
        var = jnp.mean(xc * xc, axis=-1, keepdims=True)
        xn = xc * lax.rsqrt(var + eps) * g1 + b1
        # ---- qkv projection (attention scale pre-folded into the q columns) ----
        qkv = jnp.dot(xn.astype(MM_DT), qkvw,
                      preferred_element_type=jnp.float32) + qkvb        # (N, 3C)
        # ---- multi-head attention; rel-pos bias built in VMEM from q ----
        acc = jnp.zeros((N, C), jnp.float32)
        for h in range(num_heads):
            q = qkv[:, h * head_dim:(h + 1) * head_dim].astype(MM_DT)
            k = qkv[:, C + h * head_dim:C + (h + 1) * head_dim].astype(MM_DT)
            v = qkv[:, 2 * C + h * head_dim:2 * C + (h + 1) * head_dim].astype(MM_DT)
            # q @ k^T without an explicit transpose (contract last dims of both)
            s = lax.dot_general(q, k, (((1,), (1,)), ((), ())),
                                preferred_element_type=jnp.float32)     # (N, N)
            # bias[n, n'] = q[n].Rh[n//qw, n'//qw] + q[n].Rw[n%qw, n'%qw]
            for i in range(qh):
                s = s + jnp.dot(mh[i] * q, rhE[i],
                                preferred_element_type=jnp.float32)
            for j in range(qw):
                s = s + jnp.dot(mw[j] * q, rwE[j],
                                preferred_element_type=jnp.float32)
            s = s - jnp.max(s, axis=-1, keepdims=True)
            p = jnp.exp(s)
            p = p / jnp.sum(p, axis=-1, keepdims=True)       # exact normalisation
            oh = jnp.dot(p.astype(MM_DT), v, preferred_element_type=jnp.float32)
            # head-major slice of the output projection -> no lane-axis concat
            acc = acc + jnp.dot(oh.astype(MM_DT), pw[h],
                                preferred_element_type=jnp.float32)
        h1 = acc + projb + x                                 # attention residual
        # ---- LayerNorm2 -> MLP -> residual ----
        mu2 = jnp.mean(h1, axis=-1, keepdims=True)
        hc = h1 - mu2
        var2 = jnp.mean(hc * hc, axis=-1, keepdims=True)
        hn = hc * lax.rsqrt(var2 + eps) * g2 + b2
        # TODO(synk): PyTorch nn.GELU() defaults to exact erf; tanh approximation
        # kept because erf lowering is not guaranteed on all TPU generations.
        m = jax.nn.gelu(jnp.dot(hn.astype(MM_DT), fc1w,
                                preferred_element_type=jnp.float32) + fc1b,
                        approximate=True)
        y = jnp.dot(m.astype(MM_DT), fc2w,
                    preferred_element_type=jnp.float32) + fc2b
        o_ref[w] = (y + h1).astype(o_ref.dtype)
        return carry

    lax.fori_loop(0, wb, one_window, 0)


def _neck_kernel(x_ref, w1_ref, g1_ref, b1_ref, w2_ref, g2_ref, b2_ref,
                 mfull_ref, mcore_ref, o_ref, *, H, W, C2, eps):
    # Fused SAM neck + global pool, one batch / grid step:
    #   1x1 conv -> LN2d -> 3x3 conv (9 shifted whole-plane matmuls on the
    #   zero-padded flat layout, no per-row loop) -> LN2d -> average pool.
    Wp = W + 2
    M = Wp + 1
    HW = (H + 2) * Wp
    x = x_ref[0]                                             # (R, C), pre-cast bf16
    y1 = jnp.dot(x, w1_ref[...], preferred_element_type=jnp.float32)    # (R, C2)
    mu = jnp.mean(y1, axis=-1, keepdims=True)
    yc = y1 - mu
    var = jnp.mean(yc * yc, axis=-1, keepdims=True)
    # mask zeroes the padding rows so the 3x3 conv sees true zero padding
    rn1 = (yc * lax.rsqrt(var + eps) * g1_ref[...] + b1_ref[...]) * mfull_ref[...]
    acc = jnp.zeros((HW, C2), jnp.float32)
    for di in range(3):
        for dj in range(3):
            s = M + (di - 1) * Wp + (dj - 1)
            t = di * 3 + dj
            acc = acc + jnp.dot(rn1[s:s + HW, :].astype(MM_DT),
                                w2_ref[t * C2:(t + 1) * C2, :],
                                preferred_element_type=jnp.float32)
    mu2 = jnp.mean(acc, axis=-1, keepdims=True)
    ac = acc - mu2
    var2 = jnp.mean(ac * ac, axis=-1, keepdims=True)
    rn2 = ac * lax.rsqrt(var2 + eps) * g2_ref[...] + b2_ref[...]
    pooled = jnp.sum(rn2 * mcore_ref[...], axis=0, keepdims=True) * (1.0 / (H * W))
    o_ref[0] = pooled.astype(o_ref.dtype)


# --------------------------- JAX glue (SAM pieces) ----------------------------
def get_rel_pos(q_size, k_size, rel_pos):
    # rel_pos is created with exactly 2*max(q,k)-1 rows -> no interpolation path
    q_coords = jnp.arange(q_size)[:, None] * max(k_size / q_size, 1.0)
    k_coords = jnp.arange(k_size)[None, :] * max(q_size / k_size, 1.0)
    rel = (q_coords - k_coords) + (k_size - 1) * max(q_size / k_size, 1.0)
    return rel_pos[rel.astype(jnp.int32)]


# ------------------------------- model pieces ---------------------------------
def patch_embed(x, w, b, pos):
    # Conv2d(3, EMBED_DIM, kernel=16, stride=16) == per-patch matmul (+ pos add)
    B, Cin, H, W = x.shape
    nh, nw = H // PATCH, W // PATCH
    P = nh * nw
    Cp = Cin * PATCH * PATCH
    px = x.reshape(B, Cin, nh, PATCH, nw, PATCH)
    px = px.transpose(0, 2, 4, 1, 3, 5).reshape(B, P, Cp).astype(MM_DT)
    w2 = w.reshape(EMBED_DIM, Cp).T.astype(MM_DT)                     # (Cp, D)
    tok = pl.pallas_call(
        _patch_embed_kernel,
        grid=(B,),
        in_specs=[pl.BlockSpec((1, P, Cp), lambda i: (i, 0, 0)),
                  pl.BlockSpec((Cp, EMBED_DIM), lambda i: (0, 0)),
                  pl.BlockSpec((1, EMBED_DIM), lambda i: (0, 0)),
                  pl.BlockSpec((P, EMBED_DIM), lambda i: (0, 0))],
        out_specs=pl.BlockSpec((1, P, EMBED_DIM), lambda i: (i, 0, 0)),
        out_shape=jax.ShapeDtypeStruct((B, P, EMBED_DIM), jnp.float32),
        compiler_params=_PAR1,
    )(px, w2, b.reshape(1, EMBED_DIM), pos.reshape(P, EMBED_DIM))
    return tok.reshape(B, nh, nw, EMBED_DIM)


def transformer_block(x, p, window_size):
    B, H, W, C = x.shape
    D = HEAD_DIM
    if window_size > 0:
        # TODO(synk): assumes H % window_size == W % window_size == 0; otherwise
        # the reference zero-pads the *normalized* tokens before attention.
        qh = qw = window_size
        N = qh * qw
        xw = x.reshape(B, H // qh, qh, W // qw, qw, C)
        xw = xw.transpose(0, 1, 3, 2, 4, 5).reshape(-1, N, C)
    else:
        # TODO(synk): at real SAM sizes (N=4096) the global block needs flash-style
        # KV tiling; at these shapes the full (N, N) scores fit VMEM easily.
        qh, qw = H, W
        N = H * W
        xw = x.reshape(B, N, C)
    wtot = xw.shape[0]
    wb = _largest_divisor_leq(wtot, WINDOW_BATCH)
    steps = wtot // wb

    scale = D ** -0.5
    # fold the attention scale into the q columns of the qkv projection
    colscale = jnp.concatenate([jnp.full((C,), scale, jnp.float32),
                                jnp.ones((2 * C,), jnp.float32)])
    qkv_w = (p["qkv_w"] * colscale[None, :]).astype(MM_DT)              # (C, 3C)
    qkv_b = (p["qkv_b"] * colscale).reshape(1, 3 * C).astype(jnp.float32)
    proj_w = p["proj_w"].reshape(NUM_HEADS, D, C).astype(MM_DT)         # head-major
    proj_b = p["proj_b"].reshape(1, C)
    fc1_w = p["fc1_w"].astype(MM_DT)
    fc1_b = p["fc1_b"].reshape(1, -1)
    fc2_w = p["fc2_w"].astype(MM_DT)
    fc2_b = p["fc2_b"].reshape(1, C)
    g1 = p["ln1_g"].reshape(1, C)
    b1 = p["ln1_b"].reshape(1, C)
    g2 = p["ln2_g"].reshape(1, C)
    b2 = p["ln2_b"].reshape(1, C)

    # decomposed rel-pos tables (tiny, window-independent, resident in VMEM):
    #   rhE[i, d, n'] = Rh[i, n'//qw, d],  mh[i, n] = (n//qw == i)   (same for w)
    Rh = get_rel_pos(qh, qh, p["rel_pos_h"])                            # (qh, qh, D)
    Rw = get_rel_pos(qw, qw, p["rel_pos_w"])                            # (qw, qw, D)
    n = jnp.arange(N)
    Eh = (n[None, :] // qw == jnp.arange(qh)[:, None]).astype(jnp.float32)  # (qh, N)
    Ew = (n[None, :] % qw == jnp.arange(qw)[:, None]).astype(jnp.float32)   # (qw, N)
    # key-side expansion folded into the tables; 1/scale undoes the q scaling
    rhE = (jnp.einsum("ikd,kn->idn", Rh, Eh) / scale).astype(MM_DT)     # (qh, D, N)
    rwE = (jnp.einsum("jkd,kn->jdn", Rw, Ew) / scale).astype(MM_DT)     # (qw, D, N)
    mh = Eh[:, :, None]                                                 # (qh, N, 1)
    mw = Ew[:, :, None]                                                 # (qw, N, 1)

    # TODO(synk): at real SAM widths set vmem_limit_bytes / re-derive wb so the
    # bf16 fc1/fc2 + double-buffered activations fit v7x's 64 MiB VMEM.
    out = pl.pallas_call(
        functools.partial(_block_kernel, num_heads=NUM_HEADS, head_dim=D,
                          qh=qh, qw=qw, wb=wb, eps=LN_EPS),
        grid=(steps,),
        in_specs=[pl.BlockSpec((wb, N, C), lambda s: (s, 0, 0)),
                  pl.BlockSpec((1, C), lambda s: (0, 0)),
                  pl.BlockSpec((1, C), lambda s: (0, 0)),
                  pl.BlockSpec((C, 3 * C), lambda s: (0, 0)),
                  pl.BlockSpec((1, 3 * C), lambda s: (0, 0)),
                  pl.BlockSpec((qh, D, N), lambda s: (0, 0, 0)),
                  pl.BlockSpec((qw, D, N), lambda s: (0, 0, 0)),
                  pl.BlockSpec((qh, N, 1), lambda s: (0, 0, 0)),
                  pl.BlockSpec((qw, N, 1), lambda s: (0, 0, 0)),
                  pl.BlockSpec((NUM_HEADS, D, C), lambda s: (0, 0, 0)),
                  pl.BlockSpec((1, C), lambda s: (0, 0)),
                  pl.BlockSpec((1, C), lambda s: (0, 0)),
                  pl.BlockSpec((1, C), lambda s: (0, 0)),
                  pl.BlockSpec((C, MLP_RATIO * C), lambda s: (0, 0)),
                  pl.BlockSpec((1, MLP_RATIO * C), lambda s: (0, 0)),
                  pl.BlockSpec((MLP_RATIO * C, C), lambda s: (0, 0)),
                  pl.BlockSpec((1, C), lambda s: (0, 0))],
        out_specs=pl.BlockSpec((wb, N, C), lambda s: (s, 0, 0)),
        out_shape=jax.ShapeDtypeStruct((wtot, N, C), jnp.float32),
        compiler_params=_PAR1,
    )(xw, g1, b1, qkv_w, qkv_b, rhE, rwE, mh, mw, proj_w, proj_b,
      g2, b2, fc1_w, fc1_b, fc2_w, fc2_b)

    if window_size > 0:
        out = out.reshape(B, H // qh, W // qw, qh, qw, C)
        out = out.transpose(0, 1, 3, 2, 4, 5).reshape(B, H, W, C)
    else:
        out = out.reshape(B, H, W, C)
    return out


def neck_and_pool(x, p):
    # SAM neck: 1x1 conv -> LN2d -> 3x3 conv -> LN2d, then AdaptiveAvgPool2d((1,1))
    # + Flatten, fully fused into one Pallas kernel per batch element.
    B, H, W, C = x.shape
    C2 = OUT_CHANS
    Hp, Wp = H + 2, W + 2
    M = Wp + 1
    HW = Hp * Wp
    R = HW + 2 * M
    xp = jnp.pad(x, ((0, 0), (1, 1), (1, 1), (0, 0))).reshape(B, HW, C)
    xp = jnp.pad(xp, ((0, 0), (M, M), (0, 0))).astype(MM_DT)            # (B, R, C)
    w1 = p["conv1_w"].reshape(C2, C).T.astype(MM_DT)                    # (C, C2)
    w2 = p["conv2_w"].transpose(2, 3, 1, 0).reshape(9 * C2, C2).astype(MM_DT)
    hh = jnp.arange(Hp)[:, None]
    ww = jnp.arange(Wp)[None, :]
    core = ((hh >= 1) & (hh <= H) & (ww >= 1) & (ww <= W))
    core = core.astype(jnp.float32).reshape(HW, 1)
    full = jnp.concatenate([jnp.zeros((M, 1), jnp.float32), core,
                            jnp.zeros((M, 1), jnp.float32)], axis=0)    # (R, 1)
    pooled = pl.pallas_call(
        functools.partial(_neck_kernel, H=H, W=W, C2=C2, eps=LN_EPS),
        grid=(B,),
        in_specs=[pl.BlockSpec((1, R, C), lambda b: (b, 0, 0)),
                  pl.BlockSpec((C, C2), lambda b: (0, 0)),
                  pl.BlockSpec((1, C2), lambda b: (0, 0)),
                  pl.BlockSpec((1, C2), lambda b: (0, 0)),
                  pl.BlockSpec((9 * C2, C2), lambda b: (0, 0)),
                  pl.BlockSpec((1, C2), lambda b: (0, 0)),
                  pl.BlockSpec((1, C2), lambda b: (0, 0)),
                  pl.BlockSpec((R, 1), lambda b: (0, 0)),
                  pl.BlockSpec((HW, 1), lambda b: (0, 0))],
        out_specs=pl.BlockSpec((1, 1, C2), lambda b: (b, 0, 0)),
        out_shape=jax.ShapeDtypeStruct((B, 1, C2), jnp.float32),
        compiler_params=_PAR1,
    )(xp, w1, p["ln1_g"].reshape(1, C2), p["ln1_b"].reshape(1, C2),
      w2, p["ln2_g"].reshape(1, C2), p["ln2_b"].reshape(1, C2), full, core)
    return pooled.reshape(B, C2)


def sam_mae_encoder_forward(x, params):
    h = patch_embed(x, params["pe_w"], params["pe_b"], params["pos_embed"])
    for i in range(DEPTH):
        h = transformer_block(h, params["blocks"][i], WINDOW_SIZES[i])
    return neck_and_pool(h, params["neck"])               # (B, OUT_CHANS)


# ---------------------------- deterministic params -----------------------------
def init_params(key):
    keys = iter(jax.random.split(key, 128))

    def rnd(shape, scale=0.02):
        return (scale * jax.random.normal(next(keys), shape)).astype(jnp.float32)

    params = {
        "pe_w": rnd((EMBED_DIM, IN_CHANS, PATCH, PATCH)),
        "pe_b": rnd((EMBED_DIM,)),
    }
    # pos_embed is created at 1024//16 per side, then the module's __init__
    # adaptively average-pools it to (img_size//16, img_size//16).
    full = 1024 // PATCH
    pe_full = rnd((1, full, full, EMBED_DIM))
    f = full // GRID
    params["pos_embed"] = pe_full.reshape(1, GRID, f, GRID, f, EMBED_DIM).mean(axis=(2, 4))

    blocks = []
    for d in range(DEPTH):
        ws = WINDOW_SIZES[d]
        in_sz = ws if ws > 0 else GRID
        blocks.append({
            "ln1_g": jnp.ones((EMBED_DIM,), jnp.float32),
            "ln1_b": jnp.zeros((EMBED_DIM,), jnp.float32),
            "qkv_w": rnd((EMBED_DIM, 3 * EMBED_DIM)),
            "qkv_b": rnd((3 * EMBED_DIM,)),
            "rel_pos_h": rnd((2 * in_sz - 1, HEAD_DIM)),
            "rel_pos_w": rnd((2 * in_sz - 1, HEAD_DIM)),
            "proj_w": rnd((EMBED_DIM, EMBED_DIM)),
            "proj_b": rnd((EMBED_DIM,)),
            "ln2_g": jnp.ones((EMBED_DIM,), jnp.float32),
            "ln2_b": jnp.zeros((EMBED_DIM,), jnp.float32),
            "fc1_w": rnd((EMBED_DIM, MLP_RATIO * EMBED_DIM)),
            "fc1_b": rnd((MLP_RATIO * EMBED_DIM,)),
            "fc2_w": rnd((MLP_RATIO * EMBED_DIM, EMBED_DIM)),
            "fc2_b": rnd((EMBED_DIM,)),
        })
    params["blocks"] = blocks
    params["neck"] = {
        "conv1_w": rnd((OUT_CHANS, EMBED_DIM, 1, 1)),
        "ln1_g": jnp.ones((OUT_CHANS,), jnp.float32),
        "ln1_b": jnp.zeros((OUT_CHANS,), jnp.float32),
        "conv2_w": rnd((OUT_CHANS, OUT_CHANS, 3, 3)),
        "ln2_g": jnp.ones((OUT_CHANS,), jnp.float32),
        "ln2_b": jnp.zeros((OUT_CHANS,), jnp.float32),
    }
    return params


# ------------------------------------ main -------------------------------------
if __name__ == "__main__":
    key = jax.random.PRNGKey(0)
    k_x, k_p = jax.random.split(key)
    x = jax.random.normal(k_x, (2, IN_CHANS, IMG_SIZE, IMG_SIZE), dtype=jnp.float32)
    params = init_params(k_p)

    fwd = jax.jit(sam_mae_encoder_forward)
    out = jax.block_until_ready(fwd(x, params))
    assert out.shape == (2, OUT_CHANS) and out.dtype == jnp.float32
    print("KERNEL_OK")
</pallas_src>

<mosaic_0001>
module attributes {stable_mosaic.version = 11 : i64} {
  func.func @_patch_embed_kernel(%arg0: i32, %arg1: memref<1x16x768xbf16, #tpu.memory_space<vmem>>, %arg2: memref<768x32xbf16, #tpu.memory_space<vmem>>, %arg3: memref<1x32xf32, #tpu.memory_space<vmem>>, %arg4: memref<16x32xf32, #tpu.memory_space<vmem>>, %arg5: memref<1x16x32xf32, #tpu.memory_space<vmem>>) attributes {dimension_semantics = [#tpu.dimension_semantics<parallel>], iteration_bounds = array<i64: 2>, scalar_prefetch = 0 : i64, scratch_operands = 0 : i64, tpu.core_type = #tpu.core_type<tc>, window_params = [{transform_indices = @transform_0, window_bounds = array<i64: 1, 16, 768>}, {pipeline_mode = #tpu.pipeline_mode<synchronous>, transform_indices = @transform_1, window_bounds = array<i64: 768, 32>}, {pipeline_mode = #tpu.pipeline_mode<synchronous>, transform_indices = @transform_2, window_bounds = array<i64: 1, 32>}, {pipeline_mode = #tpu.pipeline_mode<synchronous>, transform_indices = @transform_3, window_bounds = array<i64: 16, 32>}, {transform_indices = @transform_4, window_bounds = array<i64: 1, 16, 32>}]} {
    %c0 = arith.constant 0 : index
    %c0_0 = arith.constant 0 : index
    %c0_1 = arith.constant 0 : index
    %0 = vector.load %arg1[%c0, %c0_0, %c0_1] : memref<1x16x768xbf16, #tpu.memory_space<vmem>>, vector<1x16x768xbf16>
    %1 = vector.shape_cast %0 : vector<1x16x768xbf16> to vector<16x768xbf16>
    %c0_2 = arith.constant 0 : index
    %c0_3 = arith.constant 0 : index
    %2 = vector.load %arg2[%c0_2, %c0_3] : memref<768x32xbf16, #tpu.memory_space<vmem>>, vector<768x32xbf16>
    %cst = arith.constant dense<0.000000e+00> : vector<16x32xf32>
    %3 = tpu.matmul %1, %2, %cst {dimension_numbers = #tpu.dot_dimension_numbers<[1], [0], [0], [1], [0, 0, 1, 1], [], []>} : vector<16x768xbf16>, vector<768x32xbf16>, vector<16x32xf32> -> vector<16x32xf32>
    %c0_4 = arith.constant 0 : index
    %c0_5 = arith.constant 0 : index
    %4 = vector.load %arg3[%c0_4, %c0_5] : memref<1x32xf32, #tpu.memory_space<vmem>>, vector<1x32xf32>
    %5 = vector.broadcast %4 : vector<1x32xf32> to vector<16x32xf32>
    %6 = arith.addf %3, %5 : vector<16x32xf32>
    %c0_6 = arith.constant 0 : index
    %c0_7 = arith.constant 0 : index
    %7 = vector.load %arg4[%c0_6, %c0_7] : memref<16x32xf32, #tpu.memory_space<vmem>>, vector<16x32xf32>
    %8 = arith.addf %6, %7 : vector<16x32xf32>
    %c0_8 = arith.constant 0 : index
    %c0_9 = arith.constant 0 : index
    %c0_10 = arith.constant 0 : index
    %9 = vector.load %arg5[%c0_8, %c0_9, %c0_10] : memref<1x16x32xf32, #tpu.memory_space<vmem>>, vector<1x16x32xf32>
    %10 = vector.shape_cast %9 : vector<1x16x32xf32> to vector<16x32xf32>
    %11 = vector.shape_cast %8 : vector<16x32xf32> to vector<1x16x32xf32>
    tpu.vector_store %arg5[%c0_8, %c0_9, %c0_10], %11 {strides = array<i32>} : memref<1x16x32xf32, #tpu.memory_space<vmem>>, vector<1x16x32xf32>,
    return
  }
  func.func @transform_0(%arg0: i32) -> (i32, i32, i32) {
    %c0_i32 = arith.constant 0 : i32
    %c0_i32_0 = arith.constant 0 : i32
    %c0_i32_1 = arith.constant 0 : i32
    return %arg0, %c0_i32, %c0_i32_0 : i32, i32, i32
  }
  func.func @transform_1(%arg0: i32) -> (i32, i32) {
    %c0_i32 = arith.constant 0 : i32
    %c0_i32_0 = arith.constant 0 : i32
    %c0_i32_1 = arith.constant 0 : i32
    return %c0_i32, %c0_i32_0 : i32, i32
  }
  func.func @transform_2(%arg0: i32) -> (i32, i32) {
    %c0_i32 = arith.constant 0 : i32
    %c0_i32_0 = arith.constant 0 : i32
    %c0_i32_1 = arith.constant 0 : i32
    return %c0_i32, %c0_i32_0 : i32, i32
  }
  func.func @transform_3(%arg0: i32) -> (i32, i32) {
    %c0_i32 = arith.constant 0 : i32
    %c0_i32_0 = arith.constant 0 : i32
    %c0_i32_1 = arith.constant 0 : i32
    return %c0_i32, %c0_i32_0 : i32, i32
  }
  func.func @transform_4(%arg0: i32) -> (i32, i32, i32) {
    %c0_i32 = arith.constant 0 : i32
    %c0_i32_0 = arith.constant 0 : i32
    %c0_i32_1 = arith.constant 0 : i32
    return %arg0, %c0_i32, %c0_i32_0 : i32, i32, i32
  }
}

module attributes {stable_mosaic.version = 11 : i64} {
  func.func @_block_kernel(%arg0: i32, %arg1: memref<4x4x32xf32, #tpu.memory_space<vmem>>, %arg2: memref<1x32xf32, #tpu.memory_space<vmem>>, %arg3: memref<1x32xf32, #tpu.memory_space<vmem>>, %arg4: memref<32x96xbf16, #tpu.memory_space<vmem>>, %arg5: memref<1x96xf32, #tpu.memory_space<vmem>>, %arg6: memref<2x8x4xbf16, #tpu.memory_space<vmem>>, %arg7: memref<2x8x4xbf16, #tpu.memory_space<vmem>>, %arg8: memref<2x4x1xf32, #tpu.memory_space<vmem>>, %arg9: memref<2x4x1xf32, #tpu.memory_space<vmem>>, %arg10: memref<4x8x32xbf16, #tpu.memory_space<vmem>>, %arg11: memref<1x32xf32, #tpu.memory_space<vmem>>, %arg12: memref<1x32xf32, #tpu.memory_space<vmem>>, %arg13: memref<1x32xf32, #tpu.memory_space<vmem>>, %arg14: memref<32x128xbf16, #tpu.memory_space<vmem>>, %arg15: memref<1x128xf32, #tpu.memory_space<vmem>>, %arg16: memref<128x32xbf16, #tpu.memory_space<vmem>>, %arg17: memref<1x32xf32, #tpu.memory_space<vmem>>, %arg18: memref<4x4x32xf32, #tpu.memory_space<vmem>>) attributes {dimension_semantics = [#tpu.dimension_semantics<parallel>], iteration_bounds = array<i64: 2>, scalar_prefetch = 0 : i64, scratch_operands = 0 : i64, tpu.core_type = #tpu.core_type<tc>, window_params = [{transform_indices = @transform_0, window_bounds = array<i64: 4, 4, 32>}, {pipeline_mode = #tpu.pipeline_mode<synchronous>, transform_indices = @transform_1, window_bounds = array<i64: 1, 32>}, {pipeline_mode = #tpu.pipeline_mode<synchronous>, transform_indices = @transform_2, window_bounds = array<i64: 1, 32>}, {pipeline_mode = #tpu.pipeline_mode<synchronous>, transform_indices = @transform_3, window_bounds = array<i64: 32, 96>}, {pipeline_mode = #tpu.pipeline_mode<synchronous>, transform_indices = @transform_4, window_bounds = array<i64: 1, 96>}, {pipeline_mode = #tpu.pipeline_mode<synchronous>, transform_indices = @transform_5, window_bounds = array<i64: 2, 8, 4>}, {pipeline_mode = #tpu.pipeline_mode<synchronous>, transform_indices = @transform_6, window_bounds = array<i64: 2, 8, 4>}, {pipeline_mode = #tpu.pipeline_mode<synchronous>, transform_indices = @transform_7, window_bounds = array<i64: 2, 4, 1>}, {pipeline_mode = #tpu.pipeline_mode<synchronous>, transform_indices = @transform_8, window_bounds = array<i64: 2, 4, 1>}, {pipeline_mode = #tpu.pipeline_mode<synchronous>, transform_indices = @transform_9, window_bounds = array<i64: 4, 8, 32>}, {pipeline_mode = #tpu.pipeline_mode<synchronous>, transform_indices = @transform_10, window_bounds = array<i64: 1, 32>}, {pipeline_mode = #tpu.pipeline_mode<synchronous>, transform_indices = @transform_11, window_bounds = array<i64: 1, 32>}, {pipeline_mode = #tpu.pipeline_mode<synchronous>, transform_indices = @transform_12, window_bounds = array<i64: 1, 32>}, {pipeline_mode = #tpu.pipeline_mode<synchronous>, transform_indices = @transform_13, window_bounds = array<i64: 32, 128>}, {pipeline_mode = #tpu.pipeline_mode<synchronous>, transform_indices = @transform_14, window_bounds = array<i64: 1, 128>}, {pipeline_mode = #tpu.pipeline_mode<synchronous>, transform_indices = @transform_15, window_bounds = array<i64: 128, 32>}, {pipeline_mode = #tpu.pipeline_mode<synchronous>, transform_indices = @transform_16, window_bounds = array<i64: 1, 32>}, {transform_indices = @transform_17, window_bounds = array<i64: 4, 4, 32>}]} {
    %c0 = arith.constant 0 : index
    %c0_0 = arith.constant 0 : index
    %0 = vector.load %arg2[%c0, %c0_0] : memref<1x32xf32, #tpu.memory_space<vmem>>, vector<1x32xf32>
    %c0_1 = arith.constant 0 : index
    %c0_2 = arith.constant 0 : index
    %1 = vector.load %arg3[%c0_1, %c0_2] : memref<1x32xf32, #tpu.memory_space<vmem>>, vector<1x32xf32>
    %c0_3 = arith.constant 0 : index
    %c0_4 = arith.constant 0 : index
    %2 = vector.load %arg4[%c0_3, %c0_4] : memref<32x96xbf16, #tpu.memory_space<vmem>>, vector<32x96xbf16>
    %c0_5 = arith.constant 0 : index
    %c0_6 = arith.constant 0 : index
    %3 = vector.load %arg5[%c0_5, %c0_6] : memref<1x96xf32, #tpu.memory_space<vmem>>, vector<1x96xf32>
    %c0_7 = arith.constant 0 : index
    %c0_8 = arith.constant 0 : index
    %4 = vector.load %arg11[%c0_7, %c0_8] : memref<1x32xf32, #tpu.memory_space<vmem>>, vector<1x32xf32>
    %c0_9 = arith.constant 0 : index
    %c0_10 = arith.constant 0 : index
    %5 = vector.load %arg12[%c0_9, %c0_10] : memref<1x32xf32, #tpu.memory_space<vmem>>, vector<1x32xf32>
    %c0_11 = arith.constant 0 : index
    %c0_12 = arith.constant 0 : index
    %6 = vector.load %arg13[%c0_11, %c0_12] : memref<1x32xf32, #tpu.memory_space<vmem>>, vector<1x32xf32>
    %c0_13 = arith.constant 0 : index
    %c0_14 = arith.constant 0 : index
    %7 = vector.load %arg14[%c0_13, %c0_14] : memref<32x128xbf16, #tpu.memory_space<vmem>>, vector<32x128xbf16>
    %c0_15 = arith.constant 0 : index
    %c0_16 = arith.constant 0 : index
    %8 = vector.load %arg15[%c0_15, %c0_16] : memref<1x128xf32, #tpu.memory_space<vmem>>, vector<1x128xf32>
    %c0_17 = arith.constant 0 : index
    %c0_18 = arith.constant 0 : index
    %9 = vector.load %arg16[%c0_17, %c0_18] : memref<128x32xbf16, #tpu.memory_space<vmem>>, vector<128x32xbf16>
    %c0_19 = arith.constant 0 : index
    %c0_20 = arith.constant 0 : index
    %10 = vector.load %arg17[%c0_19, %c0_20] : memref<1x32xf32, #tpu.memory_space<vmem>>, vector<1x32xf32>
    %c0_21 = arith.constant 0 : index
    %c0_22 = arith.constant 0 : index
    %c0_23 = arith.constant 0 : index
    %11 = vector.load %arg6[%c0_21, %c0_22, %c0_23] : memref<2x8x4xbf16, #tpu.memory_space<vmem>>, vector<1x8x4xbf16>
    %12 = vector.shape_cast %11 : vector<1x8x4xbf16> to vector<8x4xbf16>
    %c1 = arith.constant 1 : index
    %c0_24 = arith.constant 0 : index
    %c0_25 = arith.constant 0 : index
    %13 = vector.load %arg6[%c1, %c0_24, %c0_25] : memref<2x8x4xbf16, #tpu.memory_space<vmem>>, vector<1x8x4xbf16>
    %14 = vector.shape_cast %13 : vector<1x8x4xbf16> to vector<8x4xbf16>
    %c0_26 = arith.constant 0 : index
    %c0_27 = arith.constant 0 : index
    %c0_28 = arith.constant 0 : index
    %15 = vector.load %arg7[%c0_26, %c0_27, %c0_28] : memref<2x8x4xbf16, #tpu.memory_space<vmem>>, vector<1x8x4xbf16>
    %16 = vector.shape_cast %15 : vector<1x8x4xbf16> to vector<8x4xbf16>
    %c1_29 = arith.constant 1 : index
    %c0_30 = arith.constant 0 : index
    %c0_31 = arith.constant 0 : index
    %17 = vector.load %arg7[%c1_29, %c0_30, %c0_31] : memref<2x8x4xbf16, #tpu.memory_space<vmem>>, vector<1x8x4xbf16>
    %18 = vector.shape_cast %17 : vector<1x8x4xbf16> to vector<8x4xbf16>
    %c0_32 = arith.constant 0 : index
    %c0_33 = arith.constant 0 : index
    %c0_34 = arith.constant 0 : index
    %19 = vector.load %arg8[%c0_32, %c0_33, %c0_34] : memref<2x4x1xf32, #tpu.memory_space<vmem>>, vector<1x4x1xf32>
    %20 = vector.shape_cast %19 : vector<1x4x1xf32> to vector<4x1xf32>
    %21 = arith.truncf %20 : vector<4x1xf32> to vector<4x1xbf16>
    %c1_35 = arith.constant 1 : index
    %c0_36 = arith.constant 0 : index
    %c0_37 = arith.constant 0 : index
    %22 = vector.load %arg8[%c1_35, %c0_36, %c0_37] : memref<2x4x1xf32, #tpu.memory_space<vmem>>, vector<1x4x1xf32>
    %23 = vector.shape_cast %22 : vector<1x4x1xf32> to vector<4x1xf32>
    %24 = arith.truncf %23 : vector<4x1xf32> to vector<4x1xbf16>
    %c0_38 = arith.constant 0 : index
    %c0_39 = arith.constant 0 : index
    %c0_40 = arith.constant 0 : index
    %25 = vector.load %arg9[%c0_38, %c0_39, %c0_40] : memref<2x4x1xf32, #tpu.memory_space<vmem>>, vector<1x4x1xf32>
    %26 = vector.shape_cast %25 : vector<1x4x1xf32> to vector<4x1xf32>
    %27 = arith.truncf %26 : vector<4x1xf32> to vector<4x1xbf16>
    %c1_41 = arith.constant 1 : index
    %c0_42 = arith.constant 0 : index
    %c0_43 = arith.constant 0 : index
    %28 = vector.load %arg9[%c1_41, %c0_42, %c0_43] : memref<2x4x1xf32, #tpu.memory_space<vmem>>, vector<1x4x1xf32>
    %29 = vector.shape_cast %28 : vector<1x4x1xf32> to vector<4x1xf32>
    %30 = arith.truncf %29 : vector<4x1xf32> to vector<4x1xbf16>
    %c0_44 = arith.constant 0 : index
    %c0_45 = arith.constant 0 : index
    %c0_46 = arith.constant 0 : index
    %31 = vector.load %arg10[%c0_44, %c0_45, %c0_46] : memref<4x8x32xbf16, #tpu.memory_space<vmem>>, vector<1x8x32xbf16>
    %32 = vector.shape_cast %31 : vector<1x8x32xbf16> to vector<8x32xbf16>
    %c1_47 = arith.constant 1 : index
    %c0_48 = arith.constant 0 : index
    %c0_49 = arith.constant 0 : index
    %33 = vector.load %arg10[%c1_47, %c0_48, %c0_49] : memref<4x8x32xbf16, #tpu.memory_space<vmem>>, vector<1x8x32xbf16>
    %34 = vector.shape_cast %33 : vector<1x8x32xbf16> to vector<8x32xbf16>
    %c2 = arith.constant 2 : index
    %c0_50 = arith.constant 0 : index
    %c0_51 = arith.constant 0 : index
    %35 = vector.load %arg10[%c2, %c0_50, %c0_51] : memref<4x8x32xbf16, #tpu.memory_space<vmem>>, vector<1x8x32xbf16>
    %36 = vector.shape_cast %35 : vector<1x8x32xbf16> to vector<8x32xbf16>
    %c3 = arith.constant 3 : index
    %c0_52 = arith.constant 0 : index
    %c0_53 = arith.constant 0 : index
    %37 = vector.load %arg10[%c3, %c0_52, %c0_53] : memref<4x8x32xbf16, #tpu.memory_space<vmem>>, vector<1x8x32xbf16>
    %38 = vector.shape_cast %37 : vector<1x8x32xbf16> to vector<8x32xbf16>
    %c0_i32 = arith.constant 0 : i32
    %c4_i32 = arith.constant 4 : i32
    %39 = arith.addi %c0_i32, %c4_i32 : i32
    %c1_i32 = arith.constant 1 : i32
    scf.for %arg19 = %c0_i32 to %39 step %c1_i32  : i32 {
      %40 = arith.index_cast %arg19 : i32 to index
      %c0_55 = arith.constant 0 : index
      %c0_56 = arith.constant 0 : index
      %41 = vector.load %arg1[%40, %c0_55, %c0_56] : memref<4x4x32xf32, #tpu.memory_space<vmem>>, vector<1x4x32xf32>
      %42 = vector.shape_cast %41 : vector<1x4x32xf32> to vector<4x32xf32>
      %cst = arith.constant dense<0.000000e+00> : vector<4xf32>
      %43 = vector.multi_reduction <add>, %42, %cst [1] : vector<4x32xf32> to vector<4xf32>
      %44 = vector.shape_cast %43 : vector<4xf32> to vector<4x1xf32>
      %cst_57 = arith.constant 3.200000e+01 : f32
      %45 = vector.broadcast %cst_57 : f32 to vector<4x1xf32>
      %46 = arith.divf %44, %45 : vector<4x1xf32>
      %47 = vector.broadcast %46 : vector<4x1xf32> to vector<4x32xf32>
      %48 = arith.subf %42, %47 : vector<4x32xf32>
      %49 = arith.mulf %48, %48 : vector<4x32xf32>
      %cst_58 = arith.constant dense<0.000000e+00> : vector<4xf32>
      %50 = vector.multi_reduction <add>, %49, %cst_58 [1] : vector<4x32xf32> to vector<4xf32>
      %51 = vector.shape_cast %50 : vector<4xf32> to vector<4x1xf32>
      %cst_59 = arith.constant 3.200000e+01 : f32
      %52 = vector.broadcast %cst_59 : f32 to vector<4x1xf32>
      %53 = arith.divf %51, %52 : vector<4x1xf32>
      %cst_60 = arith.constant 9.99999997E-7 : f32
      %54 = vector.broadcast %cst_60 : f32 to vector<4x1xf32>
      %55 = arith.addf %53, %54 : vector<4x1xf32>
      %56 = math.rsqrt %55 : vector<4x1xf32>
      %57 = vector.broadcast %56 : vector<4x1xf32> to vector<4x32xf32>
      %58 = arith.mulf %48, %57 : vector<4x32xf32>
      %59 = vector.broadcast %0 : vector<1x32xf32> to vector<4x32xf32>
      %60 = arith.mulf %58, %59 : vector<4x32xf32>
      %61 = vector.broadcast %1 : vector<1x32xf32> to vector<4x32xf32>
      %62 = arith.addf %60, %61 : vector<4x32xf32>
      %63 = arith.truncf %62 : vector<4x32xf32> to vector<4x32xbf16>
      %cst_61 = arith.constant dense<0.000000e+00> : vector<4x96xf32>
      %64 = tpu.matmul %63, %2, %cst_61 {dimension_numbers = #tpu.dot_dimension_numbers<[1], [0], [0], [1], [0, 0, 1, 1], [], []>} : vector<4x32xbf16>, vector<32x96xbf16>, vector<4x96xf32> -> vector<4x96xf32>
      %65 = vector.broadcast %3 : vector<1x96xf32> to vector<4x96xf32>
      %66 = arith.addf %64, %65 : vector<4x96xf32>
      %cst_62 = arith.constant 0.000000e+00 : f32
      %67 = vector.broadcast %cst_62 : f32 to vector<4x32xf32>
      %68 = vector.extract_strided_slice %66 {offsets = [0, 0], sizes = [4, 8], strides = [1, 1]} : vector<4x96xf32> to vector<4x8xf32>
      %69 = arith.truncf %68 : vector<4x8xf32> to vector<4x8xbf16>
      %70 = vector.extract_strided_slice %66 {offsets = [0, 32], sizes = [4, 8], strides = [1, 1]} : vector<4x96xf32> to vector<4x8xf32>
      %71 = arith.truncf %70 : vector<4x8xf32> to vector<4x8xbf16>
      %72 = vector.extract_strided_slice %66 {offsets = [0, 64], sizes = [4, 8], strides = [1, 1]} : vector<4x96xf32> to vector<4x8xf32>
      %73 = arith.truncf %72 : vector<4x8xf32> to vector<4x8xbf16>
      %cst_63 = arith.constant dense<0.000000e+00> : vector<4x4xf32>
      %74 = tpu.matmul %69, %71, %cst_63 {dimension_numbers = #tpu.dot_dimension_numbers<[1], [1], [0], [0], [0, 0, 1, 0], [], []>} : vector<4x8xbf16>, vector<4x8xbf16>, vector<4x4xf32> -> vector<4x4xf32>
      %75 = vector.broadcast %21 : vector<4x1xbf16> to vector<4x8xbf16>
      %76 = arith.mulf %75, %69 : vector<4x8xbf16>
      %cst_64 = arith.constant dense<0.000000e+00> : vector<4x4xf32>
      %77 = tpu.matmul %76, %12, %cst_64 {dimension_numbers = #tpu.dot_dimension_numbers<[1], [0], [0], [1], [0, 0, 1, 1], [], []>} : vector<4x8xbf16>, vector<8x4xbf16>, vector<4x4xf32> -> vector<4x4xf32>
      %78 = arith.addf %74, %77 : vector<4x4xf32>
      %79 = vector.broadcast %24 : vector<4x1xbf16> to vector<4x8xbf16>
      %80 = arith.mulf %79, %69 : vector<4x8xbf16>
      %cst_65 = arith.constant dense<0.000000e+00> : vector<4x4xf32>
      %81 = tpu.matmul %80, %14, %cst_65 {dimension_numbers = #tpu.dot_dimension_numbers<[1], [0], [0], [1], [0, 0, 1, 1], [], []>} : vector<4x8xbf16>, vector<8x4xbf16>, vector<4x4xf32> -> vector<4x4xf32>
      %82 = arith.addf %78, %81 : vector<4x4xf32>
      %83 = vector.broadcast %27 : vector<4x1xbf16> to vector<4x8xbf16>
      %84 = arith.mulf %83, %69 : vector<4x8xbf16>
      %cst_66 = arith.constant dense<0.000000e+00> : vector<4x4xf32>
      %85 = tpu.matmul %84, %16, %cst_66 {dimension_numbers = #tpu.dot_dimension_numbers<[1], [0], [0], [1], [0, 0, 1, 1], [], []>} : vector<4x8xbf16>, vector<8x4xbf16>, vector<4x4xf32> -> vector<4x4xf32>
      %86 = arith.addf %82, %85 : vector<4x4xf32>
      %87 = vector.broadcast %30 : vector<4x1xbf16> to vector<4x8xbf16>
      %88 = arith.mulf %87, %69 : vector<4x8xbf16>
      %cst_67 = arith.constant dense<0.000000e+00> : vector<4x4xf32>
      %89 = tpu.matmul %88, %18, %cst_67 {dimension_numbers = #tpu.dot_dimension_numbers<[1], [0], [0], [1], [0, 0, 1, 1], [], []>} : vector<4x8xbf16>, vector<8x4xbf16>, vector<4x4xf32> -> vector<4x4xf32>
      %90 = arith.addf %86, %89 : vector<4x4xf32>
      %cst_68 = arith.constant dense<0xFF800000> : vector<4xf32>
      %91 = vector.multi_reduction <maximumf>, %90, %cst_68 [1] : vector<4x4xf32> to vector<4xf32>
      %92 = vector.shape_cast %91 : vector<4xf32> to vector<4x1xf32>
      %93 = vector.broadcast %92 : vector<4x1xf32> to vector<4x4xf32>
      %94 = arith.subf %90, %93 : vector<4x4xf32>
      %95 = math.exp %94 : vector<4x4xf32>
      %cst_69 = arith.constant dense<0.000000e+00> : vector<4xf32>
      %96 = vector.multi_reduction <add>, %95, %cst_69 [1] : vector<4x4xf32> to vector<4xf32>
      %97 = vector.shape_cast %96 : vector<4xf32> to vector<4x1xf32>
      %98 = vector.broadcast %97 : vector<4x1xf32> to vector<4x4xf32>
      %99 = arith.divf %95, %98 : vector<4x4xf32>
      %100 = arith.truncf %99 : vector<4x4xf32> to vector<4x4xbf16>
      %cst_70 = arith.constant dense<0.000000e+00> : vector<4x8xf32>
      %101 = tpu.matmul %100, %73, %cst_70 {dimension_numbers = #tpu.dot_dimension_numbers<[1], [0], [0], [1], [0, 0, 1, 1], [], []>} : vector<4x4xbf16>, vector<4x8xbf16>, vector<4x8xf32> -> vector<4x8xf32>
      %102 = arith.truncf %101 : vector<4x8xf32> to vector<4x8xbf16>
      %cst_71 = arith.constant dense<0.000000e+00> : vector<4x32xf32>
      %103 = tpu.matmul %102, %32, %cst_71 {dimension_numbers = #tpu.dot_dimension_numbers<[1], [0], [0], [1], [0, 0, 1, 1], [], []>} : vector<4x8xbf16>, vector<8x32xbf16>, vector<4x32xf32> -> vector<4x32xf32>
      %104 = arith.addf %67, %103 : vector<4x32xf32>
      %105 = vector.extract_strided_slice %66 {offsets = [0, 8], sizes = [4, 8], strides = [1, 1]} : vector<4x96xf32> to vector<4x8xf32>
      %106 = arith.truncf %105 : vector<4x8xf32> to vector<4x8xbf16>
      %107 = vector.extract_strided_slice %66 {offsets = [0, 40], sizes = [4, 8], strides = [1, 1]} : vector<4x96xf32> to vector<4x8xf32>
      %108 = arith.truncf %107 : vector<4x8xf32> to vector<4x8xbf16>
      %109 = vector.extract_strided_slice %66 {offsets = [0, 72], sizes = [4, 8], strides = [1, 1]} : vector<4x96xf32> to vector<4x8xf32>
      %110 = arith.truncf %109 : vector<4x8xf32> to vector<4x8xbf16>
      %cst_72 = arith.constant dense<0.000000e+00> : vector<4x4xf32>
      %111 = tpu.matmul %106, %108, %cst_72 {dimension_numbers = #tpu.dot_dimension_numbers<[1], [1], [0], [0], [0, 0, 1, 0], [], []>} : vector<4x8xbf16>, vector<4x8xbf16>, vector<4x4xf32> -> vector<4x4xf32>
      %112 = vector.broadcast %21 : vector<4x1xbf16> to vector<4x8xbf16>
      %113 = arith.mulf %112, %106 : vector<4x8xbf16>
      %cst_73 = arith.constant dense<0.000000e+00> : vector<4x4xf32>
      %114 = tpu.matmul %113, %12, %cst_73 {dimension_numbers = #tpu.dot_dimension_numbers<[1], [0], [0], [1], [0, 0, 1, 1], [], []>} : vector<4x8xbf16>, vector<8x4xbf16>, vector<4x4xf32> -> vector<4x4xf32>
      %115 = arith.addf %111, %114 : vector<4x4xf32>
      %116 = vector.broadcast %24 : vector<4x1xbf16> to vector<4x8xbf16>
      %117 = arith.mulf %116, %106 : vector<4x8xbf16>
      %cst_74 = arith.constant dense<0.000000e+00> : vector<4x4xf32>
      %118 = tpu.matmul %117, %14, %cst_74 {dimension_numbers = #tpu.dot_dimension_numbers<[1], [0], [0], [1], [0, 0, 1, 1], [], []>} : vector<4x8xbf16>, vector<8x4xbf16>, vector<4x4xf32> -> vector<4x4xf32>
      %119 = arith.addf %115, %118 : vector<4x4xf32>
      %120 = vector.broadcast %27 : vector<4x1xbf16> to vector<4x8xbf16>
      %121 = arith.mulf %120, %106 : vector<4x8xbf16>
      %cst_75 = arith.constant dense<0.000000e+00> : vector<4x4xf32>
      %122 = tpu.matmul %121, %16, %cst_75 {dimension_numbers = #tpu.dot_dimension_numbers<[1], [0], [0], [1], [0, 0, 1, 1], [], []>} : vector<4x8xbf16>, vector<8x4xbf16>, vector<4x4xf32> -> vector<4x4xf32>
      %123 = arith.addf %119, %122 : vector<4x4xf32>
      %124 = vector.broadcast %30 : vector<4x1xbf16> to vector<4x8xbf16>
      %125 = arith.mulf %124, %106 : vector<4x8xbf16>
      %cst_76 = arith.constant dense<0.000000e+00> : vector<4x4xf32>
      %126 = tpu.matmul %125, %18, %cst_76 {dimension_numbers = #tpu.dot_dimension_numbers<[1], [0], [0], [1], [0, 0, 1, 1], [], []>} : vector<4x8xbf16>, vector<8x4xbf16>, vector<4x4xf32> -> vector<4x4xf32>
      %127 = arith.addf %123, %126 : vector<4x4xf32>
      %cst_77 = arith.constant dense<0xFF800000> : vector<4xf32>
      %128 = vector.multi_reduction <maximumf>, %127, %cst_77 [1] : vector<4x4xf32> to vector<4xf32>
      %129 = vector.shape_cast %128 : vector<4xf32> to vector<4x1xf32>
      %130 = vector.broadcast %129 : vector<4x1xf32> to vector<4x4xf32>
      %131 = arith.subf %127, %130 : vector<4x4xf32>
      %132 = math.exp %131 : vector<4x4xf32>
      %cst_78 = arith.constant dense<0.000000e+00> : vector<4xf32>
      %133 = vector.multi_reduction <add>, %132, %cst_78 [1] : vector<4x4xf32> to vector<4xf32>
      %134 = vector.shape_cast %133 : vector<4xf32> to vector<4x1xf32>
      %135 = vector.broadcast %134 : vector<4x1xf32> to vector<4x4xf32>
      %136 = arith.divf %132, %135 : vector<4x4xf32>
      %137 = arith.truncf %136 : vector<4x4xf32> to vector<4x4xbf16>
      %cst_79 = arith.constant dense<0.000000e+00> : vector<4x8xf32>
      %138 = tpu.matmul %137, %110, %cst_79 {dimension_numbers = #tpu.dot_dimension_numbers<[1], [0], [0], [1], [0, 0, 1, 1], [], []>} : vector<4x4xbf16>, vector<4x8xbf16>, vector<4x8xf32> -> vector<4x8xf32>
      %139 = arith.truncf %138 : vector<4x8xf32> to vector<4x8xbf16>
      %cst_80 = arith.constant dense<0.000000e+00> : vector<4x32xf32>
      %140 = tpu.matmul %139, %34, %cst_80 {dimension_numbers = #tpu.dot_dimension_numbers<[1], [0], [0], [1], [0, 0, 1, 1], [], []>} : vector<4x8xbf16>, vector<8x32xbf16>, vector<4x32xf32> -> vector<4x32xf32>
      %141 = arith.addf %104, %140 : vector<4x32xf32>
      %142 = vector.extract_strided_slice %66 {offsets = [0, 16], sizes = [4, 8], strides = [1, 1]} : vector<4x96xf32> to vector<4x8xf32>
      %143 = arith.truncf %142 : vector<4x8xf32> to vector<4x8xbf16>
      %144 = vector.extract_strided_slice %66 {offsets = [0, 48], sizes = [4, 8], strides = [1, 1]} : vector<4x96xf32> to vector<4x8xf32>
      %145 = arith.truncf %144 : vector<4x8xf32> to vector<4x8xbf16>
      %146 = vector.extract_strided_slice %66 {offsets = [0, 80], sizes = [4, 8], strides = [1, 1]} : vector<4x96xf32> to vector<4x8xf32>
      %147 = arith.truncf %146 : vector<4x8xf32> to vector<4x8xbf16>
      %cst_81 = arith.constant dense<0.000000e+00> : vector<4x4xf32>
      %148 = tpu.matmul %143, %145, %cst_81 {dimension_numbers = #tpu.dot_dimension_numbers<[1], [1], [0], [0], [0, 0, 1, 0], [], []>} : vector<4x8xbf16>, vector<4x8xbf16>, vector<4x4xf32> -> vector<4x4xf32>
      %149 = vector.broadcast %21 : vector<4x1xbf16> to vector<4x8xbf16>
      %150 = arith.mulf %149, %143 : vector<4x8xbf16>
      %cst_82 = arith.constant dense<0.000000e+00> : vector<4x4xf32>
      %151 = tpu.matmul %150, %12, %cst_82 {dimension_numbers = #tpu.dot_dimension_numbers<[1], [0], [0], [1], [0, 0, 1, 1], [], []>} : vector<4x8xbf16>, vector<8x4xbf16>, vector<4x4xf32> -> vector<4x4xf32>
      %152 = arith.addf %148, %151 : vector<4x4xf32>
      %153 = vector.broadcast %24 : vector<4x1xbf16> to vector<4x8xbf16>
      %154 = arith.mulf %153, %143 : vector<4x8xbf16>
      %cst_83 = arith.constant dense<0.000000e+00> : vector<4x4xf32>
      %155 = tpu.matmul %154, %14, %cst_83 {dimension_numbers = #tpu.dot_dimension_numbers<[1], [0], [0], [1], [0, 0, 1, 1], [], []>} : vector<4x8xbf16>, vector<8x4xbf16>, vector<4x4xf32> -> vector<4x4xf32>
      %156 = arith.addf %152, %155 : vector<4x4xf32>
      %157 = vector.broadcast %27 : vector<4x1xbf16> to vector<4x8xbf16>
      %158 = arith.mulf %157, %143 : vector<4x8xbf16>
      %cst_84 = arith.constant dense<0.000000e+00> : vector<4x4xf32>
      %159 = tpu.matmul %158, %16, %cst_84 {dimension_numbers = #tpu.dot_dimension_numbers<[1], [0], [0], [1], [0, 0, 1, 1], [], []>} : vector<4x8xbf16>, vector<8x4xbf16>, vector<4x4xf32> -> vector<4x4xf32>
      %160 = arith.addf %156, %159 : vector<4x4xf32>
      %161 = vector.broadcast %30 : vector<4x1xbf16> to vector<4x8xbf16>
      %162 = arith.mulf %161, %143 : vector<4x8xbf16>
      %cst_85 = arith.constant dense<0.000000e+00> : vector<4x4xf32>
      %163 = tpu.matmul %162, %18, %cst_85 {dimension_numbers = #tpu.dot_dimension_numbers<[1], [0], [0], [1], [0, 0, 1, 1], [], []>} : vector<4x8xbf16>, vector<8x4xbf16>, vector<4x4xf32> -> vector<4x4xf32>
      %164 = arith.addf %160, %163 : vector<4x4xf32>
      %cst_86 = arith.constant dense<0xFF800000> : vector<4xf32>
      %165 = vector.multi_reduction <maximumf>, %164, %cst_86 [1] : vector<4x4xf32> to vector<4xf32>
      %166 = vector.shape_cast %165 : vector<4xf32> to vector<4x1xf32>
      %167 = vector.broadcast %166 : vector<4x1xf32> to vector<4x4xf32>
      %168 = arith.subf %164, %167 : vector<4x4xf32>
      %169 = math.exp %168 : vector<4x4xf32>
      %cst_87 = arith.constant dense<0.000000e+00> : vector<4xf32>
      %170 = vector.multi_reduction <add>, %169, %cst_87 [1] : vector<4x4xf32> to vector<4xf32>
      %171 = vector.shape_cast %170 : vector<4xf32> to vector<4x1xf32>
      %172 = vector.broadcast %171 : vector<4x1xf32> to vector<4x4xf32>
      %173 = arith.divf %169, %172 : vector<4x4xf32>
      %174 = arith.truncf %173 : vector<4x4xf32> to vector<4x4xbf16>
      %cst_88 = arith.constant dense<0.000000e+00> : vector<4x8xf32>
      %175 = tpu.matmul %174, %147, %cst_88 {dimension_numbers = #tpu.dot_dimension_numbers<[1], [0], [0], [1], [0, 0, 1, 1], [], []>} : vector<4x4xbf16>, vector<4x8xbf16>, vector<4x8xf32> -> vector<4x8xf32>
      %176 = arith.truncf %175 : vector<4x8xf32> to vector<4x8xbf16>
      %cst_89 = arith.constant dense<0.000000e+00> : vector<4x32xf32>
      %177 = tpu.matmul %176, %36, %cst_89 {dimension_numbers = #tpu.dot_dimension_numbers<[1], [0], [0], [1], [0, 0, 1, 1], [], []>} : vector<4x8xbf16>, vector<8x32xbf16>, vector<4x32xf32> -> vector<4x32xf32>
      %178 = arith.addf %141, %177 : vector<4x32xf32>
      %179 = vector.extract_strided_slice %66 {offsets = [0, 24], sizes = [4, 8], strides = [1, 1]} : vector<4x96xf32> to vector<4x8xf32>
      %180 = arith.truncf %179 : vector<4x8xf32> to vector<4x8xbf16>
      %181 = vector.extract_strided_slice %66 {offsets = [0, 56], sizes = [4, 8], strides = [1, 1]} : vector<4x96xf32> to vector<4x8xf32>
      %182 = arith.truncf %181 : vector<4x8xf32> to vector<4x8xbf16>
      %183 = vector.extract_strided_slice %66 {offsets = [0, 88], sizes = [4, 8], strides = [1, 1]} : vector<4x96xf32> to vector<4x8xf32>
      %184 = arith.truncf %183 : vector<4x8xf32> to vector<4x8xbf16>
      %cst_90 = arith.constant dense<0.000000e+00> : vector<4x4xf32>
      %185 = tpu.matmul %180, %182, %cst_90 {dimension_numbers = #tpu.dot_dimension_numbers<[1], [1], [0], [0], [0, 0, 1, 0], [], []>} : vector<4x8xbf16>, vector<4x8xbf16>, vector<4x4xf32> -> vector<4x4xf32>
      %186 = vector.broadcast %21 : vector<4x1xbf16> to vector<4x8xbf16>
      %187 = arith.mulf %186, %180 : vector<4x8xbf16>
      %cst_91 = arith.constant dense<0.000000e+00> : vector<4x4xf32>
      %188 = tpu.matmul %187, %12, %cst_91 {dimension_numbers = #tpu.dot_dimension_numbers<[1], [0], [0], [1], [0, 0, 1, 1], [], []>} : vector<4x8xbf16>, vector<8x4xbf16>, vector<4x4xf32> -> vector<4x4xf32>
      %189 = arith.addf %185, %188 : vector<4x4xf32>
      %190 = vector.broadcast %24 : vector<4x1xbf16> to vector<4x8xbf16>
      %191 = arith.mulf %190, %180 : vector<4x8xbf16>
      %cst_92 = arith.constant dense<0.000000e+00> : vector<4x4xf32>
      %192 = tpu.matmul %191, %14, %cst_92 {dimension_numbers = #tpu.dot_dimension_numbers<[1], [0], [0], [1], [0, 0, 1, 1], [], []>} : vector<4x8xbf16>, vector<8x4xbf16>, vector<4x4xf32> -> vector<4x4xf32>
      %193 = arith.addf %189, %192 : vector<4x4xf32>
      %194 = vector.broadcast %27 : vector<4x1xbf16> to vector<4x8xbf16>
      %195 = arith.mulf %194, %180 : vector<4x8xbf16>
      %cst_93 = arith.constant dense<0.000000e+00> : vector<4x4xf32>
      %196 = tpu.matmul %195, %16, %cst_93 {dimension_numbers = #tpu.dot_dimension_numbers<[1], [0], [0], [1], [0, 0, 1, 1], [], []>} : vector<4x8xbf16>, vector<8x4xbf16>, vector<4x4xf32> -> vector<4x4xf32>
      %197 = arith.addf %193, %196 : vector<4x4xf32>
      %198 = vector.broadcast %30 : vector<4x1xbf16> to vector<4x8xbf16>
      %199 = arith.mulf %198, %180 : vector<4x8xbf16>
      %cst_94 = arith.constant dense<0.000000e+00> : vector<4x4xf32>
      %200 = tpu.matmul %199, %18, %cst_94 {dimension_numbers = #tpu.dot_dimension_numbers<[1], [0], [0], [1], [0, 0, 1, 1], [], []>} : vector<4x8xbf16>, vector<8x4xbf16>, vector<4x4xf32> -> vector<4x4xf32>
      %201 = arith.addf %197, %200 : vector<4x4xf32>
      %cst_95 = arith.constant dense<0xFF800000> : vector<4xf32>
      %202 = vector.multi_reduction <maximumf>, %201, %cst_95 [1] : vector<4x4xf32> to vector<4xf32>
      %203 = vector.shape_cast %202 : vector<4xf32> to vector<4x1xf32>
      %204 = vector.broadcast %203 : vector<4x1xf32> to vector<4x4xf32>
      %205 = arith.subf %201, %204 : vector<4x4xf32>
      %206 = math.exp %205 : vector<4x4xf32>
      %cst_96 = arith.constant dense<0.000000e+00> : vector<4xf32>
      %207 = vector.multi_reduction <add>, %206, %cst_96 [1] : vector<4x4xf32> to vector<4xf32>
      %208 = vector.shape_cast %207 : vector<4xf32> to vector<4x1xf32>
      %209 = vector.broadcast %208 : vector<4x1xf32> to vector<4x4xf32>
      %210 = arith.divf %206, %209 : vector<4x4xf32>
      %211 = arith.truncf %210 : vector<4x4xf32> to vector<4x4xbf16>
      %cst_97 = arith.constant dense<0.000000e+00> : vector<4x8xf32>
      %212 = tpu.matmul %211, %184, %cst_97 {dimension_numbers = #tpu.dot_dimension_numbers<[1], [0], [0], [1], [0, 0, 1, 1], [], []>} : vector<4x4xbf16>, vector<4x8xbf16>, vector<4x8xf32> -> vector<4x8xf32>
      %213 = arith.truncf %212 : vector<4x8xf32> to vector<4x8xbf16>
      %cst_98 = arith.constant dense<0.000000e+00> : vector<4x32xf32>
      %214 = tpu.matmul %213, %38, %cst_98 {dimension_numbers = #tpu.dot_dimension_numbers<[1], [0], [0], [1], [0, 0, 1, 1], [], []>} : vector<4x8xbf16>, vector<8x32xbf16>, vector<4x32xf32> -> vector<4x32xf32>
      %215 = arith.addf %178, %214 : vector<4x32xf32>
      %216 = vector.broadcast %4 : vector<1x32xf32> to vector<4x32xf32>
      %217 = arith.addf %215, %216 : vector<4x32xf32>
      %218 = arith.addf %217, %42 : vector<4x32xf32>
      %cst_99 = arith.constant dense<0.000000e+00> : vector<4xf32>
      %219 = vector.multi_reduction <add>, %218, %cst_99 [1] : vector<4x32xf32> to vector<4xf32>
      %220 = vector.shape_cast %219 : vector<4xf32> to vector<4x1xf32>
      %cst_100 = arith.constant 3.200000e+01 : f32
      %221 = vector.broadcast %cst_100 : f32 to vector<4x1xf32>
      %222 = arith.divf %220, %221 : vector<4x1xf32>
      %223 = vector.broadcast %222 : vector<4x1xf32> to vector<4x32xf32>
      %224 = arith.subf %218, %223 : vector<4x32xf32>
      %225 = arith.mulf %224, %224 : vector<4x32xf32>
      %cst_101 = arith.constant dense<0.000000e+00> : vector<4xf32>
      %226 = vector.multi_reduction <add>, %225, %cst_101 [1] : vector<4x32xf32> to vector<4xf32>
      %227 = vector.shape_cast %226 : vector<4xf32> to vector<4x1xf32>
      %cst_102 = arith.constant 3.200000e+01 : f32
      %228 = vector.broadcast %cst_102 : f32 to vector<4x1xf32>
      %229 = arith.divf %227, %228 : vector<4x1xf32>
      %cst_103 = arith.constant 9.99999997E-7 : f32
      %230 = vector.broadcast %cst_103 : f32 to vector<4x1xf32>
      %231 = arith.addf %229, %230 : vector<4x1xf32>
      %232 = math.rsqrt %231 : vector<4x1xf32>
      %233 = vector.broadcast %232 : vector<4x1xf32> to vector<4x32xf32>
      %234 = arith.mulf %224, %233 : vector<4x32xf32>
      %235 = vector.broadcast %5 : vector<1x32xf32> to vector<4x32xf32>
      %236 = arith.mulf %234, %235 : vector<4x32xf32>
      %237 = vector.broadcast %6 : vector<1x32xf32> to vector<4x32xf32>
      %238 = arith.addf %236, %237 : vector<4x32xf32>
      %239 = arith.truncf %238 : vector<4x32xf32> to vector<4x32xbf16>
      %cst_104 = arith.constant dense<0.000000e+00> : vector<4x128xf32>
      %240 = tpu.matmul %239, %7, %cst_104 {dimension_numbers = #tpu.dot_dimension_numbers<[1], [0], [0], [1], [0, 0, 1, 1], [], []>} : vector<4x32xbf16>, vector<32x128xbf16>, vector<4x128xf32> -> vector<4x128xf32>
      %241 = vector.broadcast %8 : vector<1x128xf32> to vector<4x128xf32>
      %242 = arith.addf %240, %241 : vector<4x128xf32>
      %243 = arith.mulf %242, %242 : vector<4x128xf32>
      %244 = arith.mulf %242, %243 : vector<4x128xf32>
      %cst_105 = arith.constant 4.471500e-02 : f32
      %245 = vector.broadcast %cst_105 : f32 to vector<4x128xf32>
      %246 = arith.mulf %245, %244 : vector<4x128xf32>
      %247 = arith.addf %242, %246 : vector<4x128xf32>
      %cst_106 = arith.constant 0.797884583 : f32
      %248 = vector.broadcast %cst_106 : f32 to vector<4x128xf32>
      %249 = arith.mulf %248, %247 : vector<4x128xf32>
      %250 = math.tanh %249 : vector<4x128xf32>
      %cst_107 = arith.constant 1.000000e+00 : f32
      %251 = vector.broadcast %cst_107 : f32 to vector<4x128xf32>
      %252 = arith.addf %251, %250 : vector<4x128xf32>
      %cst_108 = arith.constant 5.000000e-01 : f32
      %253 = vector.broadcast %cst_108 : f32 to vector<4x128xf32>
      %254 = arith.mulf %253, %252 : vector<4x128xf32>
      %255 = arith.mulf %242, %254 : vector<4x128xf32>
      %256 = arith.truncf %255 : vector<4x128xf32> to vector<4x128xbf16>
      %cst_109 = arith.constant dense<0.000000e+00> : vector<4x32xf32>
      %257 = tpu.matmul %256, %9, %cst_109 {dimension_numbers = #tpu.dot_dimension_numbers<[1], [0], [0], [1], [0, 0, 1, 1], [], []>} : vector<4x128xbf16>, vector<128x32xbf16>, vector<4x32xf32> -> vector<4x32xf32>
      %258 = vector.broadcast %10 : vector<1x32xf32> to vector<4x32xf32>
      %259 = arith.addf %257, %258 : vector<4x32xf32>
      %260 = arith.addf %259, %218 : vector<4x32xf32>
      %261 = arith.index_cast %arg19 : i32 to index
      %c0_110 = arith.constant 0 : index
      %c0_111 = arith.constant 0 : index
      %262 = vector.load %arg18[%261, %c0_110, %c0_111] : memref<4x4x32xf32, #tpu.memory_space<vmem>>, vector<1x4x32xf32>
      %263 = vector.shape_cast %262 : vector<1x4x32xf32> to vector<4x32xf32>
      %264 = vector.shape_cast %260 : vector<4x32xf32> to vector<1x4x32xf32>
      tpu.vector_store %arg18[%261, %c0_110, %c0_111], %264 {strides = array<i32>} : memref<4x4x32xf32, #tpu.memory_space<vmem>>, vector<1x4x32xf32>,
    }
    %c4_i32_54 = arith.constant 4 : i32
    return
  }
  func.func @transform_0(%arg0: i32) -> (i32, i32, i32) {
    %c0_i32 = arith.constant 0 : i32
    %c0_i32_0 = arith.constant 0 : i32
    %c0_i32_1 = arith.constant 0 : i32
    return %arg0, %c0_i32, %c0_i32_0 : i32, i32, i32
  }
  func.func @transform_1(%arg0: i32) -> (i32, i32) {
    %c0_i32 = arith.constant 0 : i32
    %c0_i32_0 = arith.constant 0 : i32
    %c0_i32_1 = arith.constant 0 : i32
    return %c0_i32, %c0_i32_0 : i32, i32
  }
  func.func @transform_2(%arg0: i32) -> (i32, i32) {
    %c0_i32 = arith.constant 0 : i32
    %c0_i32_0 = arith.constant 0 : i32
    %c0_i32_1 = arith.constant 0 : i32
    return %c0_i32, %c0_i32_0 : i32, i32
  }
  func.func @transform_3(%arg0: i32) -> (i32, i32) {
    %c0_i32 = arith.constant 0 : i32
    %c0_i32_0 = arith.constant 0 : i32
    %c0_i32_1 = arith.constant 0 : i32
    return %c0_i32, %c0_i32_0 : i32, i32
  }
  func.func @transform_4(%arg0: i32) -> (i32, i32) {
    %c0_i32 = arith.constant 0 : i32
    %c0_i32_0 = arith.constant 0 : i32
    %c0_i32_1 = arith.constant 0 : i32
    return %c0_i32, %c0_i32_0 : i32, i32
  }
  func.func @transform_5(%arg0: i32) -> (i32, i32, i32) {
    %c0_i32 = arith.constant 0 : i32
    %c0_i32_0 = arith.constant 0 : i32
    %c0_i32_1 = arith.constant 0 : i32
    %c0_i32_2 = arith.constant 0 : i32
    return %c0_i32, %c0_i32_0, %c0_i32_1 : i32, i32, i32
  }
  func.func @transform_6(%arg0: i32) -> (i32, i32, i32) {
    %c0_i32 = arith.constant 0 : i32
    %c0_i32_0 = arith.constant 0 : i32
    %c0_i32_1 = arith.constant 0 : i32
    %c0_i32_2 = arith.constant 0 : i32
    return %c0_i32, %c0_i32_0, %c0_i32_1 : i32, i32, i32
  }
  func.func @transform_7(%arg0: i32) -> (i32, i32, i32) {
    %c0_i32 = arith.constant 0 : i32
    %c0_i32_0 = arith.constant 0 : i32
    %c0_i32_1 = arith.constant 0 : i32
    %c0_i32_2 = arith.constant 0 : i32
    return %c0_i32, %c0_i32_0, %c0_i32_1 : i32, i32, i32
  }
  func.func @transform_8(%arg0: i32) -> (i32, i32, i32) {
    %c0_i32 = arith.constant 0 : i32
    %c0_i32_0 = arith.constant 0 : i32
    %c0_i32_1 = arith.constant 0 : i32
    %c0_i32_2 = arith.constant 0 : i32
    return %c0_i32, %c0_i32_0, %c0_i32_1 : i32, i32, i32
  }
  func.func @transform_9(%arg0: i32) -> (i32, i32, i32) {
    %c0_i32 = arith.constant 0 : i32
    %c0_i32_0 = arith.constant 0 : i32
    %c0_i32_1 = arith.constant 0 : i32
    %c0_i32_2 = arith.constant 0 : i32
    return %c0_i32, %c0_i32_0, %c0_i32_1 : i32, i32, i32
  }
  func.func @transform_10(%arg0: i32) -> (i32, i32) {
    %c0_i32 = arith.constant 0 : i32
    %c0_i32_0 = arith.constant 0 : i32
    %c0_i32_1 = arith.constant 0 : i32
    return %c0_i32, %c0_i32_0 : i32, i32
  }
  func.func @transform_11(%arg0: i32) -> (i32, i32) {
    %c0_i32 = arith.constant 0 : i32
    %c0_i32_0 = arith.constant 0 : i32
    %c0_i32_1 = arith.constant 0 : i32
    return %c0_i32, %c0_i32_0 : i32, i32
  }
  func.func @transform_12(%arg0: i32) -> (i32, i32) {
    %c0_i32 = arith.constant 0 : i32
    %c0_i32_0 = arith.constant 0 : i32
    %c0_i32_1 = arith.constant 0 : i32
    return %c0_i32, %c0_i32_0 : i32, i32
  }
  func.func @transform_13(%arg0: i32) -> (i32, i32) {
    %c0_i32 = arith.constant 0 : i32
    %c0_i32_0 = arith.constant 0 : i32
    %c0_i32_1 = arith.constant 0 : i32
    return %c0_i32, %c0_i32_0 : i32, i32
  }
  func.func @transform_14(%arg0: i32) -> (i32, i32) {
    %c0_i32 = arith.constant 0 : i32
    %c0_i32_0 = arith.constant 0 : i32
    %c0_i32_1 = arith.constant 0 : i32
    return %c0_i32, %c0_i32_0 : i32, i32
  }
  func.func @transform_15(%arg0: i32) -> (i32, i32) {
    %c0_i32 = arith.constant 0 : i32
    %c0_i32_0 = arith.constant 0 : i32
    %c0_i32_1 = arith.constant 0 : i32
    return %c0_i32, %c0_i32_0 : i32, i32
  }
  func.func @transform_16(%arg0: i32) -> (i32, i32) {
    %c0_i32 = arith.constant 0 : i32
    %c0_i32_0 = arith.constant 0 : i32
    %c0_i32_1 = arith.constant 0 : i32
    return %c0_i32, %c0_i32_0 : i32, i32
  }
  func.func @transform_17(%arg0: i32) -> (i32, i32, i32) {
    %c0_i32 = arith.constant 0 : i32
    %c0_i32_0 = arith.constant 0 : i32
    %c0_i32_1 = arith.constant 0 : i32
    return %arg0, %c0_i32, %c0_i32_0 : i32, i32, i32
  }
}

module attributes {stable_mosaic.version = 11 : i64} {
  func.func @_block_kernel(%arg0: i32, %arg1: memref<2x16x32xf32, #tpu.memory_space<vmem>>, %arg2: memref<1x32xf32, #tpu.memory_space<vmem>>, %arg3: memref<1x32xf32, #tpu.memory_space<vmem>>, %arg4: memref<32x96xbf16, #tpu.memory_space<vmem>>, %arg5: memref<1x96xf32, #tpu.memory_space<vmem>>, %arg6: memref<4x8x16xbf16, #tpu.memory_space<vmem>>, %arg7: memref<4x8x16xbf16, #tpu.memory_space<vmem>>, %arg8: memref<4x16x1xf32, #tpu.memory_space<vmem>>, %arg9: memref<4x16x1xf32, #tpu.memory_space<vmem>>, %arg10: memref<4x8x32xbf16, #tpu.memory_space<vmem>>, %arg11: memref<1x32xf32, #tpu.memory_space<vmem>>, %arg12: memref<1x32xf32, #tpu.memory_space<vmem>>, %arg13: memref<1x32xf32, #tpu.memory_space<vmem>>, %arg14: memref<32x128xbf16, #tpu.memory_space<vmem>>, %arg15: memref<1x128xf32, #tpu.memory_space<vmem>>, %arg16: memref<128x32xbf16, #tpu.memory_space<vmem>>, %arg17: memref<1x32xf32, #tpu.memory_space<vmem>>, %arg18: memref<2x16x32xf32, #tpu.memory_space<vmem>>) attributes {dimension_semantics = [#tpu.dimension_semantics<parallel>], iteration_bounds = array<i64: 1>, scalar_prefetch = 0 : i64, scratch_operands = 0 : i64, tpu.core_type = #tpu.core_type<tc>, window_params = [{transform_indices = @transform_0, window_bounds = array<i64: 2, 16, 32>}, {pipeline_mode = #tpu.pipeline_mode<synchronous>, transform_indices = @transform_1, window_bounds = array<i64: 1, 32>}, {pipeline_mode = #tpu.pipeline_mode<synchronous>, transform_indices = @transform_2, window_bounds = array<i64: 1, 32>}, {pipeline_mode = #tpu.pipeline_mode<synchronous>, transform_indices = @transform_3, window_bounds = array<i64: 32, 96>}, {pipeline_mode = #tpu.pipeline_mode<synchronous>, transform_indices = @transform_4, window_bounds = array<i64: 1, 96>}, {pipeline_mode = #tpu.pipeline_mode<synchronous>, transform_indices = @transform_5, window_bounds = array<i64: 4, 8, 16>}, {pipeline_mode = #tpu.pipeline_mode<synchronous>, transform_indices = @transform_6, window_bounds = array<i64: 4, 8, 16>}, {pipeline_mode = #tpu.pipeline_mode<synchronous>, transform_indices = @transform_7, window_bounds = array<i64: 4, 16, 1>}, {pipeline_mode = #tpu.pipeline_mode<synchronous>, transform_indices = @transform_8, window_bounds = array<i64: 4, 16, 1>}, {pipeline_mode = #tpu.pipeline_mode<synchronous>, transform_indices = @transform_9, window_bounds = array<i64: 4, 8, 32>}, {pipeline_mode = #tpu.pipeline_mode<synchronous>, transform_indices = @transform_10, window_bounds = array<i64: 1, 32>}, {pipeline_mode = #tpu.pipeline_mode<synchronous>, transform_indices = @transform_11, window_bounds = array<i64: 1, 32>}, {pipeline_mode = #tpu.pipeline_mode<synchronous>, transform_indices = @transform_12, window_bounds = array<i64: 1, 32>}, {pipeline_mode = #tpu.pipeline_mode<synchronous>, transform_indices = @transform_13, window_bounds = array<i64: 32, 128>}, {pipeline_mode = #tpu.pipeline_mode<synchronous>, transform_indices = @transform_14, window_bounds = array<i64: 1, 128>}, {pipeline_mode = #tpu.pipeline_mode<synchronous>, transform_indices = @transform_15, window_bounds = array<i64: 128, 32>}, {pipeline_mode = #tpu.pipeline_mode<synchronous>, transform_indices = @transform_16, window_bounds = array<i64: 1, 32>}, {transform_indices = @transform_17, window_bounds = array<i64: 2, 16, 32>}]} {
    %c0 = arith.constant 0 : index
    %c0_0 = arith.constant 0 : index
    %0 = vector.load %arg2[%c0, %c0_0] : memref<1x32xf32, #tpu.memory_space<vmem>>, vector<1x32xf32>
    %c0_1 = arith.constant 0 : index
    %c0_2 = arith.constant 0 : index
    %1 = vector.load %arg3[%c0_1, %c0_2] : memref<1x32xf32, #tpu.memory_space<vmem>>, vector<1x32xf32>
    %c0_3 = arith.constant 0 : index
    %c0_4 = arith.constant 0 : index
    %2 = vector.load %arg4[%c0_3, %c0_4] : memref<32x96xbf16, #tpu.memory_space<vmem>>, vector<32x96xbf16>
    %c0_5 = arith.constant 0 : index
    %c0_6 = arith.constant 0 : index
    %3 = vector.load %arg5[%c0_5, %c0_6] : memref<1x96xf32, #tpu.memory_space<vmem>>, vector<1x96xf32>
    %c0_7 = arith.constant 0 : index
    %c0_8 = arith.constant 0 : index
    %4 = vector.load %arg11[%c0_7, %c0_8] : memref<1x32xf32, #tpu.memory_space<vmem>>, vector<1x32xf32>
    %c0_9 = arith.constant 0 : index
    %c0_10 = arith.constant 0 : index
    %5 = vector.load %arg12[%c0_9, %c0_10] : memref<1x32xf32, #tpu.memory_space<vmem>>, vector<1x32xf32>
    %c0_11 = arith.constant 0 : index
    %c0_12 = arith.constant 0 : index
    %6 = vector.load %arg13[%c0_11, %c0_12] : memref<1x32xf32, #tpu.memory_space<vmem>>, vector<1x32xf32>
    %c0_13 = arith.constant 0 : index
    %c0_14 = arith.constant 0 : index
    %7 = vector.load %arg14[%c0_13, %c0_14] : memref<32x128xbf16, #tpu.memory_space<vmem>>, vector<32x128xbf16>
    %c0_15 = arith.constant 0 : index
    %c0_16 = arith.constant 0 : index
    %8 = vector.load %arg15[%c0_15, %c0_16] : memref<1x128xf32, #tpu.memory_space<vmem>>, vector<1x128xf32>
    %c0_17 = arith.constant 0 : index
    %c0_18 = arith.constant 0 : index
    %9 = vector.load %arg16[%c0_17, %c0_18] : memref<128x32xbf16, #tpu.memory_space<vmem>>, vector<128x32xbf16>
    %c0_19 = arith.constant 0 : index
    %c0_20 = arith.constant 0 : index
    %10 = vector.load %arg17[%c0_19, %c0_20] : memref<1x32xf32, #tpu.memory_space<vmem>>, vector<1x32xf32>
    %c0_21 = arith.constant 0 : index
    %c0_22 = arith.constant 0 : index
    %c0_23 = arith.constant 0 : index
    %11 = vector.load %arg6[%c0_21, %c0_22, %c0_23] : memref<4x8x16xbf16, #tpu.memory_space<vmem>>, vector<1x8x16xbf16>
    %12 = vector.shape_cast %11 : vector<1x8x16xbf16> to vector<8x16xbf16>
    %c1 = arith.constant 1 : index
    %c0_24 = arith.constant 0 : index
    %c0_25 = arith.constant 0 : index
    %13 = vector.load %arg6[%c1, %c0_24, %c0_25] : memref<4x8x16xbf16, #tpu.memory_space<vmem>>, vector<1x8x16xbf16>
    %14 = vector.shape_cast %13 : vector<1x8x16xbf16> to vector<8x16xbf16>
    %c2 = arith.constant 2 : index
    %c0_26 = arith.constant 0 : index
    %c0_27 = arith.constant 0 : index
    %15 = vector.load %arg6[%c2, %c0_26, %c0_27] : memref<4x8x16xbf16, #tpu.memory_space<vmem>>, vector<1x8x16xbf16>
    %16 = vector.shape_cast %15 : vector<1x8x16xbf16> to vector<8x16xbf16>
    %c3 = arith.constant 3 : index
    %c0_28 = arith.constant 0 : index
    %c0_29 = arith.constant 0 : index
    %17 = vector.load %arg6[%c3, %c0_28, %c0_29] : memref<4x8x16xbf16, #tpu.memory_space<vmem>>, vector<1x8x16xbf16>
    %18 = vector.shape_cast %17 : vector<1x8x16xbf16> to vector<8x16xbf16>
    %c0_30 = arith.constant 0 : index
    %c0_31 = arith.constant 0 : index
    %c0_32 = arith.constant 0 : index
    %19 = vector.load %arg7[%c0_30, %c0_31, %c0_32] : memref<4x8x16xbf16, #tpu.memory_space<vmem>>, vector<1x8x16xbf16>
    %20 = vector.shape_cast %19 : vector<1x8x16xbf16> to vector<8x16xbf16>
    %c1_33 = arith.constant 1 : index
    %c0_34 = arith.constant 0 : index
    %c0_35 = arith.constant 0 : index
    %21 = vector.load %arg7[%c1_33, %c0_34, %c0_35] : memref<4x8x16xbf16, #tpu.memory_space<vmem>>, vector<1x8x16xbf16>
    %22 = vector.shape_cast %21 : vector<1x8x16xbf16> to vector<8x16xbf16>
    %c2_36 = arith.constant 2 : index
    %c0_37 = arith.constant 0 : index
    %c0_38 = arith.constant 0 : index
    %23 = vector.load %arg7[%c2_36, %c0_37, %c0_38] : memref<4x8x16xbf16, #tpu.memory_space<vmem>>, vector<1x8x16xbf16>
    %24 = vector.shape_cast %23 : vector<1x8x16xbf16> to vector<8x16xbf16>
    %c3_39 = arith.constant 3 : index
    %c0_40 = arith.constant 0 : index
    %c0_41 = arith.constant 0 : index
    %25 = vector.load %arg7[%c3_39, %c0_40, %c0_41] : memref<4x8x16xbf16, #tpu.memory_space<vmem>>, vector<1x8x16xbf16>
    %26 = vector.shape_cast %25 : vector<1x8x16xbf16> to vector<8x16xbf16>
    %c0_42 = arith.constant 0 : index
    %c0_43 = arith.constant 0 : index
    %c0_44 = arith.constant 0 : index
    %27 = vector.load %arg8[%c0_42, %c0_43, %c0_44] : memref<4x16x1xf32, #tpu.memory_space<vmem>>, vector<1x16x1xf32>
    %28 = vector.shape_cast %27 : vector<1x16x1xf32> to vector<16x1xf32>
    %29 = arith.truncf %28 : vector<16x1xf32> to vector<16x1xbf16>
    %c1_45 = arith.constant 1 : index
    %c0_46 = arith.constant 0 : index
    %c0_47 = arith.constant 0 : index
    %30 = vector.load %arg8[%c1_45, %c0_46, %c0_47] : memref<4x16x1xf32, #tpu.memory_space<vmem>>, vector<1x16x1xf32>
    %31 = vector.shape_cast %30 : vector<1x16x1xf32> to vector<16x1xf32>
    %32 = arith.truncf %31 : vector<16x1xf32> to vector<16x1xbf16>
    %c2_48 = arith.constant 2 : index
    %c0_49 = arith.constant 0 : index
    %c0_50 = arith.constant 0 : index
    %33 = vector.load %arg8[%c2_48, %c0_49, %c0_50] : memref<4x16x1xf32, #tpu.memory_space<vmem>>, vector<1x16x1xf32>
    %34 = vector.shape_cast %33 : vector<1x16x1xf32> to vector<16x1xf32>
    %35 = arith.truncf %34 : vector<16x1xf32> to vector<16x1xbf16>
    %c3_51 = arith.constant 3 : index
    %c0_52 = arith.constant 0 : index
    %c0_53 = arith.constant 0 : index
    %36 = vector.load %arg8[%c3_51, %c0_52, %c0_53] : memref<4x16x1xf32, #tpu.memory_space<vmem>>, vector<1x16x1xf32>
    %37 = vector.shape_cast %36 : vector<1x16x1xf32> to vector<16x1xf32>
    %38 = arith.truncf %37 : vector<16x1xf32> to vector<16x1xbf16>
    %c0_54 = arith.constant 0 : index
    %c0_55 = arith.constant 0 : index
    %c0_56 = arith.constant 0 : index
    %39 = vector.load %arg9[%c0_54, %c0_55, %c0_56] : memref<4x16x1xf32, #tpu.memory_space<vmem>>, vector<1x16x1xf32>
    %40 = vector.shape_cast %39 : vector<1x16x1xf32> to vector<16x1xf32>
    %41 = arith.truncf %40 : vector<16x1xf32> to vector<16x1xbf16>
    %c1_57 = arith.constant 1 : index
    %c0_58 = arith.constant 0 : index
    %c0_59 = arith.constant 0 : index
    %42 = vector.load %arg9[%c1_57, %c0_58, %c0_59] : memref<4x16x1xf32, #tpu.memory_space<vmem>>, vector<1x16x1xf32>
    %43 = vector.shape_cast %42 : vector<1x16x1xf32> to vector<16x1xf32>
    %44 = arith.truncf %43 : vector<16x1xf32> to vector<16x1xbf16>
    %c2_60 = arith.constant 2 : index
    %c0_61 = arith.constant 0 : index
    %c0_62 = arith.constant 0 : index
    %45 = vector.load %arg9[%c2_60, %c0_61, %c0_62] : memref<4x16x1xf32, #tpu.memory_space<vmem>>, vector<1x16x1xf32>
    %46 = vector.shape_cast %45 : vector<1x16x1xf32> to vector<16x1xf32>
    %47 = arith.truncf %46 : vector<16x1xf32> to vector<16x1xbf16>
    %c3_63 = arith.constant 3 : index
    %c0_64 = arith.constant 0 : index
    %c0_65 = arith.constant 0 : index
    %48 = vector.load %arg9[%c3_63, %c0_64, %c0_65] : memref<4x16x1xf32, #tpu.memory_space<vmem>>, vector<1x16x1xf32>
    %49 = vector.shape_cast %48 : vector<1x16x1xf32> to vector<16x1xf32>
    %50 = arith.truncf %49 : vector<16x1xf32> to vector<16x1xbf16>
    %c0_66 = arith.constant 0 : index
    %c0_67 = arith.constant 0 : index
    %c0_68 = arith.constant 0 : index
    %51 = vector.load %arg10[%c0_66, %c0_67, %c0_68] : memref<4x8x32xbf16, #tpu.memory_space<vmem>>, vector<1x8x32xbf16>
    %52 = vector.shape_cast %51 : vector<1x8x32xbf16> to vector<8x32xbf16>
    %c1_69 = arith.constant 1 : index
    %c0_70 = arith.constant 0 : index
    %c0_71 = arith.constant 0 : index
    %53 = vector.load %arg10[%c1_69, %c0_70, %c0_71] : memref<4x8x32xbf16, #tpu.memory_space<vmem>>, vector<1x8x32xbf16>
    %54 = vector.shape_cast %53 : vector<1x8x32xbf16> to vector<8x32xbf16>
    %c2_72 = arith.constant 2 : index
    %c0_73 = arith.constant 0 : index
    %c0_74 = arith.constant 0 : index
    %55 = vector.load %arg10[%c2_72, %c0_73, %c0_74] : memref<4x8x32xbf16, #tpu.memory_space<vmem>>, vector<1x8x32xbf16>
    %56 = vector.shape_cast %55 : vector<1x8x32xbf16> to vector<8x32xbf16>
    %c3_75 = arith.constant 3 : index
    %c0_76 = arith.constant 0 : index
    %c0_77 = arith.constant 0 : index
    %57 = vector.load %arg10[%c3_75, %c0_76, %c0_77] : memref<4x8x32xbf16, #tpu.memory_space<vmem>>, vector<1x8x32xbf16>
    %58 = vector.shape_cast %57 : vector<1x8x32xbf16> to vector<8x32xbf16>
    %c0_i32 = arith.constant 0 : i32
    %c2_i32 = arith.constant 2 : i32
    %59 = arith.addi %c0_i32, %c2_i32 : i32
    %c1_i32 = arith.constant 1 : i32
    scf.for %arg19 = %c0_i32 to %59 step %c1_i32  : i32 {
      %60 = arith.index_cast %arg19 : i32 to index
      %c0_79 = arith.constant 0 : index
      %c0_80 = arith.constant 0 : index
      %61 = vector.load %arg1[%60, %c0_79, %c0_80] : memref<2x16x32xf32, #tpu.memory_space<vmem>>, vector<1x16x32xf32>
      %62 = vector.shape_cast %61 : vector<1x16x32xf32> to vector<16x32xf32>
      %cst = arith.constant dense<0.000000e+00> : vector<16xf32>
      %63 = vector.multi_reduction <add>, %62, %cst [1] : vector<16x32xf32> to vector<16xf32>
      %64 = vector.shape_cast %63 : vector<16xf32> to vector<16x1xf32>
      %cst_81 = arith.constant 3.200000e+01 : f32
      %65 = vector.broadcast %cst_81 : f32 to vector<16x1xf32>
      %66 = arith.divf %64, %65 : vector<16x1xf32>
      %67 = vector.broadcast %66 : vector<16x1xf32> to vector<16x32xf32>
      %68 = arith.subf %62, %67 : vector<16x32xf32>
      %69 = arith.mulf %68, %68 : vector<16x32xf32>
      %cst_82 = arith.constant dense<0.000000e+00> : vector<16xf32>
      %70 = vector.multi_reduction <add>, %69, %cst_82 [1] : vector<16x32xf32> to vector<16xf32>
      %71 = vector.shape_cast %70 : vector<16xf32> to vector<16x1xf32>
      %cst_83 = arith.constant 3.200000e+01 : f32
      %72 = vector.broadcast %cst_83 : f32 to vector<16x1xf32>
      %73 = arith.divf %71, %72 : vector<16x1xf32>
      %cst_84 = arith.constant 9.99999997E-7 : f32
      %74 = vector.broadcast %cst_84 : f32 to vector<16x1xf32>
      %75 = arith.addf %73, %74 : vector<16x1xf32>
      %76 = math.rsqrt %75 : vector<16x1xf32>
      %77 = vector.broadcast %76 : vector<16x1xf32> to vector<16x32xf32>
      %78 = arith.mulf %68, %77 : vector<16x32xf32>
      %79 = vector.broadcast %0 : vector<1x32xf32> to vector<16x32xf32>
      %80 = arith.mulf %78, %79 : vector<16x32xf32>
      %81 = vector.broadcast %1 : vector<1x32xf32> to vector<16x32xf32>
      %82 = arith.addf %80, %81 : vector<16x32xf32>
      %83 = arith.truncf %82 : vector<16x32xf32> to vector<16x32xbf16>
      %cst_85 = arith.constant dense<0.000000e+00> : vector<16x96xf32>
      %84 = tpu.matmul %83, %2, %cst_85 {dimension_numbers = #tpu.dot_dimension_numbers<[1], [0], [0], [1], [0, 0, 1, 1], [], []>} : vector<16x32xbf16>, vector<32x96xbf16>, vector<16x96xf32> -> vector<16x96xf32>
      %85 = vector.broadcast %3 : vector<1x96xf32> to vector<16x96xf32>
      %86 = arith.addf %84, %85 : vector<16x96xf32>
      %cst_86 = arith.constant 0.000000e+00 : f32
      %87 = vector.broadcast %cst_86 : f32 to vector<16x32xf32>
      %88 = vector.extract_strided_slice %86 {offsets = [0, 0], sizes = [16, 8], strides = [1, 1]} : vector<16x96xf32> to vector<16x8xf32>
      %89 = arith.truncf %88 : vector<16x8xf32> to vector<16x8xbf16>
      %90 = vector.extract_strided_slice %86 {offsets = [0, 32], sizes = [16, 8], strides = [1, 1]} : vector<16x96xf32> to vector<16x8xf32>
      %91 = arith.truncf %90 : vector<16x8xf32> to vector<16x8xbf16>
      %92 = vector.extract_strided_slice %86 {offsets = [0, 64], sizes = [16, 8], strides = [1, 1]} : vector<16x96xf32> to vector<16x8xf32>
      %93 = arith.truncf %92 : vector<16x8xf32> to vector<16x8xbf16>
      %cst_87 = arith.constant dense<0.000000e+00> : vector<16x16xf32>
      %94 = tpu.matmul %89, %91, %cst_87 {dimension_numbers = #tpu.dot_dimension_numbers<[1], [1], [0], [0], [0, 0, 1, 0], [], []>} : vector<16x8xbf16>, vector<16x8xbf16>, vector<16x16xf32> -> vector<16x16xf32>
      %95 = vector.broadcast %29 : vector<16x1xbf16> to vector<16x8xbf16>
      %96 = arith.mulf %95, %89 : vector<16x8xbf16>
      %cst_88 = arith.constant dense<0.000000e+00> : vector<16x16xf32>
      %97 = tpu.matmul %96, %12, %cst_88 {dimension_numbers = #tpu.dot_dimension_numbers<[1], [0], [0], [1], [0, 0, 1, 1], [], []>} : vector<16x8xbf16>, vector<8x16xbf16>, vector<16x16xf32> -> vector<16x16xf32>
      %98 = arith.addf %94, %97 : vector<16x16xf32>
      %99 = vector.broadcast %32 : vector<16x1xbf16> to vector<16x8xbf16>
      %100 = arith.mulf %99, %89 : vector<16x8xbf16>
      %cst_89 = arith.constant dense<0.000000e+00> : vector<16x16xf32>
      %101 = tpu.matmul %100, %14, %cst_89 {dimension_numbers = #tpu.dot_dimension_numbers<[1], [0], [0], [1], [0, 0, 1, 1], [], []>} : vector<16x8xbf16>, vector<8x16xbf16>, vector<16x16xf32> -> vector<16x16xf32>
      %102 = arith.addf %98, %101 : vector<16x16xf32>
      %103 = vector.broadcast %35 : vector<16x1xbf16> to vector<16x8xbf16>
      %104 = arith.mulf %103, %89 : vector<16x8xbf16>
      %cst_90 = arith.constant dense<0.000000e+00> : vector<16x16xf32>
      %105 = tpu.matmul %104, %16, %cst_90 {dimension_numbers = #tpu.dot_dimension_numbers<[1], [0], [0], [1], [0, 0, 1, 1], [], []>} : vector<16x8xbf16>, vector<8x16xbf16>, vector<16x16xf32> -> vector<16x16xf32>
      %106 = arith.addf %102, %105 : vector<16x16xf32>
      %107 = vector.broadcast %38 : vector<16x1xbf16> to vector<16x8xbf16>
      %108 = arith.mulf %107, %89 : vector<16x8xbf16>
      %cst_91 = arith.constant dense<0.000000e+00> : vector<16x16xf32>
      %109 = tpu.matmul %108, %18, %cst_91 {dimension_numbers = #tpu.dot_dimension_numbers<[1], [0], [0], [1], [0, 0, 1, 1], [], []>} : vector<16x8xbf16>, vector<8x16xbf16>, vector<16x16xf32> -> vector<16x16xf32>
      %110 = arith.addf %106, %109 : vector<16x16xf32>
      %111 = vector.broadcast %41 : vector<16x1xbf16> to vector<16x8xbf16>
      %112 = arith.mulf %111, %89 : vector<16x8xbf16>
      %cst_92 = arith.constant dense<0.000000e+00> : vector<16x16xf32>
      %113 = tpu.matmul %112, %20, %cst_92 {dimension_numbers = #tpu.dot_dimension_numbers<[1], [0], [0], [1], [0, 0, 1, 1], [], []>} : vector<16x8xbf16>, vector<8x16xbf16>, vector<16x16xf32> -> vector<16x16xf32>
      %114 = arith.addf %110, %113 : vector<16x16xf32>
      %115 = vector.broadcast %44 : vector<16x1xbf16> to vector<16x8xbf16>
      %116 = arith.mulf %115, %89 : vector<16x8xbf16>
      %cst_93 = arith.constant dense<0.000000e+00> : vector<16x16xf32>
      %117 = tpu.matmul %116, %22, %cst_93 {dimension_numbers = #tpu.dot_dimension_numbers<[1], [0], [0], [1], [0, 0, 1, 1], [], []>} : vector<16x8xbf16>, vector<8x16xbf16>, vector<16x16xf32> -> vector<16x16xf32>
      %118 = arith.addf %114, %117 : vector<16x16xf32>
      %119 = vector.broadcast %47 : vector<16x1xbf16> to vector<16x8xbf16>
      %120 = arith.mulf %119, %89 : vector<16x8xbf16>
      %cst_94 = arith.constant dense<0.000000e+00> : vector<16x16xf32>
      %121 = tpu.matmul %120, %24, %cst_94 {dimension_numbers = #tpu.dot_dimension_numbers<[1], [0], [0], [1], [0, 0, 1, 1], [], []>} : vector<16x8xbf16>, vector<8x16xbf16>, vector<16x16xf32> -> vector<16x16xf32>
      %122 = arith.addf %118, %121 : vector<16x16xf32>
      %123 = vector.broadcast %50 : vector<16x1xbf16> to vector<16x8xbf16>
      %124 = arith.mulf %123, %89 : vector<16x8xbf16>
      %cst_95 = arith.constant dense<0.000000e+00> : vector<16x16xf32>
      %125 = tpu.matmul %124, %26, %cst_95 {dimension_numbers = #tpu.dot_dimension_numbers<[1], [0], [0], [1], [0, 0, 1, 1], [], []>} : vector<16x8xbf16>, vector<8x16xbf16>, vector<16x16xf32> -> vector<16x16xf32>
      %126 = arith.addf %122, %125 : vector<16x16xf32>
      %cst_96 = arith.constant dense<0xFF800000> : vector<16xf32>
      %127 = vector.multi_reduction <maximumf>, %126, %cst_96 [1] : vector<16x16xf32> to vector<16xf32>
      %128 = vector.shape_cast %127 : vector<16xf32> to vector<16x1xf32>
      %129 = vector.broadcast %128 : vector<16x1xf32> to vector<16x16xf32>
      %130 = arith.subf %126, %129 : vector<16x16xf32>
      %131 = math.exp %130 : vector<16x16xf32>
      %cst_97 = arith.constant dense<0.000000e+00> : vector<16xf32>
      %132 = vector.multi_reduction <add>, %131, %cst_97 [1] : vector<16x16xf32> to vector<16xf32>
      %133 = vector.shape_cast %132 : vector<16xf32> to vector<16x1xf32>
      %134 = vector.broadcast %133 : vector<16x1xf32> to vector<16x16xf32>
      %135 = arith.divf %131, %134 : vector<16x16xf32>
      %136 = arith.truncf %135 : vector<16x16xf32> to vector<16x16xbf16>
      %cst_98 = arith.constant dense<0.000000e+00> : vector<16x8xf32>
      %137 = tpu.matmul %136, %93, %cst_98 {dimension_numbers = #tpu.dot_dimension_numbers<[1], [0], [0], [1], [0, 0, 1, 1], [], []>} : vector<16x16xbf16>, vector<16x8xbf16>, vector<16x8xf32> -> vector<16x8xf32>
      %138 = arith.truncf %137 : vector<16x8xf32> to vector<16x8xbf16>
      %cst_99 = arith.constant dense<0.000000e+00> : vector<16x32xf32>
      %139 = tpu.matmul %138, %52, %cst_99 {dimension_numbers = #tpu.dot_dimension_numbers<[1], [0], [0], [1], [0, 0, 1, 1], [], []>} : vector<16x8xbf16>, vector<8x32xbf16>, vector<16x32xf32> -> vector<16x32xf32>
      %140 = arith.addf %87, %139 : vector<16x32xf32>
      %141 = vector.extract_strided_slice %86 {offsets = [0, 8], sizes = [16, 8], strides = [1, 1]} : vector<16x96xf32> to vector<16x8xf32>
      %142 = arith.truncf %141 : vector<16x8xf32> to vector<16x8xbf16>
      %143 = vector.extract_strided_slice %86 {offsets = [0, 40], sizes = [16, 8], strides = [1, 1]} : vector<16x96xf32> to vector<16x8xf32>
      %144 = arith.truncf %143 : vector<16x8xf32> to vector<16x8xbf16>
      %145 = vector.extract_strided_slice %86 {offsets = [0, 72], sizes = [16, 8], strides = [1, 1]} : vector<16x96xf32> to vector<16x8xf32>
      %146 = arith.truncf %145 : vector<16x8xf32> to vector<16x8xbf16>
      %cst_100 = arith.constant dense<0.000000e+00> : vector<16x16xf32>
      %147 = tpu.matmul %142, %144, %cst_100 {dimension_numbers = #tpu.dot_dimension_numbers<[1], [1], [0], [0], [0, 0, 1, 0], [], []>} : vector<16x8xbf16>, vector<16x8xbf16>, vector<16x16xf32> -> vector<16x16xf32>
      %148 = vector.broadcast %29 : vector<16x1xbf16> to vector<16x8xbf16>
      %149 = arith.mulf %148, %142 : vector<16x8xbf16>
      %cst_101 = arith.constant dense<0.000000e+00> : vector<16x16xf32>
      %150 = tpu.matmul %149, %12, %cst_101 {dimension_numbers = #tpu.dot_dimension_numbers<[1], [0], [0], [1], [0, 0, 1, 1], [], []>} : vector<16x8xbf16>, vector<8x16xbf16>, vector<16x16xf32> -> vector<16x16xf32>
      %151 = arith.addf %147, %150 : vector<16x16xf32>
      %152 = vector.broadcast %32 : vector<16x1xbf16> to vector<16x8xbf16>
      %153 = arith.mulf %152, %142 : vector<16x8xbf16>
      %cst_102 = arith.constant dense<0.000000e+00> : vector<16x16xf32>
      %154 = tpu.matmul %153, %14, %cst_102 {dimension_numbers = #tpu.dot_dimension_numbers<[1], [0], [0], [1], [0, 0, 1, 1], [], []>} : vector<16x8xbf16>, vector<8x16xbf16>, vector<16x16xf32> -> vector<16x16xf32>
      %155 = arith.addf %151, %154 : vector<16x16xf32>
      %156 = vector.broadcast %35 : vector<16x1xbf16> to vector<16x8xbf16>
      %157 = arith.mulf %156, %142 : vector<16x8xbf16>
      %cst_103 = arith.constant dense<0.000000e+00> : vector<16x16xf32>
      %158 = tpu.matmul %157, %16, %cst_103 {dimension_numbers = #tpu.dot_dimension_numbers<[1], [0], [0], [1], [0, 0, 1, 1], [], []>} : vector<16x8xbf16>, vector<8x16xbf16>, vector<16x16xf32> -> vector<16x16xf32>
      %159 = arith.addf %155, %158 : vector<16x16xf32>
      %160 = vector.broadcast %38 : vector<16x1xbf16> to vector<16x8xbf16>
      %161 = arith.mulf %160, %142 : vector<16x8xbf16>
      %cst_104 = arith.constant dense<0.000000e+00> : vector<16x16xf32>
      %162 = tpu.matmul %161, %18, %cst_104 {dimension_numbers = #tpu.dot_dimension_numbers<[1], [0], [0], [1], [0, 0, 1, 1], [], []>} : vector<16x8xbf16>, vector<8x16xbf16>, vector<16x16xf32> -> vector<16x16xf32>
      %163 = arith.addf %159, %162 : vector<16x16xf32>
      %164 = vector.broadcast %41 : vector<16x1xbf16> to vector<16x8xbf16>
      %165 = arith.mulf %164, %142 : vector<16x8xbf16>
      %cst_105 = arith.constant dense<0.000000e+00> : vector<16x16xf32>
      %166 = tpu.matmul %165, %20, %cst_105 {dimension_numbers = #tpu.dot_dimension_numbers<[1], [0], [0], [1], [0, 0, 1, 1], [], []>} : vector<16x8xbf16>, vector<8x16xbf16>, vector<16x16xf32> -> vector<16x16xf32>
      %167 = arith.addf %163, %166 : vector<16x16xf32>
      %168 = vector.broadcast %44 : vector<16x1xbf16> to vector<16x8xbf16>
      %169 = arith.mulf %168, %142 : vector<16x8xbf16>
      %cst_106 = arith.constant dense<0.000000e+00> : vector<16x16xf32>
      %170 = tpu.matmul %169, %22, %cst_106 {dimension_numbers = #tpu.dot_dimension_numbers<[1], [0], [0], [1], [0, 0, 1, 1], [], []>} : vector<16x8xbf16>, vector<8x16xbf16>, vector<16x16xf32> -> vector<16x16xf32>
      %171 = arith.addf %167, %170 : vector<16x16xf32>
      %172 = vector.broadcast %47 : vector<16x1xbf16> to vector<16x8xbf16>
      %173 = arith.mulf %172, %142 : vector<16x8xbf16>
      %cst_107 = arith.constant dense<0.000000e+00> : vector<16x16xf32>
      %174 = tpu.matmul %173, %24, %cst_107 {dimension_numbers = #tpu.dot_dimension_numbers<[1], [0], [0], [1], [0, 0, 1, 1], [], []>} : vector<16x8xbf16>, vector<8x16xbf16>, vector<16x16xf32> -> vector<16x16xf32>
      %175 = arith.addf %171, %174 : vector<16x16xf32>
      %176 = vector.broadcast %50 : vector<16x1xbf16> to vector<16x8xbf16>
      %177 = arith.mulf %176, %142 : vector<16x8xbf16>
      %cst_108 = arith.constant dense<0.000000e+00> : vector<16x16xf32>
      %178 = tpu.matmul %177, %26, %cst_108 {dimension_numbers = #tpu.dot_dimension_numbers<[1], [0], [0], [1], [0, 0, 1, 1], [], []>} : vector<16x8xbf16>, vector<8x16xbf16>, vector<16x16xf32> -> vector<16x16xf32>
      %179 = arith.addf %175, %178 : vector<16x16xf32>
      %cst_109 = arith.constant dense<0xFF800000> : vector<16xf32>
      %180 = vector.multi_reduction <maximumf>, %179, %cst_109 [1] : vector<16x16xf32> to vector<16xf32>
      %181 = vector.shape_cast %180 : vector<16xf32> to vector<16x1xf32>
      %182 = vector.broadcast %181 : vector<16x1xf32> to vector<16x16xf32>
      %183 = arith.subf %179, %182 : vector<16x16xf32>
      %184 = math.exp %183 : vector<16x16xf32>
      %cst_110 = arith.constant dense<0.000000e+00> : vector<16xf32>
      %185 = vector.multi_reduction <add>, %184, %cst_110 [1] : vector<16x16xf32> to vector<16xf32>
      %186 = vector.shape_cast %185 : vector<16xf32> to vector<16x1xf32>
      %187 = vector.broadcast %186 : vector<16x1xf32> to vector<16x16xf32>
      %188 = arith.divf %184, %187 : vector<16x16xf32>
      %189 = arith.truncf %188 : vector<16x16xf32> to vector<16x16xbf16>
      %cst_111 = arith.constant dense<0.000000e+00> : vector<16x8xf32>
      %190 = tpu.matmul %189, %146, %cst_111 {dimension_numbers = #tpu.dot_dimension_numbers<[1], [0], [0], [1], [0, 0, 1, 1], [], []>} : vector<16x16xbf16>, vector<16x8xbf16>, vector<16x8xf32> -> vector<16x8xf32>
      %191 = arith.truncf %190 : vector<16x8xf32> to vector<16x8xbf16>
      %cst_112 = arith.constant dense<0.000000e+00> : vector<16x32xf32>
      %192 = tpu.matmul %191, %54, %cst_112 {dimension_numbers = #tpu.dot_dimension_numbers<[1], [0], [0], [1], [0, 0, 1, 1], [], []>} : vector<16x8xbf16>, vector<8x32xbf16>, vector<16x32xf32> -> vector<16x32xf32>
      %193 = arith.addf %140, %192 : vector<16x32xf32>
      %194 = vector.extract_strided_slice %86 {offsets = [0, 16], sizes = [16, 8], strides = [1, 1]} : vector<16x96xf32> to vector<16x8xf32>
      %195 = arith.truncf %194 : vector<16x8xf32> to vector<16x8xbf16>
      %196 = vector.extract_strided_slice %86 {offsets = [0, 48], sizes = [16, 8], strides = [1, 1]} : vector<16x96xf32> to vector<16x8xf32>
      %197 = arith.truncf %196 : vector<16x8xf32> to vector<16x8xbf16>
      %198 = vector.extract_strided_slice %86 {offsets = [0, 80], sizes = [16, 8], strides = [1, 1]} : vector<16x96xf32> to vector<16x8xf32>
      %199 = arith.truncf %198 : vector<16x8xf32> to vector<16x8xbf16>
      %cst_113 = arith.constant dense<0.000000e+00> : vector<16x16xf32>
      %200 = tpu.matmul %195, %197, %cst_113 {dimension_numbers = #tpu.dot_dimension_numbers<[1], [1], [0], [0], [0, 0, 1, 0], [], []>} : vector<16x8xbf16>, vector<16x8xbf16>, vector<16x16xf32> -> vector<16x16xf32>
      %201 = vector.broadcast %29 : vector<16x1xbf16> to vector<16x8xbf16>
      %202 = arith.mulf %201, %195 : vector<16x8xbf16>
      %cst_114 = arith.constant dense<0.000000e+00> : vector<16x16xf32>
      %203 = tpu.matmul %202, %12, %cst_114 {dimension_numbers = #tpu.dot_dimension_numbers<[1], [0], [0], [1], [0, 0, 1, 1], [], []>} : vector<16x8xbf16>, vector<8x16xbf16>, vector<16x16xf32> -> vector<16x16xf32>
      %204 = arith.addf %200, %203 : vector<16x16xf32>
      %205 = vector.broadcast %32 : vector<16x1xbf16> to vector<16x8xbf16>
      %206 = arith.mulf %205, %195 : vector<16x8xbf16>
      %cst_115 = arith.constant dense<0.000000e+00> : vector<16x16xf32>
      %207 = tpu.matmul %206, %14, %cst_115 {dimension_numbers = #tpu.dot_dimension_numbers<[1], [0], [0], [1], [0, 0, 1, 1], [], []>} : vector<16x8xbf16>, vector<8x16xbf16>, vector<16x16xf32> -> vector<16x16xf32>
      %208 = arith.addf %204, %207 : vector<16x16xf32>
      %209 = vector.broadcast %35 : vector<16x1xbf16> to vector<16x8xbf16>
      %210 = arith.mulf %209, %195 : vector<16x8xbf16>
      %cst_116 = arith.constant dense<0.000000e+00> : vector<16x16xf32>
      %211 = tpu.matmul %210, %16, %cst_116 {dimension_numbers = #tpu.dot_dimension_numbers<[1], [0], [0], [1], [0, 0, 1, 1], [], []>} : vector<16x8xbf16>, vector<8x16xbf16>, vector<16x16xf32> -> vector<16x16xf32>
      %212 = arith.addf %208, %211 : vector<16x16xf32>
      %213 = vector.broadcast %38 : vector<16x1xbf16> to vector<16x8xbf16>
      %214 = arith.mulf %213, %195 : vector<16x8xbf16>
      %cst_117 = arith.constant dense<0.000000e+00> : vector<16x16xf32>
      %215 = tpu.matmul %214, %18, %cst_117 {dimension_numbers = #tpu.dot_dimension_numbers<[1], [0], [0], [1], [0, 0, 1, 1], [], []>} : vector<16x8xbf16>, vector<8x16xbf16>, vector<16x16xf32> -> vector<16x16xf32>
      %216 = arith.addf %212, %215 : vector<16x16xf32>
      %217 = vector.broadcast %41 : vector<16x1xbf16> to vector<16x8xbf16>
      %218 = arith.mulf %217, %195 : vector<16x8xbf16>
      %cst_118 = arith.constant dense<0.000000e+00> : vector<16x16xf32>
      %219 = tpu.matmul %218, %20, %cst_118 {dimension_numbers = #tpu.dot_dimension_numbers<[1], [0], [0], [1], [0, 0, 1, 1], [], []>} : vector<16x8xbf16>, vector<8x16xbf16>, vector<16x16xf32> -> vector<16x16xf32>
      %220 = arith.addf %216, %219 : vector<16x16xf32>
      %221 = vector.broadcast %44 : vector<16x1xbf16> to vector<16x8xbf16>
      %222 = arith.mulf %221, %195 : vector<16x8xbf16>
      %cst_119 = arith.constant dense<0.000000e+00> : vector<16x16xf32>
      %223 = tpu.matmul %222, %22, %cst_119 {dimension_numbers = #tpu.dot_dimension_numbers<[1], [0], [0], [1], [0, 0, 1, 1], [], []>} : vector<16x8xbf16>, vector<8x16xbf16>, vector<16x16xf32> -> vector<16x16xf32>
      %224 = arith.addf %220, %223 : vector<16x16xf32>
      %225 = vector.broadcast %47 : vector<16x1xbf16> to vector<16x8xbf16>
      %226 = arith.mulf %225, %195 : vector<16x8xbf16>
      %cst_120 = arith.constant dense<0.000000e+00> : vector<16x16xf32>
      %227 = tpu.matmul %226, %24, %cst_120 {dimension_numbers = #tpu.dot_dimension_numbers<[1], [0], [0], [1], [0, 0, 1, 1], [], []>} : vector<16x8xbf16>, vector<8x16xbf16>, vector<16x16xf32> -> vector<16x16xf32>
      %228 = arith.addf %224, %227 : vector<16x16xf32>
      %229 = vector.broadcast %50 : vector<16x1xbf16> to vector<16x8xbf16>
      %230 = arith.mulf %229, %195 : vector<16x8xbf16>
      %cst_121 = arith.constant dense<0.000000e+00> : vector<16x16xf32>
      %231 = tpu.matmul %230, %26, %cst_121 {dimension_numbers = #tpu.dot_dimension_numbers<[1], [0], [0], [1], [0, 0, 1, 1], [], []>} : vector<16x8xbf16>, vector<8x16xbf16>, vector<16x16xf32> -> vector<16x16xf32>
      %232 = arith.addf %228, %231 : vector<16x16xf32>
      %cst_122 = arith.constant dense<0xFF800000> : vector<16xf32>
      %233 = vector.multi_reduction <maximumf>, %232, %cst_122 [1] : vector<16x16xf32> to vector<16xf32>
      %234 = vector.shape_cast %233 : vector<16xf32> to vector<16x1xf32>
      %235 = vector.broadcast %234 : vector<16x1xf32> to vector<16x16xf32>
      %236 = arith.subf %232, %235 : vector<16x16xf32>
      %237 = math.exp %236 : vector<16x16xf32>
      %cst_123 = arith.constant dense<0.000000e+00> : vector<16xf32>
      %238 = vector.multi_reduction <add>, %237, %cst_123 [1] : vector<16x16xf32> to vector<16xf32>
      %239 = vector.shape_cast %238 : vector<16xf32> to vector<16x1xf32>
      %240 = vector.broadcast %239 : vector<16x1xf32> to vector<16x16xf32>
      %241 = arith.divf %237, %240 : vector<16x16xf32>
      %242 = arith.truncf %241 : vector<16x16xf32> to vector<16x16xbf16>
      %cst_124 = arith.constant dense<0.000000e+00> : vector<16x8xf32>
      %243 = tpu.matmul %242, %199, %cst_124 {dimension_numbers = #tpu.dot_dimension_numbers<[1], [0], [0], [1], [0, 0, 1, 1], [], []>} : vector<16x16xbf16>, vector<16x8xbf16>, vector<16x8xf32> -> vector<16x8xf32>
      %244 = arith.truncf %243 : vector<16x8xf32> to vector<16x8xbf16>
      %cst_125 = arith.constant dense<0.000000e+00> : vector<16x32xf32>
      %245 = tpu.matmul %244, %56, %cst_125 {dimension_numbers = #tpu.dot_dimension_numbers<[1], [0], [0], [1], [0, 0, 1, 1], [], []>} : vector<16x8xbf16>, vector<8x32xbf16>, vector<16x32xf32> -> vector<16x32xf32>
      %246 = arith.addf %193, %245 : vector<16x32xf32>
      %247 = vector.extract_strided_slice %86 {offsets = [0, 24], sizes = [16, 8], strides = [1, 1]} : vector<16x96xf32> to vector<16x8xf32>
      %248 = arith.truncf %247 : vector<16x8xf32> to vector<16x8xbf16>
      %249 = vector.extract_strided_slice %86 {offsets = [0, 56], sizes = [16, 8], strides = [1, 1]} : vector<16x96xf32> to vector<16x8xf32>
      %250 = arith.truncf %249 : vector<16x8xf32> to vector<16x8xbf16>
      %251 = vector.extract_strided_slice %86 {offsets = [0, 88], sizes = [16, 8], strides = [1, 1]} : vector<16x96xf32> to vector<16x8xf32>
      %252 = arith.truncf %251 : vector<16x8xf32> to vector<16x8xbf16>
      %cst_126 = arith.constant dense<0.000000e+00> : vector<16x16xf32>
      %253 = tpu.matmul %248, %250, %cst_126 {dimension_numbers = #tpu.dot_dimension_numbers<[1], [1], [0], [0], [0, 0, 1, 0], [], []>} : vector<16x8xbf16>, vector<16x8xbf16>, vector<16x16xf32> -> vector<16x16xf32>
      %254 = vector.broadcast %29 : vector<16x1xbf16> to vector<16x8xbf16>
      %255 = arith.mulf %254, %248 : vector<16x8xbf16>
      %cst_127 = arith.constant dense<0.000000e+00> : vector<16x16xf32>
      %256 = tpu.matmul %255, %12, %cst_127 {dimension_numbers = #tpu.dot_dimension_numbers<[1], [0], [0], [1], [0, 0, 1, 1], [], []>} : vector<16x8xbf16>, vector<8x16xbf16>, vector<16x16xf32> -> vector<16x16xf32>
      %257 = arith.addf %253, %256 : vector<16x16xf32>
      %258 = vector.broadcast %32 : vector<16x1xbf16> to vector<16x8xbf16>
      %259 = arith.mulf %258, %248 : vector<16x8xbf16>
      %cst_128 = arith.constant dense<0.000000e+00> : vector<16x16xf32>
      %260 = tpu.matmul %259, %14, %cst_128 {dimension_numbers = #tpu.dot_dimension_numbers<[1], [0], [0], [1], [0, 0, 1, 1], [], []>} : vector<16x8xbf16>, vector<8x16xbf16>, vector<16x16xf32> -> vector<16x16xf32>
      %261 = arith.addf %257, %260 : vector<16x16xf32>
      %262 = vector.broadcast %35 : vector<16x1xbf16> to vector<16x8xbf16>
      %263 = arith.mulf %262, %248 : vector<16x8xbf16>
      %cst_129 = arith.constant dense<0.000000e+00> : vector<16x16xf32>
      %264 = tpu.matmul %263, %16, %cst_129 {dimension_numbers = #tpu.dot_dimension_numbers<[1], [0], [0], [1], [0, 0, 1, 1], [], []>} : vector<16x8xbf16>, vector<8x16xbf16>, vector<16x16xf32> -> vector<16x16xf32>
      %265 = arith.addf %261, %264 : vector<16x16xf32>
      %266 = vector.broadcast %38 : vector<16x1xbf16> to vector<16x8xbf16>
      %267 = arith.mulf %266, %248 : vector<16x8xbf16>
      %cst_130 = arith.constant dense<0.000000e+00> : vector<16x16xf32>
      %268 = tpu.matmul %267, %18, %cst_130 {dimension_numbers = #tpu.dot_dimension_numbers<[1], [0], [0], [1], [0, 0, 1, 1], [], []>} : vector<16x8xbf16>, vector<8x16xbf16>, vector<16x16xf32> -> vector<16x16xf32>
      %269 = arith.addf %265, %268 : vector<16x16xf32>
      %270 = vector.broadcast %41 : vector<16x1xbf16> to vector<16x8xbf16>
      %271 = arith.mulf %270, %248 : vector<16x8xbf16>
      %cst_131 = arith.constant dense<0.000000e+00> : vector<16x16xf32>
      %272 = tpu.matmul %271, %20, %cst_131 {dimension_numbers = #tpu.dot_dimension_numbers<[1], [0], [0], [1], [0, 0, 1, 1], [], []>} : vector<16x8xbf16>, vector<8x16xbf16>, vector<16x16xf32> -> vector<16x16xf32>
      %273 = arith.addf %269, %272 : vector<16x16xf32>
      %274 = vector.broadcast %44 : vector<16x1xbf16> to vector<16x8xbf16>
      %275 = arith.mulf %274, %248 : vector<16x8xbf16>
      %cst_132 = arith.constant dense<0.000000e+00> : vector<16x16xf32>
      %276 = tpu.matmul %275, %22, %cst_132 {dimension_numbers = #tpu.dot_dimension_numbers<[1], [0], [0], [1], [0, 0, 1, 1], [], []>} : vector<16x8xbf16>, vector<8x16xbf16>, vector<16x16xf32> -> vector<16x16xf32>
      %277 = arith.addf %273, %276 : vector<16x16xf32>
      %278 = vector.broadcast %47 : vector<16x1xbf16> to vector<16x8xbf16>
      %279 = arith.mulf %278, %248 : vector<16x8xbf16>
      %cst_133 = arith.constant dense<0.000000e+00> : vector<16x16xf32>
      %280 = tpu.matmul %279, %24, %cst_133 {dimension_numbers = #tpu.dot_dimension_numbers<[1], [0], [0], [1], [0, 0, 1, 1], [], []>} : vector<16x8xbf16>, vector<8x16xbf16>, vector<16x16xf32> -> vector<16x16xf32>
      %281 = arith.addf %277, %280 : vector<16x16xf32>
      %282 = vector.broadcast %50 : vector<16x1xbf16> to vector<16x8xbf16>
      %283 = arith.mulf %282, %248 : vector<16x8xbf16>
      %cst_134 = arith.constant dense<0.000000e+00> : vector<16x16xf32>
      %284 = tpu.matmul %283, %26, %cst_134 {dimension_numbers = #tpu.dot_dimension_numbers<[1], [0], [0], [1], [0, 0, 1, 1], [], []>} : vector<16x8xbf16>, vector<8x16xbf16>, vector<16x16xf32> -> vector<16x16xf32>
      %285 = arith.addf %281, %284 : vector<16x16xf32>
      %cst_135 = arith.constant dense<0xFF800000> : vector<16xf32>
      %286 = vector.multi_reduction <maximumf>, %285, %cst_135 [1] : vector<16x16xf32> to vector<16xf32>
      %287 = vector.shape_cast %286 : vector<16xf32> to vector<16x1xf32>
      %288 = vector.broadcast %287 : vector<16x1xf32> to vector<16x16xf32>
      %289 = arith.subf %285, %288 : vector<16x16xf32>
      %290 = math.exp %289 : vector<16x16xf32>
      %cst_136 = arith.constant dense<0.000000e+00> : vector<16xf32>
      %291 = vector.multi_reduction <add>, %290, %cst_136 [1] : vector<16x16xf32> to vector<16xf32>
      %292 = vector.shape_cast %291 : vector<16xf32> to vector<16x1xf32>
      %293 = vector.broadcast %292 : vector<16x1xf32> to vector<16x16xf32>
      %294 = arith.divf %290, %293 : vector<16x16xf32>
      %295 = arith.truncf %294 : vector<16x16xf32> to vector<16x16xbf16>
      %cst_137 = arith.constant dense<0.000000e+00> : vector<16x8xf32>
      %296 = tpu.matmul %295, %252, %cst_137 {dimension_numbers = #tpu.dot_dimension_numbers<[1], [0], [0], [1], [0, 0, 1, 1], [], []>} : vector<16x16xbf16>, vector<16x8xbf16>, vector<16x8xf32> -> vector<16x8xf32>
      %297 = arith.truncf %296 : vector<16x8xf32> to vector<16x8xbf16>
      %cst_138 = arith.constant dense<0.000000e+00> : vector<16x32xf32>
      %298 = tpu.matmul %297, %58, %cst_138 {dimension_numbers = #tpu.dot_dimension_numbers<[1], [0], [0], [1], [0, 0, 1, 1], [], []>} : vector<16x8xbf16>, vector<8x32xbf16>, vector<16x32xf32> -> vector<16x32xf32>
      %299 = arith.addf %246, %298 : vector<16x32xf32>
      %300 = vector.broadcast %4 : vector<1x32xf32> to vector<16x32xf32>
      %301 = arith.addf %299, %300 : vector<16x32xf32>
      %302 = arith.addf %301, %62 : vector<16x32xf32>
      %cst_139 = arith.constant dense<0.000000e+00> : vector<16xf32>
      %303 = vector.multi_reduction <add>, %302, %cst_139 [1] : vector<16x32xf32> to vector<16xf32>
      %304 = vector.shape_cast %303 : vector<16xf32> to vector<16x1xf32>
      %cst_140 = arith.constant 3.200000e+01 : f32
      %305 = vector.broadcast %cst_140 : f32 to vector<16x1xf32>
      %306 = arith.divf %304, %305 : vector<16x1xf32>
      %307 = vector.broadcast %306 : vector<16x1xf32> to vector<16x32xf32>
      %308 = arith.subf %302, %307 : vector<16x32xf32>
      %309 = arith.mulf %308, %308 : vector<16x32xf32>
      %cst_141 = arith.constant dense<0.000000e+00> : vector<16xf32>
      %310 = vector.multi_reduction <add>, %309, %cst_141 [1] : vector<16x32xf32> to vector<16xf32>
      %311 = vector.shape_cast %310 : vector<16xf32> to vector<16x1xf32>
      %cst_142 = arith.constant 3.200000e+01 : f32
      %312 = vector.broadcast %cst_142 : f32 to vector<16x1xf32>
      %313 = arith.divf %311, %312 : vector<16x1xf32>
      %cst_143 = arith.constant 9.99999997E-7 : f32
      %314 = vector.broadcast %cst_143 : f32 to vector<16x1xf32>
      %315 = arith.addf %313, %314 : vector<16x1xf32>
      %316 = math.rsqrt %315 : vector<16x1xf32>
      %317 = vector.broadcast %316 : vector<16x1xf32> to vector<16x32xf32>
      %318 = arith.mulf %308, %317 : vector<16x32xf32>
      %319 = vector.broadcast %5 : vector<1x32xf32> to vector<16x32xf32>
      %320 = arith.mulf %318, %319 : vector<16x32xf32>
      %321 = vector.broadcast %6 : vector<1x32xf32> to vector<16x32xf32>
      %322 = arith.addf %320, %321 : vector<16x32xf32>
      %323 = arith.truncf %322 : vector<16x32xf32> to vector<16x32xbf16>
      %cst_144 = arith.constant dense<0.000000e+00> : vector<16x128xf32>
      %324 = tpu.matmul %323, %7, %cst_144 {dimension_numbers = #tpu.dot_dimension_numbers<[1], [0], [0], [1], [0, 0, 1, 1], [], []>} : vector<16x32xbf16>, vector<32x128xbf16>, vector<16x128xf32> -> vector<16x128xf32>
      %325 = vector.broadcast %8 : vector<1x128xf32> to vector<16x128xf32>
      %326 = arith.addf %324, %325 : vector<16x128xf32>
      %327 = arith.mulf %326, %326 : vector<16x128xf32>
      %328 = arith.mulf %326, %327 : vector<16x128xf32>
      %cst_145 = arith.constant 4.471500e-02 : f32
      %329 = vector.broadcast %cst_145 : f32 to vector<16x128xf32>
      %330 = arith.mulf %329, %328 : vector<16x128xf32>
      %331 = arith.addf %326, %330 : vector<16x128xf32>
      %cst_146 = arith.constant 0.797884583 : f32
      %332 = vector.broadcast %cst_146 : f32 to vector<16x128xf32>
      %333 = arith.mulf %332, %331 : vector<16x128xf32>
      %334 = math.tanh %333 : vector<16x128xf32>
      %cst_147 = arith.constant 1.000000e+00 : f32
      %335 = vector.broadcast %cst_147 : f32 to vector<16x128xf32>
      %336 = arith.addf %335, %334 : vector<16x128xf32>
      %cst_148 = arith.constant 5.000000e-01 : f32
      %337 = vector.broadcast %cst_148 : f32 to vector<16x128xf32>
      %338 = arith.mulf %337, %336 : vector<16x128xf32>
      %339 = arith.mulf %326, %338 : vector<16x128xf32>
      %340 = arith.truncf %339 : vector<16x128xf32> to vector<16x128xbf16>
      %cst_149 = arith.constant dense<0.000000e+00> : vector<16x32xf32>
      %341 = tpu.matmul %340, %9, %cst_149 {dimension_numbers = #tpu.dot_dimension_numbers<[1], [0], [0], [1], [0, 0, 1, 1], [], []>} : vector<16x128xbf16>, vector<128x32xbf16>, vector<16x32xf32> -> vector<16x32xf32>
      %342 = vector.broadcast %10 : vector<1x32xf32> to vector<16x32xf32>
      %343 = arith.addf %341, %342 : vector<16x32xf32>
      %344 = arith.addf %343, %302 : vector<16x32xf32>
      %345 = arith.index_cast %arg19 : i32 to index
      %c0_150 = arith.constant 0 : index
      %c0_151 = arith.constant 0 : index
      %346 = vector.load %arg18[%345, %c0_150, %c0_151] : memref<2x16x32xf32, #tpu.memory_space<vmem>>, vector<1x16x32xf32>
      %347 = vector.shape_cast %346 : vector<1x16x32xf32> to vector<16x32xf32>
      %348 = vector.shape_cast %344 : vector<16x32xf32> to vector<1x16x32xf32>
      tpu.vector_store %arg18[%345, %c0_150, %c0_151], %348 {strides = array<i32>} : memref<2x16x32xf32, #tpu.memory_space<vmem>>, vector<1x16x32xf32>,
    }
    %c2_i32_78 = arith.constant 2 : i32
    return
  }
  func.func @transform_0(%arg0: i32) -> (i32, i32, i32) {
    %c0_i32 = arith.constant 0 : i32
    %c0_i32_0 = arith.constant 0 : i32
    %c0_i32_1 = arith.constant 0 : i32
    return %arg0, %c0_i32, %c0_i32_0 : i32, i32, i32
  }
  func.func @transform_1(%arg0: i32) -> (i32, i32) {
    %c0_i32 = arith.constant 0 : i32
    %c0_i32_0 = arith.constant 0 : i32
    %c0_i32_1 = arith.constant 0 : i32
    return %c0_i32, %c0_i32_0 : i32, i32
  }
  func.func @transform_2(%arg0: i32) -> (i32, i32) {
    %c0_i32 = arith.constant 0 : i32
    %c0_i32_0 = arith.constant 0 : i32
    %c0_i32_1 = arith.constant 0 : i32
    return %c0_i32, %c0_i32_0 : i32, i32
  }
  func.func @transform_3(%arg0: i32) -> (i32, i32) {
    %c0_i32 = arith.constant 0 : i32
    %c0_i32_0 = arith.constant 0 : i32
    %c0_i32_1 = arith.constant 0 : i32
    return %c0_i32, %c0_i32_0 : i32, i32
  }
  func.func @transform_4(%arg0: i32) -> (i32, i32) {
    %c0_i32 = arith.constant 0 : i32
    %c0_i32_0 = arith.constant 0 : i32
    %c0_i32_1 = arith.constant 0 : i32
    return %c0_i32, %c0_i32_0 : i32, i32
  }
  func.func @transform_5(%arg0: i32) -> (i32, i32, i32) {
    %c0_i32 = arith.constant 0 : i32
    %c0_i32_0 = arith.constant 0 : i32
    %c0_i32_1 = arith.constant 0 : i32
    %c0_i32_2 = arith.constant 0 : i32
    return %c0_i32, %c0_i32_0, %c0_i32_1 : i32, i32, i32
  }
  func.func @transform_6(%arg0: i32) -> (i32, i32, i32) {
    %c0_i32 = arith.constant 0 : i32
    %c0_i32_0 = arith.constant 0 : i32
    %c0_i32_1 = arith.constant 0 : i32
    %c0_i32_2 = arith.constant 0 : i32
    return %c0_i32, %c0_i32_0, %c0_i32_1 : i32, i32, i32
  }
  func.func @transform_7(%arg0: i32) -> (i32, i32, i32) {
    %c0_i32 = arith.constant 0 : i32
    %c0_i32_0 = arith.constant 0 : i32
    %c0_i32_1 = arith.constant 0 : i32
    %c0_i32_2 = arith.constant 0 : i32
    return %c0_i32, %c0_i32_0, %c0_i32_1 : i32, i32, i32
  }
  func.func @transform_8(%arg0: i32) -> (i32, i32, i32) {
    %c0_i32 = arith.constant 0 : i32
    %c0_i32_0 = arith.constant 0 : i32
    %c0_i32_1 = arith.constant 0 : i32
    %c0_i32_2 = arith.constant 0 : i32
    return %c0_i32, %c0_i32_0, %c0_i32_1 : i32, i32, i32
  }
  func.func @transform_9(%arg0: i32) -> (i32, i32, i32) {
    %c0_i32 = arith.constant 0 : i32
    %c0_i32_0 = arith.constant 0 : i32
    %c0_i32_1 = arith.constant 0 : i32
    %c0_i32_2 = arith.constant 0 : i32
    return %c0_i32, %c0_i32_0, %c0_i32_1 : i32, i32, i32
  }
  func.func @transform_10(%arg0: i32) -> (i32, i32) {
    %c0_i32 = arith.constant 0 : i32
    %c0_i32_0 = arith.constant 0 : i32
    %c0_i32_1 = arith.constant 0 : i32
    return %c0_i32, %c0_i32_0 : i32, i32
  }
  func.func @transform_11(%arg0: i32) -> (i32, i32) {
    %c0_i32 = arith.constant 0 : i32
    %c0_i32_0 = arith.constant 0 : i32
    %c0_i32_1 = arith.constant 0 : i32
    return %c0_i32, %c0_i32_0 : i32, i32
  }
  func.func @transform_12(%arg0: i32) -> (i32, i32) {
    %c0_i32 = arith.constant 0 : i32
    %c0_i32_0 = arith.constant 0 : i32
    %c0_i32_1 = arith.constant 0 : i32
    return %c0_i32, %c0_i32_0 : i32, i32
  }
  func.func @transform_13(%arg0: i32) -> (i32, i32) {
    %c0_i32 = arith.constant 0 : i32
    %c0_i32_0 = arith.constant 0 : i32
    %c0_i32_1 = arith.constant 0 : i32
    return %c0_i32, %c0_i32_0 : i32, i32
  }
  func.func @transform_14(%arg0: i32) -> (i32, i32) {
    %c0_i32 = arith.constant 0 : i32
    %c0_i32_0 = arith.constant 0 : i32
    %c0_i32_1 = arith.constant 0 : i32
    return %c0_i32, %c0_i32_0 : i32, i32
  }
  func.func @transform_15(%arg0: i32) -> (i32, i32) {
    %c0_i32 = arith.constant 0 : i32
    %c0_i32_0 = arith.constant 0 : i32
    %c0_i32_1 = arith.constant 0 : i32
    return %c0_i32, %c0_i32_0 : i32, i32
  }
  func.func @transform_16(%arg0: i32) -> (i32, i32) {
    %c0_i32 = arith.constant 0 : i32
    %c0_i32_0 = arith.constant 0 : i32
    %c0_i32_1 = arith.constant 0 : i32
    return %c0_i32, %c0_i32_0 : i32, i32
  }
  func.func @transform_17(%arg0: i32) -> (i32, i32, i32) {
    %c0_i32 = arith.constant 0 : i32
    %c0_i32_0 = arith.constant 0 : i32
    %c0_i32_1 = arith.constant 0 : i32
    return %arg0, %c0_i32, %c0_i32_0 : i32, i32, i32
  }
}

module attributes {stable_mosaic.version = 11 : i64} {
  func.func @_neck_kernel(%arg0: i32, %arg1: memref<1x50x32xbf16, #tpu.memory_space<vmem>>, %arg2: memref<32x16xbf16, #tpu.memory_space<vmem>>, %arg3: memref<1x16xf32, #tpu.memory_space<vmem>>, %arg4: memref<1x16xf32, #tpu.memory_space<vmem>>, %arg5: memref<144x16xbf16, #tpu.memory_space<vmem>>, %arg6: memref<1x16xf32, #tpu.memory_space<vmem>>, %arg7: memref<1x16xf32, #tpu.memory_space<vmem>>, %arg8: memref<50x1xf32, #tpu.memory_space<vmem>>, %arg9: memref<36x1xf32, #tpu.memory_space<vmem>>, %arg10: memref<1x1x16xf32, #tpu.memory_space<vmem>>) attributes {dimension_semantics = [#tpu.dimension_semantics<parallel>], iteration_bounds = array<i64: 2>, scalar_prefetch = 0 : i64, scratch_operands = 0 : i64, tpu.core_type = #tpu.core_type<tc>, window_params = [{transform_indices = @transform_0, window_bounds = array<i64: 1, 50, 32>}, {pipeline_mode = #tpu.pipeline_mode<synchronous>, transform_indices = @transform_1, window_bounds = array<i64: 32, 16>}, {pipeline_mode = #tpu.pipeline_mode<synchronous>, transform_indices = @transform_2, window_bounds = array<i64: 1, 16>}, {pipeline_mode = #tpu.pipeline_mode<synchronous>, transform_indices = @transform_3, window_bounds = array<i64: 1, 16>}, {pipeline_mode = #tpu.pipeline_mode<synchronous>, transform_indices = @transform_4, window_bounds = array<i64: 144, 16>}, {pipeline_mode = #tpu.pipeline_mode<synchronous>, transform_indices = @transform_5, window_bounds = array<i64: 1, 16>}, {pipeline_mode = #tpu.pipeline_mode<synchronous>, transform_indices = @transform_6, window_bounds = array<i64: 1, 16>}, {pipeline_mode = #tpu.pipeline_mode<synchronous>, transform_indices = @transform_7, window_bounds = array<i64: 50, 1>}, {pipeline_mode = #tpu.pipeline_mode<synchronous>, transform_indices = @transform_8, window_bounds = array<i64: 36, 1>}, {transform_indices = @transform_9, window_bounds = array<i64: 1, 1, 16>}]} {
    %c0 = arith.constant 0 : index
    %c0_0 = arith.constant 0 : index
    %c0_1 = arith.constant 0 : index
    %0 = vector.load %arg1[%c0, %c0_0, %c0_1] : memref<1x50x32xbf16, #tpu.memory_space<vmem>>, vector<1x50x32xbf16>
    %1 = vector.shape_cast %0 : vector<1x50x32xbf16> to vector<50x32xbf16>
    %c0_2 = arith.constant 0 : index
    %c0_3 = arith.constant 0 : index
    %2 = vector.load %arg2[%c0_2, %c0_3] : memref<32x16xbf16, #tpu.memory_space<vmem>>, vector<32x16xbf16>
    %cst = arith.constant dense<0.000000e+00> : vector<50x16xf32>
    %3 = tpu.matmul %1, %2, %cst {dimension_numbers = #tpu.dot_dimension_numbers<[1], [0], [0], [1], [0, 0, 1, 1], [], []>} : vector<50x32xbf16>, vector<32x16xbf16>, vector<50x16xf32> -> vector<50x16xf32>
    %cst_4 = arith.constant dense<0.000000e+00> : vector<50xf32>
    %4 = vector.multi_reduction <add>, %3, %cst_4 [1] : vector<50x16xf32> to vector<50xf32>
    %5 = vector.shape_cast %4 : vector<50xf32> to vector<50x1xf32>
    %cst_5 = arith.constant 1.600000e+01 : f32
    %6 = vector.broadcast %cst_5 : f32 to vector<50x1xf32>
    %7 = arith.divf %5, %6 : vector<50x1xf32>
    %8 = vector.broadcast %7 : vector<50x1xf32> to vector<50x16xf32>
    %9 = arith.subf %3, %8 : vector<50x16xf32>
    %10 = arith.mulf %9, %9 : vector<50x16xf32>
    %cst_6 = arith.constant dense<0.000000e+00> : vector<50xf32>
    %11 = vector.multi_reduction <add>, %10, %cst_6 [1] : vector<50x16xf32> to vector<50xf32>
    %12 = vector.shape_cast %11 : vector<50xf32> to vector<50x1xf32>
    %cst_7 = arith.constant 1.600000e+01 : f32
    %13 = vector.broadcast %cst_7 : f32 to vector<50x1xf32>
    %14 = arith.divf %12, %13 : vector<50x1xf32>
    %cst_8 = arith.constant 9.99999997E-7 : f32
    %15 = vector.broadcast %cst_8 : f32 to vector<50x1xf32>
    %16 = arith.addf %14, %15 : vector<50x1xf32>
    %17 = math.rsqrt %16 : vector<50x1xf32>
    %18 = vector.broadcast %17 : vector<50x1xf32> to vector<50x16xf32>
    %19 = arith.mulf %9, %18 : vector<50x16xf32>
    %c0_9 = arith.constant 0 : index
    %c0_10 = arith.constant 0 : index
    %20 = vector.load %arg3[%c0_9, %c0_10] : memref<1x16xf32, #tpu.memory_space<vmem>>, vector<1x16xf32>
    %21 = vector.broadcast %20 : vector<1x16xf32> to vector<50x16xf32>
    %22 = arith.mulf %19, %21 : vector<50x16xf32>
    %c0_11 = arith.constant 0 : index
    %c0_12 = arith.constant 0 : index
    %23 = vector.load %arg4[%c0_11, %c0_12] : memref<1x16xf32, #tpu.memory_space<vmem>>, vector<1x16xf32>
    %24 = vector.broadcast %23 : vector<1x16xf32> to vector<50x16xf32>
    %25 = arith.addf %22, %24 : vector<50x16xf32>
    %c0_13 = arith.constant 0 : index
    %c0_14 = arith.constant 0 : index
    %26 = vector.load %arg8[%c0_13, %c0_14] : memref<50x1xf32, #tpu.memory_space<vmem>>, vector<50x1xf32>
    %27 = vector.broadcast %26 : vector<50x1xf32> to vector<50x16xf32>
    %28 = arith.mulf %25, %27 : vector<50x16xf32>
    %cst_15 = arith.constant 0.000000e+00 : f32
    %29 = vector.broadcast %cst_15 : f32 to vector<36x16xf32>
    %30 = vector.extract_strided_slice %28 {offsets = [0, 0], sizes = [36, 16], strides = [1, 1]} : vector<50x16xf32> to vector<36x16xf32>
    %31 = arith.truncf %30 : vector<36x16xf32> to vector<36x16xbf16>
    %c0_16 = arith.constant 0 : index
    %c0_17 = arith.constant 0 : index
    %32 = vector.load %arg5[%c0_16, %c0_17] : memref<144x16xbf16, #tpu.memory_space<vmem>>, vector<16x16xbf16>
    %cst_18 = arith.constant dense<0.000000e+00> : vector<36x16xf32>
    %33 = tpu.matmul %31, %32, %cst_18 {dimension_numbers = #tpu.dot_dimension_numbers<[1], [0], [0], [1], [0, 0, 1, 1], [], []>} : vector<36x16xbf16>, vector<16x16xbf16>, vector<36x16xf32> -> vector<36x16xf32>
    %34 = arith.addf %29, %33 : vector<36x16xf32>
    %35 = vector.extract_strided_slice %28 {offsets = [1, 0], sizes = [36, 16], strides = [1, 1]} : vector<50x16xf32> to vector<36x16xf32>
    %36 = arith.truncf %35 : vector<36x16xf32> to vector<36x16xbf16>
    %c16 = arith.constant 16 : index
    %c0_19 = arith.constant 0 : index
    %37 = vector.load %arg5[%c16, %c0_19] : memref<144x16xbf16, #tpu.memory_space<vmem>>, vector<16x16xbf16>
    %cst_20 = arith.constant dense<0.000000e+00> : vector<36x16xf32>
    %38 = tpu.matmul %36, %37, %cst_20 {dimension_numbers = #tpu.dot_dimension_numbers<[1], [0], [0], [1], [0, 0, 1, 1], [], []>} : vector<36x16xbf16>, vector<16x16xbf16>, vector<36x16xf32> -> vector<36x16xf32>
    %39 = arith.addf %34, %38 : vector<36x16xf32>
    %40 = vector.extract_strided_slice %28 {offsets = [2, 0], sizes = [36, 16], strides = [1, 1]} : vector<50x16xf32> to vector<36x16xf32>
    %41 = arith.truncf %40 : vector<36x16xf32> to vector<36x16xbf16>
    %c32 = arith.constant 32 : index
    %c0_21 = arith.constant 0 : index
    %42 = vector.load %arg5[%c32, %c0_21] : memref<144x16xbf16, #tpu.memory_space<vmem>>, vector<16x16xbf16>
    %cst_22 = arith.constant dense<0.000000e+00> : vector<36x16xf32>
    %43 = tpu.matmul %41, %42, %cst_22 {dimension_numbers = #tpu.dot_dimension_numbers<[1], [0], [0], [1], [0, 0, 1, 1], [], []>} : vector<36x16xbf16>, vector<16x16xbf16>, vector<36x16xf32> -> vector<36x16xf32>
    %44 = arith.addf %39, %43 : vector<36x16xf32>
    %45 = vector.extract_strided_slice %28 {offsets = [6, 0], sizes = [36, 16], strides = [1, 1]} : vector<50x16xf32> to vector<36x16xf32>
    %46 = arith.truncf %45 : vector<36x16xf32> to vector<36x16xbf16>
    %c48 = arith.constant 48 : index
    %c0_23 = arith.constant 0 : index
    %47 = vector.load %arg5[%c48, %c0_23] : memref<144x16xbf16, #tpu.memory_space<vmem>>, vector<16x16xbf16>
    %cst_24 = arith.constant dense<0.000000e+00> : vector<36x16xf32>
    %48 = tpu.matmul %46, %47, %cst_24 {dimension_numbers = #tpu.dot_dimension_numbers<[1], [0], [0], [1], [0, 0, 1, 1], [], []>} : vector<36x16xbf16>, vector<16x16xbf16>, vector<36x16xf32> -> vector<36x16xf32>
    %49 = arith.addf %44, %48 : vector<36x16xf32>
    %50 = vector.extract_strided_slice %28 {offsets = [7, 0], sizes = [36, 16], strides = [1, 1]} : vector<50x16xf32> to vector<36x16xf32>
    %51 = arith.truncf %50 : vector<36x16xf32> to vector<36x16xbf16>
    %c64 = arith.constant 64 : index
    %c0_25 = arith.constant 0 : index
    %52 = vector.load %arg5[%c64, %c0_25] : memref<144x16xbf16, #tpu.memory_space<vmem>>, vector<16x16xbf16>
    %cst_26 = arith.constant dense<0.000000e+00> : vector<36x16xf32>
    %53 = tpu.matmul %51, %52, %cst_26 {dimension_numbers = #tpu.dot_dimension_numbers<[1], [0], [0], [1], [0, 0, 1, 1], [], []>} : vector<36x16xbf16>, vector<16x16xbf16>, vector<36x16xf32> -> vector<36x16xf32>
    %54 = arith.addf %49, %53 : vector<36x16xf32>
    %55 = vector.extract_strided_slice %28 {offsets = [8, 0], sizes = [36, 16], strides = [1, 1]} : vector<50x16xf32> to vector<36x16xf32>
    %56 = arith.truncf %55 : vector<36x16xf32> to vector<36x16xbf16>
    %c80 = arith.constant 80 : index
    %c0_27 = arith.constant 0 : index
    %57 = vector.load %arg5[%c80, %c0_27] : memref<144x16xbf16, #tpu.memory_space<vmem>>, vector<16x16xbf16>
    %cst_28 = arith.constant dense<0.000000e+00> : vector<36x16xf32>
    %58 = tpu.matmul %56, %57, %cst_28 {dimension_numbers = #tpu.dot_dimension_numbers<[1], [0], [0], [1], [0, 0, 1, 1], [], []>} : vector<36x16xbf16>, vector<16x16xbf16>, vector<36x16xf32> -> vector<36x16xf32>
    %59 = arith.addf %54, %58 : vector<36x16xf32>
    %60 = vector.extract_strided_slice %28 {offsets = [12, 0], sizes = [36, 16], strides = [1, 1]} : vector<50x16xf32> to vector<36x16xf32>
    %61 = arith.truncf %60 : vector<36x16xf32> to vector<36x16xbf16>
    %c96 = arith.constant 96 : index
    %c0_29 = arith.constant 0 : index
    %62 = vector.load %arg5[%c96, %c0_29] : memref<144x16xbf16, #tpu.memory_space<vmem>>, vector<16x16xbf16>
    %cst_30 = arith.constant dense<0.000000e+00> : vector<36x16xf32>
    %63 = tpu.matmul %61, %62, %cst_30 {dimension_numbers = #tpu.dot_dimension_numbers<[1], [0], [0], [1], [0, 0, 1, 1], [], []>} : vector<36x16xbf16>, vector<16x16xbf16>, vector<36x16xf32> -> vector<36x16xf32>
    %64 = arith.addf %59, %63 : vector<36x16xf32>
    %65 = vector.extract_strided_slice %28 {offsets = [13, 0], sizes = [36, 16], strides = [1, 1]} : vector<50x16xf32> to vector<36x16xf32>
    %66 = arith.truncf %65 : vector<36x16xf32> to vector<36x16xbf16>
    %c112 = arith.constant 112 : index
    %c0_31 = arith.constant 0 : index
    %67 = vector.load %arg5[%c112, %c0_31] : memref<144x16xbf16, #tpu.memory_space<vmem>>, vector<16x16xbf16>
    %cst_32 = arith.constant dense<0.000000e+00> : vector<36x16xf32>
    %68 = tpu.matmul %66, %67, %cst_32 {dimension_numbers = #tpu.dot_dimension_numbers<[1], [0], [0], [1], [0, 0, 1, 1], [], []>} : vector<36x16xbf16>, vector<16x16xbf16>, vector<36x16xf32> -> vector<36x16xf32>
    %69 = arith.addf %64, %68 : vector<36x16xf32>
    %70 = vector.extract_strided_slice %28 {offsets = [14, 0], sizes = [36, 16], strides = [1, 1]} : vector<50x16xf32> to vector<36x16xf32>
    %71 = arith.truncf %70 : vector<36x16xf32> to vector<36x16xbf16>
    %c128 = arith.constant 128 : index
    %c0_33 = arith.constant 0 : index
    %72 = vector.load %arg5[%c128, %c0_33] : memref<144x16xbf16, #tpu.memory_space<vmem>>, vector<16x16xbf16>
    %cst_34 = arith.constant dense<0.000000e+00> : vector<36x16xf32>
    %73 = tpu.matmul %71, %72, %cst_34 {dimension_numbers = #tpu.dot_dimension_numbers<[1], [0], [0], [1], [0, 0, 1, 1], [], []>} : vector<36x16xbf16>, vector<16x16xbf16>, vector<36x16xf32> -> vector<36x16xf32>
    %74 = arith.addf %69, %73 : vector<36x16xf32>
    %cst_35 = arith.constant dense<0.000000e+00> : vector<36xf32>
    %75 = vector.multi_reduction <add>, %74, %cst_35 [1] : vector<36x16xf32> to vector<36xf32>
    %76 = vector.shape_cast %75 : vector<36xf32> to vector<36x1xf32>
    %cst_36 = arith.constant 1.600000e+01 : f32
    %77 = vector.broadcast %cst_36 : f32 to vector<36x1xf32>
    %78 = arith.divf %76, %77 : vector<36x1xf32>
    %79 = vector.broadcast %78 : vector<36x1xf32> to vector<36x16xf32>
    %80 = arith.subf %74, %79 : vector<36x16xf32>
    %81 = arith.mulf %80, %80 : vector<36x16xf32>
    %cst_37 = arith.constant dense<0.000000e+00> : vector<36xf32>
    %82 = vector.multi_reduction <add>, %81, %cst_37 [1] : vector<36x16xf32> to vector<36xf32>
    %83 = vector.shape_cast %82 : vector<36xf32> to vector<36x1xf32>
    %cst_38 = arith.constant 1.600000e+01 : f32
    %84 = vector.broadcast %cst_38 : f32 to vector<36x1xf32>
    %85 = arith.divf %83, %84 : vector<36x1xf32>
    %cst_39 = arith.constant 9.99999997E-7 : f32
    %86 = vector.broadcast %cst_39 : f32 to vector<36x1xf32>
    %87 = arith.addf %85, %86 : vector<36x1xf32>
    %88 = math.rsqrt %87 : vector<36x1xf32>
    %89 = vector.broadcast %88 : vector<36x1xf32> to vector<36x16xf32>
    %90 = arith.mulf %80, %89 : vector<36x16xf32>
    %c0_40 = arith.constant 0 : index
    %c0_41 = arith.constant 0 : index
    %91 = vector.load %arg6[%c0_40, %c0_41] : memref<1x16xf32, #tpu.memory_space<vmem>>, vector<1x16xf32>
    %92 = vector.broadcast %91 : vector<1x16xf32> to vector<36x16xf32>
    %93 = arith.mulf %90, %92 : vector<36x16xf32>
    %c0_42 = arith.constant 0 : index
    %c0_43 = arith.constant 0 : index
    %94 = vector.load %arg7[%c0_42, %c0_43] : memref<1x16xf32, #tpu.memory_space<vmem>>, vector<1x16xf32>
    %95 = vector.broadcast %94 : vector<1x16xf32> to vector<36x16xf32>
    %96 = arith.addf %93, %95 : vector<36x16xf32>
    %c0_44 = arith.constant 0 : index
    %c0_45 = arith.constant 0 : index
    %97 = vector.load %arg9[%c0_44, %c0_45] : memref<36x1xf32, #tpu.memory_space<vmem>>, vector<36x1xf32>
    %98 = vector.broadcast %97 : vector<36x1xf32> to vector<36x16xf32>
    %99 = arith.mulf %96, %98 : vector<36x16xf32>
    %cst_46 = arith.constant dense<0.000000e+00> : vector<16xf32>
    %100 = vector.multi_reduction <add>, %99, %cst_46 [0] : vector<36x16xf32> to vector<16xf32>
    %101 = vector.shape_cast %100 : vector<16xf32> to vector<1x16xf32>
    %cst_47 = arith.constant 6.250000e-02 : f32
    %102 = vector.broadcast %cst_47 : f32 to vector<1x16xf32>
    %103 = arith.mulf %101, %102 : vector<1x16xf32>
    %c0_48 = arith.constant 0 : index
    %c0_49 = arith.constant 0 : index
    %c0_50 = arith.constant 0 : index
    %104 = vector.load %arg10[%c0_48, %c0_49, %c0_50] : memref<1x1x16xf32, #tpu.memory_space<vmem>>, vector<1x1x16xf32>
    %105 = vector.shape_cast %104 : vector<1x1x16xf32> to vector<1x16xf32>
    %106 = vector.shape_cast %103 : vector<1x16xf32> to vector<1x1x16xf32>
    tpu.vector_store %arg10[%c0_48, %c0_49, %c0_50], %106 {strides = array<i32>} : memref<1x1x16xf32, #tpu.memory_space<vmem>>, vector<1x1x16xf32>,
    return
  }
  func.func @transform_0(%arg0: i32) -> (i32, i32, i32) {
    %c0_i32 = arith.constant 0 : i32
    %c0_i32_0 = arith.constant 0 : i32
    %c0_i32_1 = arith.constant 0 : i32
    return %arg0, %c0_i32, %c0_i32_0 : i32, i32, i32
  }
  func.func @transform_1(%arg0: i32) -> (i32, i32) {
    %c0_i32 = arith.constant 0 : i32
    %c0_i32_0 = arith.constant 0 : i32
    %c0_i32_1 = arith.constant 0 : i32
    return %c0_i32, %c0_i32_0 : i32, i32
  }
  func.func @transform_2(%arg0: i32) -> (i32, i32) {
    %c0_i32 = arith.constant 0 : i32
    %c0_i32_0 = arith.constant 0 : i32
    %c0_i32_1 = arith.constant 0 : i32
    return %c0_i32, %c0_i32_0 : i32, i32
  }
  func.func @transform_3(%arg0: i32) -> (i32, i32) {
    %c0_i32 = arith.constant 0 : i32
    %c0_i32_0 = arith.constant 0 : i32
    %c0_i32_1 = arith.constant 0 : i32
    return %c0_i32, %c0_i32_0 : i32, i32
  }
  func.func @transform_4(%arg0: i32) -> (i32, i32) {
    %c0_i32 = arith.constant 0 : i32
    %c0_i32_0 = arith.constant 0 : i32
    %c0_i32_1 = arith.constant 0 : i32
    return %c0_i32, %c0_i32_0 : i32, i32
  }
  func.func @transform_5(%arg0: i32) -> (i32, i32) {
    %c0_i32 = arith.constant 0 : i32
    %c0_i32_0 = arith.constant 0 : i32
    %c0_i32_1 = arith.constant 0 : i32
    return %c0_i32, %c0_i32_0 : i32, i32
  }
  func.func @transform_6(%arg0: i32) -> (i32, i32) {
    %c0_i32 = arith.constant 0 : i32
    %c0_i32_0 = arith.constant 0 : i32
    %c0_i32_1 = arith.constant 0 : i32
    return %c0_i32, %c0_i32_0 : i32, i32
  }
  func.func @transform_7(%arg0: i32) -> (i32, i32) {
    %c0_i32 = arith.constant 0 : i32
    %c0_i32_0 = arith.constant 0 : i32
    %c0_i32_1 = arith.constant 0 : i32
    return %c0_i32, %c0_i32_0 : i32, i32
  }
  func.func @transform_8(%arg0: i32) -> (i32, i32) {
    %c0_i32 = arith.constant 0 : i32
    %c0_i32_0 = arith.constant 0 : i32
    %c0_i32_1 = arith.constant 0 : i32
    return %c0_i32, %c0_i32_0 : i32, i32
  }
  func.func @transform_9(%arg0: i32) -> (i32, i32, i32) {
    %c0_i32 = arith.constant 0 : i32
    %c0_i32_0 = arith.constant 0 : i32
    %c0_i32_1 = arith.constant 0 : i32
    return %arg0, %c0_i32, %c0_i32_0 : i32, i32, i32
  }
}

</mosaic_0001>

<llo_original>
// kernel: sam_mae_encoder_forward.4
$region0: #{sam_mae_encoder_forward.4}
  #allocation0 [shape = 'u32[]', space=smem, size = 0x4, offset = 0x4, fixed_abs, tag = 'smem constant byte address 0x4 - core index']
  #allocation1 [shape = 'u32[144,128]{1,0:T(1,128)}', space=vmem, size = 0x12000, scoped, tag = 'internal scratch']
  %s0 = inlined_call_operand.vmem [shape: bf16[2,16,768], index: 0, kind: input, shape index: {}]
  %s1 = inlined_call_operand.vmem [shape: bf16[768,32], index: 1, kind: input, shape index: {}]
  %s2 = inlined_call_operand.vmem [shape: f32[1,32], index: 2, kind: input, shape index: {}]
  %s3 = inlined_call_operand.vmem [shape: f32[16,32], index: 3, kind: input, shape index: {}]
  %s4 = inlined_call_operand.vmem [shape: f32[2,16,32], index: 4, kind: output, shape index: {}]
  %s5 = sld [smem:[#allocation0]]
  $region49: #{sam_mae_encoder_forward.4} parent=0
    _
  %s7 = ssub.s32 1, %s5
  %s8 = scalar_select 0, %s7, %s5
  loop: start=0, step=1, limit=4
  $region2: #{sam_mae_encoder_forward.4} parent=0 // loop_pre_header
    _
  $region3: #{sam_mae_encoder_forward.4} parent=0 // loop_header
    %s10 = sphi 0, %s14
    %p11 = scmp.ge.s32.totalorder %s10, 4
    %s20 = sphi 0, %s22
    %s23 = sphi 0, %s20
    %s24 = sphi 0, %s23
    %s40 = sphi 0, %s24
    %s44 = sphi 0, %s44
    %s46 = sphi 0, %s44
    %s47 = sphi 0, %s46
    %s61 = sphi 0, %s47
    %s65 = sphi 0, %s65
    %s67 = sphi 0, %s65
    %s68 = sphi 0, %s67
    %s82 = sphi 0, %s68
    %s86 = sphi 0, %s86
    %s88 = sphi 0, %s86
    %s89 = sphi 0, %s88
    %s103 = sphi 0, %s89
    %s109 = sphi 0, %s111
    %s112 = sphi 0, %s109
    %s113 = sphi 0, %s112
    %s129 = sphi 0, %s113
  $region4: #{sam_mae_encoder_forward.4} parent=0 // loop_header_branch
    %13 = sbr.rel (%p11) target = $region8
  $region5: #{sam_mae_encoder_forward.4} parent=0 // loop_body
    %s15 = ssub.s32 %s10, 1
    %s16 = ssub.s32 %s10, 2
    %s17 = sadd.s32 %s10, 1
    %s18 = ssub.s32 %s10, %s17
    %p19 = scmp.eq.s32.totalorder %s18, 0
    %s21 = sadd.s32 %s20, 1
    %s22 = scalar_select %p19, %s20, %s21
    %p25 = pneg %p19
    %p26 = scmp.eq.s32.totalorder %s10, 1
    %p27 = por %p25, %p26
    %p28 = scmp.ne.s32.totalorder %s20, %s23
    %p29 = scmp.eq.s32.totalorder %s10, 0
    %p30 = por %p28, %p29
    %p31 = scmp.ne.s32.totalorder %s20, %s23
    %p32 = scmp.eq.s32.totalorder %s15, 1
    %p33 = por %p31, %p32
    %p34 = scmp.ne.s32.totalorder %s23, %s24
    %p35 = scmp.eq.s32.totalorder %s15, 0
    %p36 = por %p34, %p35
    %p37 = scmp.ne.s32.totalorder %s23, %s24
    %p38 = scmp.eq.s32.totalorder %s16, 1
    %p39 = por %p37, %p38
    %p41 = scmp.ne.s32.totalorder %s24, %s40
    %p42 = scmp.eq.s32.totalorder %s16, 0
    %p43 = por %p41, %p42
    %s45 = sadd.s32 %s44, 1
    %p48 = scmp.eq.s32.totalorder %s10, 1
    %p49 = scmp.ne.s32.totalorder %s44, %s46
    %p50 = scmp.eq.s32.totalorder %s10, 0
    %p51 = por %p49, %p50
    %p52 = scmp.ne.s32.totalorder %s44, %s46
    %p53 = scmp.eq.s32.totalorder %s15, 1
    %p54 = por %p52, %p53
    %p55 = scmp.ne.s32.totalorder %s46, %s47
    %p56 = scmp.eq.s32.totalorder %s15, 0
    %p57 = por %p55, %p56
    %p58 = scmp.ne.s32.totalorder %s46, %s47
    %p59 = scmp.eq.s32.totalorder %s16, 1
    %p60 = por %p58, %p59
    %p62 = scmp.ne.s32.totalorder %s47, %s61
    %p63 = scmp.eq.s32.totalorder %s16, 0
    %p64 = por %p62, %p63
    %s66 = sadd.s32 %s65, 1
    %p69 = scmp.eq.s32.totalorder %s10, 1
    %p70 = scmp.ne.s32.totalorder %s65, %s67
    %p71 = scmp.eq.s32.totalorder %s10, 0
    %p72 = por %p70, %p71
    %p73 = scmp.ne.s32.totalorder %s65, %s67
    %p74 = scmp.eq.s32.totalorder %s15, 1
    %p75 = por %p73, %p74
    %p76 = scmp.ne.s32.totalorder %s67, %s68
    %p77 = scmp.eq.s32.totalorder %s15, 0
    %p78 = por %p76, %p77
    %p79 = scmp.ne.s32.totalorder %s67, %s68
    %p80 = scmp.eq.s32.totalorder %s16, 1
    %p81 = por %p79, %p80
    %p83 = scmp.ne.s32.totalorder %s68, %s82
    %p84 = scmp.eq.s32.totalorder %s16, 0
    %p85 = por %p83, %p84
    %s87 = sadd.s32 %s86, 1
    %p90 = scmp.eq.s32.totalorder %s10, 1
    %p91 = scmp.ne.s32.totalorder %s86, %s88
    %p92 = scmp.eq.s32.totalorder %s10, 0
    %p93 = por %p91, %p92
    %p94 = scmp.ne.s32.totalorder %s86, %s88
    %p95 = scmp.eq.s32.totalorder %s15, 1
    %p96 = por %p94, %p95
    %p97 = scmp.ne.s32.totalorder %s88, %s89
    %p98 = scmp.eq.s32.totalorder %s15, 0
    %p99 = por %p97, %p98
    %p100 = scmp.ne.s32.totalorder %s88, %s89
    %p101 = scmp.eq.s32.totalorder %s16, 1
    %p102 = por %p100, %p101
    %p104 = scmp.ne.s32.totalorder %s89, %s103
    %p105 = scmp.eq.s32.totalorder %s16, 0
    %p106 = por %p104, %p105
    %s107 = ssub.s32 %s10, %s17
    %p108 = scmp.eq.s32.totalorder %s107, 0
    %s110 = sadd.s32 %s109, 1
    %s111 = scalar_select %p108, %s109, %s110
    %p114 = pneg %p108
    %p115 = scmp.eq.s32.totalorder %s10, 1
    %p116 = por %p114, %p115
    %p117 = scmp.ne.s32.totalorder %s109, %s112
    %p118 = scmp.eq.s32.totalorder %s10, 0
    %p119 = por %p117, %p118
    %p120 = scmp.ne.s32.totalorder %s109, %s112
    %p121 = scmp.eq.s32.totalorder %s15, 1
    %p122 = por %p120, %p121
    %p123 = scmp.ne.s32.totalorder %s112, %s113
    %p124 = scmp.eq.s32.totalorder %s15, 0
    %p125 = por %p123, %p124
    %p126 = scmp.ne.s32.totalorder %s112, %s113
    %p127 = scmp.eq.s32.totalorder %s16, 1
    %p128 = por %p126, %p127
    %p130 = scmp.ne.s32.totalorder %s113, %s129
    %p131 = scmp.eq.s32.totalorder %s16, 0
    %p132 = por %p130, %p131
    %p133 = scmp.le.s32.totalorder 1, %s10
    %p134 = scmp.lt.s32.totalorder %s10, 3
    %p135 = pnand %p133, %p134
    %p136 = pneg %p135
    // Predicated region
    $region9: #{sam_mae_encoder_forward.4} parent=5 // pred_check
      _
    $region10: #{sam_mae_encoder_forward.4} parent=5 // pred_check_branch
      %138 = sbr.rel (%p135) target = $region12
    $region11: #{sam_mae_encoder_forward.4} parent=5 // pred_region
      %s139 = ssub.s32 %s10, 1
      // Predicated region
      $region13: #{sam_mae_encoder_forward.4} parent=11 // pred_check
        %p140 = pneg %p57
      $region14: #{sam_mae_encoder_forward.4} parent=11 // pred_check_branch
        %142 = sbr.rel (%p140) target = $region16
      $region15: #{sam_mae_encoder_forward.4} parent=11 // pred_region
        _
      $region16: #{sam_mae_encoder_forward.4} parent=11 // pred_fallthru
        _
      // Predicated region
      $region17: #{sam_mae_encoder_forward.4} parent=11 // pred_check
        %p143 = pneg %p78
      $region18: #{sam_mae_encoder_forward.4} parent=11 // pred_check_branch
        %145 = sbr.rel (%p143) target = $region20
      $region19: #{sam_mae_encoder_forward.4} parent=11 // pred_region
        _
      $region20: #{sam_mae_encoder_forward.4} parent=11 // pred_fallthru
        _
      // Predicated region
      $region21: #{sam_mae_encoder_forward.4} parent=11 // pred_check
        %p146 = pneg %p99
      $region22: #{sam_mae_encoder_forward.4} parent=11 // pred_check_branch
        %148 = sbr.rel (%p146) target = $region24
      $region23: #{sam_mae_encoder_forward.4} parent=11 // pred_region
        _
      $region24: #{sam_mae_encoder_forward.4} parent=11 // pred_fallthru
        _
    $region12: #{sam_mae_encoder_forward.4} parent=5 // pred_fallthru
      _
    %p149 = scmp.lt.s32.totalorder %s10, 2
    // Predicated region
    $region25: #{sam_mae_encoder_forward.4} parent=5 // pred_check
      %p150 = pneg %p149
    $region26: #{sam_mae_encoder_forward.4} parent=5 // pred_check_branch
      %152 = sbr.rel (%p150) target = $region28
    $region27: #{sam_mae_encoder_forward.4} parent=5 // pred_region
      // Predicated region
      $region29: #{sam_mae_encoder_forward.4} parent=27 // pred_check
        %p153 = pneg %p30
      $region30: #{sam_mae_encoder_forward.4} parent=27 // pred_check_branch
        %155 = sbr.rel (%p153) target = $region32
      $region31: #{sam_mae_encoder_forward.4} parent=27 // pred_region
        %p156 = scmp.lt.s32.totalorder %s10, 1
        %s157 = scalar_select %p156, %s10, 1
        %s158 = smul.addr %s157, 12
        %s159 = smul.addr %s158, 4
        %s160 = scalar_lea.vmem %s0, %s159
      $region32: #{sam_mae_encoder_forward.4} parent=27 // pred_fallthru
        _
    $region28: #{sam_mae_encoder_forward.4} parent=5 // pred_fallthru
      _
    %p161 = scmp.le.s32.totalorder 1, %s10
    %p162 = scmp.lt.s32.totalorder %s10, 3
    %p163 = pnand %p161, %p162
    %p164 = pneg %p163
    // Predicated region
    $region33: #{sam_mae_encoder_forward.4} parent=5 // pred_check
      _
    $region34: #{sam_mae_encoder_forward.4} parent=5 // pred_check_branch
      %166 = sbr.rel (%p163) target = $region36
    $region35: #{sam_mae_encoder_forward.4} parent=5 // pred_region
      %s167 = ssub.s32 %s10, 1
      %p168 = scmp.lt.s32.totalorder %s15, 1
      %s169 = scalar_select %p168, %s15, 1
      %s170 = smul.addr %s169, 12
      %s171 = smul.addr %s170, 4
      %s172 = scalar_lea.vmem %s0, %s171
      %p173 = pneg %p36
      %p174 = pneg %p33
      %p175 = pneg %p57
      %p176 = pneg %p54
      %p177 = pneg %p78
      %p178 = pneg %p75
      %p179 = pneg %p99
      %p180 = pneg %p96
      %p181 = pneg %p125
      %p182 = pneg %p122
      %p183 = scmp.lt.s32.totalorder %s15, 1
      %s184 = scalar_select %p183, %s15, 1
      %s185 = smul.addr %s184, 2
      %s186 = smul.addr %s185, 8
      %s187 = scalar_lea.vmem %s4, %s186
      %p188 = scmp.lt.s32.totalorder %s15, 1
      %s189 = scalar_select %p188, %s15, 1
      %s190 = smul.addr %s189, 12
      %s191 = smul.addr %s190, 4
      %s192 = scalar_lea.vmem %s0, %s191
      %p193 = scmp.lt.s32.totalorder %s15, 1
      %s194 = scalar_select %p193, %s15, 1
      %s195 = smul.addr %s194, 2
      %s196 = smul.addr %s195, 8
      %s197 = scalar_lea.vmem %s4, %s196
      %v199 = vld [vmem:[%s192] sm:$0xff]
      %v200 = vld [vmem:[%s192 + $0x8] sm:$0xff]
      %v201 = vld [vmem:[%s192 + $0x10] sm:$0xff]
      %v202 = vld [vmem:[%s192 + $0x18] sm:$0xff]
      %v203 = vld [vmem:[%s192 + $0x20] sm:$0xff]
      %v204 = vld [vmem:[%s192 + $0x28] sm:$0xff]
      %v205 = vld [vmem:[%s1] sm:$0xf]
      %v206 = vld [vmem:[%s1 + $0x4] sm:$0xf]
      %v207 = vld [vmem:[%s1 + $0x8] sm:$0xf]
      %v208 = vld [vmem:[%s1 + $0xc] sm:$0xf]
      %v209 = vld [vmem:[%s1 + $0x10] sm:$0xf]
      %v210 = vld [vmem:[%s1 + $0x14] sm:$0xf]
      %v211 = vld [vmem:[%s1 + $0x18] sm:$0xf]
      %v212 = vld [vmem:[%s1 + $0x1c] sm:$0xf]
      %v213 = vld [vmem:[%s1 + $0x20] sm:$0xf]
      %v214 = vld [vmem:[%s1 + $0x24] sm:$0xf]
      %v215 = vld [vmem:[%s1 + $0x28] sm:$0xf]
      %v216 = vld [vmem:[%s1 + $0x2c] sm:$0xf]
      %v217 = vld [vmem:[%s1 + $0x30] sm:$0xf]
      %v218 = vld [vmem:[%s1 + $0x34] sm:$0xf]
      %v219 = vld [vmem:[%s1 + $0x38] sm:$0xf]
      %v220 = vld [vmem:[%s1 + $0x3c] sm:$0xf]
      %v221 = vld [vmem:[%s1 + $0x40] sm:$0xf]
      %v222 = vld [vmem:[%s1 + $0x44] sm:$0xf]
      %v223 = vld [vmem:[%s1 + $0x48] sm:$0xf]
      %v224 = vld [vmem:[%s1 + $0x4c] sm:$0xf]
      %v225 = vld [vmem:[%s1 + $0x50] sm:$0xf]
      %v226 = vld [vmem:[%s1 + $0x54] sm:$0xf]
      %v227 = vld [vmem:[%s1 + $0x58] sm:$0xf]
      %v228 = vld [vmem:[%s1 + $0x5c] sm:$0xf]
      %v229 = vld [vmem:[%s1 + $0x60] sm:$0xf]
      %v230 = vld [vmem:[%s1 + $0x64] sm:$0xf]
      %v231 = vld [vmem:[%s1 + $0x68] sm:$0xf]
      %v232 = vld [vmem:[%s1 + $0x6c] sm:$0xf]
      %v233 = vld [vmem:[%s1 + $0x70] sm:$0xf]
      %v234 = vld [vmem:[%s1 + $0x74] sm:$0xf]
      %v235 = vld [vmem:[%s1 + $0x78] sm:$0xf]
      %v236 = vld [vmem:[%s1 + $0x7c] sm:$0xf]
      %v237 = vld [vmem:[%s1 + $0x80] sm:$0xf]
      %v238 = vld [vmem:[%s1 + $0x84] sm:$0xf]
      %v239 = vld [vmem:[%s1 + $0x88] sm:$0xf]
      %v240 = vld [vmem:[%s1 + $0x8c] sm:$0xf]
      %v241 = vld [vmem:[%s1 + $0x90] sm:$0xf]
      %v242 = vld [vmem:[%s1 + $0x94] sm:$0xf]
      %v243 = vld [vmem:[%s1 + $0x98] sm:$0xf]
      %v244 = vld [vmem:[%s1 + $0x9c] sm:$0xf]
      %v245 = vld [vmem:[%s1 + $0xa0] sm:$0xf]
      %v246 = vld [vmem:[%s1 + $0xa4] sm:$0xf]
      %v247 = vld [vmem:[%s1 + $0xa8] sm:$0xf]
      %v248 = vld [vmem:[%s1 + $0xac] sm:$0xf]
      %v249 = vld [vmem:[%s1 + $0xb0] sm:$0xf]
      %v250 = vld [vmem:[%s1 + $0xb4] sm:$0xf]
      %v251 = vld [vmem:[%s1 + $0xb8] sm:$0xf]
      %v252 = vld [vmem:[%s1 + $0xbc] sm:$0xf]
      %v253 = vld [vmem:[%s1 + $0xc0] sm:$0xf]
      %v254 = vld [vmem:[%s1 + $0xc4] sm:$0xf]
      %v255 = vld [vmem:[%s1 + $0xc8] sm:$0xf]
      %v256 = vld [vmem:[%s1 + $0xcc] sm:$0xf]
      %v257 = vld [vmem:[%s1 + $0xd0] sm:$0xf]
      %v258 = vld [vmem:[%s1 + $0xd4] sm:$0xf]
      %v259 = vld [vmem:[%s1 + $0xd8] sm:$0xf]
      %v260 = vld [vmem:[%s1 + $0xdc] sm:$0xf]
      %v261 = vld [vmem:[%s1 + $0xe0] sm:$0xf]
      %v262 = vld [vmem:[%s1 + $0xe4] sm:$0xf]
      %v263 = vld [vmem:[%s1 + $0xe8] sm:$0xf]
      %v264 = vld [vmem:[%s1 + $0xec] sm:$0xf]
      %v265 = vld [vmem:[%s1 + $0xf0] sm:$0xf]
      %v266 = vld [vmem:[%s1 + $0xf4] sm:$0xf]
      %v267 = vld [vmem:[%s1 + $0xf8] sm:$0xf]
      %v268 = vld [vmem:[%s1 + $0xfc] sm:$0xf]
      %v269 = vld [vmem:[%s1 + $0x100] sm:$0xf]
      %v270 = vld [vmem:[%s1 + $0x104] sm:$0xf]
      %v271 = vld [vmem:[%s1 + $0x108] sm:$0xf]
      %v272 = vld [vmem:[%s1 + $0x10c] sm:$0xf]
      %v273 = vld [vmem:[%s1 + $0x110] sm:$0xf]
      %v274 = vld [vmem:[%s1 + $0x114] sm:$0xf]
      %v275 = vld [vmem:[%s1 + $0x118] sm:$0xf]
      %v276 = vld [vmem:[%s1 + $0x11c] sm:$0xf]
      %v277 = vld [vmem:[%s1 + $0x120] sm:$0xf]
      %v278 = vld [vmem:[%s1 + $0x124] sm:$0xf]
      %v279 = vld [vmem:[%s1 + $0x128] sm:$0xf]
      %v280 = vld [vmem:[%s1 + $0x12c] sm:$0xf]
      %v281 = vld [vmem:[%s1 + $0x130] sm:$0xf]
      %v282 = vld [vmem:[%s1 + $0x134] sm:$0xf]
      %v283 = vld [vmem:[%s1 + $0x138] sm:$0xf]
      %v284 = vld [vmem:[%s1 + $0x13c] sm:$0xf]
      %v285 = vld [vmem:[%s1 + $0x140] sm:$0xf]
      %v286 = vld [vmem:[%s1 + $0x144] sm:$0xf]
      %v287 = vld [vmem:[%s1 + $0x148] sm:$0xf]
      %v288 = vld [vmem:[%s1 + $0x14c] sm:$0xf]
      %v289 = vld [vmem:[%s1 + $0x150] sm:$0xf]
      %v290 = vld [vmem:[%s1 + $0x154] sm:$0xf]
      %v291 = vld [vmem:[%s1 + $0x158] sm:$0xf]
      %v292 = vld [vmem:[%s1 + $0x15c] sm:$0xf]
      %v293 = vld [vmem:[%s1 + $0x160] sm:$0xf]
      %v294 = vld [vmem:[%s1 + $0x164] sm:$0xf]
      %v295 = vld [vmem:[%s1 + $0x168] sm:$0xf]
      %v296 = vld [vmem:[%s1 + $0x16c] sm:$0xf]
      %v297 = vld [vmem:[%s1 + $0x170] sm:$0xf]
      %v298 = vld [vmem:[%s1 + $0x174] sm:$0xf]
      %v299 = vld [vmem:[%s1 + $0x178] sm:$0xf]
      %v300 = vld [vmem:[%s1 + $0x17c] sm:$0xf]
      %v301 = vld [vmem:[%s2] sm:$0x1]
      %v303 = vlaneseq
      %v304 = vshrl.u32 %v303, 7
      %v305 = vsub.s32 0, %v304
      %v306 = vrot.slane %v301, %v305
      %v314 = vunpack.c.l.b16 %v199
      %v315 = vunpack.c.h.b16 %v199
      %v316 = vunpack.c.l.b16 %v200
      %v317 = vunpack.c.h.b16 %v200
      %v318 = vunpack.c.l.b16 %v201
      %v319 = vunpack.c.h.b16 %v201
      %v320 = vunpack.c.l.b16 %v202
      %v321 = vunpack.c.h.b16 %v202
      %v322 = vunpack.c.l.b16 %v203
      %v323 = vunpack.c.h.b16 %v203
      %v324 = vunpack.c.l.b16 %v204
      %v325 = vunpack.c.h.b16 %v204
      %v326 = vpack.c.b16 %v320, %v314
      %v327 = vpack.c.b16 %v321, %v315
      %v328 = vpack.c.b16 %v322, %v316
      %v329 = vpack.c.b16 %v323, %v317
      %v330 = vpack.c.b16 %v324, %v318
      %v331 = vpack.c.b16 %v325, %v319
      %v434 = vunpack.c.l.b16 %v205
      %v435 = vunpack.c.l.b16 %v206
      %v436 = vunpack.c.l.b16 %v207
      %v437 = vunpack.c.l.b16 %v208
      %v438 = vunpack.c.l.b16 %v209
      %v439 = vunpack.c.l.b16 %v210
      %v440 = vunpack.c.l.b16 %v211
      %v441 = vunpack.c.l.b16 %v212
      %v442 = vunpack.c.l.b16 %v213
      %v443 = vunpack.c.l.b16 %v214
      %v444 = vunpack.c.l.b16 %v215
      %v445 = vunpack.c.l.b16 %v216
      %v446 = vunpack.c.l.b16 %v217
      %v447 = vunpack.c.l.b16 %v218
      %v448 = vunpack.c.l.b16 %v219
      %v449 = vunpack.c.l.b16 %v220
      %v450 = vunpack.c.l.b16 %v221
      %v451 = vunpack.c.l.b16 %v222
      %v452 = vunpack.c.l.b16 %v223
      %v453 = vunpack.c.l.b16 %v224
      %v454 = vunpack.c.l.b16 %v225
      %v455 = vunpack.c.l.b16 %v226
      %v456 = vunpack.c.l.b16 %v227
      %v457 = vunpack.c.l.b16 %v228
      %v458 = vunpack.c.l.b16 %v229
      %v459 = vunpack.c.l.b16 %v230
      %v460 = vunpack.c.l.b16 %v231
      %v461 = vunpack.c.l.b16 %v232
      %v462 = vunpack.c.l.b16 %v233
      %v463 = vunpack.c.l.b16 %v234
      %v464 = vunpack.c.l.b16 %v235
      %v465 = vunpack.c.l.b16 %v236
      %v466 = vunpack.c.l.b16 %v237
      %v467 = vunpack.c.l.b16 %v238
      %v468 = vunpack.c.l.b16 %v239
      %v469 = vunpack.c.l.b16 %v240
      %v470 = vunpack.c.l.b16 %v241
      %v471 = vunpack.c.l.b16 %v242
      %v472 = vunpack.c.l.b16 %v243
      %v473 = vunpack.c.l.b16 %v244
      %v474 = vunpack.c.l.b16 %v245
      %v475 = vunpack.c.l.b16 %v246
      %v476 = vunpack.c.l.b16 %v247
      %v477 = vunpack.c.l.b16 %v248
      %v478 = vunpack.c.l.b16 %v249
      %v479 = vunpack.c.l.b16 %v250
      %v480 = vunpack.c.l.b16 %v251
      %v481 = vunpack.c.l.b16 %v252
      %v482 = vunpack.c.l.b16 %v253
      %v483 = vunpack.c.l.b16 %v254
      %v484 = vunpack.c.l.b16 %v255
      %v485 = vunpack.c.l.b16 %v256
      %v486 = vunpack.c.l.b16 %v257
      %v487 = vunpack.c.l.b16 %v258
      %v488 = vunpack.c.l.b16 %v259
      %v489 = vunpack.c.l.b16 %v260
      %v490 = vunpack.c.l.b16 %v261
      %v491 = vunpack.c.l.b16 %v262
      %v492 = vunpack.c.l.b16 %v263
      %v493 = vunpack.c.l.b16 %v264
      %v494 = vunpack.c.l.b16 %v265
      %v495 = vunpack.c.l.b16 %v266
      %v496 = vunpack.c.l.b16 %v267
      %v497 = vunpack.c.l.b16 %v268
      %v498 = vunpack.c.l.b16 %v269
      %v499 = vunpack.c.l.b16 %v270
      %v500 = vunpack.c.l.b16 %v271
      %v501 = vunpack.c.l.b16 %v272
      %v502 = vunpack.c.l.b16 %v273
      %v503 = vunpack.c.l.b16 %v274
      %v504 = vunpack.c.l.b16 %v275
      %v505 = vunpack.c.l.b16 %v276
      %v506 = vunpack.c.l.b16 %v277
      %v507 = vunpack.c.l.b16 %v278
      %v508 = vunpack.c.l.b16 %v279
      %v509 = vunpack.c.l.b16 %v280
      %v510 = vunpack.c.l.b16 %v281
      %v511 = vunpack.c.l.b16 %v282
      %v512 = vunpack.c.l.b16 %v283
      %v513 = vunpack.c.l.b16 %v284
      %v514 = vunpack.c.l.b16 %v285
      %v515 = vunpack.c.l.b16 %v286
      %v516 = vunpack.c.l.b16 %v287
      %v517 = vunpack.c.l.b16 %v288
      %v518 = vunpack.c.l.b16 %v289
      %v519 = vunpack.c.l.b16 %v290
      %v520 = vunpack.c.l.b16 %v291
      %v521 = vunpack.c.l.b16 %v292
      %v522 = vunpack.c.l.b16 %v293
      %v523 = vunpack.c.l.b16 %v294
      %v524 = vunpack.c.l.b16 %v295
      %v525 = vunpack.c.l.b16 %v296
      %v526 = vunpack.c.l.b16 %v297
      %v527 = vunpack.c.l.b16 %v298
      %v528 = vunpack.c.l.b16 %v299
      %v529 = vunpack.c.l.b16 %v300
      %v530 = vpack.c.b16 %v435, %v434
      %v531 = vpack.c.b16 %v437, %v436
      %v532 = vpack.c.b16 %v439, %v438
      %v533 = vpack.c.b16 %v441, %v440
      %v534 = vpack.c.b16 %v443, %v442
      %v535 = vpack.c.b16 %v445, %v444
      %v536 = vpack.c.b16 %v447, %v446
      %v537 = vpack.c.b16 %v449, %v448
      %v538 = vpack.c.b16 %v451, %v450
      %v539 = vpack.c.b16 %v453, %v452
      %v540 = vpack.c.b16 %v455, %v454
      %v541 = vpack.c.b16 %v457, %v456
      %v542 = vpack.c.b16 %v459, %v458
      %v543 = vpack.c.b16 %v461, %v460
      %v544 = vpack.c.b16 %v463, %v462
      %v545 = vpack.c.b16 %v465, %v464
      %v546 = vpack.c.b16 %v467, %v466
      %v547 = vpack.c.b16 %v469, %v468
      %v548 = vpack.c.b16 %v471, %v470
      %v549 = vpack.c.b16 %v473, %v472
      %v550 = vpack.c.b16 %v475, %v474
      %v551 = vpack.c.b16 %v477, %v476
      %v552 = vpack.c.b16 %v479, %v478
      %v553 = vpack.c.b16 %v481, %v480
      %v554 = vpack.c.b16 %v483, %v482
      %v555 = vpack.c.b16 %v485, %v484
      %v556 = vpack.c.b16 %v487, %v486
      %v557 = vpack.c.b16 %v489, %v488
      %v558 = vpack.c.b16 %v491, %v490
      %v559 = vpack.c.b16 %v493, %v492
      %v560 = vpack.c.b16 %v495, %v494
      %v561 = vpack.c.b16 %v497, %v496
      %v562 = vpack.c.b16 %v499, %v498
      %v563 = vpack.c.b16 %v501, %v500
      %v564 = vpack.c.b16 %v503, %v502
      %v565 = vpack.c.b16 %v505, %v504
      %v566 = vpack.c.b16 %v507, %v506
      %v567 = vpack.c.b16 %v509, %v508
      %v568 = vpack.c.b16 %v511, %v510
      %v569 = vpack.c.b16 %v513, %v512
      %v570 = vpack.c.b16 %v515, %v514
      %v571 = vpack.c.b16 %v517, %v516
      %v572 = vpack.c.b16 %v519, %v518
      %v573 = vpack.c.b16 %v521, %v520
      %v574 = vpack.c.b16 %v523, %v522
      %v575 = vpack.c.b16 %v525, %v524
      %v576 = vpack.c.b16 %v527, %v526
      %v577 = vpack.c.b16 %v529, %v528
      %626 = vmatprep.subr.bf16.mxu0 0
      %627 = vmatpush1.bf16.msra.mxu0 %v537
      %628 = vmatprep.subr.bf16.mxu0 0
      %629 = vmatpush1.bf16.msra.mxu0 %v536
      %630 = vmatprep.subr.bf16.mxu0 0
      %631 = vmatpush1.bf16.msra.mxu0 %v535
      %632 = vmatprep.subr.bf16.mxu0 0
      %633 = vmatpush1.bf16.msra.mxu0 %v534
      %634 = vmatprep.subr.bf16.mxu0 0
      %635 = vmatpush1.bf16.msra.mxu0 %v533
      %636 = vmatprep.subr.bf16.mxu0 0
      %637 = vmatpush1.bf16.msra.mxu0 %v532
      %638 = vmatprep.subr.bf16.mxu0 0
      %639 = vmatpush1.bf16.msra.mxu0 %v531
      %640 = vmatprep.subr.bf16.mxu0 0
      %641 = vmatpush1.bf16.msra.mxu0 %v530
      %642 = vmatprep.subr.bf16.mxu0 0
      %643 = vmatpush2.bf16.msra.mxu0 %v545
      %644 = vmatprep.subr.bf16.mxu0 0
      %645 = vmatpush2.bf16.msra.mxu0 %v544
      %646 = vmatprep.subr.bf16.mxu0 0
      %647 = vmatpush2.bf16.msra.mxu0 %v543
      %648 = vmatprep.subr.bf16.mxu0 0
      %649 = vmatpush2.bf16.msra.mxu0 %v542
      %650 = vmatprep.subr.bf16.mxu0 0
      %651 = vmatpush2.bf16.msra.mxu0 %v541
      %652 = vmatprep.subr.bf16.mxu0 0
      %653 = vmatpush2.bf16.msra.mxu0 %v540
      %654 = vmatprep.subr.bf16.mxu0 0
      %655 = vmatpush2.bf16.msra.mxu0 %v539
      %656 = vmatprep.subr.bf16.mxu0 0
      %657 = vmatpush2.bf16.msra.mxu0 %v538
      %658 = vmatprep.mubr.bf16.mxu0 %v327
      %659 = vmatmul.mubr.bf16.gmra.mxu0 %v326
      %v660 = vpop.f32.mrf.mxu0
      %v661 = vadd.f32 %v306, %v660
      %v662 = vpop.f32.mrf.mxu0
      %v663 = vpop.f32.mrf.mxu0
      %v664 = vadd.f32 %v306, %v663
      %v665 = vpop.f32.mrf.mxu0
      %666 = vdwg.mxu0
      %667 = vmatprep.subr.bf16.mxu0 0
      %668 = vmatpush1.bf16.msra.mxu0 %v553
      %669 = vmatprep.subr.bf16.mxu0 0
      %670 = vmatpush1.bf16.msra.mxu0 %v552
      %671 = vmatprep.subr.bf16.mxu0 0
      %672 = vmatpush1.bf16.msra.mxu0 %v551
      %673 = vmatprep.subr.bf16.mxu0 0
      %674 = vmatpush1.bf16.msra.mxu0 %v550
      %675 = vmatprep.subr.bf16.mxu0 0
      %676 = vmatpush1.bf16.msra.mxu0 %v549
      %677 = vmatprep.subr.bf16.mxu0 0
      %678 = vmatpush1.bf16.msra.mxu0 %v548
      %679 = vmatprep.subr.bf16.mxu0 0
      %680 = vmatpush1.bf16.msra.mxu0 %v547
      %681 = vmatprep.subr.bf16.mxu0 0
      %682 = vmatpush1.bf16.msra.mxu0 %v546
      %683 = vmatprep.subr.bf16.mxu0 0
      %684 = vmatpush2.bf16.msra.mxu0 %v561
      %685 = vmatprep.subr.bf16.mxu0 0
      %686 = vmatpush2.bf16.msra.mxu0 %v560
      %687 = vmatprep.subr.bf16.mxu0 0
      %688 = vmatpush2.bf16.msra.mxu0 %v559
      %689 = vmatprep.subr.bf16.mxu0 0
      %690 = vmatpush2.bf16.msra.mxu0 %v558
      %691 = vmatprep.subr.bf16.mxu0 0
      %692 = vmatpush2.bf16.msra.mxu0 %v557
      %693 = vmatprep.subr.bf16.mxu0 0
      %694 = vmatpush2.bf16.msra.mxu0 %v556
      %695 = vmatprep.subr.bf16.mxu0 0
      %696 = vmatpush2.bf16.msra.mxu0 %v555
      %697 = vmatprep.subr.bf16.mxu0 0
      %698 = vmatpush2.bf16.msra.mxu0 %v554
      %699 = vmatprep.mubr.bf16.mxu0 %v329
      %700 = vmatmul.mubr.bf16.gmra.mxu0 %v328
      %v701 = vpop.f32.mrf.mxu0
      %v702 = vadd.f32 %v661, %v701
      %v703 = vpop.f32.mrf.mxu0
      %v704 = vpop.f32.mrf.mxu0
      %v705 = vadd.f32 %v664, %v704
      %v706 = vpop.f32.mrf.mxu0
      %707 = vdwg.mxu0
      %708 = vmatprep.subr.bf16.mxu0 0
      %709 = vmatpush1.bf16.msra.mxu0 %v569
      %710 = vmatprep.subr.bf16.mxu0 0
      %711 = vmatpush1.bf16.msra.mxu0 %v568
      %712 = vmatprep.subr.bf16.mxu0 0
      %713 = vmatpush1.bf16.msra.mxu0 %v567
      %714 = vmatprep.subr.bf16.mxu0 0
      %715 = vmatpush1.bf16.msra.mxu0 %v566
      %716 = vmatprep.subr.bf16.mxu0 0
      %717 = vmatpush1.bf16.msra.mxu0 %v565
      %718 = vmatprep.subr.bf16.mxu0 0
      %719 = vmatpush1.bf16.msra.mxu0 %v564
      %720 = vmatprep.subr.bf16.mxu0 0
      %721 = vmatpush1.bf16.msra.mxu0 %v563
      %722 = vmatprep.subr.bf16.mxu0 0
      %723 = vmatpush1.bf16.msra.mxu0 %v562
      %724 = vmatprep.subr.bf16.mxu0 0
      %725 = vmatpush2.bf16.msra.mxu0 %v577
      %726 = vmatprep.subr.bf16.mxu0 0
      %727 = vmatpush2.bf16.msra.mxu0 %v576
      %728 = vmatprep.subr.bf16.mxu0 0
      %729 = vmatpush2.bf16.msra.mxu0 %v575
      %730 = vmatprep.subr.bf16.mxu0 0
      %731 = vmatpush2.bf16.msra.mxu0 %v574
      %732 = vmatprep.subr.bf16.mxu0 0
      %733 = vmatpush2.bf16.msra.mxu0 %v573
      %734 = vmatprep.subr.bf16.mxu0 0
      %735 = vmatpush2.bf16.msra.mxu0 %v572
      %736 = vmatprep.subr.bf16.mxu0 0
      %737 = vmatpush2.bf16.msra.mxu0 %v571
      %738 = vmatprep.subr.bf16.mxu0 0
      %739 = vmatpush2.bf16.msra.mxu0 %v570
      %740 = vmatprep.mubr.bf16.mxu0 %v331
      %741 = vmatmul.mubr.bf16.gmra.mxu0 %v330
      %v742 = vpop.f32.mrf.mxu0
      %v743 = vadd.f32 %v702, %v742
      %v744 = vpop.f32.mrf.mxu0
      %v745 = vpop.f32.mrf.mxu0
      %v746 = vadd.f32 %v705, %v745
      %v747 = vpop.f32.mrf.mxu0
      %748 = vdwg.mxu0
      %v749 = vld [vmem:[%s3] sm:$0xff]
      %v750 = vld [vmem:[%s3 + $0x8] sm:$0xff]
      %v751 = vadd.f32 %v743, %v749
      %v752 = vadd.f32 %v746, %v750
      %vm753 = vcmask 261120
      %754 = vst.msk [vmem:[%s197] sm:$0xff] %vm753, %v751
      %755 = vst.msk [vmem:[%s197 + $0x8] sm:$0xff] %vm753, %v752
      %p756 = scmp.lt.s32.totalorder %s15, 1
      %s757 = scalar_select %p756, %s15, 1
      %s758 = smul.addr %s757, 2
      %s759 = smul.addr %s758, 8
      %s760 = scalar_lea.vmem %s4, %s759
      // Predicated region
      $region37: #{sam_mae_encoder_forward.4} parent=35 // pred_check
        %p761 = pneg %p122
      $region38: #{sam_mae_encoder_forward.4} parent=35 // pred_check_branch
        %763 = sbr.rel (%p761) target = $region40
      $region39: #{sam_mae_encoder_forward.4} parent=35 // pred_region
        _
      $region40: #{sam_mae_encoder_forward.4} parent=35 // pred_fallthru
        _
    $region36: #{sam_mae_encoder_forward.4} parent=5 // pred_fallthru
      _
    %p764 = scmp.le.s32.totalorder 2, %s10
    // Predicated region
    $region41: #{sam_mae_encoder_forward.4} parent=5 // pred_check
      %p765 = pneg %p764
    $region42: #{sam_mae_encoder_forward.4} parent=5 // pred_check_branch
      %767 = sbr.rel (%p765) target = $region44
    $region43: #{sam_mae_encoder_forward.4} parent=5 // pred_region
      %s768 = ssub.s32 %s10, 2
      // Predicated region
      $region45: #{sam_mae_encoder_forward.4} parent=43 // pred_check
        %p769 = pneg %p128
      $region46: #{sam_mae_encoder_forward.4} parent=43 // pred_check_branch
        %771 = sbr.rel (%p769) target = $region48
      $region47: #{sam_mae_encoder_forward.4} parent=43 // pred_region
        %p772 = scmp.lt.s32.totalorder %s16, 1
        %s773 = scalar_select %p772, %s16, 1
        %s774 = smul.addr %s773, 2
        %s775 = smul.addr %s774, 8
        %s776 = scalar_lea.vmem %s4, %s775
      $region48: #{sam_mae_encoder_forward.4} parent=43 // pred_fallthru
        _
    $region44: #{sam_mae_encoder_forward.4} parent=5 // pred_fallthru
      _
  $region6: #{sam_mae_encoder_forward.4} parent=0 // loop_footer
    %s14 = sadd.s32 1, %s10
  $region7: #{sam_mae_encoder_forward.4} parent=0 // loop_footer_branch
    %9 = sbr.rel target = $region3
  $region8: #{sam_mae_encoder_forward.4} parent=0 // loop_exit
    _

// kernel: sam_mae_encoder_forward.5
$region0: #{sam_mae_encoder_forward.5}
  #allocation0 [shape = 'u32[]', space=smem, size = 0x4, offset = 0x4, fixed_abs, tag = 'smem constant byte address 0x4 - core index']
  #allocation1 [shape = 'u32[144,128]{1,0:T(1,128)}', space=vmem, size = 0x12000, scoped, tag = 'internal scratch']
  %s0 = inlined_call_operand.vmem [shape: f32[8,4,32], index: 0, kind: input, shape index: {}]
  %s1 = inlined_call_operand.vmem [shape: f32[1,32], index: 1, kind: input, shape index: {}]
  %s2 = inlined_call_operand.vmem [shape: f32[1,32], index: 2, kind: input, shape index: {}]
  %s3 = inlined_call_operand.vmem [shape: bf16[32,96], index: 3, kind: input, shape index: {}]
  %s4 = inlined_call_operand.vmem [shape: f32[1,96], index: 4, kind: input, shape index: {}]
  %s5 = inlined_call_operand.vmem [shape: bf16[2,8,4], index: 5, kind: input, shape index: {}]
  %s6 = inlined_call_operand.vmem [shape: bf16[2,8,4], index: 6, kind: input, shape index: {}]
  %s7 = inlined_call_operand.vmem [shape: f32[2,4,1], index: 7, kind: input, shape index: {}]
  %s8 = inlined_call_operand.vmem [shape: f32[2,4,1], index: 8, kind: input, shape index: {}]
  %s9 = inlined_call_operand.vmem [shape: bf16[4,8,32], index: 9, kind: input, shape index: {}]
  %s10 = inlined_call_operand.vmem [shape: f32[1,32], index: 10, kind: input, shape index: {}]
  %s11 = inlined_call_operand.vmem [shape: f32[1,32], index: 11, kind: input, shape index: {}]
  %s12 = inlined_call_operand.vmem [shape: f32[1,32], index: 12, kind: input, shape index: {}]
  %s13 = inlined_call_operand.vmem [shape: bf16[32,128], index: 13, kind: input, shape index: {}]
  %s14 = inlined_call_operand.vmem [shape: f32[1,128], index: 14, kind: input, shape index: {}]
  %s15 = inlined_call_operand.vmem [shape: bf16[128,32], index: 15, kind: input, shape index: {}]
  %s16 = inlined_call_operand.vmem [shape: f32[1,32], index: 16, kind: input, shape index: {}]
  %s17 = inlined_call_operand.vmem [shape: f32[8,4,32], index: 17, kind: output, shape index: {}]
  %s18 = sld [smem:[#allocation0]]
  $region108: #{sam_mae_encoder_forward.5} parent=0
    _
  %s20 = ssub.s32 1, %s18
  %s21 = scalar_select 0, %s20, %s18
  loop: start=0, step=1, limit=4
  $region2: #{sam_mae_encoder_forward.5} parent=0 // loop_pre_header
    _
  $region3: #{sam_mae_encoder_forward.5} parent=0 // loop_header
    %s23 = sphi 0, %s27
    %p24 = scmp.ge.s32.totalorder %s23, 4
    %s33 = sphi 0, %s35
    %s36 = sphi 0, %s33
    %s37 = sphi 0, %s36
    %s53 = sphi 0, %s37
    %s57 = sphi 0, %s57
    %s59 = sphi 0, %s57
    %s60 = sphi 0, %s59
    %s74 = sphi 0, %s60
    %s78 = sphi 0, %s78
    %s80 = sphi 0, %s78
    %s81 = sphi 0, %s80
    %s95 = sphi 0, %s81
    %s99 = sphi 0, %s99
    %s101 = sphi 0, %s99
    %s102 = sphi 0, %s101
    %s116 = sphi 0, %s102
    %s120 = sphi 0, %s120
    %s122 = sphi 0, %s120
    %s123 = sphi 0, %s122
    %s137 = sphi 0, %s123
    %s141 = sphi 0, %s141
    %s143 = sphi 0, %s141
    %s144 = sphi 0, %s143
    %s158 = sphi 0, %s144
    %s162 = sphi 0, %s162
    %s164 = sphi 0, %s162
    %s165 = sphi 0, %s164
    %s179 = sphi 0, %s165
    %s183 = sphi 0, %s183
    %s185 = sphi 0, %s183
    %s186 = sphi 0, %s185
    %s200 = sphi 0, %s186
    %s204 = sphi 0, %s204
    %s206 = sphi 0, %s204
    %s207 = sphi 0, %s206
    %s221 = sphi 0, %s207
    %s225 = sphi 0, %s225
    %s227 = sphi 0, %s225
    %s228 = sphi 0, %s227
    %s242 = sphi 0, %s228
    %s246 = sphi 0, %s246
    %s248 = sphi 0, %s246
    %s249 = sphi 0, %s248
    %s263 = sphi 0, %s249
    %s267 = sphi 0, %s267
    %s269 = sphi 0, %s267
    %s270 = sphi 0, %s269
    %s284 = sphi 0, %s270
    %s288 = sphi 0, %s288
    %s290 = sphi 0, %s288
    %s291 = sphi 0, %s290
    %s305 = sphi 0, %s291
    %s309 = sphi 0, %s309
    %s311 = sphi 0, %s309
    %s312 = sphi 0, %s311
    %s326 = sphi 0, %s312
    %s330 = sphi 0, %s330
    %s332 = sphi 0, %s330
    %s333 = sphi 0, %s332
    %s347 = sphi 0, %s333
    %s351 = sphi 0, %s351
    %s353 = sphi 0, %s351
    %s354 = sphi 0, %s353
    %s368 = sphi 0, %s354
    %s372 = sphi 0, %s372
    %s374 = sphi 0, %s372
    %s375 = sphi 0, %s374
    %s389 = sphi 0, %s375
    %s395 = sphi 0, %s397
    %s398 = sphi 0, %s395
    %s399 = sphi 0, %s398
    %s415 = sphi 0, %s399
  $region4: #{sam_mae_encoder_forward.5} parent=0 // loop_header_branch
    %26 = sbr.rel (%p24) target = $region8
  $region5: #{sam_mae_encoder_forward.5} parent=0 // loop_body
    %s28 = ssub.s32 %s23, 1
    %s29 = ssub.s32 %s23, 2
    %s30 = sadd.s32 %s23, 1
    %s31 = ssub.s32 %s23, %s30
    %p32 = scmp.eq.s32.totalorder %s31, 0
    %s34 = sadd.s32 %s33, 1
    %s35 = scalar_select %p32, %s33, %s34
    %p38 = pneg %p32
    %p39 = scmp.eq.s32.totalorder %s23, 1
    %p40 = por %p38, %p39
    %p41 = scmp.ne.s32.totalorder %s33, %s36
    %p42 = scmp.eq.s32.totalorder %s23, 0
    %p43 = por %p41, %p42
    %p44 = scmp.ne.s32.totalorder %s33, %s36
    %p45 = scmp.eq.s32.totalorder %s28, 1
    %p46 = por %p44, %p45
    %p47 = scmp.ne.s32.totalorder %s36, %s37
    %p48 = scmp.eq.s32.totalorder %s28, 0
    %p49 = por %p47, %p48
    %p50 = scmp.ne.s32.totalorder %s36, %s37
    %p51 = scmp.eq.s32.totalorder %s29, 1
    %p52 = por %p50, %p51
    %p54 = scmp.ne.s32.totalorder %s37, %s53
    %p55 = scmp.eq.s32.totalorder %s29, 0
    %p56 = por %p54, %p55
    %s58 = sadd.s32 %s57, 1
    %p61 = scmp.eq.s32.totalorder %s23, 1
    %p62 = scmp.ne.s32.totalorder %s57, %s59
    %p63 = scmp.eq.s32.totalorder %s23, 0
    %p64 = por %p62, %p63
    %p65 = scmp.ne.s32.totalorder %s57, %s59
    %p66 = scmp.eq.s32.totalorder %s28, 1
    %p67 = por %p65, %p66
    %p68 = scmp.ne.s32.totalorder %s59, %s60
    %p69 = scmp.eq.s32.totalorder %s28, 0
    %p70 = por %p68, %p69
    %p71 = scmp.ne.s32.totalorder %s59, %s60
    %p72 = scmp.eq.s32.totalorder %s29, 1
    %p73 = por %p71, %p72
    %p75 = scmp.ne.s32.totalorder %s60, %s74
    %p76 = scmp.eq.s32.totalorder %s29, 0
    %p77 = por %p75, %p76
    %s79 = sadd.s32 %s78, 1
    %p82 = scmp.eq.s32.totalorder %s23, 1
    %p83 = scmp.ne.s32.totalorder %s78, %s80
    %p84 = scmp.eq.s32.totalorder %s23, 0
    %p85 = por %p83, %p84
    %p86 = scmp.ne.s32.totalorder %s78, %s80
    %p87 = scmp.eq.s32.totalorder %s28, 1
    %p88 = por %p86, %p87
    %p89 = scmp.ne.s32.totalorder %s80, %s81
    %p90 = scmp.eq.s32.totalorder %s28, 0
    %p91 = por %p89, %p90
    %p92 = scmp.ne.s32.totalorder %s80, %s81
    %p93 = scmp.eq.s32.totalorder %s29, 1
    %p94 = por %p92, %p93
    %p96 = scmp.ne.s32.totalorder %s81, %s95
    %p97 = scmp.eq.s32.totalorder %s29, 0
    %p98 = por %p96, %p97
    %s100 = sadd.s32 %s99, 1
    %p103 = scmp.eq.s32.totalorder %s23, 1
    %p104 = scmp.ne.s32.totalorder %s99, %s101
    %p105 = scmp.eq.s32.totalorder %s23, 0
    %p106 = por %p104, %p105
    %p107 = scmp.ne.s32.totalorder %s99, %s101
    %p108 = scmp.eq.s32.totalorder %s28, 1
    %p109 = por %p107, %p108
    %p110 = scmp.ne.s32.totalorder %s101, %s102
    %p111 = scmp.eq.s32.totalorder %s28, 0
    %p112 = por %p110, %p111
    %p113 = scmp.ne.s32.totalorder %s101, %s102
    %p114 = scmp.eq.s32.totalorder %s29, 1
    %p115 = por %p113, %p114
    %p117 = scmp.ne.s32.totalorder %s102, %s116
    %p118 = scmp.eq.s32.totalorder %s29, 0
    %p119 = por %p117, %p118
    %s121 = sadd.s32 %s120, 1
    %p124 = scmp.eq.s32.totalorder %s23, 1
    %p125 = scmp.ne.s32.totalorder %s120, %s122
    %p126 = scmp.eq.s32.totalorder %s23, 0
    %p127 = por %p125, %p126
    %p128 = scmp.ne.s32.totalorder %s120, %s122
    %p129 = scmp.eq.s32.totalorder %s28, 1
    %p130 = por %p128, %p129
    %p131 = scmp.ne.s32.totalorder %s122, %s123
    %p132 = scmp.eq.s32.totalorder %s28, 0
    %p133 = por %p131, %p132
    %p134 = scmp.ne.s32.totalorder %s122, %s123
    %p135 = scmp.eq.s32.totalorder %s29, 1
    %p136 = por %p134, %p135
    %p138 = scmp.ne.s32.totalorder %s123, %s137
    %p139 = scmp.eq.s32.totalorder %s29, 0
    %p140 = por %p138, %p139
    %s142 = sadd.s32 %s141, 1
    %p145 = scmp.eq.s32.totalorder %s23, 1
    %p146 = scmp.ne.s32.totalorder %s141, %s143
    %p147 = scmp.eq.s32.totalorder %s23, 0
    %p148 = por %p146, %p147
    %p149 = scmp.ne.s32.totalorder %s141, %s143
    %p150 = scmp.eq.s32.totalorder %s28, 1
    %p151 = por %p149, %p150
    %p152 = scmp.ne.s32.totalorder %s143, %s144
    %p153 = scmp.eq.s32.totalorder %s28, 0
    %p154 = por %p152, %p153
    %p155 = scmp.ne.s32.totalorder %s143, %s144
    %p156 = scmp.eq.s32.totalorder %s29, 1
    %p157 = por %p155, %p156
    %p159 = scmp.ne.s32.totalorder %s144, %s158
    %p160 = scmp.eq.s32.totalorder %s29, 0
    %p161 = por %p159, %p160
    %s163 = sadd.s32 %s162, 1
    %p166 = scmp.eq.s32.totalorder %s23, 1
    %p167 = scmp.ne.s32.totalorder %s162, %s164
    %p168 = scmp.eq.s32.totalorder %s23, 0
    %p169 = por %p167, %p168
    %p170 = scmp.ne.s32.totalorder %s162, %s164
    %p171 = scmp.eq.s32.totalorder %s28, 1
    %p172 = por %p170, %p171
    %p173 = scmp.ne.s32.totalorder %s164, %s165
    %p174 = scmp.eq.s32.totalorder %s28, 0
    %p175 = por %p173, %p174
    %p176 = scmp.ne.s32.totalorder %s164, %s165
    %p177 = scmp.eq.s32.totalorder %s29, 1
    %p178 = por %p176, %p177
    %p180 = scmp.ne.s32.totalorder %s165, %s179
    %p181 = scmp.eq.s32.totalorder %s29, 0
    %p182 = por %p180, %p181
    %s184 = sadd.s32 %s183, 1
    %p187 = scmp.eq.s32.totalorder %s23, 1
    %p188 = scmp.ne.s32.totalorder %s183, %s185
    %p189 = scmp.eq.s32.totalorder %s23, 0
    %p190 = por %p188, %p189
    %p191 = scmp.ne.s32.totalorder %s183, %s185
    %p192 = scmp.eq.s32.totalorder %s28, 1
    %p193 = por %p191, %p192
    %p194 = scmp.ne.s32.totalorder %s185, %s186
    %p195 = scmp.eq.s32.totalorder %s28, 0
    %p196 = por %p194, %p195
    %p197 = scmp.ne.s32.totalorder %s185, %s186
    %p198 = scmp.eq.s32.totalorder %s29, 1
    %p199 = por %p197, %p198
    %p201 = scmp.ne.s32.totalorder %s186, %s200
    %p202 = scmp.eq.s32.totalorder %s29, 0
    %p203 = por %p201, %p202
    %s205 = sadd.s32 %s204, 1
    %p208 = scmp.eq.s32.totalorder %s23, 1
    %p209 = scmp.ne.s32.totalorder %s204, %s206
    %p210 = scmp.eq.s32.totalorder %s23, 0
    %p211 = por %p209, %p210
    %p212 = scmp.ne.s32.totalorder %s204, %s206
    %p213 = scmp.eq.s32.totalorder %s28, 1
    %p214 = por %p212, %p213
    %p215 = scmp.ne.s32.totalorder %s206, %s207
    %p216 = scmp.eq.s32.totalorder %s28, 0
    %p217 = por %p215, %p216
    %p218 = scmp.ne.s32.totalorder %s206, %s207
    %p219 = scmp.eq.s32.totalorder %s29, 1
    %p220 = por %p218, %p219
    %p222 = scmp.ne.s32.totalorder %s207, %s221
    %p223 = scmp.eq.s32.totalorder %s29, 0
    %p224 = por %p222, %p223
    %s226 = sadd.s32 %s225, 1
    %p229 = scmp.eq.s32.totalorder %s23, 1
    %p230 = scmp.ne.s32.totalorder %s225, %s227
    %p231 = scmp.eq.s32.totalorder %s23, 0
    %p232 = por %p230, %p231
    %p233 = scmp.ne.s32.totalorder %s225, %s227
    %p234 = scmp.eq.s32.totalorder %s28, 1
    %p235 = por %p233, %p234
    %p236 = scmp.ne.s32.totalorder %s227, %s228
    %p237 = scmp.eq.s32.totalorder %s28, 0
    %p238 = por %p236, %p237
    %p239 = scmp.ne.s32.totalorder %s227, %s228
    %p240 = scmp.eq.s32.totalorder %s29, 1
    %p241 = por %p239, %p240
    %p243 = scmp.ne.s32.totalorder %s228, %s242
    %p244 = scmp.eq.s32.totalorder %s29, 0
    %p245 = por %p243, %p244
    %s247 = sadd.s32 %s246, 1
    %p250 = scmp.eq.s32.totalorder %s23, 1
    %p251 = scmp.ne.s32.totalorder %s246, %s248
    %p252 = scmp.eq.s32.totalorder %s23, 0
    %p253 = por %p251, %p252
    %p254 = scmp.ne.s32.totalorder %s246, %s248
    %p255 = scmp.eq.s32.totalorder %s28, 1
    %p256 = por %p254, %p255
    %p257 = scmp.ne.s32.totalorder %s248, %s249
    %p258 = scmp.eq.s32.totalorder %s28, 0
    %p259 = por %p257, %p258
    %p260 = scmp.ne.s32.totalorder %s248, %s249
    %p261 = scmp.eq.s32.totalorder %s29, 1
    %p262 = por %p260, %p261
    %p264 = scmp.ne.s32.totalorder %s249, %s263
    %p265 = scmp.eq.s32.totalorder %s29, 0
    %p266 = por %p264, %p265
    %s268 = sadd.s32 %s267, 1
    %p271 = scmp.eq.s32.totalorder %s23, 1
    %p272 = scmp.ne.s32.totalorder %s267, %s269
    %p273 = scmp.eq.s32.totalorder %s23, 0
    %p274 = por %p272, %p273
    %p275 = scmp.ne.s32.totalorder %s267, %s269
    %p276 = scmp.eq.s32.totalorder %s28, 1
    %p277 = por %p275, %p276
    %p278 = scmp.ne.s32.totalorder %s269, %s270
    %p279 = scmp.eq.s32.totalorder %s28, 0
    %p280 = por %p278, %p279
    %p281 = scmp.ne.s32.totalorder %s269, %s270
    %p282 = scmp.eq.s32.totalorder %s29, 1
    %p283 = por %p281, %p282
    %p285 = scmp.ne.s32.totalorder %s270, %s284
    %p286 = scmp.eq.s32.totalorder %s29, 0
    %p287 = por %p285, %p286
    %s289 = sadd.s32 %s288, 1
    %p292 = scmp.eq.s32.totalorder %s23, 1
    %p293 = scmp.ne.s32.totalorder %s288, %s290
    %p294 = scmp.eq.s32.totalorder %s23, 0
    %p295 = por %p293, %p294
    %p296 = scmp.ne.s32.totalorder %s288, %s290
    %p297 = scmp.eq.s32.totalorder %s28, 1
    %p298 = por %p296, %p297
    %p299 = scmp.ne.s32.totalorder %s290, %s291
    %p300 = scmp.eq.s32.totalorder %s28, 0
    %p301 = por %p299, %p300
    %p302 = scmp.ne.s32.totalorder %s290, %s291
    %p303 = scmp.eq.s32.totalorder %s29, 1
    %p304 = por %p302, %p303
    %p306 = scmp.ne.s32.totalorder %s291, %s305
    %p307 = scmp.eq.s32.totalorder %s29, 0
    %p308 = por %p306, %p307
    %s310 = sadd.s32 %s309, 1
    %p313 = scmp.eq.s32.totalorder %s23, 1
    %p314 = scmp.ne.s32.totalorder %s309, %s311
    %p315 = scmp.eq.s32.totalorder %s23, 0
    %p316 = por %p314, %p315
    %p317 = scmp.ne.s32.totalorder %s309, %s311
    %p318 = scmp.eq.s32.totalorder %s28, 1
    %p319 = por %p317, %p318
    %p320 = scmp.ne.s32.totalorder %s311, %s312
    %p321 = scmp.eq.s32.totalorder %s28, 0
    %p322 = por %p320, %p321
    %p323 = scmp.ne.s32.totalorder %s311, %s312
    %p324 = scmp.eq.s32.totalorder %s29, 1
    %p325 = por %p323, %p324
    %p327 = scmp.ne.s32.totalorder %s312, %s326
    %p328 = scmp.eq.s32.totalorder %s29, 0
    %p329 = por %p327, %p328
    %s331 = sadd.s32 %s330, 1
    %p334 = scmp.eq.s32.totalorder %s23, 1
    %p335 = scmp.ne.s32.totalorder %s330, %s332
    %p336 = scmp.eq.s32.totalorder %s23, 0
    %p337 = por %p335, %p336
    %p338 = scmp.ne.s32.totalorder %s330, %s332
    %p339 = scmp.eq.s32.totalorder %s28, 1
    %p340 = por %p338, %p339
    %p341 = scmp.ne.s32.totalorder %s332, %s333
    %p342 = scmp.eq.s32.totalorder %s28, 0
    %p343 = por %p341, %p342
    %p344 = scmp.ne.s32.totalorder %s332, %s333
    %p345 = scmp.eq.s32.totalorder %s29, 1
    %p346 = por %p344, %p345
    %p348 = scmp.ne.s32.totalorder %s333, %s347
    %p349 = scmp.eq.s32.totalorder %s29, 0
    %p350 = por %p348, %p349
    %s352 = sadd.s32 %s351, 1
    %p355 = scmp.eq.s32.totalorder %s23, 1
    %p356 = scmp.ne.s32.totalorder %s351, %s353
    %p357 = scmp.eq.s32.totalorder %s23, 0
    %p358 = por %p356, %p357
    %p359 = scmp.ne.s32.totalorder %s351, %s353
    %p360 = scmp.eq.s32.totalorder %s28, 1
    %p361 = por %p359, %p360
    %p362 = scmp.ne.s32.totalorder %s353, %s354
    %p363 = scmp.eq.s32.totalorder %s28, 0
    %p364 = por %p362, %p363
    %p365 = scmp.ne.s32.totalorder %s353, %s354
    %p366 = scmp.eq.s32.totalorder %s29, 1
    %p367 = por %p365, %p366
    %p369 = scmp.ne.s32.totalorder %s354, %s368
    %p370 = scmp.eq.s32.totalorder %s29, 0
    %p371 = por %p369, %p370
    %s373 = sadd.s32 %s372, 1
    %p376 = scmp.eq.s32.totalorder %s23, 1
    %p377 = scmp.ne.s32.totalorder %s372, %s374
    %p378 = scmp.eq.s32.totalorder %s23, 0
    %p379 = por %p377, %p378
    %p380 = scmp.ne.s32.totalorder %s372, %s374
    %p381 = scmp.eq.s32.totalorder %s28, 1
    %p382 = por %p380, %p381
    %p383 = scmp.ne.s32.totalorder %s374, %s375
    %p384 = scmp.eq.s32.totalorder %s28, 0
    %p385 = por %p383, %p384
    %p386 = scmp.ne.s32.totalorder %s374, %s375
    %p387 = scmp.eq.s32.totalorder %s29, 1
    %p388 = por %p386, %p387
    %p390 = scmp.ne.s32.totalorder %s375, %s389
    %p391 = scmp.eq.s32.totalorder %s29, 0
    %p392 = por %p390, %p391
    %s393 = ssub.s32 %s23, %s30
    %p394 = scmp.eq.s32.totalorder %s393, 0
    %s396 = sadd.s32 %s395, 1
    %s397 = scalar_select %p394, %s395, %s396
    %p400 = pneg %p394
    %p401 = scmp.eq.s32.totalorder %s23, 1
    %p402 = por %p400, %p401
    %p403 = scmp.ne.s32.totalorder %s395, %s398
    %p404 = scmp.eq.s32.totalorder %s23, 0
    %p405 = por %p403, %p404
    %p406 = scmp.ne.s32.totalorder %s395, %s398
    %p407 = scmp.eq.s32.totalorder %s28, 1
    %p408 = por %p406, %p407
    %p409 = scmp.ne.s32.totalorder %s398, %s399
    %p410 = scmp.eq.s32.totalorder %s28, 0
    %p411 = por %p409, %p410
    %p412 = scmp.ne.s32.totalorder %s398, %s399
    %p413 = scmp.eq.s32.totalorder %s29, 1
    %p414 = por %p412, %p413
    %p416 = scmp.ne.s32.totalorder %s399, %s415
    %p417 = scmp.eq.s32.totalorder %s29, 0
    %p418 = por %p416, %p417
    %p419 = scmp.le.s32.totalorder 1, %s23
    %p420 = scmp.lt.s32.totalorder %s23, 3
    %p421 = pnand %p419, %p420
    %p422 = pneg %p421
    // Predicated region
    $region9: #{sam_mae_encoder_forward.5} parent=5 // pred_check
      _
    $region10: #{sam_mae_encoder_forward.5} parent=5 // pred_check_branch
      %424 = sbr.rel (%p421) target = $region12
    $region11: #{sam_mae_encoder_forward.5} parent=5 // pred_region
      %s425 = ssub.s32 %s23, 1
      // Predicated region
      $region13: #{sam_mae_encoder_forward.5} parent=11 // pred_check
        %p426 = pneg %p70
      $region14: #{sam_mae_encoder_forward.5} parent=11 // pred_check_branch
        %428 = sbr.rel (%p426) target = $region16
      $region15: #{sam_mae_encoder_forward.5} parent=11 // pred_region
        _
      $region16: #{sam_mae_encoder_forward.5} parent=11 // pred_fallthru
        _
      // Predicated region
      $region17: #{sam_mae_encoder_forward.5} parent=11 // pred_check
        %p429 = pneg %p91
      $region18: #{sam_mae_encoder_forward.5} parent=11 // pred_check_branch
        %431 = sbr.rel (%p429) target = $region20
      $region19: #{sam_mae_encoder_forward.5} parent=11 // pred_region
        _
      $region20: #{sam_mae_encoder_forward.5} parent=11 // pred_fallthru
        _
      // Predicated region
      $region21: #{sam_mae_encoder_forward.5} parent=11 // pred_check
        %p432 = pneg %p112
      $region22: #{sam_mae_encoder_forward.5} parent=11 // pred_check_branch
        %434 = sbr.rel (%p432) target = $region24
      $region23: #{sam_mae_encoder_forward.5} parent=11 // pred_region
        _
      $region24: #{sam_mae_encoder_forward.5} parent=11 // pred_fallthru
        _
      // Predicated region
      $region25: #{sam_mae_encoder_forward.5} parent=11 // pred_check
        %p435 = pneg %p133
      $region26: #{sam_mae_encoder_forward.5} parent=11 // pred_check_branch
        %437 = sbr.rel (%p435) target = $region28
      $region27: #{sam_mae_encoder_forward.5} parent=11 // pred_region
        _
      $region28: #{sam_mae_encoder_forward.5} parent=11 // pred_fallthru
        _
      // Predicated region
      $region29: #{sam_mae_encoder_forward.5} parent=11 // pred_check
        %p438 = pneg %p154
      $region30: #{sam_mae_encoder_forward.5} parent=11 // pred_check_branch
        %440 = sbr.rel (%p438) target = $region32
      $region31: #{sam_mae_encoder_forward.5} parent=11 // pred_region
        _
      $region32: #{sam_mae_encoder_forward.5} parent=11 // pred_fallthru
        _
      // Predicated region
      $region33: #{sam_mae_encoder_forward.5} parent=11 // pred_check
        %p441 = pneg %p175
      $region34: #{sam_mae_encoder_forward.5} parent=11 // pred_check_branch
        %443 = sbr.rel (%p441) target = $region36
      $region35: #{sam_mae_encoder_forward.5} parent=11 // pred_region
        _
      $region36: #{sam_mae_encoder_forward.5} parent=11 // pred_fallthru
        _
      // Predicated region
      $region37: #{sam_mae_encoder_forward.5} parent=11 // pred_check
        %p444 = pneg %p196
      $region38: #{sam_mae_encoder_forward.5} parent=11 // pred_check_branch
        %446 = sbr.rel (%p444) target = $region40
      $region39: #{sam_mae_encoder_forward.5} parent=11 // pred_region
        _
      $region40: #{sam_mae_encoder_forward.5} parent=11 // pred_fallthru
        _
      // Predicated region
      $region41: #{sam_mae_encoder_forward.5} parent=11 // pred_check
        %p447 = pneg %p217
      $region42: #{sam_mae_encoder_forward.5} parent=11 // pred_check_branch
        %449 = sbr.rel (%p447) target = $region44
      $region43: #{sam_mae_encoder_forward.5} parent=11 // pred_region
        _
      $region44: #{sam_mae_encoder_forward.5} parent=11 // pred_fallthru
        _
      // Predicated region
      $region45: #{sam_mae_encoder_forward.5} parent=11 // pred_check
        %p450 = pneg %p238
      $region46: #{sam_mae_encoder_forward.5} parent=11 // pred_check_branch
        %452 = sbr.rel (%p450) target = $region48
      $region47: #{sam_mae_encoder_forward.5} parent=11 // pred_region
        _
      $region48: #{sam_mae_encoder_forward.5} parent=11 // pred_fallthru
        _
      // Predicated region
      $region49: #{sam_mae_encoder_forward.5} parent=11 // pred_check
        %p453 = pneg %p259
      $region50: #{sam_mae_encoder_forward.5} parent=11 // pred_check_branch
        %455 = sbr.rel (%p453) target = $region52
      $region51: #{sam_mae_encoder_forward.5} parent=11 // pred_region
        _
      $region52: #{sam_mae_encoder_forward.5} parent=11 // pred_fallthru
        _
      // Predicated region
      $region53: #{sam_mae_encoder_forward.5} parent=11 // pred_check
        %p456 = pneg %p280
      $region54: #{sam_mae_encoder_forward.5} parent=11 // pred_check_branch
        %458 = sbr.rel (%p456) target = $region56
      $region55: #{sam_mae_encoder_forward.5} parent=11 // pred_region
        _
      $region56: #{sam_mae_encoder_forward.5} parent=11 // pred_fallthru
        _
      // Predicated region
      $region57: #{sam_mae_encoder_forward.5} parent=11 // pred_check
        %p459 = pneg %p301
      $region58: #{sam_mae_encoder_forward.5} parent=11 // pred_check_branch
        %461 = sbr.rel (%p459) target = $region60
      $region59: #{sam_mae_encoder_forward.5} parent=11 // pred_region
        _
      $region60: #{sam_mae_encoder_forward.5} parent=11 // pred_fallthru
        _
      // Predicated region
      $region61: #{sam_mae_encoder_forward.5} parent=11 // pred_check
        %p462 = pneg %p322
      $region62: #{sam_mae_encoder_forward.5} parent=11 // pred_check_branch
        %464 = sbr.rel (%p462) target = $region64
      $region63: #{sam_mae_encoder_forward.5} parent=11 // pred_region
        _
      $region64: #{sam_mae_encoder_forward.5} parent=11 // pred_fallthru
        _
      // Predicated region
      $region65: #{sam_mae_encoder_forward.5} parent=11 // pred_check
        %p465 = pneg %p343
      $region66: #{sam_mae_encoder_forward.5} parent=11 // pred_check_branch
        %467 = sbr.rel (%p465) target = $region68
      $region67: #{sam_mae_encoder_forward.5} parent=11 // pred_region
        _
      $region68: #{sam_mae_encoder_forward.5} parent=11 // pred_fallthru
        _
      // Predicated region
      $region69: #{sam_mae_encoder_forward.5} parent=11 // pred_check
        %p468 = pneg %p364
      $region70: #{sam_mae_encoder_forward.5} parent=11 // pred_check_branch
        %470 = sbr.rel (%p468) target = $region72
      $region71: #{sam_mae_encoder_forward.5} parent=11 // pred_region
        _
      $region72: #{sam_mae_encoder_forward.5} parent=11 // pred_fallthru
        _
      // Predicated region
      $region73: #{sam_mae_encoder_forward.5} parent=11 // pred_check
        %p471 = pneg %p385
      $region74: #{sam_mae_encoder_forward.5} parent=11 // pred_check_branch
        %473 = sbr.rel (%p471) target = $region76
      $region75: #{sam_mae_encoder_forward.5} parent=11 // pred_region
        _
      $region76: #{sam_mae_encoder_forward.5} parent=11 // pred_fallthru
        _
    $region12: #{sam_mae_encoder_forward.5} parent=5 // pred_fallthru
      _
    %p474 = scmp.lt.s32.totalorder %s23, 2
    // Predicated region
    $region77: #{sam_mae_encoder_forward.5} parent=5 // pred_check
      %p475 = pneg %p474
    $region78: #{sam_mae_encoder_forward.5} parent=5 // pred_check_branch
      %477 = sbr.rel (%p475) target = $region80
    $region79: #{sam_mae_encoder_forward.5} parent=5 // pred_region
      // Predicated region
      $region81: #{sam_mae_encoder_forward.5} parent=79 // pred_check
        %p478 = pneg %p43
      $region82: #{sam_mae_encoder_forward.5} parent=79 // pred_check_branch
        %480 = sbr.rel (%p478) target = $region84
      $region83: #{sam_mae_encoder_forward.5} parent=79 // pred_region
        %s481 = smul.u32 4, %s23
        %p482 = scmp.lt.s32.totalorder %s481, 7
        %s483 = scalar_select %p482, %s481, 7
        %s484 = smul.addr %s483, 4
        %s485 = scalar_lea.vmem %s0, %s484
        %s486 = smul.u32 4, %s23
      $region84: #{sam_mae_encoder_forward.5} parent=79 // pred_fallthru
        _
    $region80: #{sam_mae_encoder_forward.5} parent=5 // pred_fallthru
      _
    %p487 = scmp.le.s32.totalorder 1, %s23
    %p488 = scmp.lt.s32.totalorder %s23, 3
    %p489 = pnand %p487, %p488
    %p490 = pneg %p489
    // Predicated region
    $region85: #{sam_mae_encoder_forward.5} parent=5 // pred_check
      _
    $region86: #{sam_mae_encoder_forward.5} parent=5 // pred_check_branch
      %492 = sbr.rel (%p489) target = $region88
    $region87: #{sam_mae_encoder_forward.5} parent=5 // pred_region
      %s493 = ssub.s32 %s23, 1
      %s494 = smul.u32 4, %s28
      %p495 = scmp.lt.s32.totalorder %s494, 7
      %s496 = scalar_select %p495, %s494, 7
      %s497 = smul.addr %s496, 4
      %s498 = scalar_lea.vmem %s0, %s497
      %p499 = pneg %p49
      %p500 = pneg %p46
      %p501 = pneg %p70
      %p502 = pneg %p67
      %p503 = pneg %p91
      %p504 = pneg %p88
      %p505 = pneg %p112
      %p506 = pneg %p109
      %p507 = pneg %p133
      %p508 = pneg %p130
      %p509 = pneg %p154
      %p510 = pneg %p151
      %p511 = pneg %p175
      %p512 = pneg %p172
      %p513 = pneg %p196
      %p514 = pneg %p193
      %p515 = pneg %p217
      %p516 = pneg %p214
      %p517 = pneg %p238
      %p518 = pneg %p235
      %p519 = pneg %p259
      %p520 = pneg %p256
      %p521 = pneg %p280
      %p522 = pneg %p277
      %p523 = pneg %p301
      %p524 = pneg %p298
      %p525 = pneg %p322
      %p526 = pneg %p319
      %p527 = pneg %p343
      %p528 = pneg %p340
      %p529 = pneg %p364
      %p530 = pneg %p361
      %p531 = pneg %p385
      %p532 = pneg %p382
      %p533 = pneg %p411
      %p534 = pneg %p408
      %s535 = smul.u32 4, %s28
      %p536 = scmp.lt.s32.totalorder %s535, 7
      %s537 = scalar_select %p536, %s535, 7
      %s538 = smul.addr %s537, 4
      %s539 = scalar_lea.vmem %s17, %s538
      %s540 = smul.u32 4, %s28
      %p541 = scmp.lt.s32.totalorder %s540, 7
      %s542 = scalar_select %p541, %s540, 7
      %s543 = smul.addr %s542, 4
      %s544 = scalar_lea.vmem %s0, %s543
      %s545 = smul.u32 4, %s28
      %s546 = smul.u32 4, %s28
      %p547 = scmp.lt.s32.totalorder %s546, 7
      %s548 = scalar_select %p547, %s546, 7
      %s549 = smul.addr %s548, 4
      %s550 = scalar_lea.vmem %s17, %s549
      %s551 = smul.u32 4, %s28
      %v553 = vld [vmem:[%s1] sm:$0x1]
      %v554 = vld [vmem:[%s2] sm:$0x1]
      %v555 = vld [vmem:[%s3] sm:$0xf]
      %v556 = vld [vmem:[%s3 + $0x4] sm:$0xf]
      %v557 = vld [vmem:[%s3 + $0x8] sm:$0xf]
      %v558 = vld [vmem:[%s3 + $0xc] sm:$0xf]
      %v559 = vld [vmem:[%s4] sm:$0x1]
      %v560 = vld [vmem:[%s10] sm:$0x1]
      %v561 = vld [vmem:[%s11] sm:$0x1]
      %v562 = vld [vmem:[%s12] sm:$0x1]
      %v563 = vld [vmem:[%s13] sm:$0xf]
      %v564 = vld [vmem:[%s13 + $0x4] sm:$0xf]
      %v565 = vld [vmem:[%s13 + $0x8] sm:$0xf]
      %v566 = vld [vmem:[%s13 + $0xc] sm:$0xf]
      %v567 = vld [vmem:[%s14] sm:$0x1]
      %v568 = vld [vmem:[%s15] sm:$0xf]
      %v569 = vld [vmem:[%s15 + $0x4] sm:$0xf]
      %v570 = vld [vmem:[%s15 + $0x8] sm:$0xf]
      %v571 = vld [vmem:[%s15 + $0xc] sm:$0xf]
      %v572 = vld [vmem:[%s15 + $0x10] sm:$0xf]
      %v573 = vld [vmem:[%s15 + $0x14] sm:$0xf]
      %v574 = vld [vmem:[%s15 + $0x18] sm:$0xf]
      %v575 = vld [vmem:[%s15 + $0x1c] sm:$0xf]
      %v576 = vld [vmem:[%s15 + $0x20] sm:$0xf]
      %v577 = vld [vmem:[%s15 + $0x24] sm:$0xf]
      %v578 = vld [vmem:[%s15 + $0x28] sm:$0xf]
      %v579 = vld [vmem:[%s15 + $0x2c] sm:$0xf]
      %v580 = vld [vmem:[%s15 + $0x30] sm:$0xf]
      %v581 = vld [vmem:[%s15 + $0x34] sm:$0xf]
      %v582 = vld [vmem:[%s15 + $0x38] sm:$0xf]
      %v583 = vld [vmem:[%s15 + $0x3c] sm:$0xf]
      %v584 = vld [vmem:[%s16] sm:$0x1]
      %v585 = vld [vmem:[%s5] sm:$0xf]
      %s586 = scalar_lea.vmem %s5, 4
      %v587 = vld [vmem:[%s586] sm:$0xf]
      %v588 = vld [vmem:[%s6] sm:$0xf]
      %s589 = scalar_lea.vmem %s6, 4
      %v590 = vld [vmem:[%s589] sm:$0xf]
      %v591 = vld [vmem:[%s7] sm:$0xf]
      %v592 = vpack.c.bf16 %v591, %v591
      %s593 = scalar_lea.vmem %s7, 4
      %v594 = vld [vmem:[%s593] sm:$0xf]
      %v595 = vpack.c.bf16 %v594, %v594
      %v596 = vld [vmem:[%s8] sm:$0xf]
      %v597 = vpack.c.bf16 %v596, %v596
      %s598 = scalar_lea.vmem %s8, 4
      %v599 = vld [vmem:[%s598] sm:$0xf]
      %v600 = vpack.c.bf16 %v599, %v599
      %v601 = vld [vmem:[%s9] sm:$0xf]
      %s602 = scalar_lea.vmem %s9, 4
      %v603 = vld [vmem:[%s602] sm:$0xf]
      %s604 = scalar_lea.vmem %s9, 8
      %v605 = vld [vmem:[%s604] sm:$0xf]
      %s606 = scalar_lea.vmem %s9, 12
      %v607 = vld [vmem:[%s606] sm:$0xf]
      loop: start=0, step=1, limit=4
      $region89: #{sam_mae_encoder_forward.5} parent=87 // loop_pre_header
        _
      $region90: #{sam_mae_encoder_forward.5} parent=87 // loop_header
        %s609 = sphi 0, %s613
        %p610 = scmp.ge.s32.totalorder %s609, 4
      $region91: #{sam_mae_encoder_forward.5} parent=87 // loop_header_branch
        %612 = sbr.rel (%p610) target = $region95
      $region92: #{sam_mae_encoder_forward.5} parent=87 // loop_body
        %s614 = smul.u32 %s609, 4
        %s615 = scalar_lea.vmem %s544, %s614
        %v616 = vld [vmem:[%s615] sm:$0xf]
        %vm617 = vcmask 257024
        %v618 = vsel %vm617, %v616, 0.0
        %619 = vadd.xlane.f32.xlu0 %v618
        %v620 = vpop.xlane.xlu0 %619
        %v621 = vrcp.pop 32.0
        %v622 = vmul.f32 %v620, %v621
        %v623 = vsub.f32 %v616, %v622
        %v624 = vmul.f32 %v623, %v623
        %v625 = vsel %vm617, %v624, 0.0
        %626 = vadd.xlane.f32.xlu0 %v625
        %v627 = vpop.xlane.xlu0 %626
        %v628 = vmul.f32 %v627, %v621
        %v629 = vadd.f32 %v628, 1e-06
        %v630 = vrsqrt.pop %v629
        %v631 = vmul.f32 %v623, %v630
        %v633 = vlaneseq
        %v634 = vshrl.u32 %v633, 7
        %v635 = vsub.s32 0, %v634
        %v636 = vrot.slane %v553, %v635
        %v638 = vmul.f32 %v631, %v636
        %v640 = vlaneseq
        %v641 = vshrl.u32 %v640, 7
        %v642 = vsub.s32 0, %v641
        %v643 = vrot.slane %v554, %v642
        %v645 = vadd.f32 %v638, %v643
        %v646 = vpack.c.bf16 %v645, %v645
        %v648 = vlaneseq
        %v649 = vshrl.u32 %v648, 7
        %v650 = vsub.s32 0, %v649
        %v651 = vrot.slane %v559, %v650
        %v657 = vunpack.c.l.b16 %v555
        %v658 = vunpack.c.l.b16 %v556
        %v659 = vunpack.c.l.b16 %v557
        %v660 = vunpack.c.l.b16 %v558
        %v661 = vpack.c.b16 %v658, %v657
        %v662 = vpack.c.b16 %v660, %v659
        %vm665 = vcmask 261120
        %v667 = vsel %vm665, %v646, 0
        %669 = vmatprep.subr.bf16.mxu0 0
        %670 = vmatpush1.bf16.msra.mxu0 0
        %671 = vmatprep.subr.bf16.mxu0 0
        %672 = vmatpush1.bf16.msra.mxu0 0
        %673 = vmatprep.subr.bf16.mxu0 0
        %674 = vmatpush1.bf16.msra.mxu0 0
        %675 = vmatprep.subr.bf16.mxu0 0
        %676 = vmatpush1.bf16.msra.mxu0 0
        %677 = vmatprep.subr.bf16.mxu0 0
        %678 = vmatpush1.bf16.msra.mxu0 0
        %679 = vmatprep.subr.bf16.mxu0 0
        %680 = vmatpush1.bf16.msra.mxu0 0
        %681 = vmatprep.subr.bf16.mxu0 0
        %682 = vmatpush1.bf16.msra.mxu0 %v662
        %683 = vmatprep.subr.bf16.mxu0 0
        %684 = vmatpush1.bf16.msra.mxu0 %v661
        %685 = vmatprep.subr.bf16.mxu0 0
        %686 = vmatpush2.bf16.msra.mxu0 0
        %687 = vmatprep.subr.bf16.mxu0 0
        %688 = vmatpush2.bf16.msra.mxu0 0
        %689 = vmatprep.subr.bf16.mxu0 0
        %690 = vmatpush2.bf16.msra.mxu0 0
        %691 = vmatprep.subr.bf16.mxu0 0
        %692 = vmatpush2.bf16.msra.mxu0 0
        %693 = vmatprep.subr.bf16.mxu0 0
        %694 = vmatpush2.bf16.msra.mxu0 0
        %695 = vmatprep.subr.bf16.mxu0 0
        %696 = vmatpush2.bf16.msra.mxu0 0
        %697 = vmatprep.subr.bf16.mxu0 0
        %698 = vmatpush2.bf16.msra.mxu0 0
        %699 = vmatprep.subr.bf16.mxu0 0
        %700 = vmatpush2.bf16.msra.mxu0 0
        %701 = vmatprep.mubr.bf16.mxu0 0
        %702 = vmatmul.mubr.bf16.gmra.mxu0 %v667
        %v703 = vpop.f32.mrf.mxu0
        %v704 = vadd.f32 %v651, %v703
        %v705 = vpop.f32.mrf.mxu0
        %v706 = vpop.f32.mrf.mxu0
        %v707 = vpop.f32.mrf.mxu0
        %708 = vdwg.mxu0
        %v709 = vpack.c.bf16 %v704, %v704
        %711 = vset.pattern.permute.xlu0 0
        %712 = vperm.xlu0 %711, %v592
        %v713 = vpop.permute.xlu0 %712
        %v715 = vmul.bf16 %v713, %v709
        %vm716 = vcmask 64512
        %v718 = vsel %vm716, %v715, 0
        %vm720 = vcmask 1043456
        %v722 = vsel %vm720, %v585, 0
        %724 = vmatprep.subr.bf16.mxu0 0
        %725 = vmatpush1.bf16.msra.mxu0 0
        %726 = vmatprep.subr.bf16.mxu0 0
        %727 = vmatpush1.bf16.msra.mxu0 0
        %728 = vmatprep.subr.bf16.mxu0 0
        %729 = vmatpush1.bf16.msra.mxu0 0
        %730 = vmatprep.subr.bf16.mxu0 0
        %731 = vmatpush1.bf16.msra.mxu0 0
        %732 = vmatprep.subr.bf16.mxu0 0
        %733 = vmatpush1.bf16.msra.mxu0 0
        %734 = vmatprep.subr.bf16.mxu0 0
        %735 = vmatpush1.bf16.msra.mxu0 0
        %736 = vmatprep.subr.bf16.mxu0 0
        %737 = vmatpush1.bf16.msra.mxu0 0
        %738 = vmatprep.subr.bf16.mxu0 0
        %739 = vmatpush1.bf16.msra.mxu0 %v722
        %740 = vmatprep.subr.bf16.mxu0 0
        %741 = vmatpush2.bf16.msra.mxu0 0
        %742 = vmatprep.subr.bf16.mxu0 0
        %743 = vmatpush2.bf16.msra.mxu0 0
        %744 = vmatprep.subr.bf16.mxu0 0
        %745 = vmatpush2.bf16.msra.mxu0 0
        %746 = vmatprep.subr.bf16.mxu0 0
        %747 = vmatpush2.bf16.msra.mxu0 0
        %748 = vmatprep.subr.bf16.mxu0 0
        %749 = vmatpush2.bf16.msra.mxu0 0
        %750 = vmatprep.subr.bf16.mxu0 0
        %751 = vmatpush2.bf16.msra.mxu0 0
        %752 = vmatprep.subr.bf16.mxu0 0
        %753 = vmatpush2.bf16.msra.mxu0 0
        %754 = vmatprep.subr.bf16.mxu0 0
        %755 = vmatpush2.bf16.msra.mxu0 0
        %756 = vmatprep.mubr.bf16.mxu0 0
        %757 = vmatmul.mubr.bf16.gmra.mxu0 %v718
        %v758 = vpop.f32.mrf.mxu0
        %v759 = vadd.f32 0.0, %v758
        %v760 = vpop.f32.mrf.mxu0
        %v761 = vpop.f32.mrf.mxu0
        %v762 = vpop.f32.mrf.mxu0
        %763 = vdwg.mxu0
        %765 = vrot.lane.b32.xlu0 %v709, 96
        %v766 = vpop.permute.xlu0 %765
        %v768 = vsel %vm716, %v709, 0
        %v771 = vsel %vm716, %v766, 0
        %773 = vmatprep.subr.bf16.mxu0 0
        %774 = vmatpush1.bf16.xpose.msra.mxu0 0
        %775 = vmatprep.subr.bf16.mxu0 0
        %776 = vmatpush1.bf16.xpose.msra.mxu0 0
        %777 = vmatprep.subr.bf16.mxu0 0
        %778 = vmatpush1.bf16.xpose.msra.mxu0 0
        %779 = vmatprep.subr.bf16.mxu0 0
        %780 = vmatpush1.bf16.xpose.msra.mxu0 0
        %781 = vmatprep.subr.bf16.mxu0 0
        %782 = vmatpush1.bf16.xpose.msra.mxu0 0
        %783 = vmatprep.subr.bf16.mxu0 0
        %784 = vmatpush1.bf16.xpose.msra.mxu0 0
        %785 = vmatprep.subr.bf16.mxu0 0
        %786 = vmatpush1.bf16.xpose.msra.mxu0 0
        %787 = vmatprep.subr.bf16.mxu0 0
        %788 = vmatpush1.bf16.xpose.msra.mxu0 %v771
        %789 = vmatprep.subr.bf16.mxu0 0
        %790 = vmatpush2.bf16.xpose.msra.mxu0 0
        %791 = vmatprep.subr.bf16.mxu0 0
        %792 = vmatpush2.bf16.xpose.msra.mxu0 0
        %793 = vmatprep.subr.bf16.mxu0 0
        %794 = vmatpush2.bf16.xpose.msra.mxu0 0
        %795 = vmatprep.subr.bf16.mxu0 0
        %796 = vmatpush2.bf16.xpose.msra.mxu0 0
        %797 = vmatprep.subr.bf16.mxu0 0
        %798 = vmatpush2.bf16.xpose.msra.mxu0 0
        %799 = vmatprep.subr.bf16.mxu0 0
        %800 = vmatpush2.bf16.xpose.msra.mxu0 0
        %801 = vmatprep.subr.bf16.mxu0 0
        %802 = vmatpush2.bf16.xpose.msra.mxu0 0
        %803 = vmatprep.subr.bf16.mxu0 0
        %804 = vmatpush2.bf16.xpose.msra.mxu0 0
        %805 = vmatprep.mubr.bf16.mxu0 0
        %806 = vmatmul.mubr.bf16.gmra.mxu0 %v768
        %v807 = vpop.f32.mrf.mxu0
        %v808 = vadd.f32 %v759, %v807
        %v809 = vpop.f32.mrf.mxu0
        %v810 = vpop.f32.mrf.mxu0
        %v811 = vpop.f32.mrf.mxu0
        %812 = vdwg.mxu0
        %814 = vset.pattern.permute.xlu0 0
        %815 = vperm.xlu0 %814, %v595
        %v816 = vpop.permute.xlu0 %815
        %v818 = vmul.bf16 %v816, %v709
        %v820 = vsel %vm716, %v818, 0
        %v823 = vsel %vm720, %v587, 0
        %825 = vmatprep.subr.bf16.mxu0 0
        %826 = vmatpush1.bf16.msra.mxu0 0
        %827 = vmatprep.subr.bf16.mxu0 0
        %828 = vmatpush1.bf16.msra.mxu0 0
        %829 = vmatprep.subr.bf16.mxu0 0
        %830 = vmatpush1.bf16.msra.mxu0 0
        %831 = vmatprep.subr.bf16.mxu0 0
        %832 = vmatpush1.bf16.msra.mxu0 0
        %833 = vmatprep.subr.bf16.mxu0 0
        %834 = vmatpush1.bf16.msra.mxu0 0
        %835 = vmatprep.subr.bf16.mxu0 0
        %836 = vmatpush1.bf16.msra.mxu0 0
        %837 = vmatprep.subr.bf16.mxu0 0
        %838 = vmatpush1.bf16.msra.mxu0 0
        %839 = vmatprep.subr.bf16.mxu0 0
        %840 = vmatpush1.bf16.msra.mxu0 %v823
        %841 = vmatprep.subr.bf16.mxu0 0
        %842 = vmatpush2.bf16.msra.mxu0 0
        %843 = vmatprep.subr.bf16.mxu0 0
        %844 = vmatpush2.bf16.msra.mxu0 0
        %845 = vmatprep.subr.bf16.mxu0 0
        %846 = vmatpush2.bf16.msra.mxu0 0
        %847 = vmatprep.subr.bf16.mxu0 0
        %848 = vmatpush2.bf16.msra.mxu0 0
        %849 = vmatprep.subr.bf16.mxu0 0
        %850 = vmatpush2.bf16.msra.mxu0 0
        %851 = vmatprep.subr.bf16.mxu0 0
        %852 = vmatpush2.bf16.msra.mxu0 0
        %853 = vmatprep.subr.bf16.mxu0 0
        %854 = vmatpush2.bf16.msra.mxu0 0
        %855 = vmatprep.subr.bf16.mxu0 0
        %856 = vmatpush2.bf16.msra.mxu0 0
        %857 = vmatprep.mubr.bf16.mxu0 0
        %858 = vmatmul.mubr.bf16.gmra.mxu0 %v820
        %v859 = vpop.f32.mrf.mxu0
        %v860 = vadd.f32 0.0, %v859
        %v861 = vpop.f32.mrf.mxu0
        %v862 = vpop.f32.mrf.mxu0
        %v863 = vpop.f32.mrf.mxu0
        %864 = vdwg.mxu0
        %v865 = vadd.f32 %v808, %v860
        %867 = vset.pattern.permute.xlu0 0
        %868 = vperm.xlu0 %867, %v597
        %v869 = vpop.permute.xlu0 %868
        %v871 = vmul.bf16 %v869, %v709
        %v873 = vsel %vm716, %v871, 0
        %v876 = vsel %vm720, %v588, 0
        %878 = vmatprep.subr.bf16.mxu0 0
        %879 = vmatpush1.bf16.msra.mxu0 0
        %880 = vmatprep.subr.bf16.mxu0 0
        %881 = vmatpush1.bf16.msra.mxu0 0
        %882 = vmatprep.subr.bf16.mxu0 0
        %883 = vmatpush1.bf16.msra.mxu0 0
        %884 = vmatprep.subr.bf16.mxu0 0
        %885 = vmatpush1.bf16.msra.mxu0 0
        %886 = vmatprep.subr.bf16.mxu0 0
        %887 = vmatpush1.bf16.msra.mxu0 0
        %888 = vmatprep.subr.bf16.mxu0 0
        %889 = vmatpush1.bf16.msra.mxu0 0
        %890 = vmatprep.subr.bf16.mxu0 0
        %891 = vmatpush1.bf16.msra.mxu0 0
        %892 = vmatprep.subr.bf16.mxu0 0
        %893 = vmatpush1.bf16.msra.mxu0 %v876
        %894 = vmatprep.subr.bf16.mxu0 0
        %895 = vmatpush2.bf16.msra.mxu0 0
        %896 = vmatprep.subr.bf16.mxu0 0
        %897 = vmatpush2.bf16.msra.mxu0 0
        %898 = vmatprep.subr.bf16.mxu0 0
        %899 = vmatpush2.bf16.msra.mxu0 0
        %900 = vmatprep.subr.bf16.mxu0 0
        %901 = vmatpush2.bf16.msra.mxu0 0
        %902 = vmatprep.subr.bf16.mxu0 0
        %903 = vmatpush2.bf16.msra.mxu0 0
        %904 = vmatprep.subr.bf16.mxu0 0
        %905 = vmatpush2.bf16.msra.mxu0 0
        %906 = vmatprep.subr.bf16.mxu0 0
        %907 = vmatpush2.bf16.msra.mxu0 0
        %908 = vmatprep.subr.bf16.mxu0 0
        %909 = vmatpush2.bf16.msra.mxu0 0
        %910 = vmatprep.mubr.bf16.mxu0 0
        %911 = vmatmul.mubr.bf16.gmra.mxu0 %v873
        %v912 = vpop.f32.mrf.mxu0
        %v913 = vadd.f32 0.0, %v912
        %v914 = vpop.f32.mrf.mxu0
        %v915 = vpop.f32.mrf.mxu0
        %v916 = vpop.f32.mrf.mxu0
        %917 = vdwg.mxu0
        %v918 = vadd.f32 %v865, %v913
        %920 = vset.pattern.permute.xlu0 0
        %921 = vperm.xlu0 %920, %v600
        %v922 = vpop.permute.xlu0 %921
        %v924 = vmul.bf16 %v922, %v709
        %v926 = vsel %vm716, %v924, 0
        %v929 = vsel %vm720, %v590, 0
        %931 = vmatprep.subr.bf16.mxu0 0
        %932 = vmatpush1.bf16.msra.mxu0 0
        %933 = vmatprep.subr.bf16.mxu0 0
        %934 = vmatpush1.bf16.msra.mxu0 0
        %935 = vmatprep.subr.bf16.mxu0 0
        %936 = vmatpush1.bf16.msra.mxu0 0
        %937 = vmatprep.subr.bf16.mxu0 0
        %938 = vmatpush1.bf16.msra.mxu0 0
        %939 = vmatprep.subr.bf16.mxu0 0
        %940 = vmatpush1.bf16.msra.mxu0 0
        %941 = vmatprep.subr.bf16.mxu0 0
        %942 = vmatpush1.bf16.msra.mxu0 0
        %943 = vmatprep.subr.bf16.mxu0 0
        %944 = vmatpush1.bf16.msra.mxu0 0
        %945 = vmatprep.subr.bf16.mxu0 0
        %946 = vmatpush1.bf16.msra.mxu0 %v929
        %947 = vmatprep.subr.bf16.mxu0 0
        %948 = vmatpush2.bf16.msra.mxu0 0
        %949 = vmatprep.subr.bf16.mxu0 0
        %950 = vmatpush2.bf16.msra.mxu0 0
        %951 = vmatprep.subr.bf16.mxu0 0
        %952 = vmatpush2.bf16.msra.mxu0 0
        %953 = vmatprep.subr.bf16.mxu0 0
        %954 = vmatpush2.bf16.msra.mxu0 0
        %955 = vmatprep.subr.bf16.mxu0 0
        %956 = vmatpush2.bf16.msra.mxu0 0
        %957 = vmatprep.subr.bf16.mxu0 0
        %958 = vmatpush2.bf16.msra.mxu0 0
        %959 = vmatprep.subr.bf16.mxu0 0
        %960 = vmatpush2.bf16.msra.mxu0 0
        %961 = vmatprep.subr.bf16.mxu0 0
        %962 = vmatpush2.bf16.msra.mxu0 0
        %963 = vmatprep.mubr.bf16.mxu0 0
        %964 = vmatmul.mubr.bf16.gmra.mxu0 %v926
        %v965 = vpop.f32.mrf.mxu0
        %v966 = vadd.f32 0.0, %v965
        %v967 = vpop.f32.mrf.mxu0
        %v968 = vpop.f32.mrf.mxu0
        %v969 = vpop.f32.mrf.mxu0
        %970 = vdwg.mxu0
        %v971 = vadd.f32 %v918, %v966
        %vm972 = vcmask 27648
        %v973 = vsel %vm972, %v971, -inf
        %974 = vmax.xlane.f32.xlu0 %v973
        %v975 = vpop.xlane.xlu0 %974
        %v976 = vsub.f32 %v971, %v975
        %v977 = vmul.f32 %v976, 1.442695
        %v978 = vpow.pop %v977
        %v979 = vsel %vm972, %v978, 0.0
        %980 = vadd.xlane.f32.xlu0 %v979
        %v981 = vpop.xlane.xlu0 %980
        %v982 = vrcp.pop %v981
        %v983 = vmul.f32 %v978, %v982
        %v984 = vpack.c.bf16 %v983, %v983
        %985 = vrot.lane.b32.xlu0 %v709, 64
        %v986 = vpop.permute.xlu0 %985
        %vm987 = vcmask 31744
        %v989 = vsel %vm987, %v984, 0
        %vm991 = vcmask 1041408
        %v993 = vsel %vm991, %v986, 0
        %995 = vmatprep.subr.bf16.mxu0 0
        %996 = vmatpush1.bf16.msra.mxu0 0
        %997 = vmatprep.subr.bf16.mxu0 0
        %998 = vmatpush1.bf16.msra.mxu0 0
        %999 = vmatprep.subr.bf16.mxu0 0
        %1000 = vmatpush1.bf16.msra.mxu0 0
        %1001 = vmatprep.subr.bf16.mxu0 0
        %1002 = vmatpush1.bf16.msra.mxu0 0
        %1003 = vmatprep.subr.bf16.mxu0 0
        %1004 = vmatpush1.bf16.msra.mxu0 0
        %1005 = vmatprep.subr.bf16.mxu0 0
        %1006 = vmatpush1.bf16.msra.mxu0 0
        %1007 = vmatprep.subr.bf16.mxu0 0
        %1008 = vmatpush1.bf16.msra.mxu0 0
        %1009 = vmatprep.subr.bf16.mxu0 0
        %1010 = vmatpush1.bf16.msra.mxu0 %v993
        %1011 = vmatprep.subr.bf16.mxu0 0
        %1012 = vmatpush2.bf16.msra.mxu0 0
        %1013 = vmatprep.subr.bf16.mxu0 0
        %1014 = vmatpush2.bf16.msra.mxu0 0
        %1015 = vmatprep.subr.bf16.mxu0 0
        %1016 = vmatpush2.bf16.msra.mxu0 0
        %1017 = vmatprep.subr.bf16.mxu0 0
        %1018 = vmatpush2.bf16.msra.mxu0 0
        %1019 = vmatprep.subr.bf16.mxu0 0
        %1020 = vmatpush2.bf16.msra.mxu0 0
        %1021 = vmatprep.subr.bf16.mxu0 0
        %1022 = vmatpush2.bf16.msra.mxu0 0
        %1023 = vmatprep.subr.bf16.mxu0 0
        %1024 = vmatpush2.bf16.msra.mxu0 0
        %1025 = vmatprep.subr.bf16.mxu0 0
        %1026 = vmatpush2.bf16.msra.mxu0 0
        %1027 = vmatprep.mubr.bf16.mxu0 0
        %1028 = vmatmul.mubr.bf16.gmra.mxu0 %v989
        %v1029 = vpop.f32.mrf.mxu0
        %v1030 = vadd.f32 0.0, %v1029
        %v1031 = vpop.f32.mrf.mxu0
        %v1032 = vpop.f32.mrf.mxu0
        %v1033 = vpop.f32.mrf.mxu0
        %1034 = vdwg.mxu0
        %v1035 = vpack.c.bf16 %v1030, %v1030
        %1037 = vrot.lane.b32.xlu0 %v715, 120
        %v1038 = vpop.permute.xlu0 %1037
        %v1040 = vsel %vm716, %v1038, 0
        %1042 = vmatprep.subr.bf16.mxu0 0
        %1043 = vmatpush1.bf16.msra.mxu0 0
        %1044 = vmatprep.subr.bf16.mxu0 0
        %1045 = vmatpush1.bf16.msra.mxu0 0
        %1046 = vmatprep.subr.bf16.mxu0 0
        %1047 = vmatpush1.bf16.msra.mxu0 0
        %1048 = vmatprep.subr.bf16.mxu0 0
        %1049 = vmatpush1.bf16.msra.mxu0 0
        %1050 = vmatprep.subr.bf16.mxu0 0
        %1051 = vmatpush1.bf16.msra.mxu0 0
        %1052 = vmatprep.subr.bf16.mxu0 0
        %1053 = vmatpush1.bf16.msra.mxu0 0
        %1054 = vmatprep.subr.bf16.mxu0 0
        %1055 = vmatpush1.bf16.msra.mxu0 0
        %1056 = vmatprep.subr.bf16.mxu0 0
        %1057 = vmatpush1.bf16.msra.mxu0 %v722
        %1058 = vmatprep.subr.bf16.mxu0 0
        %1059 = vmatpush2.bf16.msra.mxu0 0
        %1060 = vmatprep.subr.bf16.mxu0 0
        %1061 = vmatpush2.bf16.msra.mxu0 0
        %1062 = vmatprep.subr.bf16.mxu0 0
        %1063 = vmatpush2.bf16.msra.mxu0 0
        %1064 = vmatprep.subr.bf16.mxu0 0
        %1065 = vmatpush2.bf16.msra.mxu0 0
        %1066 = vmatprep.subr.bf16.mxu0 0
        %1067 = vmatpush2.bf16.msra.mxu0 0
        %1068 = vmatprep.subr.bf16.mxu0 0
        %1069 = vmatpush2.bf16.msra.mxu0 0
        %1070 = vmatprep.subr.bf16.mxu0 0
        %1071 = vmatpush2.bf16.msra.mxu0 0
        %1072 = vmatprep.subr.bf16.mxu0 0
        %1073 = vmatpush2.bf16.msra.mxu0 0
        %1074 = vmatprep.mubr.bf16.mxu0 0
        %1075 = vmatmul.mubr.bf16.gmra.mxu0 %v1040
        %v1076 = vpop.f32.mrf.mxu0
        %v1077 = vadd.f32 0.0, %v1076
        %v1078 = vpop.f32.mrf.mxu0
        %v1079 = vpop.f32.mrf.mxu0
        %v1080 = vpop.f32.mrf.mxu0
        %1081 = vdwg.mxu0
        %1082 = vrot.lane.b32.xlu0 %v709, 120
        %v1083 = vpop.permute.xlu0 %1082
        %1084 = vrot.lane.b32.xlu0 %v709, 88
        %v1085 = vpop.permute.xlu0 %1084
        %v1087 = vsel %vm716, %v1083, 0
        %v1090 = vsel %vm716, %v1085, 0
        %1092 = vmatprep.subr.bf16.mxu0 0
        %1093 = vmatpush1.bf16.xpose.msra.mxu0 0
        %1094 = vmatprep.subr.bf16.mxu0 0
        %1095 = vmatpush1.bf16.xpose.msra.mxu0 0
        %1096 = vmatprep.subr.bf16.mxu0 0
        %1097 = vmatpush1.bf16.xpose.msra.mxu0 0
        %1098 = vmatprep.subr.bf16.mxu0 0
        %1099 = vmatpush1.bf16.xpose.msra.mxu0 0
        %1100 = vmatprep.subr.bf16.mxu0 0
        %1101 = vmatpush1.bf16.xpose.msra.mxu0 0
        %1102 = vmatprep.subr.bf16.mxu0 0
        %1103 = vmatpush1.bf16.xpose.msra.mxu0 0
        %1104 = vmatprep.subr.bf16.mxu0 0
        %1105 = vmatpush1.bf16.xpose.msra.mxu0 0
        %1106 = vmatprep.subr.bf16.mxu0 0
        %1107 = vmatpush1.bf16.xpose.msra.mxu0 %v1090
        %1108 = vmatprep.subr.bf16.mxu0 0
        %1109 = vmatpush2.bf16.xpose.msra.mxu0 0
        %1110 = vmatprep.subr.bf16.mxu0 0
        %1111 = vmatpush2.bf16.xpose.msra.mxu0 0
        %1112 = vmatprep.subr.bf16.mxu0 0
        %1113 = vmatpush2.bf16.xpose.msra.mxu0 0
        %1114 = vmatprep.subr.bf16.mxu0 0
        %1115 = vmatpush2.bf16.xpose.msra.mxu0 0
        %1116 = vmatprep.subr.bf16.mxu0 0
        %1117 = vmatpush2.bf16.xpose.msra.mxu0 0
        %1118 = vmatprep.subr.bf16.mxu0 0
        %1119 = vmatpush2.bf16.xpose.msra.mxu0 0
        %1120 = vmatprep.subr.bf16.mxu0 0
        %1121 = vmatpush2.bf16.xpose.msra.mxu0 0
        %1122 = vmatprep.subr.bf16.mxu0 0
        %1123 = vmatpush2.bf16.xpose.msra.mxu0 0
        %1124 = vmatprep.mubr.bf16.mxu0 0
        %1125 = vmatmul.mubr.bf16.gmra.mxu0 %v1087
        %v1126 = vpop.f32.mrf.mxu0
        %v1127 = vadd.f32 %v1077, %v1126
        %v1128 = vpop.f32.mrf.mxu0
        %v1129 = vpop.f32.mrf.mxu0
        %v1130 = vpop.f32.mrf.mxu0
        %1131 = vdwg.mxu0
        %1133 = vrot.lane.b32.xlu0 %v818, 120
        %v1134 = vpop.permute.xlu0 %1133
        %v1136 = vsel %vm716, %v1134, 0
        %1138 = vmatprep.subr.bf16.mxu0 0
        %1139 = vmatpush1.bf16.msra.mxu0 0
        %1140 = vmatprep.subr.bf16.mxu0 0
        %1141 = vmatpush1.bf16.msra.mxu0 0
        %1142 = vmatprep.subr.bf16.mxu0 0
        %1143 = vmatpush1.bf16.msra.mxu0 0
        %1144 = vmatprep.subr.bf16.mxu0 0
        %1145 = vmatpush1.bf16.msra.mxu0 0
        %1146 = vmatprep.subr.bf16.mxu0 0
        %1147 = vmatpush1.bf16.msra.mxu0 0
        %1148 = vmatprep.subr.bf16.mxu0 0
        %1149 = vmatpush1.bf16.msra.mxu0 0
        %1150 = vmatprep.subr.bf16.mxu0 0
        %1151 = vmatpush1.bf16.msra.mxu0 0
        %1152 = vmatprep.subr.bf16.mxu0 0
        %1153 = vmatpush1.bf16.msra.mxu0 %v823
        %1154 = vmatprep.subr.bf16.mxu0 0
        %1155 = vmatpush2.bf16.msra.mxu0 0
        %1156 = vmatprep.subr.bf16.mxu0 0
        %1157 = vmatpush2.bf16.msra.mxu0 0
        %1158 = vmatprep.subr.bf16.mxu0 0
        %1159 = vmatpush2.bf16.msra.mxu0 0
        %1160 = vmatprep.subr.bf16.mxu0 0
        %1161 = vmatpush2.bf16.msra.mxu0 0
        %1162 = vmatprep.subr.bf16.mxu0 0
        %1163 = vmatpush2.bf16.msra.mxu0 0
        %1164 = vmatprep.subr.bf16.mxu0 0
        %1165 = vmatpush2.bf16.msra.mxu0 0
        %1166 = vmatprep.subr.bf16.mxu0 0
        %1167 = vmatpush2.bf16.msra.mxu0 0
        %1168 = vmatprep.subr.bf16.mxu0 0
        %1169 = vmatpush2.bf16.msra.mxu0 0
        %1170 = vmatprep.mubr.bf16.mxu0 0
        %1171 = vmatmul.mubr.bf16.gmra.mxu0 %v1136
        %v1172 = vpop.f32.mrf.mxu0
        %v1173 = vadd.f32 0.0, %v1172
        %v1174 = vpop.f32.mrf.mxu0
        %v1175 = vpop.f32.mrf.mxu0
        %v1176 = vpop.f32.mrf.mxu0
        %1177 = vdwg.mxu0
        %v1178 = vadd.f32 %v1127, %v1173
        %1180 = vrot.lane.b32.xlu0 %v871, 120
        %v1181 = vpop.permute.xlu0 %1180
        %v1183 = vsel %vm716, %v1181, 0
        %1185 = vmatprep.subr.bf16.mxu0 0
        %1186 = vmatpush1.bf16.msra.mxu0 0
        %1187 = vmatprep.subr.bf16.mxu0 0
        %1188 = vmatpush1.bf16.msra.mxu0 0
        %1189 = vmatprep.subr.bf16.mxu0 0
        %1190 = vmatpush1.bf16.msra.mxu0 0
        %1191 = vmatprep.subr.bf16.mxu0 0
        %1192 = vmatpush1.bf16.msra.mxu0 0
        %1193 = vmatprep.subr.bf16.mxu0 0
        %1194 = vmatpush1.bf16.msra.mxu0 0
        %1195 = vmatprep.subr.bf16.mxu0 0
        %1196 = vmatpush1.bf16.msra.mxu0 0
        %1197 = vmatprep.subr.bf16.mxu0 0
        %1198 = vmatpush1.bf16.msra.mxu0 0
        %1199 = vmatprep.subr.bf16.mxu0 0
        %1200 = vmatpush1.bf16.msra.mxu0 %v876
        %1201 = vmatprep.subr.bf16.mxu0 0
        %1202 = vmatpush2.bf16.msra.mxu0 0
        %1203 = vmatprep.subr.bf16.mxu0 0
        %1204 = vmatpush2.bf16.msra.mxu0 0
        %1205 = vmatprep.subr.bf16.mxu0 0
        %1206 = vmatpush2.bf16.msra.mxu0 0
        %1207 = vmatprep.subr.bf16.mxu0 0
        %1208 = vmatpush2.bf16.msra.mxu0 0
        %1209 = vmatprep.subr.bf16.mxu0 0
        %1210 = vmatpush2.bf16.msra.mxu0 0
        %1211 = vmatprep.subr.bf16.mxu0 0
        %1212 = vmatpush2.bf16.msra.mxu0 0
        %1213 = vmatprep.subr.bf16.mxu0 0
        %1214 = vmatpush2.bf16.msra.mxu0 0
        %1215 = vmatprep.subr.bf16.mxu0 0
        %1216 = vmatpush2.bf16.msra.mxu0 0
        %1217 = vmatprep.mubr.bf16.mxu0 0
        %1218 = vmatmul.mubr.bf16.gmra.mxu0 %v1183
        %v1219 = vpop.f32.mrf.mxu0
        %v1220 = vadd.f32 0.0, %v1219
        %v1221 = vpop.f32.mrf.mxu0
        %v1222 = vpop.f32.mrf.mxu0
        %v1223 = vpop.f32.mrf.mxu0
        %1224 = vdwg.mxu0
        %v1225 = vadd.f32 %v1178, %v1220
        %1227 = vrot.lane.b32.xlu0 %v924, 120
        %v1228 = vpop.permute.xlu0 %1227
        %v1230 = vsel %vm716, %v1228, 0
        %1232 = vmatprep.subr.bf16.mxu0 0
        %1233 = vmatpush1.bf16.msra.mxu0 0
        %1234 = vmatprep.subr.bf16.mxu0 0
        %1235 = vmatpush1.bf16.msra.mxu0 0
        %1236 = vmatprep.subr.bf16.mxu0 0
        %1237 = vmatpush1.bf16.msra.mxu0 0
        %1238 = vmatprep.subr.bf16.mxu0 0
        %1239 = vmatpush1.bf16.msra.mxu0 0
        %1240 = vmatprep.subr.bf16.mxu0 0
        %1241 = vmatpush1.bf16.msra.mxu0 0
        %1242 = vmatprep.subr.bf16.mxu0 0
        %1243 = vmatpush1.bf16.msra.mxu0 0
        %1244 = vmatprep.subr.bf16.mxu0 0
        %1245 = vmatpush1.bf16.msra.mxu0 0
        %1246 = vmatprep.subr.bf16.mxu0 0
        %1247 = vmatpush1.bf16.msra.mxu0 %v929
        %1248 = vmatprep.subr.bf16.mxu0 0
        %1249 = vmatpush2.bf16.msra.mxu0 0
        %1250 = vmatprep.subr.bf16.mxu0 0
        %1251 = vmatpush2.bf16.msra.mxu0 0
        %1252 = vmatprep.subr.bf16.mxu0 0
        %1253 = vmatpush2.bf16.msra.mxu0 0
        %1254 = vmatprep.subr.bf16.mxu0 0
        %1255 = vmatpush2.bf16.msra.mxu0 0
        %1256 = vmatprep.subr.bf16.mxu0 0
        %1257 = vmatpush2.bf16.msra.mxu0 0
        %1258 = vmatprep.subr.bf16.mxu0 0
        %1259 = vmatpush2.bf16.msra.mxu0 0
        %1260 = vmatprep.subr.bf16.mxu0 0
        %1261 = vmatpush2.bf16.msra.mxu0 0
        %1262 = vmatprep.subr.bf16.mxu0 0
        %1263 = vmatpush2.bf16.msra.mxu0 0
        %1264 = vmatprep.mubr.bf16.mxu0 0
        %1265 = vmatmul.mubr.bf16.gmra.mxu0 %v1230
        %v1266 = vpop.f32.mrf.mxu0
        %v1267 = vadd.f32 0.0, %v1266
        %v1268 = vpop.f32.mrf.mxu0
        %v1269 = vpop.f32.mrf.mxu0
        %v1270 = vpop.f32.mrf.mxu0
        %1271 = vdwg.mxu0
        %v1272 = vadd.f32 %v1225, %v1267
        %v1273 = vsel %vm972, %v1272, -inf
        %1274 = vmax.xlane.f32.xlu0 %v1273
        %v1275 = vpop.xlane.xlu0 %1274
        %v1276 = vsub.f32 %v1272, %v1275
        %v1277 = vmul.f32 %v1276, 1.442695
        %v1278 = vpow.pop %v1277
        %v1279 = vsel %vm972, %v1278, 0.0
        %1280 = vadd.xlane.f32.xlu0 %v1279
        %v1281 = vpop.xlane.xlu0 %1280
        %v1282 = vrcp.pop %v1281
        %v1283 = vmul.f32 %v1278, %v1282
        %v1284 = vpack.c.bf16 %v1283, %v1283
        %1285 = vrot.lane.b32.xlu0 %v709, 56
        %v1286 = vpop.permute.xlu0 %1285
        %v1288 = vsel %vm987, %v1284, 0
        %v1291 = vsel %vm991, %v1286, 0
        %1293 = vmatprep.subr.bf16.mxu0 0
        %1294 = vmatpush1.bf16.msra.mxu0 0
        %1295 = vmatprep.subr.bf16.mxu0 0
        %1296 = vmatpush1.bf16.msra.mxu0 0
        %1297 = vmatprep.subr.bf16.mxu0 0
        %1298 = vmatpush1.bf16.msra.mxu0 0
        %1299 = vmatprep.subr.bf16.mxu0 0
        %1300 = vmatpush1.bf16.msra.mxu0 0
        %1301 = vmatprep.subr.bf16.mxu0 0
        %1302 = vmatpush1.bf16.msra.mxu0 0
        %1303 = vmatprep.subr.bf16.mxu0 0
        %1304 = vmatpush1.bf16.msra.mxu0 0
        %1305 = vmatprep.subr.bf16.mxu0 0
        %1306 = vmatpush1.bf16.msra.mxu0 0
        %1307 = vmatprep.subr.bf16.mxu0 0
        %1308 = vmatpush1.bf16.msra.mxu0 %v1291
        %1309 = vmatprep.subr.bf16.mxu0 0
        %1310 = vmatpush2.bf16.msra.mxu0 0
        %1311 = vmatprep.subr.bf16.mxu0 0
        %1312 = vmatpush2.bf16.msra.mxu0 0
        %1313 = vmatprep.subr.bf16.mxu0 0
        %1314 = vmatpush2.bf16.msra.mxu0 0
        %1315 = vmatprep.subr.bf16.mxu0 0
        %1316 = vmatpush2.bf16.msra.mxu0 0
        %1317 = vmatprep.subr.bf16.mxu0 0
        %1318 = vmatpush2.bf16.msra.mxu0 0
        %1319 = vmatprep.subr.bf16.mxu0 0
        %1320 = vmatpush2.bf16.msra.mxu0 0
        %1321 = vmatprep.subr.bf16.mxu0 0
        %1322 = vmatpush2.bf16.msra.mxu0 0
        %1323 = vmatprep.subr.bf16.mxu0 0
        %1324 = vmatpush2.bf16.msra.mxu0 0
        %1325 = vmatprep.mubr.bf16.mxu0 0
        %1326 = vmatmul.mubr.bf16.gmra.mxu0 %v1288
        %v1327 = vpop.f32.mrf.mxu0
        %v1328 = vadd.f32 0.0, %v1327
        %v1329 = vpop.f32.mrf.mxu0
        %v1330 = vpop.f32.mrf.mxu0
        %v1331 = vpop.f32.mrf.mxu0
        %1332 = vdwg.mxu0
        %v1333 = vpack.c.bf16 %v1328, %v1328
        %v1335 = vsel %vm716, %v1333, 0
        %v1338 = vsel %vm720, %v603, 0
        %1340 = vmatprep.subr.bf16.mxu0 0
        %1341 = vmatpush1.bf16.msra.mxu0 0
        %1342 = vmatprep.subr.bf16.mxu0 0
        %1343 = vmatpush1.bf16.msra.mxu0 0
        %1344 = vmatprep.subr.bf16.mxu0 0
        %1345 = vmatpush1.bf16.msra.mxu0 0
        %1346 = vmatprep.subr.bf16.mxu0 0
        %1347 = vmatpush1.bf16.msra.mxu0 0
        %1348 = vmatprep.subr.bf16.mxu0 0
        %1349 = vmatpush1.bf16.msra.mxu0 0
        %1350 = vmatprep.subr.bf16.mxu0 0
        %1351 = vmatpush1.bf16.msra.mxu0 0
        %1352 = vmatprep.subr.bf16.mxu0 0
        %1353 = vmatpush1.bf16.msra.mxu0 0
        %1354 = vmatprep.subr.bf16.mxu0 0
        %1355 = vmatpush1.bf16.msra.mxu0 %v1338
        %1356 = vmatprep.subr.bf16.mxu0 0
        %1357 = vmatpush2.bf16.msra.mxu0 0
        %1358 = vmatprep.subr.bf16.mxu0 0
        %1359 = vmatpush2.bf16.msra.mxu0 0
        %1360 = vmatprep.subr.bf16.mxu0 0
        %1361 = vmatpush2.bf16.msra.mxu0 0
        %1362 = vmatprep.subr.bf16.mxu0 0
        %1363 = vmatpush2.bf16.msra.mxu0 0
        %1364 = vmatprep.subr.bf16.mxu0 0
        %1365 = vmatpush2.bf16.msra.mxu0 0
        %1366 = vmatprep.subr.bf16.mxu0 0
        %1367 = vmatpush2.bf16.msra.mxu0 0
        %1368 = vmatprep.subr.bf16.mxu0 0
        %1369 = vmatpush2.bf16.msra.mxu0 0
        %1370 = vmatprep.subr.bf16.mxu0 0
        %1371 = vmatpush2.bf16.msra.mxu0 0
        %1372 = vmatprep.mubr.bf16.mxu0 0
        %1373 = vmatmul.mubr.bf16.gmra.mxu0 %v1335
        %v1374 = vpop.f32.mrf.mxu0
        %v1375 = vadd.f32 0.0, %v1374
        %v1376 = vpop.f32.mrf.mxu0
        %v1377 = vpop.f32.mrf.mxu0
        %v1378 = vpop.f32.mrf.mxu0
        %1379 = vdwg.mxu0
        %v1381 = vsel %vm716, %v1035, 0
        %v1384 = vsel %vm720, %v601, 0
        %1386 = vmatprep.subr.bf16.mxu0 0
        %1387 = vmatpush1.bf16.msra.mxu0 0
        %1388 = vmatprep.subr.bf16.mxu0 0
        %1389 = vmatpush1.bf16.msra.mxu0 0
        %1390 = vmatprep.subr.bf16.mxu0 0
        %1391 = vmatpush1.bf16.msra.mxu0 0
        %1392 = vmatprep.subr.bf16.mxu0 0
        %1393 = vmatpush1.bf16.msra.mxu0 0
        %1394 = vmatprep.subr.bf16.mxu0 0
        %1395 = vmatpush1.bf16.msra.mxu0 0
        %1396 = vmatprep.subr.bf16.mxu0 0
        %1397 = vmatpush1.bf16.msra.mxu0 0
        %1398 = vmatprep.subr.bf16.mxu0 0
        %1399 = vmatpush1.bf16.msra.mxu0 0
        %1400 = vmatprep.subr.bf16.mxu0 0
        %1401 = vmatpush1.bf16.msra.mxu0 %v1384
        %1402 = vmatprep.subr.bf16.mxu0 0
        %1403 = vmatpush2.bf16.msra.mxu0 0
        %1404 = vmatprep.subr.bf16.mxu0 0
        %1405 = vmatpush2.bf16.msra.mxu0 0
        %1406 = vmatprep.subr.bf16.mxu0 0
        %1407 = vmatpush2.bf16.msra.mxu0 0
        %1408 = vmatprep.subr.bf16.mxu0 0
        %1409 = vmatpush2.bf16.msra.mxu0 0
        %1410 = vmatprep.subr.bf16.mxu0 0
        %1411 = vmatpush2.bf16.msra.mxu0 0
        %1412 = vmatprep.subr.bf16.mxu0 0
        %1413 = vmatpush2.bf16.msra.mxu0 0
        %1414 = vmatprep.subr.bf16.mxu0 0
        %1415 = vmatpush2.bf16.msra.mxu0 0
        %1416 = vmatprep.subr.bf16.mxu0 0
        %1417 = vmatpush2.bf16.msra.mxu0 0
        %1418 = vmatprep.mubr.bf16.mxu0 0
        %1419 = vmatmul.mubr.bf16.gmra.mxu0 %v1381
        %v1420 = vpop.f32.mrf.mxu0
        %v1421 = vadd.f32 %v1375, %v1420
        %v1422 = vpop.f32.mrf.mxu0
        %v1423 = vpop.f32.mrf.mxu0
        %v1424 = vpop.f32.mrf.mxu0
        %1425 = vdwg.mxu0
        %1426 = vrot.lane.b32.xlu0 %v715, 112
        %v1427 = vpop.permute.xlu0 %1426
        %v1429 = vsel %vm716, %v1427, 0
        %1431 = vmatprep.subr.bf16.mxu0 0
        %1432 = vmatpush1.bf16.msra.mxu0 0
        %1433 = vmatprep.subr.bf16.mxu0 0
        %1434 = vmatpush1.bf16.msra.mxu0 0
        %1435 = vmatprep.subr.bf16.mxu0 0
        %1436 = vmatpush1.bf16.msra.mxu0 0
        %1437 = vmatprep.subr.bf16.mxu0 0
        %1438 = vmatpush1.bf16.msra.mxu0 0
        %1439 = vmatprep.subr.bf16.mxu0 0
        %1440 = vmatpush1.bf16.msra.mxu0 0
        %1441 = vmatprep.subr.bf16.mxu0 0
        %1442 = vmatpush1.bf16.msra.mxu0 0
        %1443 = vmatprep.subr.bf16.mxu0 0
        %1444 = vmatpush1.bf16.msra.mxu0 0
        %1445 = vmatprep.subr.bf16.mxu0 0
        %1446 = vmatpush1.bf16.msra.mxu0 %v722
        %1447 = vmatprep.subr.bf16.mxu0 0
        %1448 = vmatpush2.bf16.msra.mxu0 0
        %1449 = vmatprep.subr.bf16.mxu0 0
        %1450 = vmatpush2.bf16.msra.mxu0 0
        %1451 = vmatprep.subr.bf16.mxu0 0
        %1452 = vmatpush2.bf16.msra.mxu0 0
        %1453 = vmatprep.subr.bf16.mxu0 0
        %1454 = vmatpush2.bf16.msra.mxu0 0
        %1455 = vmatprep.subr.bf16.mxu0 0
        %1456 = vmatpush2.bf16.msra.mxu0 0
        %1457 = vmatprep.subr.bf16.mxu0 0
        %1458 = vmatpush2.bf16.msra.mxu0 0
        %1459 = vmatprep.subr.bf16.mxu0 0
        %1460 = vmatpush2.bf16.msra.mxu0 0
        %1461 = vmatprep.subr.bf16.mxu0 0
        %1462 = vmatpush2.bf16.msra.mxu0 0
        %1463 = vmatprep.mubr.bf16.mxu0 0
        %1464 = vmatmul.mubr.bf16.gmra.mxu0 %v1429
        %v1465 = vpop.f32.mrf.mxu0
        %v1466 = vadd.f32 0.0, %v1465
        %v1467 = vpop.f32.mrf.mxu0
        %v1468 = vpop.f32.mrf.mxu0
        %v1469 = vpop.f32.mrf.mxu0
        %1470 = vdwg.mxu0
        %1471 = vrot.lane.b32.xlu0 %v709, 112
        %v1472 = vpop.permute.xlu0 %1471
        %1473 = vrot.lane.b32.xlu0 %v709, 80
        %v1474 = vpop.permute.xlu0 %1473
        %v1476 = vsel %vm716, %v1472, 0
        %v1479 = vsel %vm716, %v1474, 0
        %1481 = vmatprep.subr.bf16.mxu0 0
        %1482 = vmatpush1.bf16.xpose.msra.mxu0 0
        %1483 = vmatprep.subr.bf16.mxu0 0
        %1484 = vmatpush1.bf16.xpose.msra.mxu0 0
        %1485 = vmatprep.subr.bf16.mxu0 0
        %1486 = vmatpush1.bf16.xpose.msra.mxu0 0
        %1487 = vmatprep.subr.bf16.mxu0 0
        %1488 = vmatpush1.bf16.xpose.msra.mxu0 0
        %1489 = vmatprep.subr.bf16.mxu0 0
        %1490 = vmatpush1.bf16.xpose.msra.mxu0 0
        %1491 = vmatprep.subr.bf16.mxu0 0
        %1492 = vmatpush1.bf16.xpose.msra.mxu0 0
        %1493 = vmatprep.subr.bf16.mxu0 0
        %1494 = vmatpush1.bf16.xpose.msra.mxu0 0
        %1495 = vmatprep.subr.bf16.mxu0 0
        %1496 = vmatpush1.bf16.xpose.msra.mxu0 %v1479
        %1497 = vmatprep.subr.bf16.mxu0 0
        %1498 = vmatpush2.bf16.xpose.msra.mxu0 0
        %1499 = vmatprep.subr.bf16.mxu0 0
        %1500 = vmatpush2.bf16.xpose.msra.mxu0 0
        %1501 = vmatprep.subr.bf16.mxu0 0
        %1502 = vmatpush2.bf16.xpose.msra.mxu0 0
        %1503 = vmatprep.subr.bf16.mxu0 0
        %1504 = vmatpush2.bf16.xpose.msra.mxu0 0
        %1505 = vmatprep.subr.bf16.mxu0 0
        %1506 = vmatpush2.bf16.xpose.msra.mxu0 0
        %1507 = vmatprep.subr.bf16.mxu0 0
        %1508 = vmatpush2.bf16.xpose.msra.mxu0 0
        %1509 = vmatprep.subr.bf16.mxu0 0
        %1510 = vmatpush2.bf16.xpose.msra.mxu0 0
        %1511 = vmatprep.subr.bf16.mxu0 0
        %1512 = vmatpush2.bf16.xpose.msra.mxu0 0
        %1513 = vmatprep.mubr.bf16.mxu0 0
        %1514 = vmatmul.mubr.bf16.gmra.mxu0 %v1476
        %v1515 = vpop.f32.mrf.mxu0
        %v1516 = vadd.f32 %v1466, %v1515
        %v1517 = vpop.f32.mrf.mxu0
        %v1518 = vpop.f32.mrf.mxu0
        %v1519 = vpop.f32.mrf.mxu0
        %1520 = vdwg.mxu0
        %1521 = vrot.lane.b32.xlu0 %v818, 112
        %v1522 = vpop.permute.xlu0 %1521
        %v1524 = vsel %vm716, %v1522, 0
        %1526 = vmatprep.subr.bf16.mxu0 0
        %1527 = vmatpush1.bf16.msra.mxu0 0
        %1528 = vmatprep.subr.bf16.mxu0 0
        %1529 = vmatpush1.bf16.msra.mxu0 0
        %1530 = vmatprep.subr.bf16.mxu0 0
        %1531 = vmatpush1.bf16.msra.mxu0 0
        %1532 = vmatprep.subr.bf16.mxu0 0
        %1533 = vmatpush1.bf16.msra.mxu0 0
        %1534 = vmatprep.subr.bf16.mxu0 0
        %1535 = vmatpush1.bf16.msra.mxu0 0
        %1536 = vmatprep.subr.bf16.mxu0 0
        %1537 = vmatpush1.bf16.msra.mxu0 0
        %1538 = vmatprep.subr.bf16.mxu0 0
        %1539 = vmatpush1.bf16.msra.mxu0 0
        %1540 = vmatprep.subr.bf16.mxu0 0
        %1541 = vmatpush1.bf16.msra.mxu0 %v823
        %1542 = vmatprep.subr.bf16.mxu0 0
        %1543 = vmatpush2.bf16.msra.mxu0 0
        %1544 = vmatprep.subr.bf16.mxu0 0
        %1545 = vmatpush2.bf16.msra.mxu0 0
        %1546 = vmatprep.subr.bf16.mxu0 0
        %1547 = vmatpush2.bf16.msra.mxu0 0
        %1548 = vmatprep.subr.bf16.mxu0 0
        %1549 = vmatpush2.bf16.msra.mxu0 0
        %1550 = vmatprep.subr.bf16.mxu0 0
        %1551 = vmatpush2.bf16.msra.mxu0 0
        %1552 = vmatprep.subr.bf16.mxu0 0
        %1553 = vmatpush2.bf16.msra.mxu0 0
        %1554 = vmatprep.subr.bf16.mxu0 0
        %1555 = vmatpush2.bf16.msra.mxu0 0
        %1556 = vmatprep.subr.bf16.mxu0 0
        %1557 = vmatpush2.bf16.msra.mxu0 0
        %1558 = vmatprep.mubr.bf16.mxu0 0
        %1559 = vmatmul.mubr.bf16.gmra.mxu0 %v1524
        %v1560 = vpop.f32.mrf.mxu0
        %v1561 = vadd.f32 0.0, %v1560
        %v1562 = vpop.f32.mrf.mxu0
        %v1563 = vpop.f32.mrf.mxu0
        %v1564 = vpop.f32.mrf.mxu0
        %1565 = vdwg.mxu0
        %v1566 = vadd.f32 %v1516, %v1561
        %1567 = vrot.lane.b32.xlu0 %v871, 112
        %v1568 = vpop.permute.xlu0 %1567
        %v1570 = vsel %vm716, %v1568, 0
        %1572 = vmatprep.subr.bf16.mxu0 0
        %1573 = vmatpush1.bf16.msra.mxu0 0
        %1574 = vmatprep.subr.bf16.mxu0 0
        %1575 = vmatpush1.bf16.msra.mxu0 0
        %1576 = vmatprep.subr.bf16.mxu0 0
        %1577 = vmatpush1.bf16.msra.mxu0 0
        %1578 = vmatprep.subr.bf16.mxu0 0
        %1579 = vmatpush1.bf16.msra.mxu0 0
        %1580 = vmatprep.subr.bf16.mxu0 0
        %1581 = vmatpush1.bf16.msra.mxu0 0
        %1582 = vmatprep.subr.bf16.mxu0 0
        %1583 = vmatpush1.bf16.msra.mxu0 0
        %1584 = vmatprep.subr.bf16.mxu0 0
        %1585 = vmatpush1.bf16.msra.mxu0 0
        %1586 = vmatprep.subr.bf16.mxu0 0
        %1587 = vmatpush1.bf16.msra.mxu0 %v876
        %1588 = vmatprep.subr.bf16.mxu0 0
        %1589 = vmatpush2.bf16.msra.mxu0 0
        %1590 = vmatprep.subr.bf16.mxu0 0
        %1591 = vmatpush2.bf16.msra.mxu0 0
        %1592 = vmatprep.subr.bf16.mxu0 0
        %1593 = vmatpush2.bf16.msra.mxu0 0
        %1594 = vmatprep.subr.bf16.mxu0 0
        %1595 = vmatpush2.bf16.msra.mxu0 0
        %1596 = vmatprep.subr.bf16.mxu0 0
        %1597 = vmatpush2.bf16.msra.mxu0 0
        %1598 = vmatprep.subr.bf16.mxu0 0
        %1599 = vmatpush2.bf16.msra.mxu0 0
        %1600 = vmatprep.subr.bf16.mxu0 0
        %1601 = vmatpush2.bf16.msra.mxu0 0
        %1602 = vmatprep.subr.bf16.mxu0 0
        %1603 = vmatpush2.bf16.msra.mxu0 0
        %1604 = vmatprep.mubr.bf16.mxu0 0
        %1605 = vmatmul.mubr.bf16.gmra.mxu0 %v1570
        %v1606 = vpop.f32.mrf.mxu0
        %v1607 = vadd.f32 0.0, %v1606
        %v1608 = vpop.f32.mrf.mxu0
        %v1609 = vpop.f32.mrf.mxu0
        %v1610 = vpop.f32.mrf.mxu0
        %1611 = vdwg.mxu0
        %v1612 = vadd.f32 %v1566, %v1607
        %1613 = vrot.lane.b32.xlu0 %v924, 112
        %v1614 = vpop.permute.xlu0 %1613
        %v1616 = vsel %vm716, %v1614, 0
        %1618 = vmatprep.subr.bf16.mxu0 0
        %1619 = vmatpush1.bf16.msra.mxu0 0
        %1620 = vmatprep.subr.bf16.mxu0 0
        %1621 = vmatpush1.bf16.msra.mxu0 0
        %1622 = vmatprep.subr.bf16.mxu0 0
        %1623 = vmatpush1.bf16.msra.mxu0 0
        %1624 = vmatprep.subr.bf16.mxu0 0
        %1625 = vmatpush1.bf16.msra.mxu0 0
        %1626 = vmatprep.subr.bf16.mxu0 0
        %1627 = vmatpush1.bf16.msra.mxu0 0
        %1628 = vmatprep.subr.bf16.mxu0 0
        %1629 = vmatpush1.bf16.msra.mxu0 0
        %1630 = vmatprep.subr.bf16.mxu0 0
        %1631 = vmatpush1.bf16.msra.mxu0 0
        %1632 = vmatprep.subr.bf16.mxu0 0
        %1633 = vmatpush1.bf16.msra.mxu0 %v929
        %1634 = vmatprep.subr.bf16.mxu0 0
        %1635 = vmatpush2.bf16.msra.mxu0 0
        %1636 = vmatprep.subr.bf16.mxu0 0
        %1637 = vmatpush2.bf16.msra.mxu0 0
        %1638 = vmatprep.subr.bf16.mxu0 0
        %1639 = vmatpush2.bf16.msra.mxu0 0
        %1640 = vmatprep.subr.bf16.mxu0 0
        %1641 = vmatpush2.bf16.msra.mxu0 0
        %1642 = vmatprep.subr.bf16.mxu0 0
        %1643 = vmatpush2.bf16.msra.mxu0 0
        %1644 = vmatprep.subr.bf16.mxu0 0
        %1645 = vmatpush2.bf16.msra.mxu0 0
        %1646 = vmatprep.subr.bf16.mxu0 0
        %1647 = vmatpush2.bf16.msra.mxu0 0
        %1648 = vmatprep.subr.bf16.mxu0 0
        %1649 = vmatpush2.bf16.msra.mxu0 0
        %1650 = vmatprep.mubr.bf16.mxu0 0
        %1651 = vmatmul.mubr.bf16.gmra.mxu0 %v1616
        %v1652 = vpop.f32.mrf.mxu0
        %v1653 = vadd.f32 0.0, %v1652
        %v1654 = vpop.f32.mrf.mxu0
        %v1655 = vpop.f32.mrf.mxu0
        %v1656 = vpop.f32.mrf.mxu0
        %1657 = vdwg.mxu0
        %v1658 = vadd.f32 %v1612, %v1653
        %v1659 = vsel %vm972, %v1658, -inf
        %1660 = vmax.xlane.f32.xlu0 %v1659
        %v1661 = vpop.xlane.xlu0 %1660
        %v1662 = vsub.f32 %v1658, %v1661
        %v1663 = vmul.f32 %v1662, 1.442695
        %v1664 = vpow.pop %v1663
        %v1665 = vsel %vm972, %v1664, 0.0
        %1666 = vadd.xlane.f32.xlu0 %v1665
        %v1667 = vpop.xlane.xlu0 %1666
        %v1668 = vrcp.pop %v1667
        %v1669 = vmul.f32 %v1664, %v1668
        %v1670 = vpack.c.bf16 %v1669, %v1669
        %1671 = vrot.lane.b32.xlu0 %v709, 48
        %v1672 = vpop.permute.xlu0 %1671
        %v1674 = vsel %vm987, %v1670, 0
        %v1677 = vsel %vm991, %v1672, 0
        %1679 = vmatprep.subr.bf16.mxu0 0
        %1680 = vmatpush1.bf16.msra.mxu0 0
        %1681 = vmatprep.subr.bf16.mxu0 0
        %1682 = vmatpush1.bf16.msra.mxu0 0
        %1683 = vmatprep.subr.bf16.mxu0 0
        %1684 = vmatpush1.bf16.msra.mxu0 0
        %1685 = vmatprep.subr.bf16.mxu0 0
        %1686 = vmatpush1.bf16.msra.mxu0 0
        %1687 = vmatprep.subr.bf16.mxu0 0
        %1688 = vmatpush1.bf16.msra.mxu0 0
        %1689 = vmatprep.subr.bf16.mxu0 0
        %1690 = vmatpush1.bf16.msra.mxu0 0
        %1691 = vmatprep.subr.bf16.mxu0 0
        %1692 = vmatpush1.bf16.msra.mxu0 0
        %1693 = vmatprep.subr.bf16.mxu0 0
        %1694 = vmatpush1.bf16.msra.mxu0 %v1677
        %1695 = vmatprep.subr.bf16.mxu0 0
        %1696 = vmatpush2.bf16.msra.mxu0 0
        %1697 = vmatprep.subr.bf16.mxu0 0
        %1698 = vmatpush2.bf16.msra.mxu0 0
        %1699 = vmatprep.subr.bf16.mxu0 0
        %1700 = vmatpush2.bf16.msra.mxu0 0
        %1701 = vmatprep.subr.bf16.mxu0 0
        %1702 = vmatpush2.bf16.msra.mxu0 0
        %1703 = vmatprep.subr.bf16.mxu0 0
        %1704 = vmatpush2.bf16.msra.mxu0 0
        %1705 = vmatprep.subr.bf16.mxu0 0
        %1706 = vmatpush2.bf16.msra.mxu0 0
        %1707 = vmatprep.subr.bf16.mxu0 0
        %1708 = vmatpush2.bf16.msra.mxu0 0
        %1709 = vmatprep.subr.bf16.mxu0 0
        %1710 = vmatpush2.bf16.msra.mxu0 0
        %1711 = vmatprep.mubr.bf16.mxu0 0
        %1712 = vmatmul.mubr.bf16.gmra.mxu0 %v1674
        %v1713 = vpop.f32.mrf.mxu0
        %v1714 = vadd.f32 0.0, %v1713
        %v1715 = vpop.f32.mrf.mxu0
        %v1716 = vpop.f32.mrf.mxu0
        %v1717 = vpop.f32.mrf.mxu0
        %1718 = vdwg.mxu0
        %v1719 = vpack.c.bf16 %v1714, %v1714
        %v1721 = vsel %vm716, %v1719, 0
        %v1724 = vsel %vm720, %v605, 0
        %1726 = vmatprep.subr.bf16.mxu0 0
        %1727 = vmatpush1.bf16.msra.mxu0 0
        %1728 = vmatprep.subr.bf16.mxu0 0
        %1729 = vmatpush1.bf16.msra.mxu0 0
        %1730 = vmatprep.subr.bf16.mxu0 0
        %1731 = vmatpush1.bf16.msra.mxu0 0
        %1732 = vmatprep.subr.bf16.mxu0 0
        %1733 = vmatpush1.bf16.msra.mxu0 0
        %1734 = vmatprep.subr.bf16.mxu0 0
        %1735 = vmatpush1.bf16.msra.mxu0 0
        %1736 = vmatprep.subr.bf16.mxu0 0
        %1737 = vmatpush1.bf16.msra.mxu0 0
        %1738 = vmatprep.subr.bf16.mxu0 0
        %1739 = vmatpush1.bf16.msra.mxu0 0
        %1740 = vmatprep.subr.bf16.mxu0 0
        %1741 = vmatpush1.bf16.msra.mxu0 %v1724
        %1742 = vmatprep.subr.bf16.mxu0 0
        %1743 = vmatpush2.bf16.msra.mxu0 0
        %1744 = vmatprep.subr.bf16.mxu0 0
        %1745 = vmatpush2.bf16.msra.mxu0 0
        %1746 = vmatprep.subr.bf16.mxu0 0
        %1747 = vmatpush2.bf16.msra.mxu0 0
        %1748 = vmatprep.subr.bf16.mxu0 0
        %1749 = vmatpush2.bf16.msra.mxu0 0
        %1750 = vmatprep.subr.bf16.mxu0 0
        %1751 = vmatpush2.bf16.msra.mxu0 0
        %1752 = vmatprep.subr.bf16.mxu0 0
        %1753 = vmatpush2.bf16.msra.mxu0 0
        %1754 = vmatprep.subr.bf16.mxu0 0
        %1755 = vmatpush2.bf16.msra.mxu0 0
        %1756 = vmatprep.subr.bf16.mxu0 0
        %1757 = vmatpush2.bf16.msra.mxu0 0
        %1758 = vmatprep.mubr.bf16.mxu0 0
        %1759 = vmatmul.mubr.bf16.gmra.mxu0 %v1721
        %v1760 = vpop.f32.mrf.mxu0
        %v1761 = vadd.f32 0.0, %v1760
        %v1762 = vpop.f32.mrf.mxu0
        %v1763 = vpop.f32.mrf.mxu0
        %v1764 = vpop.f32.mrf.mxu0
        %1765 = vdwg.mxu0
        %v1766 = vadd.f32 %v1421, %v1761
        %1767 = vrot.lane.b32.xlu0 %v715, 104
        %v1768 = vpop.permute.xlu0 %1767
        %v1770 = vsel %vm716, %v1768, 0
        %1772 = vmatprep.subr.bf16.mxu0 0
        %1773 = vmatpush1.bf16.msra.mxu0 0
        %1774 = vmatprep.subr.bf16.mxu0 0
        %1775 = vmatpush1.bf16.msra.mxu0 0
        %1776 = vmatprep.subr.bf16.mxu0 0
        %1777 = vmatpush1.bf16.msra.mxu0 0
        %1778 = vmatprep.subr.bf16.mxu0 0
        %1779 = vmatpush1.bf16.msra.mxu0 0
        %1780 = vmatprep.subr.bf16.mxu0 0
        %1781 = vmatpush1.bf16.msra.mxu0 0
        %1782 = vmatprep.subr.bf16.mxu0 0
        %1783 = vmatpush1.bf16.msra.mxu0 0
        %1784 = vmatprep.subr.bf16.mxu0 0
        %1785 = vmatpush1.bf16.msra.mxu0 0
        %1786 = vmatprep.subr.bf16.mxu0 0
        %1787 = vmatpush1.bf16.msra.mxu0 %v722
        %1788 = vmatprep.subr.bf16.mxu0 0
        %1789 = vmatpush2.bf16.msra.mxu0 0
        %1790 = vmatprep.subr.bf16.mxu0 0
        %1791 = vmatpush2.bf16.msra.mxu0 0
        %1792 = vmatprep.subr.bf16.mxu0 0
        %1793 = vmatpush2.bf16.msra.mxu0 0
        %1794 = vmatprep.subr.bf16.mxu0 0
        %1795 = vmatpush2.bf16.msra.mxu0 0
        %1796 = vmatprep.subr.bf16.mxu0 0
        %1797 = vmatpush2.bf16.msra.mxu0 0
        %1798 = vmatprep.subr.bf16.mxu0 0
        %1799 = vmatpush2.bf16.msra.mxu0 0
        %1800 = vmatprep.subr.bf16.mxu0 0
        %1801 = vmatpush2.bf16.msra.mxu0 0
        %1802 = vmatprep.subr.bf16.mxu0 0
        %1803 = vmatpush2.bf16.msra.mxu0 0
        %1804 = vmatprep.mubr.bf16.mxu0 0
        %1805 = vmatmul.mubr.bf16.gmra.mxu0 %v1770
        %v1806 = vpop.f32.mrf.mxu0
        %v1807 = vadd.f32 0.0, %v1806
        %v1808 = vpop.f32.mrf.mxu0
        %v1809 = vpop.f32.mrf.mxu0
        %v1810 = vpop.f32.mrf.mxu0
        %1811 = vdwg.mxu0
        %1812 = vrot.lane.b32.xlu0 %v709, 104
        %v1813 = vpop.permute.xlu0 %1812
        %1814 = vrot.lane.b32.xlu0 %v709, 72
        %v1815 = vpop.permute.xlu0 %1814
        %v1817 = vsel %vm716, %v1813, 0
        %v1820 = vsel %vm716, %v1815, 0
        %1822 = vmatprep.subr.bf16.mxu0 0
        %1823 = vmatpush1.bf16.xpose.msra.mxu0 0
        %1824 = vmatprep.subr.bf16.mxu0 0
        %1825 = vmatpush1.bf16.xpose.msra.mxu0 0
        %1826 = vmatprep.subr.bf16.mxu0 0
        %1827 = vmatpush1.bf16.xpose.msra.mxu0 0
        %1828 = vmatprep.subr.bf16.mxu0 0
        %1829 = vmatpush1.bf16.xpose.msra.mxu0 0
        %1830 = vmatprep.subr.bf16.mxu0 0
        %1831 = vmatpush1.bf16.xpose.msra.mxu0 0
        %1832 = vmatprep.subr.bf16.mxu0 0
        %1833 = vmatpush1.bf16.xpose.msra.mxu0 0
        %1834 = vmatprep.subr.bf16.mxu0 0
        %1835 = vmatpush1.bf16.xpose.msra.mxu0 0
        %1836 = vmatprep.subr.bf16.mxu0 0
        %1837 = vmatpush1.bf16.xpose.msra.mxu0 %v1820
        %1838 = vmatprep.subr.bf16.mxu0 0
        %1839 = vmatpush2.bf16.xpose.msra.mxu0 0
        %1840 = vmatprep.subr.bf16.mxu0 0
        %1841 = vmatpush2.bf16.xpose.msra.mxu0 0
        %1842 = vmatprep.subr.bf16.mxu0 0
        %1843 = vmatpush2.bf16.xpose.msra.mxu0 0
        %1844 = vmatprep.subr.bf16.mxu0 0
        %1845 = vmatpush2.bf16.xpose.msra.mxu0 0
        %1846 = vmatprep.subr.bf16.mxu0 0
        %1847 = vmatpush2.bf16.xpose.msra.mxu0 0
        %1848 = vmatprep.subr.bf16.mxu0 0
        %1849 = vmatpush2.bf16.xpose.msra.mxu0 0
        %1850 = vmatprep.subr.bf16.mxu0 0
        %1851 = vmatpush2.bf16.xpose.msra.mxu0 0
        %1852 = vmatprep.subr.bf16.mxu0 0
        %1853 = vmatpush2.bf16.xpose.msra.mxu0 0
        %1854 = vmatprep.mubr.bf16.mxu0 0
        %1855 = vmatmul.mubr.bf16.gmra.mxu0 %v1817
        %v1856 = vpop.f32.mrf.mxu0
        %v1857 = vadd.f32 %v1807, %v1856
        %v1858 = vpop.f32.mrf.mxu0
        %v1859 = vpop.f32.mrf.mxu0
        %v1860 = vpop.f32.mrf.mxu0
        %1861 = vdwg.mxu0
        %1862 = vrot.lane.b32.xlu0 %v818, 104
        %v1863 = vpop.permute.xlu0 %1862
        %v1865 = vsel %vm716, %v1863, 0
        %1867 = vmatprep.subr.bf16.mxu0 0
        %1868 = vmatpush1.bf16.msra.mxu0 0
        %1869 = vmatprep.subr.bf16.mxu0 0
        %1870 = vmatpush1.bf16.msra.mxu0 0
        %1871 = vmatprep.subr.bf16.mxu0 0
        %1872 = vmatpush1.bf16.msra.mxu0 0
        %1873 = vmatprep.subr.bf16.mxu0 0
        %1874 = vmatpush1.bf16.msra.mxu0 0
        %1875 = vmatprep.subr.bf16.mxu0 0
        %1876 = vmatpush1.bf16.msra.mxu0 0
        %1877 = vmatprep.subr.bf16.mxu0 0
        %1878 = vmatpush1.bf16.msra.mxu0 0
        %1879 = vmatprep.subr.bf16.mxu0 0
        %1880 = vmatpush1.bf16.msra.mxu0 0
        %1881 = vmatprep.subr.bf16.mxu0 0
        %1882 = vmatpush1.bf16.msra.mxu0 %v823
        %1883 = vmatprep.subr.bf16.mxu0 0
        %1884 = vmatpush2.bf16.msra.mxu0 0
        %1885 = vmatprep.subr.bf16.mxu0 0
        %1886 = vmatpush2.bf16.msra.mxu0 0
        %1887 = vmatprep.subr.bf16.mxu0 0
        %1888 = vmatpush2.bf16.msra.mxu0 0
        %1889 = vmatprep.subr.bf16.mxu0 0
        %1890 = vmatpush2.bf16.msra.mxu0 0
        %1891 = vmatprep.subr.bf16.mxu0 0
        %1892 = vmatpush2.bf16.msra.mxu0 0
        %1893 = vmatprep.subr.bf16.mxu0 0
        %1894 = vmatpush2.bf16.msra.mxu0 0
        %1895 = vmatprep.subr.bf16.mxu0 0
        %1896 = vmatpush2.bf16.msra.mxu0 0
        %1897 = vmatprep.subr.bf16.mxu0 0
        %1898 = vmatpush2.bf16.msra.mxu0 0
        %1899 = vmatprep.mubr.bf16.mxu0 0
        %1900 = vmatmul.mubr.bf16.gmra.mxu0 %v1865
        %v1901 = vpop.f32.mrf.mxu0
        %v1902 = vadd.f32 0.0, %v1901
        %v1903 = vpop.f32.mrf.mxu0
        %v1904 = vpop.f32.mrf.mxu0
        %v1905 = vpop.f32.mrf.mxu0
        %1906 = vdwg.mxu0
        %v1907 = vadd.f32 %v1857, %v1902
        %1908 = vrot.lane.b32.xlu0 %v871, 104
        %v1909 = vpop.permute.xlu0 %1908
        %v1911 = vsel %vm716, %v1909, 0
        %1913 = vmatprep.subr.bf16.mxu0 0
        %1914 = vmatpush1.bf16.msra.mxu0 0
        %1915 = vmatprep.subr.bf16.mxu0 0
        %1916 = vmatpush1.bf16.msra.mxu0 0
        %1917 = vmatprep.subr.bf16.mxu0 0
        %1918 = vmatpush1.bf16.msra.mxu0 0
        %1919 = vmatprep.subr.bf16.mxu0 0
        %1920 = vmatpush1.bf16.msra.mxu0 0
        %1921 = vmatprep.subr.bf16.mxu0 0
        %1922 = vmatpush1.bf16.msra.mxu0 0
        %1923 = vmatprep.subr.bf16.mxu0 0
        %1924 = vmatpush1.bf16.msra.mxu0 0
        %1925 = vmatprep.subr.bf16.mxu0 0
        %1926 = vmatpush1.bf16.msra.mxu0 0
        %1927 = vmatprep.subr.bf16.mxu0 0
        %1928 = vmatpush1.bf16.msra.mxu0 %v876
        %1929 = vmatprep.subr.bf16.mxu0 0
        %1930 = vmatpush2.bf16.msra.mxu0 0
        %1931 = vmatprep.subr.bf16.mxu0 0
        %1932 = vmatpush2.bf16.msra.mxu0 0
        %1933 = vmatprep.subr.bf16.mxu0 0
        %1934 = vmatpush2.bf16.msra.mxu0 0
        %1935 = vmatprep.subr.bf16.mxu0 0
        %1936 = vmatpush2.bf16.msra.mxu0 0
        %1937 = vmatprep.subr.bf16.mxu0 0
        %1938 = vmatpush2.bf16.msra.mxu0 0
        %1939 = vmatprep.subr.bf16.mxu0 0
        %1940 = vmatpush2.bf16.msra.mxu0 0
        %1941 = vmatprep.subr.bf16.mxu0 0
        %1942 = vmatpush2.bf16.msra.mxu0 0
        %1943 = vmatprep.subr.bf16.mxu0 0
        %1944 = vmatpush2.bf16.msra.mxu0 0
        %1945 = vmatprep.mubr.bf16.mxu0 0
        %1946 = vmatmul.mubr.bf16.gmra.mxu0 %v1911
        %v1947 = vpop.f32.mrf.mxu0
        %v1948 = vadd.f32 0.0, %v1947
        %v1949 = vpop.f32.mrf.mxu0
        %v1950 = vpop.f32.mrf.mxu0
        %v1951 = vpop.f32.mrf.mxu0
        %1952 = vdwg.mxu0
        %v1953 = vadd.f32 %v1907, %v1948
        %1954 = vrot.lane.b32.xlu0 %v924, 104
        %v1955 = vpop.permute.xlu0 %1954
        %v1957 = vsel %vm716, %v1955, 0
        %1959 = vmatprep.subr.bf16.mxu0 0
        %1960 = vmatpush1.bf16.msra.mxu0 0
        %1961 = vmatprep.subr.bf16.mxu0 0
        %1962 = vmatpush1.bf16.msra.mxu0 0
        %1963 = vmatprep.subr.bf16.mxu0 0
        %1964 = vmatpush1.bf16.msra.mxu0 0
        %1965 = vmatprep.subr.bf16.mxu0 0
        %1966 = vmatpush1.bf16.msra.mxu0 0
        %1967 = vmatprep.subr.bf16.mxu0 0
        %1968 = vmatpush1.bf16.msra.mxu0 0
        %1969 = vmatprep.subr.bf16.mxu0 0
        %1970 = vmatpush1.bf16.msra.mxu0 0
        %1971 = vmatprep.subr.bf16.mxu0 0
        %1972 = vmatpush1.bf16.msra.mxu0 0
        %1973 = vmatprep.subr.bf16.mxu0 0
        %1974 = vmatpush1.bf16.msra.mxu0 %v929
        %1975 = vmatprep.subr.bf16.mxu0 0
        %1976 = vmatpush2.bf16.msra.mxu0 0
        %1977 = vmatprep.subr.bf16.mxu0 0
        %1978 = vmatpush2.bf16.msra.mxu0 0
        %1979 = vmatprep.subr.bf16.mxu0 0
        %1980 = vmatpush2.bf16.msra.mxu0 0
        %1981 = vmatprep.subr.bf16.mxu0 0
        %1982 = vmatpush2.bf16.msra.mxu0 0
        %1983 = vmatprep.subr.bf16.mxu0 0
        %1984 = vmatpush2.bf16.msra.mxu0 0
        %1985 = vmatprep.subr.bf16.mxu0 0
        %1986 = vmatpush2.bf16.msra.mxu0 0
        %1987 = vmatprep.subr.bf16.mxu0 0
        %1988 = vmatpush2.bf16.msra.mxu0 0
        %1989 = vmatprep.subr.bf16.mxu0 0
        %1990 = vmatpush2.bf16.msra.mxu0 0
        %1991 = vmatprep.mubr.bf16.mxu0 0
        %1992 = vmatmul.mubr.bf16.gmra.mxu0 %v1957
        %v1993 = vpop.f32.mrf.mxu0
        %v1994 = vadd.f32 0.0, %v1993
        %v1995 = vpop.f32.mrf.mxu0
        %v1996 = vpop.f32.mrf.mxu0
        %v1997 = vpop.f32.mrf.mxu0
        %1998 = vdwg.mxu0
        %v1999 = vadd.f32 %v1953, %v1994
        %v2000 = vsel %vm972, %v1999, -inf
        %2001 = vmax.xlane.f32.xlu0 %v2000
        %v2002 = vpop.xlane.xlu0 %2001
        %v2003 = vsub.f32 %v1999, %v2002
        %v2004 = vmul.f32 %v2003, 1.442695
        %v2005 = vpow.pop %v2004
        %v2006 = vsel %vm972, %v2005, 0.0
        %2007 = vadd.xlane.f32.xlu0 %v2006
        %v2008 = vpop.xlane.xlu0 %2007
        %v2009 = vrcp.pop %v2008
        %v2010 = vmul.f32 %v2005, %v2009
        %v2011 = vpack.c.bf16 %v2010, %v2010
        %2012 = vrot.lane.b32.xlu0 %v709, 40
        %v2013 = vpop.permute.xlu0 %2012
        %v2015 = vsel %vm987, %v2011, 0
        %v2018 = vsel %vm991, %v2013, 0
        %2020 = vmatprep.subr.bf16.mxu0 0
        %2021 = vmatpush1.bf16.msra.mxu0 0
        %2022 = vmatprep.subr.bf16.mxu0 0
        %2023 = vmatpush1.bf16.msra.mxu0 0
        %2024 = vmatprep.subr.bf16.mxu0 0
        %2025 = vmatpush1.bf16.msra.mxu0 0
        %2026 = vmatprep.subr.bf16.mxu0 0
        %2027 = vmatpush1.bf16.msra.mxu0 0
        %2028 = vmatprep.subr.bf16.mxu0 0
        %2029 = vmatpush1.bf16.msra.mxu0 0
        %2030 = vmatprep.subr.bf16.mxu0 0
        %2031 = vmatpush1.bf16.msra.mxu0 0
        %2032 = vmatprep.subr.bf16.mxu0 0
        %2033 = vmatpush1.bf16.msra.mxu0 0
        %2034 = vmatprep.subr.bf16.mxu0 0
        %2035 = vmatpush1.bf16.msra.mxu0 %v2018
        %2036 = vmatprep.subr.bf16.mxu0 0
        %2037 = vmatpush2.bf16.msra.mxu0 0
        %2038 = vmatprep.subr.bf16.mxu0 0
        %2039 = vmatpush2.bf16.msra.mxu0 0
        %2040 = vmatprep.subr.bf16.mxu0 0
        %2041 = vmatpush2.bf16.msra.mxu0 0
        %2042 = vmatprep.subr.bf16.mxu0 0
        %2043 = vmatpush2.bf16.msra.mxu0 0
        %2044 = vmatprep.subr.bf16.mxu0 0
        %2045 = vmatpush2.bf16.msra.mxu0 0
        %2046 = vmatprep.subr.bf16.mxu0 0
        %2047 = vmatpush2.bf16.msra.mxu0 0
        %2048 = vmatprep.subr.bf16.mxu0 0
        %2049 = vmatpush2.bf16.msra.mxu0 0
        %2050 = vmatprep.subr.bf16.mxu0 0
        %2051 = vmatpush2.bf16.msra.mxu0 0
        %2052 = vmatprep.mubr.bf16.mxu0 0
        %2053 = vmatmul.mubr.bf16.gmra.mxu0 %v2015
        %v2054 = vpop.f32.mrf.mxu0
        %v2055 = vadd.f32 0.0, %v2054
        %v2056 = vpop.f32.mrf.mxu0
        %v2057 = vpop.f32.mrf.mxu0
        %v2058 = vpop.f32.mrf.mxu0
        %2059 = vdwg.mxu0
        %v2060 = vpack.c.bf16 %v2055, %v2055
        %v2062 = vsel %vm716, %v2060, 0
        %v2065 = vsel %vm720, %v607, 0
        %2067 = vmatprep.subr.bf16.mxu0 0
        %2068 = vmatpush1.bf16.msra.mxu0 0
        %2069 = vmatprep.subr.bf16.mxu0 0
        %2070 = vmatpush1.bf16.msra.mxu0 0
        %2071 = vmatprep.subr.bf16.mxu0 0
        %2072 = vmatpush1.bf16.msra.mxu0 0
        %2073 = vmatprep.subr.bf16.mxu0 0
        %2074 = vmatpush1.bf16.msra.mxu0 0
        %2075 = vmatprep.subr.bf16.mxu0 0
        %2076 = vmatpush1.bf16.msra.mxu0 0
        %2077 = vmatprep.subr.bf16.mxu0 0
        %2078 = vmatpush1.bf16.msra.mxu0 0
        %2079 = vmatprep.subr.bf16.mxu0 0
        %2080 = vmatpush1.bf16.msra.mxu0 0
        %2081 = vmatprep.subr.bf16.mxu0 0
        %2082 = vmatpush1.bf16.msra.mxu0 %v2065
        %2083 = vmatprep.subr.bf16.mxu0 0
        %2084 = vmatpush2.bf16.msra.mxu0 0
        %2085 = vmatprep.subr.bf16.mxu0 0
        %2086 = vmatpush2.bf16.msra.mxu0 0
        %2087 = vmatprep.subr.bf16.mxu0 0
        %2088 = vmatpush2.bf16.msra.mxu0 0
        %2089 = vmatprep.subr.bf16.mxu0 0
        %2090 = vmatpush2.bf16.msra.mxu0 0
        %2091 = vmatprep.subr.bf16.mxu0 0
        %2092 = vmatpush2.bf16.msra.mxu0 0
        %2093 = vmatprep.subr.bf16.mxu0 0
        %2094 = vmatpush2.bf16.msra.mxu0 0
        %2095 = vmatprep.subr.bf16.mxu0 0
        %2096 = vmatpush2.bf16.msra.mxu0 0
        %2097 = vmatprep.subr.bf16.mxu0 0
        %2098 = vmatpush2.bf16.msra.mxu0 0
        %2099 = vmatprep.mubr.bf16.mxu0 0
        %2100 = vmatmul.mubr.bf16.gmra.mxu0 %v2062
        %v2101 = vpop.f32.mrf.mxu0
        %v2102 = vadd.f32 0.0, %v2101
        %v2103 = vpop.f32.mrf.mxu0
        %v2104 = vpop.f32.mrf.mxu0
        %v2105 = vpop.f32.mrf.mxu0
        %2106 = vdwg.mxu0
        %v2107 = vadd.f32 %v1766, %v2102
        %v2109 = vlaneseq
        %v2110 = vshrl.u32 %v2109, 7
        %v2111 = vsub.s32 0, %v2110
        %v2112 = vrot.slane %v560, %v2111
        %v2114 = vadd.f32 %v2107, %v2112
        %v2115 = vadd.f32 %v2114, %v616
        %v2116 = vsel %vm617, %v2115, 0.0
        %2117 = vadd.xlane.f32.xlu0 %v2116
        %v2118 = vpop.xlane.xlu0 %2117
        %v2119 = vmul.f32 %v2118, %v621
        %v2120 = vsub.f32 %v2115, %v2119
        %v2121 = vmul.f32 %v2120, %v2120
        %v2122 = vsel %vm617, %v2121, 0.0
        %2123 = vadd.xlane.f32.xlu0 %v2122
        %v2124 = vpop.xlane.xlu0 %2123
        %v2125 = vmul.f32 %v2124, %v621
        %v2126 = vadd.f32 %v2125, 1e-06
        %v2127 = vrsqrt.pop %v2126
        %v2128 = vmul.f32 %v2120, %v2127
        %v2130 = vlaneseq
        %v2131 = vshrl.u32 %v2130, 7
        %v2132 = vsub.s32 0, %v2131
        %v2133 = vrot.slane %v561, %v2132
        %v2135 = vmul.f32 %v2128, %v2133
        %v2137 = vlaneseq
        %v2138 = vshrl.u32 %v2137, 7
        %v2139 = vsub.s32 0, %v2138
        %v2140 = vrot.slane %v562, %v2139
        %v2142 = vadd.f32 %v2135, %v2140
        %v2143 = vpack.c.bf16 %v2142, %v2142
        %v2145 = vlaneseq
        %v2146 = vshrl.u32 %v2145, 7
        %v2147 = vsub.s32 0, %v2146
        %v2148 = vrot.slane %v567, %v2147
        %v2154 = vunpack.c.l.b16 %v563
        %v2155 = vunpack.c.l.b16 %v564
        %v2156 = vunpack.c.l.b16 %v565
        %v2157 = vunpack.c.l.b16 %v566
        %v2158 = vpack.c.b16 %v2155, %v2154
        %v2159 = vpack.c.b16 %v2157, %v2156
        %v2163 = vsel %vm665, %v2143, 0
        %2165 = vmatprep.subr.bf16.mxu0 0
        %2166 = vmatpush1.bf16.msra.mxu0 0
        %2167 = vmatprep.subr.bf16.mxu0 0
        %2168 = vmatpush1.bf16.msra.mxu0 0
        %2169 = vmatprep.subr.bf16.mxu0 0
        %2170 = vmatpush1.bf16.msra.mxu0 0
        %2171 = vmatprep.subr.bf16.mxu0 0
        %2172 = vmatpush1.bf16.msra.mxu0 0
        %2173 = vmatprep.subr.bf16.mxu0 0
        %2174 = vmatpush1.bf16.msra.mxu0 0
        %2175 = vmatprep.subr.bf16.mxu0 0
        %2176 = vmatpush1.bf16.msra.mxu0 0
        %2177 = vmatprep.subr.bf16.mxu0 0
        %2178 = vmatpush1.bf16.msra.mxu0 %v2159
        %2179 = vmatprep.subr.bf16.mxu0 0
        %2180 = vmatpush1.bf16.msra.mxu0 %v2158
        %2181 = vmatprep.subr.bf16.mxu0 0
        %2182 = vmatpush2.bf16.msra.mxu0 0
        %2183 = vmatprep.subr.bf16.mxu0 0
        %2184 = vmatpush2.bf16.msra.mxu0 0
        %2185 = vmatprep.subr.bf16.mxu0 0
        %2186 = vmatpush2.bf16.msra.mxu0 0
        %2187 = vmatprep.subr.bf16.mxu0 0
        %2188 = vmatpush2.bf16.msra.mxu0 0
        %2189 = vmatprep.subr.bf16.mxu0 0
        %2190 = vmatpush2.bf16.msra.mxu0 0
        %2191 = vmatprep.subr.bf16.mxu0 0
        %2192 = vmatpush2.bf16.msra.mxu0 0
        %2193 = vmatprep.subr.bf16.mxu0 0
        %2194 = vmatpush2.bf16.msra.mxu0 0
        %2195 = vmatprep.subr.bf16.mxu0 0
        %2196 = vmatpush2.bf16.msra.mxu0 0
        %2197 = vmatprep.mubr.bf16.mxu0 0
        %2198 = vmatmul.mubr.bf16.gmra.mxu0 %v2163
        %v2199 = vpop.f32.mrf.mxu0
        %v2200 = vadd.f32 %v2148, %v2199
        %v2201 = vpop.f32.mrf.mxu0
        %v2202 = vpop.f32.mrf.mxu0
        %v2203 = vpop.f32.mrf.mxu0
        %2204 = vdwg.mxu0
        %v2205 = vmul.f32 %v2200, %v2200
        %v2206 = vmul.f32 %v2200, %v2205
        %v2207 = vmul.f32 %v2206, 0.044715
        %v2208 = vadd.f32 %v2200, %v2207
        %v2209 = vmul.f32 %v2208, 0.7978846
        %v2210 = vtanh.pop %v2209
        %v2211 = vadd.f32 %v2210, 1.0
        %v2212 = vmul.f32 %v2211, 0.5
        %v2213 = vmul.f32 %v2200, %v2212
        %v2214 = vpack.c.bf16 %v2213, %v2213
        %v2216 = vlaneseq
        %v2217 = vshrl.u32 %v2216, 7
        %v2218 = vsub.s32 0, %v2217
        %v2219 = vrot.slane %v584, %v2218
        %v2237 = vunpack.c.l.b16 %v568
        %v2238 = vunpack.c.l.b16 %v569
        %v2239 = vunpack.c.l.b16 %v570
        %v2240 = vunpack.c.l.b16 %v571
        %v2241 = vunpack.c.l.b16 %v572
        %v2242 = vunpack.c.l.b16 %v573
        %v2243 = vunpack.c.l.b16 %v574
        %v2244 = vunpack.c.l.b16 %v575
        %v2245 = vunpack.c.l.b16 %v576
        %v2246 = vunpack.c.l.b16 %v577
        %v2247 = vunpack.c.l.b16 %v578
        %v2248 = vunpack.c.l.b16 %v579
        %v2249 = vunpack.c.l.b16 %v580
        %v2250 = vunpack.c.l.b16 %v581
        %v2251 = vunpack.c.l.b16 %v582
        %v2252 = vunpack.c.l.b16 %v583
        %v2253 = vpack.c.b16 %v2238, %v2237
        %v2254 = vpack.c.b16 %v2240, %v2239
        %v2255 = vpack.c.b16 %v2242, %v2241
        %v2256 = vpack.c.b16 %v2244, %v2243
        %v2257 = vpack.c.b16 %v2246, %v2245
        %v2258 = vpack.c.b16 %v2248, %v2247
        %v2259 = vpack.c.b16 %v2250, %v2249
        %v2260 = vpack.c.b16 %v2252, %v2251
        %2269 = vmatprep.subr.bf16.mxu0 0
        %2270 = vmatpush1.bf16.msra.mxu0 %v2260
        %2271 = vmatprep.subr.bf16.mxu0 0
        %2272 = vmatpush1.bf16.msra.mxu0 %v2259
        %2273 = vmatprep.subr.bf16.mxu0 0
        %2274 = vmatpush1.bf16.msra.mxu0 %v2258
        %2275 = vmatprep.subr.bf16.mxu0 0
        %2276 = vmatpush1.bf16.msra.mxu0 %v2257
        %2277 = vmatprep.subr.bf16.mxu0 0
        %2278 = vmatpush1.bf16.msra.mxu0 %v2256
        %2279 = vmatprep.subr.bf16.mxu0 0
        %2280 = vmatpush1.bf16.msra.mxu0 %v2255
        %2281 = vmatprep.subr.bf16.mxu0 0
        %2282 = vmatpush1.bf16.msra.mxu0 %v2254
        %2283 = vmatprep.subr.bf16.mxu0 0
        %2284 = vmatpush1.bf16.msra.mxu0 %v2253
        %2285 = vmatprep.subr.bf16.mxu0 0
        %2286 = vmatpush2.bf16.msra.mxu0 0
        %2287 = vmatprep.subr.bf16.mxu0 0
        %2288 = vmatpush2.bf16.msra.mxu0 0
        %2289 = vmatprep.subr.bf16.mxu0 0
        %2290 = vmatpush2.bf16.msra.mxu0 0
        %2291 = vmatprep.subr.bf16.mxu0 0
        %2292 = vmatpush2.bf16.msra.mxu0 0
        %2293 = vmatprep.subr.bf16.mxu0 0
        %2294 = vmatpush2.bf16.msra.mxu0 0
        %2295 = vmatprep.subr.bf16.mxu0 0
        %2296 = vmatpush2.bf16.msra.mxu0 0
        %2297 = vmatprep.subr.bf16.mxu0 0
        %2298 = vmatpush2.bf16.msra.mxu0 0
        %2299 = vmatprep.subr.bf16.mxu0 0
        %2300 = vmatpush2.bf16.msra.mxu0 0
        %2301 = vmatprep.mubr.bf16.mxu0 0
        %2302 = vmatmul.mubr.bf16.gmra.mxu0 %v2214
        %v2303 = vpop.f32.mrf.mxu0
        %v2304 = vadd.f32 %v2219, %v2303
        %v2305 = vpop.f32.mrf.mxu0
        %v2306 = vpop.f32.mrf.mxu0
        %v2307 = vpop.f32.mrf.mxu0
        %2308 = vdwg.mxu0
        %v2309 = vadd.f32 %v2304, %v2115
        %s2310 = scalar_lea.vmem %s550, %s614
        %2311 = vst.msk [vmem:[%s2310] sm:$0xf] %vm617, %v2309
      $region93: #{sam_mae_encoder_forward.5} parent=87 // loop_footer
        %s613 = sadd.s32 1, %s609
      $region94: #{sam_mae_encoder_forward.5} parent=87 // loop_footer_branch
        %608 = sbr.rel target = $region90
      $region95: #{sam_mae_encoder_forward.5} parent=87 // loop_exit
        _
      %s2312 = smul.u32 4, %s28
      %p2313 = scmp.lt.s32.totalorder %s2312, 7
      %s2314 = scalar_select %p2313, %s2312, 7
      %s2315 = smul.addr %s2314, 4
      %s2316 = scalar_lea.vmem %s17, %s2315
      // Predicated region
      $region96: #{sam_mae_encoder_forward.5} parent=87 // pred_check
        %p2317 = pneg %p408
      $region97: #{sam_mae_encoder_forward.5} parent=87 // pred_check_branch
        %2319 = sbr.rel (%p2317) target = $region99
      $region98: #{sam_mae_encoder_forward.5} parent=87 // pred_region
        %s2320 = smul.u32 4, %s28
      $region99: #{sam_mae_encoder_forward.5} parent=87 // pred_fallthru
        _
    $region88: #{sam_mae_encoder_forward.5} parent=5 // pred_fallthru
      _
    %p2321 = scmp.le.s32.totalorder 2, %s23
    // Predicated region
    $region100: #{sam_mae_encoder_forward.5} parent=5 // pred_check
      %p2322 = pneg %p2321
    $region101: #{sam_mae_encoder_forward.5} parent=5 // pred_check_branch
      %2324 = sbr.rel (%p2322) target = $region103
    $region102: #{sam_mae_encoder_forward.5} parent=5 // pred_region
      %s2325 = ssub.s32 %s23, 2
      // Predicated region
      $region104: #{sam_mae_encoder_forward.5} parent=102 // pred_check
        %p2326 = pneg %p414
      $region105: #{sam_mae_encoder_forward.5} parent=102 // pred_check_branch
        %2328 = sbr.rel (%p2326) target = $region107
      $region106: #{sam_mae_encoder_forward.5} parent=102 // pred_region
        %s2329 = smul.u32 4, %s29
        %p2330 = scmp.lt.s32.totalorder %s2329, 7
        %s2331 = scalar_select %p2330, %s2329, 7
        %s2332 = smul.addr %s2331, 4
        %s2333 = scalar_lea.vmem %s17, %s2332
      $region107: #{sam_mae_encoder_forward.5} parent=102 // pred_fallthru
        _
    $region103: #{sam_mae_encoder_forward.5} parent=5 // pred_fallthru
      _
  $region6: #{sam_mae_encoder_forward.5} parent=0 // loop_footer
    %s27 = sadd.s32 1, %s23
  $region7: #{sam_mae_encoder_forward.5} parent=0 // loop_footer_branch
    %22 = sbr.rel target = $region3
  $region8: #{sam_mae_encoder_forward.5} parent=0 // loop_exit
    _

// kernel: sam_mae_encoder_forward.7
$region0: #{sam_mae_encoder_forward.7}
  #allocation0 [shape = 'u32[]', space=smem, size = 0x4, offset = 0x4, fixed_abs, tag = 'smem constant byte address 0x4 - core index']
  #allocation1 [shape = 'u32[144,128]{1,0:T(1,128)}', space=vmem, size = 0x12000, scoped, tag = 'internal scratch']
  %s0 = inlined_call_operand.vmem [shape: bf16[2,50,32], index: 0, kind: input, shape index: {}]
  %s1 = inlined_call_operand.vmem [shape: bf16[32,16], index: 1, kind: input, shape index: {}]
  %s2 = inlined_call_operand.vmem [shape: f32[1,16], index: 2, kind: input, shape index: {}]
  %s3 = inlined_call_operand.vmem [shape: f32[1,16], index: 3, kind: input, shape index: {}]
  %s4 = inlined_call_operand.vmem [shape: bf16[144,16], index: 4, kind: input, shape index: {}]
  %s5 = inlined_call_operand.vmem [shape: f32[1,16], index: 5, kind: input, shape index: {}]
  %s6 = inlined_call_operand.vmem [shape: f32[1,16], index: 6, kind: input, shape index: {}]
  %s7 = inlined_call_operand.vmem [shape: f32[50,1], index: 7, kind: input, shape index: {}]
  %s8 = inlined_call_operand.vmem [shape: f32[36,1], index: 8, kind: input, shape index: {}]
  %s9 = inlined_call_operand.hbm [shape: f32[2,1,16], index: 9, kind: output, shape index: {}]
  %s10 = sld [smem:[#allocation0]]
  $region69: #{sam_mae_encoder_forward.7} parent=0
    _
  %s12 = ssub.s32 1, %s10
  %s13 = scalar_select 0, %s12, %s10
  $region1: #{sam_mae_encoder_forward.7} parent=0
    #allocation2 [shape = 'u8[1024]{0}', space=vmem, size = 0x400, scoped, tag = 'output window, operand 0']
    #allocation3 [shape = 's32[2]{0}', space=sflag, size = 0x8, scoped, tag = 'scoped memory for sam_mae_encoder_forward.7']
    %14 = vsyncpa [#allocation3], 0
    %s15 = scalar_lea.sflag [#allocation3], 1
    %16 = vsyncpa %s15, 0
    loop: start=0, step=1, limit=4
    $region2: #{sam_mae_encoder_forward.7} parent=1 // loop_pre_header
      _
    $region3: #{sam_mae_encoder_forward.7} parent=1 // loop_header
      %s18 = sphi 0, %s22
      %p19 = scmp.ge.s32.totalorder %s18, 4
      %s28 = sphi 0, %s30
      %s31 = sphi 0, %s28
      %s32 = sphi 0, %s31
      %s48 = sphi 0, %s32
      %s52 = sphi 0, %s52
      %s54 = sphi 0, %s52
      %s55 = sphi 0, %s54
      %s69 = sphi 0, %s55
      %s73 = sphi 0, %s73
      %s75 = sphi 0, %s73
      %s76 = sphi 0, %s75
      %s90 = sphi 0, %s76
      %s94 = sphi 0, %s94
      %s96 = sphi 0, %s94
      %s97 = sphi 0, %s96
      %s111 = sphi 0, %s97
      %s115 = sphi 0, %s115
      %s117 = sphi 0, %s115
      %s118 = sphi 0, %s117
      %s132 = sphi 0, %s118
      %s136 = sphi 0, %s136
      %s138 = sphi 0, %s136
      %s139 = sphi 0, %s138
      %s153 = sphi 0, %s139
      %s157 = sphi 0, %s157
      %s159 = sphi 0, %s157
      %s160 = sphi 0, %s159
      %s174 = sphi 0, %s160
      %s178 = sphi 0, %s178
      %s180 = sphi 0, %s178
      %s181 = sphi 0, %s180
      %s195 = sphi 0, %s181
      %s199 = sphi 0, %s199
      %s201 = sphi 0, %s199
      %s202 = sphi 0, %s201
      %s216 = sphi 0, %s202
      %s222 = sphi 0, %s224
      %s225 = sphi 0, %s222
      %s226 = sphi 0, %s225
      %s242 = sphi 0, %s226
    $region4: #{sam_mae_encoder_forward.7} parent=1 // loop_header_branch
      %21 = sbr.rel (%p19) target = $region8
    $region5: #{sam_mae_encoder_forward.7} parent=1 // loop_body
      %s23 = ssub.s32 %s18, 1
      %s24 = ssub.s32 %s18, 2
      %s25 = sadd.s32 %s18, 1
      %s26 = ssub.s32 %s18, %s25
      %p27 = scmp.eq.s32.totalorder %s26, 0
      %s29 = sadd.s32 %s28, 1
      %s30 = scalar_select %p27, %s28, %s29
      %p33 = pneg %p27
      %p34 = scmp.eq.s32.totalorder %s18, 1
      %p35 = por %p33, %p34
      %p36 = scmp.ne.s32.totalorder %s28, %s31
      %p37 = scmp.eq.s32.totalorder %s18, 0
      %p38 = por %p36, %p37
      %p39 = scmp.ne.s32.totalorder %s28, %s31
      %p40 = scmp.eq.s32.totalorder %s23, 1
      %p41 = por %p39, %p40
      %p42 = scmp.ne.s32.totalorder %s31, %s32
      %p43 = scmp.eq.s32.totalorder %s23, 0
      %p44 = por %p42, %p43
      %p45 = scmp.ne.s32.totalorder %s31, %s32
      %p46 = scmp.eq.s32.totalorder %s24, 1
      %p47 = por %p45, %p46
      %p49 = scmp.ne.s32.totalorder %s32, %s48
      %p50 = scmp.eq.s32.totalorder %s24, 0
      %p51 = por %p49, %p50
      %s53 = sadd.s32 %s52, 1
      %p56 = scmp.eq.s32.totalorder %s18, 1
      %p57 = scmp.ne.s32.totalorder %s52, %s54
      %p58 = scmp.eq.s32.totalorder %s18, 0
      %p59 = por %p57, %p58
      %p60 = scmp.ne.s32.totalorder %s52, %s54
      %p61 = scmp.eq.s32.totalorder %s23, 1
      %p62 = por %p60, %p61
      %p63 = scmp.ne.s32.totalorder %s54, %s55
      %p64 = scmp.eq.s32.totalorder %s23, 0
      %p65 = por %p63, %p64
      %p66 = scmp.ne.s32.totalorder %s54, %s55
      %p67 = scmp.eq.s32.totalorder %s24, 1
      %p68 = por %p66, %p67
      %p70 = scmp.ne.s32.totalorder %s55, %s69
      %p71 = scmp.eq.s32.totalorder %s24, 0
      %p72 = por %p70, %p71
      %s74 = sadd.s32 %s73, 1
      %p77 = scmp.eq.s32.totalorder %s18, 1
      %p78 = scmp.ne.s32.totalorder %s73, %s75
      %p79 = scmp.eq.s32.totalorder %s18, 0
      %p80 = por %p78, %p79
      %p81 = scmp.ne.s32.totalorder %s73, %s75
      %p82 = scmp.eq.s32.totalorder %s23, 1
      %p83 = por %p81, %p82
      %p84 = scmp.ne.s32.totalorder %s75, %s76
      %p85 = scmp.eq.s32.totalorder %s23, 0
      %p86 = por %p84, %p85
      %p87 = scmp.ne.s32.totalorder %s75, %s76
      %p88 = scmp.eq.s32.totalorder %s24, 1
      %p89 = por %p87, %p88
      %p91 = scmp.ne.s32.totalorder %s76, %s90
      %p92 = scmp.eq.s32.totalorder %s24, 0
      %p93 = por %p91, %p92
      %s95 = sadd.s32 %s94, 1
      %p98 = scmp.eq.s32.totalorder %s18, 1
      %p99 = scmp.ne.s32.totalorder %s94, %s96
      %p100 = scmp.eq.s32.totalorder %s18, 0
      %p101 = por %p99, %p100
      %p102 = scmp.ne.s32.totalorder %s94, %s96
      %p103 = scmp.eq.s32.totalorder %s23, 1
      %p104 = por %p102, %p103
      %p105 = scmp.ne.s32.totalorder %s96, %s97
      %p106 = scmp.eq.s32.totalorder %s23, 0
      %p107 = por %p105, %p106
      %p108 = scmp.ne.s32.totalorder %s96, %s97
      %p109 = scmp.eq.s32.totalorder %s24, 1
      %p110 = por %p108, %p109
      %p112 = scmp.ne.s32.totalorder %s97, %s111
      %p113 = scmp.eq.s32.totalorder %s24, 0
      %p114 = por %p112, %p113
      %s116 = sadd.s32 %s115, 1
      %p119 = scmp.eq.s32.totalorder %s18, 1
      %p120 = scmp.ne.s32.totalorder %s115, %s117
      %p121 = scmp.eq.s32.totalorder %s18, 0
      %p122 = por %p120, %p121
      %p123 = scmp.ne.s32.totalorder %s115, %s117
      %p124 = scmp.eq.s32.totalorder %s23, 1
      %p125 = por %p123, %p124
      %p126 = scmp.ne.s32.totalorder %s117, %s118
      %p127 = scmp.eq.s32.totalorder %s23, 0
      %p128 = por %p126, %p127
      %p129 = scmp.ne.s32.totalorder %s117, %s118
      %p130 = scmp.eq.s32.totalorder %s24, 1
      %p131 = por %p129, %p130
      %p133 = scmp.ne.s32.totalorder %s118, %s132
      %p134 = scmp.eq.s32.totalorder %s24, 0
      %p135 = por %p133, %p134
      %s137 = sadd.s32 %s136, 1
      %p140 = scmp.eq.s32.totalorder %s18, 1
      %p141 = scmp.ne.s32.totalorder %s136, %s138
      %p142 = scmp.eq.s32.totalorder %s18, 0
      %p143 = por %p141, %p142
      %p144 = scmp.ne.s32.totalorder %s136, %s138
      %p145 = scmp.eq.s32.totalorder %s23, 1
      %p146 = por %p144, %p145
      %p147 = scmp.ne.s32.totalorder %s138, %s139
      %p148 = scmp.eq.s32.totalorder %s23, 0
      %p149 = por %p147, %p148
      %p150 = scmp.ne.s32.totalorder %s138, %s139
      %p151 = scmp.eq.s32.totalorder %s24, 1
      %p152 = por %p150, %p151
      %p154 = scmp.ne.s32.totalorder %s139, %s153
      %p155 = scmp.eq.s32.totalorder %s24, 0
      %p156 = por %p154, %p155
      %s158 = sadd.s32 %s157, 1
      %p161 = scmp.eq.s32.totalorder %s18, 1
      %p162 = scmp.ne.s32.totalorder %s157, %s159
      %p163 = scmp.eq.s32.totalorder %s18, 0
      %p164 = por %p162, %p163
      %p165 = scmp.ne.s32.totalorder %s157, %s159
      %p166 = scmp.eq.s32.totalorder %s23, 1
      %p167 = por %p165, %p166
      %p168 = scmp.ne.s32.totalorder %s159, %s160
      %p169 = scmp.eq.s32.totalorder %s23, 0
      %p170 = por %p168, %p169
      %p171 = scmp.ne.s32.totalorder %s159, %s160
      %p172 = scmp.eq.s32.totalorder %s24, 1
      %p173 = por %p171, %p172
      %p175 = scmp.ne.s32.totalorder %s160, %s174
      %p176 = scmp.eq.s32.totalorder %s24, 0
      %p177 = por %p175, %p176
      %s179 = sadd.s32 %s178, 1
      %p182 = scmp.eq.s32.totalorder %s18, 1
      %p183 = scmp.ne.s32.totalorder %s178, %s180
      %p184 = scmp.eq.s32.totalorder %s18, 0
      %p185 = por %p183, %p184
      %p186 = scmp.ne.s32.totalorder %s178, %s180
      %p187 = scmp.eq.s32.totalorder %s23, 1
      %p188 = por %p186, %p187
      %p189 = scmp.ne.s32.totalorder %s180, %s181
      %p190 = scmp.eq.s32.totalorder %s23, 0
      %p191 = por %p189, %p190
      %p192 = scmp.ne.s32.totalorder %s180, %s181
      %p193 = scmp.eq.s32.totalorder %s24, 1
      %p194 = por %p192, %p193
      %p196 = scmp.ne.s32.totalorder %s181, %s195
      %p197 = scmp.eq.s32.totalorder %s24, 0
      %p198 = por %p196, %p197
      %s200 = sadd.s32 %s199, 1
      %p203 = scmp.eq.s32.totalorder %s18, 1
      %p204 = scmp.ne.s32.totalorder %s199, %s201
      %p205 = scmp.eq.s32.totalorder %s18, 0
      %p206 = por %p204, %p205
      %p207 = scmp.ne.s32.totalorder %s199, %s201
      %p208 = scmp.eq.s32.totalorder %s23, 1
      %p209 = por %p207, %p208
      %p210 = scmp.ne.s32.totalorder %s201, %s202
      %p211 = scmp.eq.s32.totalorder %s23, 0
      %p212 = por %p210, %p211
      %p213 = scmp.ne.s32.totalorder %s201, %s202
      %p214 = scmp.eq.s32.totalorder %s24, 1
      %p215 = por %p213, %p214
      %p217 = scmp.ne.s32.totalorder %s202, %s216
      %p218 = scmp.eq.s32.totalorder %s24, 0
      %p219 = por %p217, %p218
      %s220 = ssub.s32 %s18, %s25
      %p221 = scmp.eq.s32.totalorder %s220, 0
      %s223 = sadd.s32 %s222, 1
      %s224 = scalar_select %p221, %s222, %s223
      %p227 = pneg %p221
      %p228 = scmp.eq.s32.totalorder %s18, 1
      %p229 = por %p227, %p228
      %p230 = scmp.ne.s32.totalorder %s222, %s225
      %p231 = scmp.eq.s32.totalorder %s18, 0
      %p232 = por %p230, %p231
      %p233 = scmp.ne.s32.totalorder %s222, %s225
      %p234 = scmp.eq.s32.totalorder %s23, 1
      %p235 = por %p233, %p234
      %p236 = scmp.ne.s32.totalorder %s225, %s226
      %p237 = scmp.eq.s32.totalorder %s23, 0
      %p238 = por %p236, %p237
      %p239 = scmp.ne.s32.totalorder %s225, %s226
      %p240 = scmp.eq.s32.totalorder %s24, 1
      %p241 = por %p239, %p240
      %p243 = scmp.ne.s32.totalorder %s226, %s242
      %p244 = scmp.eq.s32.totalorder %s24, 0
      %p245 = por %p243, %p244
      %p246 = scmp.le.s32.totalorder 1, %s18
      %p247 = scmp.lt.s32.totalorder %s18, 3
      %p248 = pnand %p246, %p247
      %p249 = pneg %p248
      // Predicated region
      $region9: #{sam_mae_encoder_forward.7} parent=5 // pred_check
        _
      $region10: #{sam_mae_encoder_forward.7} parent=5 // pred_check_branch
        %251 = sbr.rel (%p248) target = $region12
      $region11: #{sam_mae_encoder_forward.7} parent=5 // pred_region
        %s252 = ssub.s32 %s18, 1
        // Predicated region
        $region13: #{sam_mae_encoder_forward.7} parent=11 // pred_check
          %p253 = pneg %p65
        $region14: #{sam_mae_encoder_forward.7} parent=11 // pred_check_branch
          %255 = sbr.rel (%p253) target = $region16
        $region15: #{sam_mae_encoder_forward.7} parent=11 // pred_region
          _
        $region16: #{sam_mae_encoder_forward.7} parent=11 // pred_fallthru
          _
        // Predicated region
        $region17: #{sam_mae_encoder_forward.7} parent=11 // pred_check
          %p256 = pneg %p86
        $region18: #{sam_mae_encoder_forward.7} parent=11 // pred_check_branch
          %258 = sbr.rel (%p256) target = $region20
        $region19: #{sam_mae_encoder_forward.7} parent=11 // pred_region
          _
        $region20: #{sam_mae_encoder_forward.7} parent=11 // pred_fallthru
          _
        // Predicated region
        $region21: #{sam_mae_encoder_forward.7} parent=11 // pred_check
          %p259 = pneg %p107
        $region22: #{sam_mae_encoder_forward.7} parent=11 // pred_check_branch
          %261 = sbr.rel (%p259) target = $region24
        $region23: #{sam_mae_encoder_forward.7} parent=11 // pred_region
          _
        $region24: #{sam_mae_encoder_forward.7} parent=11 // pred_fallthru
          _
        // Predicated region
        $region25: #{sam_mae_encoder_forward.7} parent=11 // pred_check
          %p262 = pneg %p128
        $region26: #{sam_mae_encoder_forward.7} parent=11 // pred_check_branch
          %264 = sbr.rel (%p262) target = $region28
        $region27: #{sam_mae_encoder_forward.7} parent=11 // pred_region
          _
        $region28: #{sam_mae_encoder_forward.7} parent=11 // pred_fallthru
          _
        // Predicated region
        $region29: #{sam_mae_encoder_forward.7} parent=11 // pred_check
          %p265 = pneg %p149
        $region30: #{sam_mae_encoder_forward.7} parent=11 // pred_check_branch
          %267 = sbr.rel (%p265) target = $region32
        $region31: #{sam_mae_encoder_forward.7} parent=11 // pred_region
          _
        $region32: #{sam_mae_encoder_forward.7} parent=11 // pred_fallthru
          _
        // Predicated region
        $region33: #{sam_mae_encoder_forward.7} parent=11 // pred_check
          %p268 = pneg %p170
        $region34: #{sam_mae_encoder_forward.7} parent=11 // pred_check_branch
          %270 = sbr.rel (%p268) target = $region36
        $region35: #{sam_mae_encoder_forward.7} parent=11 // pred_region
          _
        $region36: #{sam_mae_encoder_forward.7} parent=11 // pred_fallthru
          _
        // Predicated region
        $region37: #{sam_mae_encoder_forward.7} parent=11 // pred_check
          %p271 = pneg %p191
        $region38: #{sam_mae_encoder_forward.7} parent=11 // pred_check_branch
          %273 = sbr.rel (%p271) target = $region40
        $region39: #{sam_mae_encoder_forward.7} parent=11 // pred_region
          _
        $region40: #{sam_mae_encoder_forward.7} parent=11 // pred_fallthru
          _
        // Predicated region
        $region41: #{sam_mae_encoder_forward.7} parent=11 // pred_check
          %p274 = pneg %p212
        $region42: #{sam_mae_encoder_forward.7} parent=11 // pred_check_branch
          %276 = sbr.rel (%p274) target = $region44
        $region43: #{sam_mae_encoder_forward.7} parent=11 // pred_region
          _
        $region44: #{sam_mae_encoder_forward.7} parent=11 // pred_fallthru
          _
      $region12: #{sam_mae_encoder_forward.7} parent=5 // pred_fallthru
        _
      %p277 = scmp.lt.s32.totalorder %s18, 2
      // Predicated region
      $region45: #{sam_mae_encoder_forward.7} parent=5 // pred_check
        %p278 = pneg %p277
      $region46: #{sam_mae_encoder_forward.7} parent=5 // pred_check_branch
        %280 = sbr.rel (%p278) target = $region48
      $region47: #{sam_mae_encoder_forward.7} parent=5 // pred_region
        // Predicated region
        $region49: #{sam_mae_encoder_forward.7} parent=47 // pred_check
          %p281 = pneg %p38
        $region50: #{sam_mae_encoder_forward.7} parent=47 // pred_check_branch
          %283 = sbr.rel (%p281) target = $region52
        $region51: #{sam_mae_encoder_forward.7} parent=47 // pred_region
          %p284 = scmp.lt.s32.totalorder %s18, 1
          %s285 = scalar_select %p284, %s18, 1
          %s286 = smul.addr %s285, 7
          %s287 = smul.addr %s286, 4
          %s288 = scalar_lea.vmem %s0, %s287
        $region52: #{sam_mae_encoder_forward.7} parent=47 // pred_fallthru
          _
      $region48: #{sam_mae_encoder_forward.7} parent=5 // pred_fallthru
        _
      %p289 = scmp.le.s32.totalorder 1, %s18
      %p290 = scmp.lt.s32.totalorder %s18, 3
      %p291 = pnand %p289, %p290
      %p292 = pneg %p291
      // Predicated region
      $region53: #{sam_mae_encoder_forward.7} parent=5 // pred_check
        _
      $region54: #{sam_mae_encoder_forward.7} parent=5 // pred_check_branch
        %294 = sbr.rel (%p291) target = $region56
      $region55: #{sam_mae_encoder_forward.7} parent=5 // pred_region
        %s295 = ssub.s32 %s18, 1
        %p296 = scmp.lt.s32.totalorder %s23, 1
        %s297 = scalar_select %p296, %s23, 1
        %s298 = smul.addr %s297, 7
        %s299 = smul.addr %s298, 4
        %s300 = scalar_lea.vmem %s0, %s299
        %p301 = pneg %p44
        %p302 = pneg %p41
        %p303 = pneg %p65
        %p304 = pneg %p62
        %p305 = pneg %p86
        %p306 = pneg %p83
        %p307 = pneg %p107
        %p308 = pneg %p104
        %p309 = pneg %p128
        %p310 = pneg %p125
        %p311 = pneg %p149
        %p312 = pneg %p146
        %p313 = pneg %p170
        %p314 = pneg %p167
        %p315 = pneg %p191
        %p316 = pneg %p188
        %p317 = pneg %p212
        %p318 = pneg %p209
        %p319 = pneg %p238
        %p320 = pneg %p235
        %s321 = sand.u32 %s225, 1
        %s322 = scalar_lea.sflag [#allocation3], %s321
        %s323 = sand.u32 %s225, 1
        %s324 = scalar_lea.vmem [#allocation2], %s323
        %p325 = scmp.lt.s32.totalorder %s23, 1
        %s326 = scalar_select %p325, %s23, 1
        %s327 = smul.addr %s326, 7
        %s328 = smul.addr %s327, 4
        %s329 = scalar_lea.vmem %s0, %s328
        %v331 = vld [vmem:[%s329] sm:$0xf]
        %v332 = vld [vmem:[%s329 + $0x4] sm:$0xf]
        %v333 = vld [vmem:[%s329 + $0x8] sm:$0xf]
        %v334 = vld [vmem:[%s329 + $0xc] sm:$0xf]
        %v335 = vld [vmem:[%s329 + $0x10] sm:$0xf]
        %v336 = vld [vmem:[%s329 + $0x14] sm:$0xf]
        %v337 = vld [vmem:[%s329 + $0x18] sm:$0x1]
        %v338 = vld [vmem:[%s1] sm:$0xf]
        %v339 = vld [vmem:[%s1 + $0x4] sm:$0xf]
        %v340 = vld [vmem:[%s1 + $0x8] sm:$0xf]
        %v341 = vld [vmem:[%s1 + $0xc] sm:$0xf]
        %v349 = vunpack.c.l.b16 %v331
        %v350 = vunpack.c.l.b16 %v332
        %v351 = vunpack.c.l.b16 %v333
        %v352 = vunpack.c.l.b16 %v334
        %v353 = vunpack.c.l.b16 %v335
        %v354 = vunpack.c.l.b16 %v336
        %v355 = vunpack.c.l.b16 %v337
        %v356 = vpack.c.b16 %v350, %v349
        %v357 = vpack.c.b16 %v352, %v351
        %v358 = vpack.c.b16 %v354, %v353
        %v359 = vpack.c.b16 %v355, %v355
        %v364 = vunpack.c.l.b16 %v338
        %v365 = vunpack.c.l.b16 %v339
        %v366 = vunpack.c.l.b16 %v340
        %v367 = vunpack.c.l.b16 %v341
        %v368 = vpack.c.b16 %v365, %v364
        %v369 = vpack.c.b16 %v367, %v366
        %vm372 = vcmask 261120
        %v374 = vsel %vm372, %v356, 0
        %v377 = vsel %vm372, %v357, 0
        %v380 = vsel %vm372, %v358, 0
        %v383 = vsel %vm372, %v359, 0
        %385 = vmatprep.subr.bf16.mxu0 0
        %386 = vmatpush1.bf16.msra.mxu0 0
        %387 = vmatprep.subr.bf16.mxu0 0
        %388 = vmatpush1.bf16.msra.mxu0 0
        %389 = vmatprep.subr.bf16.mxu0 0
        %390 = vmatpush1.bf16.msra.mxu0 0
        %391 = vmatprep.subr.bf16.mxu0 0
        %392 = vmatpush1.bf16.msra.mxu0 0
        %393 = vmatprep.subr.bf16.mxu0 0
        %394 = vmatpush1.bf16.msra.mxu0 0
        %395 = vmatprep.subr.bf16.mxu0 0
        %396 = vmatpush1.bf16.msra.mxu0 0
        %397 = vmatprep.subr.bf16.mxu0 0
        %398 = vmatpush1.bf16.msra.mxu0 %v369
        %399 = vmatprep.subr.bf16.mxu0 0
        %400 = vmatpush1.bf16.msra.mxu0 %v368
        %401 = vmatprep.subr.bf16.mxu0 0
        %402 = vmatpush2.bf16.msra.mxu0 0
        %403 = vmatprep.subr.bf16.mxu0 0
        %404 = vmatpush2.bf16.msra.mxu0 0
        %405 = vmatprep.subr.bf16.mxu0 0
        %406 = vmatpush2.bf16.msra.mxu0 0
        %407 = vmatprep.subr.bf16.mxu0 0
        %408 = vmatpush2.bf16.msra.mxu0 0
        %409 = vmatprep.subr.bf16.mxu0 0
        %410 = vmatpush2.bf16.msra.mxu0 0
        %411 = vmatprep.subr.bf16.mxu0 0
        %412 = vmatpush2.bf16.msra.mxu0 0
        %413 = vmatprep.subr.bf16.mxu0 0
        %414 = vmatpush2.bf16.msra.mxu0 0
        %415 = vmatprep.subr.bf16.mxu0 0
        %416 = vmatpush2.bf16.msra.mxu0 0
        %417 = vmatprep.mubr.bf16.mxu0 0
        %418 = vmatmul.mubr.bf16.gmra.mxu0 %v374
        %v419 = vpop.f32.mrf.mxu0
        %v420 = vadd.f32 0.0, %v419
        %v421 = vpop.f32.mrf.mxu0
        %v422 = vpop.f32.mrf.mxu0
        %v423 = vadd.f32 0.0, %v422
        %v424 = vpop.f32.mrf.mxu0
        %425 = vmatprep.mubr.bf16.mxu0 0
        %426 = vmatmul.mubr.bf16.gmra.mxu0 %v377
        %v427 = vpop.f32.mrf.mxu0
        %v428 = vadd.f32 0.0, %v427
        %v429 = vpop.f32.mrf.mxu0
        %v430 = vpop.f32.mrf.mxu0
        %v431 = vadd.f32 0.0, %v430
        %v432 = vpop.f32.mrf.mxu0
        %433 = vmatprep.mubr.bf16.mxu0 0
        %434 = vmatmul.mubr.bf16.gmra.mxu0 %v380
        %v435 = vpop.f32.mrf.mxu0
        %v436 = vadd.f32 0.0, %v435
        %v437 = vpop.f32.mrf.mxu0
        %v438 = vpop.f32.mrf.mxu0
        %v439 = vadd.f32 0.0, %v438
        %v440 = vpop.f32.mrf.mxu0
        %441 = vmatprep.mubr.bf16.mxu0 0
        %442 = vmatmul.mubr.bf16.gmra.mxu0 %v383
        %v443 = vpop.f32.mrf.mxu0
        %v444 = vadd.f32 0.0, %v443
        %v445 = vpop.f32.mrf.mxu0
        %v446 = vpop.f32.mrf.mxu0
        %v447 = vpop.f32.mrf.mxu0
        %448 = vdwg.mxu0
        %vm449 = vcmask 130048
        %v450 = vsel %vm449, %v420, 0.0
        %451 = vadd.xlane.f32.xlu0 %v450
        %v452 = vpop.xlane.xlu0 %451
        %v453 = vsel %vm449, %v423, 0.0
        %454 = vadd.xlane.f32.xlu0 %v453
        %v455 = vpop.xlane.xlu0 %454
        %v456 = vsel %vm449, %v428, 0.0
        %457 = vadd.xlane.f32.xlu0 %v456
        %v458 = vpop.xlane.xlu0 %457
        %v459 = vsel %vm449, %v431, 0.0
        %460 = vadd.xlane.f32.xlu0 %v459
        %v461 = vpop.xlane.xlu0 %460
        %v462 = vsel %vm449, %v436, 0.0
        %463 = vadd.xlane.f32.xlu0 %v462
        %v464 = vpop.xlane.xlu0 %463
        %v465 = vsel %vm449, %v439, 0.0
        %466 = vadd.xlane.f32.xlu0 %v465
        %v467 = vpop.xlane.xlu0 %466
        %vm468 = vcmask 123904
        %v469 = vsel %vm468, %v444, 0.0
        %470 = vadd.xlane.f32.xlu0 %v469
        %v471 = vpop.xlane.xlu0 %470
        %v472 = vrcp.pop 16.0
        %v473 = vmul.f32 %v452, %v472
        %v474 = vmul.f32 %v455, %v472
        %v475 = vmul.f32 %v458, %v472
        %v476 = vmul.f32 %v461, %v472
        %v477 = vmul.f32 %v464, %v472
        %v478 = vmul.f32 %v467, %v472
        %v479 = vmul.f32 %v471, %v472
        %v480 = vsub.f32 %v420, %v473
        %v481 = vsub.f32 %v423, %v474
        %v482 = vsub.f32 %v428, %v475
        %v483 = vsub.f32 %v431, %v476
        %v484 = vsub.f32 %v436, %v477
        %v485 = vsub.f32 %v439, %v478
        %v486 = vsub.f32 %v444, %v479
        %v487 = vmul.f32 %v480, %v480
        %v488 = vmul.f32 %v481, %v481
        %v489 = vmul.f32 %v482, %v482
        %v490 = vmul.f32 %v483, %v483
        %v491 = vmul.f32 %v484, %v484
        %v492 = vmul.f32 %v485, %v485
        %v493 = vmul.f32 %v486, %v486
        %v494 = vsel %vm449, %v487, 0.0
        %495 = vadd.xlane.f32.xlu0 %v494
        %v496 = vpop.xlane.xlu0 %495
        %v497 = vsel %vm449, %v488, 0.0
        %498 = vadd.xlane.f32.xlu0 %v497
        %v499 = vpop.xlane.xlu0 %498
        %v500 = vsel %vm449, %v489, 0.0
        %501 = vadd.xlane.f32.xlu0 %v500
        %v502 = vpop.xlane.xlu0 %501
        %v503 = vsel %vm449, %v490, 0.0
        %504 = vadd.xlane.f32.xlu0 %v503
        %v505 = vpop.xlane.xlu0 %504
        %v506 = vsel %vm449, %v491, 0.0
        %507 = vadd.xlane.f32.xlu0 %v506
        %v508 = vpop.xlane.xlu0 %507
        %v509 = vsel %vm449, %v492, 0.0
        %510 = vadd.xlane.f32.xlu0 %v509
        %v511 = vpop.xlane.xlu0 %510
        %v512 = vsel %vm468, %v493, 0.0
        %513 = vadd.xlane.f32.xlu0 %v512
        %v514 = vpop.xlane.xlu0 %513
        %v515 = vmul.f32 %v496, %v472
        %v516 = vmul.f32 %v499, %v472
        %v517 = vmul.f32 %v502, %v472
        %v518 = vmul.f32 %v505, %v472
        %v519 = vmul.f32 %v508, %v472
        %v520 = vmul.f32 %v511, %v472
        %v521 = vmul.f32 %v514, %v472
        %v522 = vadd.f32 %v515, 1e-06
        %v523 = vadd.f32 %v516, 1e-06
        %v524 = vadd.f32 %v517, 1e-06
        %v525 = vadd.f32 %v518, 1e-06
        %v526 = vadd.f32 %v519, 1e-06
        %v527 = vadd.f32 %v520, 1e-06
        %v528 = vadd.f32 %v521, 1e-06
        %v529 = vrsqrt.pop %v522
        %v530 = vrsqrt.pop %v523
        %v531 = vrsqrt.pop %v524
        %v532 = vrsqrt.pop %v525
        %v533 = vrsqrt.pop %v526
        %v534 = vrsqrt.pop %v527
        %v535 = vrsqrt.pop %v528
        %v536 = vmul.f32 %v480, %v529
        %v537 = vmul.f32 %v481, %v530
        %v538 = vmul.f32 %v482, %v531
        %v539 = vmul.f32 %v483, %v532
        %v540 = vmul.f32 %v484, %v533
        %v541 = vmul.f32 %v485, %v534
        %v542 = vmul.f32 %v486, %v535
        %v543 = vld [vmem:[%s2] sm:$0x1]
        %v545 = vlaneseq
        %v546 = vshrl.u32 %v545, 7
        %v547 = vsub.s32 0, %v546
        %v548 = vrot.slane %v543, %v547
        %v550 = vmul.f32 %v536, %v548
        %v551 = vmul.f32 %v537, %v548
        %v552 = vmul.f32 %v538, %v548
        %v553 = vmul.f32 %v539, %v548
        %v554 = vmul.f32 %v540, %v548
        %v555 = vmul.f32 %v541, %v548
        %v556 = vmul.f32 %v542, %v548
        %v557 = vld [vmem:[%s3] sm:$0x1]
        %v559 = vlaneseq
        %v560 = vshrl.u32 %v559, 7
        %v561 = vsub.s32 0, %v560
        %v562 = vrot.slane %v557, %v561
        %v564 = vadd.f32 %v550, %v562
        %v565 = vadd.f32 %v551, %v562
        %v566 = vadd.f32 %v552, %v562
        %v567 = vadd.f32 %v553, %v562
        %v568 = vadd.f32 %v554, %v562
        %v569 = vadd.f32 %v555, %v562
        %v570 = vadd.f32 %v556, %v562
        %v571 = vld [vmem:[%s7] sm:$0xff]
        %v572 = vld [vmem:[%s7 + $0x8] sm:$0xff]
        %v573 = vld [vmem:[%s7 + $0x10] sm:$0xff]
        %v574 = vld [vmem:[%s7 + $0x18] sm:$0xff]
        %v575 = vld [vmem:[%s7 + $0x20] sm:$0xff]
        %v576 = vld [vmem:[%s7 + $0x28] sm:$0xff]
        %v577 = vld [vmem:[%s7 + $0x30] sm:$0x3]
        %579 = vset.pattern.permute.xlu0 0
        %580 = vperm.xlu0 %579, %v571
        %v581 = vpop.permute.xlu0 %580
        %584 = vset.pattern.permute.xlu0 0
        %585 = vperm.xlu0 %584, %v572
        %v586 = vpop.permute.xlu0 %585
        %589 = vset.pattern.permute.xlu0 0
        %590 = vperm.xlu0 %589, %v573
        %v591 = vpop.permute.xlu0 %590
        %594 = vset.pattern.permute.xlu0 0
        %595 = vperm.xlu0 %594, %v574
        %v596 = vpop.permute.xlu0 %595
        %599 = vset.pattern.permute.xlu0 0
        %600 = vperm.xlu0 %599, %v575
        %v601 = vpop.permute.xlu0 %600
        %604 = vset.pattern.permute.xlu0 0
        %605 = vperm.xlu0 %604, %v576
        %v606 = vpop.permute.xlu0 %605
        %609 = vset.pattern.permute.xlu0 0
        %610 = vperm.xlu0 %609, %v577
        %v611 = vpop.permute.xlu0 %610
        %v613 = vmul.f32 %v564, %v581
        %v614 = vmul.f32 %v565, %v586
        %v615 = vmul.f32 %v566, %v591
        %v616 = vmul.f32 %v567, %v596
        %v617 = vmul.f32 %v568, %v601
        %v618 = vmul.f32 %v569, %v606
        %v619 = vmul.f32 %v570, %v611
        %v620 = vpack.c.bf16 %v614, %v613
        %v621 = vpack.c.bf16 %v616, %v615
        %v622 = vpack.c.bf16 %v617, %v617
        %v623 = vld [vmem:[%s4] sm:$0xf]
        %v624 = vld [vmem:[%s4 + $0x4] sm:$0xf]
        %v625 = vld [vmem:[%s4 + $0x8] sm:$0xf]
        %v626 = vld [vmem:[%s4 + $0xc] sm:$0xf]
        %vm627 = vsmask.f32 7424
        %v629 = vshrl.u32 %v620, 16
        %v631 = vshll.u32 %v620, 16
        %v633 = vrot.slane %v631, 1
        %v634 = vor.u32 %v629, %v633
        %v636 = vshll.u32 %v621, 16
        %v638 = vrot.slane %v636, 1
        %v639 = vsel %vm627, %v634, %v638
        %v640 = vshrl.u32 %v621, 16
        %v642 = vor.u32 %v640, %v638
        %v644 = vshll.u32 %v622, 16
        %v646 = vrot.slane %v644, 1
        %v647 = vsel %vm627, %v642, %v646
        %v648 = vshrl.u32 %v622, 16
        %v650 = vor.u32 %v648, %v646
        %v653 = vunpack.c.l.b16 %v625
        %v654 = vunpack.c.l.b16 %v626
        %v655 = vpack.c.b16 %v654, %v653
        %v658 = vsel %vm449, %v639, 0
        %v661 = vsel %vm449, %v647, 0
        %v664 = vsel %vm449, %v650, 0
        %666 = vmatprep.subr.bf16.mxu0 0
        %667 = vmatpush1.bf16.msra.mxu0 0
        %668 = vmatprep.subr.bf16.mxu0 0
        %669 = vmatpush1.bf16.msra.mxu0 0
        %670 = vmatprep.subr.bf16.mxu0 0
        %671 = vmatpush1.bf16.msra.mxu0 0
        %672 = vmatprep.subr.bf16.mxu0 0
        %673 = vmatpush1.bf16.msra.mxu0 0
        %674 = vmatprep.subr.bf16.mxu0 0
        %675 = vmatpush1.bf16.msra.mxu0 0
        %676 = vmatprep.subr.bf16.mxu0 0
        %677 = vmatpush1.bf16.msra.mxu0 0
        %678 = vmatprep.subr.bf16.mxu0 0
        %679 = vmatpush1.bf16.msra.mxu0 0
        %680 = vmatprep.subr.bf16.mxu0 0
        %681 = vmatpush1.bf16.msra.mxu0 %v655
        %682 = vmatprep.subr.bf16.mxu0 0
        %683 = vmatpush2.bf16.msra.mxu0 0
        %684 = vmatprep.subr.bf16.mxu0 0
        %685 = vmatpush2.bf16.msra.mxu0 0
        %686 = vmatprep.subr.bf16.mxu0 0
        %687 = vmatpush2.bf16.msra.mxu0 0
        %688 = vmatprep.subr.bf16.mxu0 0
        %689 = vmatpush2.bf16.msra.mxu0 0
        %690 = vmatprep.subr.bf16.mxu0 0
        %691 = vmatpush2.bf16.msra.mxu0 0
        %692 = vmatprep.subr.bf16.mxu0 0
        %693 = vmatpush2.bf16.msra.mxu0 0
        %694 = vmatprep.subr.bf16.mxu0 0
        %695 = vmatpush2.bf16.msra.mxu0 0
        %696 = vmatprep.subr.bf16.mxu0 0
        %697 = vmatpush2.bf16.msra.mxu0 0
        %698 = vmatprep.mubr.bf16.mxu0 0
        %699 = vmatmul.mubr.bf16.gmra.mxu0 %v658
        %v700 = vpop.f32.mrf.mxu0
        %v701 = vadd.f32 0.0, %v700
        %v702 = vpop.f32.mrf.mxu0
        %v703 = vpop.f32.mrf.mxu0
        %v704 = vadd.f32 0.0, %v703
        %v705 = vpop.f32.mrf.mxu0
        %706 = vmatprep.mubr.bf16.mxu0 0
        %707 = vmatmul.mubr.bf16.gmra.mxu0 %v661
        %v708 = vpop.f32.mrf.mxu0
        %v709 = vadd.f32 0.0, %v708
        %v710 = vpop.f32.mrf.mxu0
        %v711 = vpop.f32.mrf.mxu0
        %v712 = vadd.f32 0.0, %v711
        %v713 = vpop.f32.mrf.mxu0
        %714 = vmatprep.mubr.bf16.mxu0 0
        %715 = vmatmul.mubr.bf16.gmra.mxu0 %v664
        %v716 = vpop.f32.mrf.mxu0
        %v717 = vadd.f32 0.0, %v716
        %v718 = vpop.f32.mrf.mxu0
        %v719 = vpop.f32.mrf.mxu0
        %v720 = vpop.f32.mrf.mxu0
        %721 = vdwg.mxu0
        %v724 = vunpack.c.l.b16 %v623
        %v725 = vunpack.c.l.b16 %v624
        %v726 = vpack.c.b16 %v725, %v724
        %v728 = vsel %vm449, %v620, 0
        %v730 = vsel %vm449, %v621, 0
        %v732 = vsel %vm449, %v622, 0
        %734 = vmatprep.subr.bf16.mxu0 0
        %735 = vmatpush1.bf16.msra.mxu0 0
        %736 = vmatprep.subr.bf16.mxu0 0
        %737 = vmatpush1.bf16.msra.mxu0 0
        %738 = vmatprep.subr.bf16.mxu0 0
        %739 = vmatpush1.bf16.msra.mxu0 0
        %740 = vmatprep.subr.bf16.mxu0 0
        %741 = vmatpush1.bf16.msra.mxu0 0
        %742 = vmatprep.subr.bf16.mxu0 0
        %743 = vmatpush1.bf16.msra.mxu0 0
        %744 = vmatprep.subr.bf16.mxu0 0
        %745 = vmatpush1.bf16.msra.mxu0 0
        %746 = vmatprep.subr.bf16.mxu0 0
        %747 = vmatpush1.bf16.msra.mxu0 0
        %748 = vmatprep.subr.bf16.mxu0 0
        %749 = vmatpush1.bf16.msra.mxu0 %v726
        %750 = vmatprep.subr.bf16.mxu0 0
        %751 = vmatpush2.bf16.msra.mxu0 0
        %752 = vmatprep.subr.bf16.mxu0 0
        %753 = vmatpush2.bf16.msra.mxu0 0
        %754 = vmatprep.subr.bf16.mxu0 0
        %755 = vmatpush2.bf16.msra.mxu0 0
        %756 = vmatprep.subr.bf16.mxu0 0
        %757 = vmatpush2.bf16.msra.mxu0 0
        %758 = vmatprep.subr.bf16.mxu0 0
        %759 = vmatpush2.bf16.msra.mxu0 0
        %760 = vmatprep.subr.bf16.mxu0 0
        %761 = vmatpush2.bf16.msra.mxu0 0
        %762 = vmatprep.subr.bf16.mxu0 0
        %763 = vmatpush2.bf16.msra.mxu0 0
        %764 = vmatprep.subr.bf16.mxu0 0
        %765 = vmatpush2.bf16.msra.mxu0 0
        %766 = vmatprep.mubr.bf16.mxu0 0
        %767 = vmatmul.mubr.bf16.gmra.mxu0 %v728
        %v768 = vpop.f32.mrf.mxu0
        %v769 = vadd.f32 %v701, %v768
        %v770 = vpop.f32.mrf.mxu0
        %v771 = vpop.f32.mrf.mxu0
        %v772 = vadd.f32 %v704, %v771
        %v773 = vpop.f32.mrf.mxu0
        %774 = vmatprep.mubr.bf16.mxu0 0
        %775 = vmatmul.mubr.bf16.gmra.mxu0 %v730
        %v776 = vpop.f32.mrf.mxu0
        %v777 = vadd.f32 %v709, %v776
        %v778 = vpop.f32.mrf.mxu0
        %v779 = vpop.f32.mrf.mxu0
        %v780 = vadd.f32 %v712, %v779
        %v781 = vpop.f32.mrf.mxu0
        %782 = vmatprep.mubr.bf16.mxu0 0
        %783 = vmatmul.mubr.bf16.gmra.mxu0 %v732
        %v784 = vpop.f32.mrf.mxu0
        %v785 = vadd.f32 %v717, %v784
        %v786 = vpop.f32.mrf.mxu0
        %v787 = vpop.f32.mrf.mxu0
        %v788 = vpop.f32.mrf.mxu0
        %789 = vdwg.mxu0
        %v790 = vld [vmem:[%s4 + $0x10] sm:$0xf]
        %v791 = vld [vmem:[%s4 + $0x14] sm:$0xf]
        %vm795 = vcmask 1046528
        %v796 = vrot.slane %v620, 1
        %v797 = vrot.slane %v621, 1
        %v798 = vsel %vm795, %v796, %v797
        %v799 = vrot.slane %v622, 1
        %v800 = vsel %vm795, %v797, %v799
        %v803 = vunpack.c.l.b16 %v790
        %v804 = vunpack.c.l.b16 %v791
        %v805 = vpack.c.b16 %v804, %v803
        %v808 = vsel %vm449, %v798, 0
        %v811 = vsel %vm449, %v800, 0
        %v814 = vsel %vm449, %v799, 0
        %816 = vmatprep.subr.bf16.mxu0 0
        %817 = vmatpush1.bf16.msra.mxu0 0
        %818 = vmatprep.subr.bf16.mxu0 0
        %819 = vmatpush1.bf16.msra.mxu0 0
        %820 = vmatprep.subr.bf16.mxu0 0
        %821 = vmatpush1.bf16.msra.mxu0 0
        %822 = vmatprep.subr.bf16.mxu0 0
        %823 = vmatpush1.bf16.msra.mxu0 0
        %824 = vmatprep.subr.bf16.mxu0 0
        %825 = vmatpush1.bf16.msra.mxu0 0
        %826 = vmatprep.subr.bf16.mxu0 0
        %827 = vmatpush1.bf16.msra.mxu0 0
        %828 = vmatprep.subr.bf16.mxu0 0
        %829 = vmatpush1.bf16.msra.mxu0 0
        %830 = vmatprep.subr.bf16.mxu0 0
        %831 = vmatpush1.bf16.msra.mxu0 %v805
        %832 = vmatprep.subr.bf16.mxu0 0
        %833 = vmatpush2.bf16.msra.mxu0 0
        %834 = vmatprep.subr.bf16.mxu0 0
        %835 = vmatpush2.bf16.msra.mxu0 0
        %836 = vmatprep.subr.bf16.mxu0 0
        %837 = vmatpush2.bf16.msra.mxu0 0
        %838 = vmatprep.subr.bf16.mxu0 0
        %839 = vmatpush2.bf16.msra.mxu0 0
        %840 = vmatprep.subr.bf16.mxu0 0
        %841 = vmatpush2.bf16.msra.mxu0 0
        %842 = vmatprep.subr.bf16.mxu0 0
        %843 = vmatpush2.bf16.msra.mxu0 0
        %844 = vmatprep.subr.bf16.mxu0 0
        %845 = vmatpush2.bf16.msra.mxu0 0
        %846 = vmatprep.subr.bf16.mxu0 0
        %847 = vmatpush2.bf16.msra.mxu0 0
        %848 = vmatprep.mubr.bf16.mxu0 0
        %849 = vmatmul.mubr.bf16.gmra.mxu0 %v808
        %v850 = vpop.f32.mrf.mxu0
        %v851 = vadd.f32 0.0, %v850
        %v852 = vpop.f32.mrf.mxu0
        %v853 = vpop.f32.mrf.mxu0
        %v854 = vadd.f32 0.0, %v853
        %v855 = vpop.f32.mrf.mxu0
        %856 = vmatprep.mubr.bf16.mxu0 0
        %857 = vmatmul.mubr.bf16.gmra.mxu0 %v811
        %v858 = vpop.f32.mrf.mxu0
        %v859 = vadd.f32 0.0, %v858
        %v860 = vpop.f32.mrf.mxu0
        %v861 = vpop.f32.mrf.mxu0
        %v862 = vadd.f32 0.0, %v861
        %v863 = vpop.f32.mrf.mxu0
        %864 = vmatprep.mubr.bf16.mxu0 0
        %865 = vmatmul.mubr.bf16.gmra.mxu0 %v814
        %v866 = vpop.f32.mrf.mxu0
        %v867 = vadd.f32 0.0, %v866
        %v868 = vpop.f32.mrf.mxu0
        %v869 = vpop.f32.mrf.mxu0
        %v870 = vpop.f32.mrf.mxu0
        %871 = vdwg.mxu0
        %v872 = vadd.f32 %v769, %v851
        %v873 = vadd.f32 %v772, %v854
        %v874 = vadd.f32 %v777, %v859
        %v875 = vadd.f32 %v780, %v862
        %v876 = vadd.f32 %v785, %v867
        %v877 = vpack.c.bf16 %v618, %v617
        %v878 = vld [vmem:[%s4 + $0x18] sm:$0xf]
        %v879 = vld [vmem:[%s4 + $0x1c] sm:$0xf]
        %vm881 = vcmask 1044480
        %v882 = vrot.slane %v620, 3
        %v883 = vrot.slane %v621, 3
        %v884 = vsel %vm881, %v882, %v883
        %v885 = vrot.slane %v877, 3
        %v886 = vsel %vm881, %v883, %v885
        %v889 = vunpack.c.l.b16 %v878
        %v890 = vunpack.c.l.b16 %v879
        %v891 = vpack.c.b16 %v890, %v889
        %v894 = vsel %vm449, %v884, 0
        %v897 = vsel %vm449, %v886, 0
        %v900 = vsel %vm449, %v885, 0
        %902 = vmatprep.subr.bf16.mxu0 0
        %903 = vmatpush1.bf16.msra.mxu0 0
        %904 = vmatprep.subr.bf16.mxu0 0
        %905 = vmatpush1.bf16.msra.mxu0 0
        %906 = vmatprep.subr.bf16.mxu0 0
        %907 = vmatpush1.bf16.msra.mxu0 0
        %908 = vmatprep.subr.bf16.mxu0 0
        %909 = vmatpush1.bf16.msra.mxu0 0
        %910 = vmatprep.subr.bf16.mxu0 0
        %911 = vmatpush1.bf16.msra.mxu0 0
        %912 = vmatprep.subr.bf16.mxu0 0
        %913 = vmatpush1.bf16.msra.mxu0 0
        %914 = vmatprep.subr.bf16.mxu0 0
        %915 = vmatpush1.bf16.msra.mxu0 0
        %916 = vmatprep.subr.bf16.mxu0 0
        %917 = vmatpush1.bf16.msra.mxu0 %v891
        %918 = vmatprep.subr.bf16.mxu0 0
        %919 = vmatpush2.bf16.msra.mxu0 0
        %920 = vmatprep.subr.bf16.mxu0 0
        %921 = vmatpush2.bf16.msra.mxu0 0
        %922 = vmatprep.subr.bf16.mxu0 0
        %923 = vmatpush2.bf16.msra.mxu0 0
        %924 = vmatprep.subr.bf16.mxu0 0
        %925 = vmatpush2.bf16.msra.mxu0 0
        %926 = vmatprep.subr.bf16.mxu0 0
        %927 = vmatpush2.bf16.msra.mxu0 0
        %928 = vmatprep.subr.bf16.mxu0 0
        %929 = vmatpush2.bf16.msra.mxu0 0
        %930 = vmatprep.subr.bf16.mxu0 0
        %931 = vmatpush2.bf16.msra.mxu0 0
        %932 = vmatprep.subr.bf16.mxu0 0
        %933 = vmatpush2.bf16.msra.mxu0 0
        %934 = vmatprep.mubr.bf16.mxu0 0
        %935 = vmatmul.mubr.bf16.gmra.mxu0 %v894
        %v936 = vpop.f32.mrf.mxu0
        %v937 = vadd.f32 0.0, %v936
        %v938 = vpop.f32.mrf.mxu0
        %v939 = vpop.f32.mrf.mxu0
        %v940 = vadd.f32 0.0, %v939
        %v941 = vpop.f32.mrf.mxu0
        %942 = vmatprep.mubr.bf16.mxu0 0
        %943 = vmatmul.mubr.bf16.gmra.mxu0 %v897
        %v944 = vpop.f32.mrf.mxu0
        %v945 = vadd.f32 0.0, %v944
        %v946 = vpop.f32.mrf.mxu0
        %v947 = vpop.f32.mrf.mxu0
        %v948 = vadd.f32 0.0, %v947
        %v949 = vpop.f32.mrf.mxu0
        %950 = vmatprep.mubr.bf16.mxu0 0
        %951 = vmatmul.mubr.bf16.gmra.mxu0 %v900
        %v952 = vpop.f32.mrf.mxu0
        %v953 = vadd.f32 0.0, %v952
        %v954 = vpop.f32.mrf.mxu0
        %v955 = vpop.f32.mrf.mxu0
        %v956 = vpop.f32.mrf.mxu0
        %957 = vdwg.mxu0
        %v958 = vadd.f32 %v872, %v937
        %v959 = vadd.f32 %v873, %v940
        %v960 = vadd.f32 %v874, %v945
        %v961 = vadd.f32 %v875, %v948
        %v962 = vadd.f32 %v876, %v953
        %v963 = vld [vmem:[%s4 + $0x20] sm:$0xf]
        %v964 = vld [vmem:[%s4 + $0x24] sm:$0xf]
        %vm965 = vsmask.f32 4352
        %v966 = vrot.slane %v629, 3
        %v967 = vrot.slane %v631, 4
        %v968 = vor.u32 %v966, %v967
        %v969 = vrot.slane %v640, 3
        %v970 = vrot.slane %v636, 4
        %v971 = vor.u32 %v969, %v970
        %v972 = vsel %vm965, %v968, %v971
        %v974 = vshrl.u32 %v877, 16
        %v976 = vrot.slane %v974, 3
        %v977 = vshll.u32 %v877, 16
        %v979 = vrot.slane %v977, 4
        %v980 = vor.u32 %v976, %v979
        %v981 = vsel %vm965, %v971, %v980
        %v984 = vunpack.c.l.b16 %v963
        %v985 = vunpack.c.l.b16 %v964
        %v986 = vpack.c.b16 %v985, %v984
        %v989 = vsel %vm449, %v972, 0
        %v992 = vsel %vm449, %v981, 0
        %v995 = vsel %vm449, %v980, 0
        %997 = vmatprep.subr.bf16.mxu0 0
        %998 = vmatpush1.bf16.msra.mxu0 0
        %999 = vmatprep.subr.bf16.mxu0 0
        %1000 = vmatpush1.bf16.msra.mxu0 0
        %1001 = vmatprep.subr.bf16.mxu0 0
        %1002 = vmatpush1.bf16.msra.mxu0 0
        %1003 = vmatprep.subr.bf16.mxu0 0
        %1004 = vmatpush1.bf16.msra.mxu0 0
        %1005 = vmatprep.subr.bf16.mxu0 0
        %1006 = vmatpush1.bf16.msra.mxu0 0
        %1007 = vmatprep.subr.bf16.mxu0 0
        %1008 = vmatpush1.bf16.msra.mxu0 0
        %1009 = vmatprep.subr.bf16.mxu0 0
        %1010 = vmatpush1.bf16.msra.mxu0 0
        %1011 = vmatprep.subr.bf16.mxu0 0
        %1012 = vmatpush1.bf16.msra.mxu0 %v986
        %1013 = vmatprep.subr.bf16.mxu0 0
        %1014 = vmatpush2.bf16.msra.mxu0 0
        %1015 = vmatprep.subr.bf16.mxu0 0
        %1016 = vmatpush2.bf16.msra.mxu0 0
        %1017 = vmatprep.subr.bf16.mxu0 0
        %1018 = vmatpush2.bf16.msra.mxu0 0
        %1019 = vmatprep.subr.bf16.mxu0 0
        %1020 = vmatpush2.bf16.msra.mxu0 0
        %1021 = vmatprep.subr.bf16.mxu0 0
        %1022 = vmatpush2.bf16.msra.mxu0 0
        %1023 = vmatprep.subr.bf16.mxu0 0
        %1024 = vmatpush2.bf16.msra.mxu0 0
        %1025 = vmatprep.subr.bf16.mxu0 0
        %1026 = vmatpush2.bf16.msra.mxu0 0
        %1027 = vmatprep.subr.bf16.mxu0 0
        %1028 = vmatpush2.bf16.msra.mxu0 0
        %1029 = vmatprep.mubr.bf16.mxu0 0
        %1030 = vmatmul.mubr.bf16.gmra.mxu0 %v989
        %v1031 = vpop.f32.mrf.mxu0
        %v1032 = vadd.f32 0.0, %v1031
        %v1033 = vpop.f32.mrf.mxu0
        %v1034 = vpop.f32.mrf.mxu0
        %v1035 = vadd.f32 0.0, %v1034
        %v1036 = vpop.f32.mrf.mxu0
        %1037 = vmatprep.mubr.bf16.mxu0 0
        %1038 = vmatmul.mubr.bf16.gmra.mxu0 %v992
        %v1039 = vpop.f32.mrf.mxu0
        %v1040 = vadd.f32 0.0, %v1039
        %v1041 = vpop.f32.mrf.mxu0
        %v1042 = vpop.f32.mrf.mxu0
        %v1043 = vadd.f32 0.0, %v1042
        %v1044 = vpop.f32.mrf.mxu0
        %1045 = vmatprep.mubr.bf16.mxu0 0
        %1046 = vmatmul.mubr.bf16.gmra.mxu0 %v995
        %v1047 = vpop.f32.mrf.mxu0
        %v1048 = vadd.f32 0.0, %v1047
        %v1049 = vpop.f32.mrf.mxu0
        %v1050 = vpop.f32.mrf.mxu0
        %v1051 = vpop.f32.mrf.mxu0
        %1052 = vdwg.mxu0
        %v1053 = vadd.f32 %v958, %v1032
        %v1054 = vadd.f32 %v959, %v1035
        %v1055 = vadd.f32 %v960, %v1040
        %v1056 = vadd.f32 %v961, %v1043
        %v1057 = vadd.f32 %v962, %v1048
        %v1058 = vpack.c.bf16 %v615, %v614
        %v1059 = vpack.c.bf16 %v617, %v616
        %v1060 = vpack.c.bf16 %v618, %v618
        %v1061 = vld [vmem:[%s4 + $0x28] sm:$0xf]
        %v1062 = vld [vmem:[%s4 + $0x2c] sm:$0xf]
        %v1065 = vunpack.c.l.b16 %v1061
        %v1066 = vunpack.c.l.b16 %v1062
        %v1067 = vpack.c.b16 %v1066, %v1065
        %v1070 = vsel %vm449, %v1058, 0
        %v1073 = vsel %vm449, %v1059, 0
        %v1076 = vsel %vm449, %v1060, 0
        %1078 = vmatprep.subr.bf16.mxu0 0
        %1079 = vmatpush1.bf16.msra.mxu0 0
        %1080 = vmatprep.subr.bf16.mxu0 0
        %1081 = vmatpush1.bf16.msra.mxu0 0
        %1082 = vmatprep.subr.bf16.mxu0 0
        %1083 = vmatpush1.bf16.msra.mxu0 0
        %1084 = vmatprep.subr.bf16.mxu0 0
        %1085 = vmatpush1.bf16.msra.mxu0 0
        %1086 = vmatprep.subr.bf16.mxu0 0
        %1087 = vmatpush1.bf16.msra.mxu0 0
        %1088 = vmatprep.subr.bf16.mxu0 0
        %1089 = vmatpush1.bf16.msra.mxu0 0
        %1090 = vmatprep.subr.bf16.mxu0 0
        %1091 = vmatpush1.bf16.msra.mxu0 0
        %1092 = vmatprep.subr.bf16.mxu0 0
        %1093 = vmatpush1.bf16.msra.mxu0 %v1067
        %1094 = vmatprep.subr.bf16.mxu0 0
        %1095 = vmatpush2.bf16.msra.mxu0 0
        %1096 = vmatprep.subr.bf16.mxu0 0
        %1097 = vmatpush2.bf16.msra.mxu0 0
        %1098 = vmatprep.subr.bf16.mxu0 0
        %1099 = vmatpush2.bf16.msra.mxu0 0
        %1100 = vmatprep.subr.bf16.mxu0 0
        %1101 = vmatpush2.bf16.msra.mxu0 0
        %1102 = vmatprep.subr.bf16.mxu0 0
        %1103 = vmatpush2.bf16.msra.mxu0 0
        %1104 = vmatprep.subr.bf16.mxu0 0
        %1105 = vmatpush2.bf16.msra.mxu0 0
        %1106 = vmatprep.subr.bf16.mxu0 0
        %1107 = vmatpush2.bf16.msra.mxu0 0
        %1108 = vmatprep.subr.bf16.mxu0 0
        %1109 = vmatpush2.bf16.msra.mxu0 0
        %1110 = vmatprep.mubr.bf16.mxu0 0
        %1111 = vmatmul.mubr.bf16.gmra.mxu0 %v1070
        %v1112 = vpop.f32.mrf.mxu0
        %v1113 = vadd.f32 0.0, %v1112
        %v1114 = vpop.f32.mrf.mxu0
        %v1115 = vpop.f32.mrf.mxu0
        %v1116 = vadd.f32 0.0, %v1115
        %v1117 = vpop.f32.mrf.mxu0
        %1118 = vmatprep.mubr.bf16.mxu0 0
        %1119 = vmatmul.mubr.bf16.gmra.mxu0 %v1073
        %v1120 = vpop.f32.mrf.mxu0
        %v1121 = vadd.f32 0.0, %v1120
        %v1122 = vpop.f32.mrf.mxu0
        %v1123 = vpop.f32.mrf.mxu0
        %v1124 = vadd.f32 0.0, %v1123
        %v1125 = vpop.f32.mrf.mxu0
        %1126 = vmatprep.mubr.bf16.mxu0 0
        %1127 = vmatmul.mubr.bf16.gmra.mxu0 %v1076
        %v1128 = vpop.f32.mrf.mxu0
        %v1129 = vadd.f32 0.0, %v1128
        %v1130 = vpop.f32.mrf.mxu0
        %v1131 = vpop.f32.mrf.mxu0
        %v1132 = vpop.f32.mrf.mxu0
        %1133 = vdwg.mxu0
        %v1134 = vadd.f32 %v1053, %v1113
        %v1135 = vadd.f32 %v1054, %v1116
        %v1136 = vadd.f32 %v1055, %v1121
        %v1137 = vadd.f32 %v1056, %v1124
        %v1138 = vadd.f32 %v1057, %v1129
        %v1139 = vld [vmem:[%s4 + $0x30] sm:$0xf]
        %v1140 = vld [vmem:[%s4 + $0x34] sm:$0xf]
        %vm1144 = vcmask 1045504
        %v1145 = vrot.slane %v1058, 2
        %v1146 = vrot.slane %v1059, 2
        %v1147 = vsel %vm1144, %v1145, %v1146
        %v1148 = vrot.slane %v1060, 2
        %v1149 = vsel %vm1144, %v1146, %v1148
        %v1152 = vunpack.c.l.b16 %v1139
        %v1153 = vunpack.c.l.b16 %v1140
        %v1154 = vpack.c.b16 %v1153, %v1152
        %v1157 = vsel %vm449, %v1147, 0
        %v1160 = vsel %vm449, %v1149, 0
        %v1163 = vsel %vm449, %v1148, 0
        %1165 = vmatprep.subr.bf16.mxu0 0
        %1166 = vmatpush1.bf16.msra.mxu0 0
        %1167 = vmatprep.subr.bf16.mxu0 0
        %1168 = vmatpush1.bf16.msra.mxu0 0
        %1169 = vmatprep.subr.bf16.mxu0 0
        %1170 = vmatpush1.bf16.msra.mxu0 0
        %1171 = vmatprep.subr.bf16.mxu0 0
        %1172 = vmatpush1.bf16.msra.mxu0 0
        %1173 = vmatprep.subr.bf16.mxu0 0
        %1174 = vmatpush1.bf16.msra.mxu0 0
        %1175 = vmatprep.subr.bf16.mxu0 0
        %1176 = vmatpush1.bf16.msra.mxu0 0
        %1177 = vmatprep.subr.bf16.mxu0 0
        %1178 = vmatpush1.bf16.msra.mxu0 0
        %1179 = vmatprep.subr.bf16.mxu0 0
        %1180 = vmatpush1.bf16.msra.mxu0 %v1154
        %1181 = vmatprep.subr.bf16.mxu0 0
        %1182 = vmatpush2.bf16.msra.mxu0 0
        %1183 = vmatprep.subr.bf16.mxu0 0
        %1184 = vmatpush2.bf16.msra.mxu0 0
        %1185 = vmatprep.subr.bf16.mxu0 0
        %1186 = vmatpush2.bf16.msra.mxu0 0
        %1187 = vmatprep.subr.bf16.mxu0 0
        %1188 = vmatpush2.bf16.msra.mxu0 0
        %1189 = vmatprep.subr.bf16.mxu0 0
        %1190 = vmatpush2.bf16.msra.mxu0 0
        %1191 = vmatprep.subr.bf16.mxu0 0
        %1192 = vmatpush2.bf16.msra.mxu0 0
        %1193 = vmatprep.subr.bf16.mxu0 0
        %1194 = vmatpush2.bf16.msra.mxu0 0
        %1195 = vmatprep.subr.bf16.mxu0 0
        %1196 = vmatpush2.bf16.msra.mxu0 0
        %1197 = vmatprep.mubr.bf16.mxu0 0
        %1198 = vmatmul.mubr.bf16.gmra.mxu0 %v1157
        %v1199 = vpop.f32.mrf.mxu0
        %v1200 = vadd.f32 0.0, %v1199
        %v1201 = vpop.f32.mrf.mxu0
        %v1202 = vpop.f32.mrf.mxu0
        %v1203 = vadd.f32 0.0, %v1202
        %v1204 = vpop.f32.mrf.mxu0
        %1205 = vmatprep.mubr.bf16.mxu0 0
        %1206 = vmatmul.mubr.bf16.gmra.mxu0 %v1160
        %v1207 = vpop.f32.mrf.mxu0
        %v1208 = vadd.f32 0.0, %v1207
        %v1209 = vpop.f32.mrf.mxu0
        %v1210 = vpop.f32.mrf.mxu0
        %v1211 = vadd.f32 0.0, %v1210
        %v1212 = vpop.f32.mrf.mxu0
        %1213 = vmatprep.mubr.bf16.mxu0 0
        %1214 = vmatmul.mubr.bf16.gmra.mxu0 %v1163
        %v1215 = vpop.f32.mrf.mxu0
        %v1216 = vadd.f32 0.0, %v1215
        %v1217 = vpop.f32.mrf.mxu0
        %v1218 = vpop.f32.mrf.mxu0
        %v1219 = vpop.f32.mrf.mxu0
        %1220 = vdwg.mxu0
        %v1221 = vadd.f32 %v1134, %v1200
        %v1222 = vadd.f32 %v1135, %v1203
        %v1223 = vadd.f32 %v1136, %v1208
        %v1224 = vadd.f32 %v1137, %v1211
        %v1225 = vadd.f32 %v1138, %v1216
        %v1226 = vpack.c.bf16 %v619, %v618
        %v1227 = vld [vmem:[%s4 + $0x38] sm:$0xf]
        %v1228 = vld [vmem:[%s4 + $0x3c] sm:$0xf]
        %vm1229 = vsmask.f32 5376
        %v1230 = vshrl.u32 %v1058, 16
        %v1232 = vrot.slane %v1230, 2
        %v1233 = vshll.u32 %v1058, 16
        %v1235 = vrot.slane %v1233, 3
        %v1236 = vor.u32 %v1232, %v1235
        %v1237 = vshrl.u32 %v1059, 16
        %v1239 = vrot.slane %v1237, 2
        %v1240 = vshll.u32 %v1059, 16
        %v1242 = vrot.slane %v1240, 3
        %v1243 = vor.u32 %v1239, %v1242
        %v1244 = vsel %vm1229, %v1236, %v1243
        %v1246 = vshrl.u32 %v1226, 16
        %v1248 = vrot.slane %v1246, 2
        %v1249 = vshll.u32 %v1226, 16
        %v1251 = vrot.slane %v1249, 3
        %v1252 = vor.u32 %v1248, %v1251
        %v1253 = vsel %vm1229, %v1243, %v1252
        %v1256 = vunpack.c.l.b16 %v1227
        %v1257 = vunpack.c.l.b16 %v1228
        %v1258 = vpack.c.b16 %v1257, %v1256
        %v1261 = vsel %vm449, %v1244, 0
        %v1264 = vsel %vm449, %v1253, 0
        %v1267 = vsel %vm449, %v1252, 0
        %1269 = vmatprep.subr.bf16.mxu0 0
        %1270 = vmatpush1.bf16.msra.mxu0 0
        %1271 = vmatprep.subr.bf16.mxu0 0
        %1272 = vmatpush1.bf16.msra.mxu0 0
        %1273 = vmatprep.subr.bf16.mxu0 0
        %1274 = vmatpush1.bf16.msra.mxu0 0
        %1275 = vmatprep.subr.bf16.mxu0 0
        %1276 = vmatpush1.bf16.msra.mxu0 0
        %1277 = vmatprep.subr.bf16.mxu0 0
        %1278 = vmatpush1.bf16.msra.mxu0 0
        %1279 = vmatprep.subr.bf16.mxu0 0
        %1280 = vmatpush1.bf16.msra.mxu0 0
        %1281 = vmatprep.subr.bf16.mxu0 0
        %1282 = vmatpush1.bf16.msra.mxu0 0
        %1283 = vmatprep.subr.bf16.mxu0 0
        %1284 = vmatpush1.bf16.msra.mxu0 %v1258
        %1285 = vmatprep.subr.bf16.mxu0 0
        %1286 = vmatpush2.bf16.msra.mxu0 0
        %1287 = vmatprep.subr.bf16.mxu0 0
        %1288 = vmatpush2.bf16.msra.mxu0 0
        %1289 = vmatprep.subr.bf16.mxu0 0
        %1290 = vmatpush2.bf16.msra.mxu0 0
        %1291 = vmatprep.subr.bf16.mxu0 0
        %1292 = vmatpush2.bf16.msra.mxu0 0
        %1293 = vmatprep.subr.bf16.mxu0 0
        %1294 = vmatpush2.bf16.msra.mxu0 0
        %1295 = vmatprep.subr.bf16.mxu0 0
        %1296 = vmatpush2.bf16.msra.mxu0 0
        %1297 = vmatprep.subr.bf16.mxu0 0
        %1298 = vmatpush2.bf16.msra.mxu0 0
        %1299 = vmatprep.subr.bf16.mxu0 0
        %1300 = vmatpush2.bf16.msra.mxu0 0
        %1301 = vmatprep.mubr.bf16.mxu0 0
        %1302 = vmatmul.mubr.bf16.gmra.mxu0 %v1261
        %v1303 = vpop.f32.mrf.mxu0
        %v1304 = vadd.f32 0.0, %v1303
        %v1305 = vpop.f32.mrf.mxu0
        %v1306 = vpop.f32.mrf.mxu0
        %v1307 = vadd.f32 0.0, %v1306
        %v1308 = vpop.f32.mrf.mxu0
        %1309 = vmatprep.mubr.bf16.mxu0 0
        %1310 = vmatmul.mubr.bf16.gmra.mxu0 %v1264
        %v1311 = vpop.f32.mrf.mxu0
        %v1312 = vadd.f32 0.0, %v1311
        %v1313 = vpop.f32.mrf.mxu0
        %v1314 = vpop.f32.mrf.mxu0
        %v1315 = vadd.f32 0.0, %v1314
        %v1316 = vpop.f32.mrf.mxu0
        %1317 = vmatprep.mubr.bf16.mxu0 0
        %1318 = vmatmul.mubr.bf16.gmra.mxu0 %v1267
        %v1319 = vpop.f32.mrf.mxu0
        %v1320 = vadd.f32 0.0, %v1319
        %v1321 = vpop.f32.mrf.mxu0
        %v1322 = vpop.f32.mrf.mxu0
        %v1323 = vpop.f32.mrf.mxu0
        %1324 = vdwg.mxu0
        %v1325 = vadd.f32 %v1221, %v1304
        %v1326 = vadd.f32 %v1222, %v1307
        %v1327 = vadd.f32 %v1223, %v1312
        %v1328 = vadd.f32 %v1224, %v1315
        %v1329 = vadd.f32 %v1225, %v1320
        %v1330 = vld [vmem:[%s4 + $0x40] sm:$0xf]
        %v1331 = vld [vmem:[%s4 + $0x44] sm:$0xf]
        %v1333 = vrot.slane %v1058, 3
        %v1334 = vrot.slane %v1059, 3
        %v1335 = vsel %vm881, %v1333, %v1334
        %v1336 = vrot.slane %v1226, 3
        %v1337 = vsel %vm881, %v1334, %v1336
        %v1340 = vunpack.c.l.b16 %v1330
        %v1341 = vunpack.c.l.b16 %v1331
        %v1342 = vpack.c.b16 %v1341, %v1340
        %v1345 = vsel %vm449, %v1335, 0
        %v1348 = vsel %vm449, %v1337, 0
        %v1351 = vsel %vm449, %v1336, 0
        %1353 = vmatprep.subr.bf16.mxu0 0
        %1354 = vmatpush1.bf16.msra.mxu0 0
        %1355 = vmatprep.subr.bf16.mxu0 0
        %1356 = vmatpush1.bf16.msra.mxu0 0
        %1357 = vmatprep.subr.bf16.mxu0 0
        %1358 = vmatpush1.bf16.msra.mxu0 0
        %1359 = vmatprep.subr.bf16.mxu0 0
        %1360 = vmatpush1.bf16.msra.mxu0 0
        %1361 = vmatprep.subr.bf16.mxu0 0
        %1362 = vmatpush1.bf16.msra.mxu0 0
        %1363 = vmatprep.subr.bf16.mxu0 0
        %1364 = vmatpush1.bf16.msra.mxu0 0
        %1365 = vmatprep.subr.bf16.mxu0 0
        %1366 = vmatpush1.bf16.msra.mxu0 0
        %1367 = vmatprep.subr.bf16.mxu0 0
        %1368 = vmatpush1.bf16.msra.mxu0 %v1342
        %1369 = vmatprep.subr.bf16.mxu0 0
        %1370 = vmatpush2.bf16.msra.mxu0 0
        %1371 = vmatprep.subr.bf16.mxu0 0
        %1372 = vmatpush2.bf16.msra.mxu0 0
        %1373 = vmatprep.subr.bf16.mxu0 0
        %1374 = vmatpush2.bf16.msra.mxu0 0
        %1375 = vmatprep.subr.bf16.mxu0 0
        %1376 = vmatpush2.bf16.msra.mxu0 0
        %1377 = vmatprep.subr.bf16.mxu0 0
        %1378 = vmatpush2.bf16.msra.mxu0 0
        %1379 = vmatprep.subr.bf16.mxu0 0
        %1380 = vmatpush2.bf16.msra.mxu0 0
        %1381 = vmatprep.subr.bf16.mxu0 0
        %1382 = vmatpush2.bf16.msra.mxu0 0
        %1383 = vmatprep.subr.bf16.mxu0 0
        %1384 = vmatpush2.bf16.msra.mxu0 0
        %1385 = vmatprep.mubr.bf16.mxu0 0
        %1386 = vmatmul.mubr.bf16.gmra.mxu0 %v1345
        %v1387 = vpop.f32.mrf.mxu0
        %v1388 = vadd.f32 0.0, %v1387
        %v1389 = vpop.f32.mrf.mxu0
        %v1390 = vpop.f32.mrf.mxu0
        %v1391 = vadd.f32 0.0, %v1390
        %v1392 = vpop.f32.mrf.mxu0
        %1393 = vmatprep.mubr.bf16.mxu0 0
        %1394 = vmatmul.mubr.bf16.gmra.mxu0 %v1348
        %v1395 = vpop.f32.mrf.mxu0
        %v1396 = vadd.f32 0.0, %v1395
        %v1397 = vpop.f32.mrf.mxu0
        %v1398 = vpop.f32.mrf.mxu0
        %v1399 = vadd.f32 0.0, %v1398
        %v1400 = vpop.f32.mrf.mxu0
        %1401 = vmatprep.mubr.bf16.mxu0 0
        %1402 = vmatmul.mubr.bf16.gmra.mxu0 %v1351
        %v1403 = vpop.f32.mrf.mxu0
        %v1404 = vadd.f32 0.0, %v1403
        %v1405 = vpop.f32.mrf.mxu0
        %v1406 = vpop.f32.mrf.mxu0
        %v1407 = vpop.f32.mrf.mxu0
        %1408 = vdwg.mxu0
        %v1409 = vadd.f32 %v1325, %v1388
        %v1410 = vadd.f32 %v1326, %v1391
        %v1411 = vadd.f32 %v1327, %v1396
        %v1412 = vadd.f32 %v1328, %v1399
        %v1413 = vadd.f32 %v1329, %v1404
        %v1414 = vsel %vm449, %v1409, 0.0
        %1415 = vadd.xlane.f32.xlu0 %v1414
        %v1416 = vpop.xlane.xlu0 %1415
        %v1417 = vsel %vm449, %v1410, 0.0
        %1418 = vadd.xlane.f32.xlu0 %v1417
        %v1419 = vpop.xlane.xlu0 %1418
        %v1420 = vsel %vm449, %v1411, 0.0
        %1421 = vadd.xlane.f32.xlu0 %v1420
        %v1422 = vpop.xlane.xlu0 %1421
        %v1423 = vsel %vm449, %v1412, 0.0
        %1424 = vadd.xlane.f32.xlu0 %v1423
        %v1425 = vpop.xlane.xlu0 %1424
        %vm1426 = vcmask 125952
        %v1427 = vsel %vm1426, %v1413, 0.0
        %1428 = vadd.xlane.f32.xlu0 %v1427
        %v1429 = vpop.xlane.xlu0 %1428
        %v1430 = vmul.f32 %v1416, %v472
        %v1431 = vmul.f32 %v1419, %v472
        %v1432 = vmul.f32 %v1422, %v472
        %v1433 = vmul.f32 %v1425, %v472
        %v1434 = vmul.f32 %v1429, %v472
        %v1435 = vsub.f32 %v1409, %v1430
        %v1436 = vsub.f32 %v1410, %v1431
        %v1437 = vsub.f32 %v1411, %v1432
        %v1438 = vsub.f32 %v1412, %v1433
        %v1439 = vsub.f32 %v1413, %v1434
        %v1440 = vmul.f32 %v1435, %v1435
        %v1441 = vmul.f32 %v1436, %v1436
        %v1442 = vmul.f32 %v1437, %v1437
        %v1443 = vmul.f32 %v1438, %v1438
        %v1444 = vmul.f32 %v1439, %v1439
        %v1445 = vsel %vm449, %v1440, 0.0
        %1446 = vadd.xlane.f32.xlu0 %v1445
        %v1447 = vpop.xlane.xlu0 %1446
        %v1448 = vsel %vm449, %v1441, 0.0
        %1449 = vadd.xlane.f32.xlu0 %v1448
        %v1450 = vpop.xlane.xlu0 %1449
        %v1451 = vsel %vm449, %v1442, 0.0
        %1452 = vadd.xlane.f32.xlu0 %v1451
        %v1453 = vpop.xlane.xlu0 %1452
        %v1454 = vsel %vm449, %v1443, 0.0
        %1455 = vadd.xlane.f32.xlu0 %v1454
        %v1456 = vpop.xlane.xlu0 %1455
        %v1457 = vsel %vm1426, %v1444, 0.0
        %1458 = vadd.xlane.f32.xlu0 %v1457
        %v1459 = vpop.xlane.xlu0 %1458
        %v1460 = vmul.f32 %v1447, %v472
        %v1461 = vmul.f32 %v1450, %v472
        %v1462 = vmul.f32 %v1453, %v472
        %v1463 = vmul.f32 %v1456, %v472
        %v1464 = vmul.f32 %v1459, %v472
        %v1465 = vadd.f32 %v1460, 1e-06
        %v1466 = vadd.f32 %v1461, 1e-06
        %v1467 = vadd.f32 %v1462, 1e-06
        %v1468 = vadd.f32 %v1463, 1e-06
        %v1469 = vadd.f32 %v1464, 1e-06
        %v1470 = vrsqrt.pop %v1465
        %v1471 = vrsqrt.pop %v1466
        %v1472 = vrsqrt.pop %v1467
        %v1473 = vrsqrt.pop %v1468
        %v1474 = vrsqrt.pop %v1469
        %v1475 = vmul.f32 %v1435, %v1470
        %v1476 = vmul.f32 %v1436, %v1471
        %v1477 = vmul.f32 %v1437, %v1472
        %v1478 = vmul.f32 %v1438, %v1473
        %v1479 = vmul.f32 %v1439, %v1474
        %v1480 = vld [vmem:[%s5] sm:$0x1]
        %v1482 = vlaneseq
        %v1483 = vshrl.u32 %v1482, 7
        %v1484 = vsub.s32 0, %v1483
        %v1485 = vrot.slane %v1480, %v1484
        %v1487 = vmul.f32 %v1475, %v1485
        %v1488 = vmul.f32 %v1476, %v1485
        %v1489 = vmul.f32 %v1477, %v1485
        %v1490 = vmul.f32 %v1478, %v1485
        %v1491 = vmul.f32 %v1479, %v1485
        %v1492 = vld [vmem:[%s6] sm:$0x1]
        %v1494 = vlaneseq
        %v1495 = vshrl.u32 %v1494, 7
        %v1496 = vsub.s32 0, %v1495
        %v1497 = vrot.slane %v1492, %v1496
        %v1499 = vadd.f32 %v1487, %v1497
        %v1500 = vadd.f32 %v1488, %v1497
        %v1501 = vadd.f32 %v1489, %v1497
        %v1502 = vadd.f32 %v1490, %v1497
        %v1503 = vadd.f32 %v1491, %v1497
        %v1504 = vld [vmem:[%s8] sm:$0xff]
        %v1505 = vld [vmem:[%s8 + $0x8] sm:$0xff]
        %v1506 = vld [vmem:[%s8 + $0x10] sm:$0xff]
        %v1507 = vld [vmem:[%s8 + $0x18] sm:$0xff]
        %v1508 = vld [vmem:[%s8 + $0x20] sm:$0xf]
        %1510 = vset.pattern.permute.xlu0 0
        %1511 = vperm.xlu0 %1510, %v1504
        %v1512 = vpop.permute.xlu0 %1511
        %1515 = vset.pattern.permute.xlu0 0
        %1516 = vperm.xlu0 %1515, %v1505
        %v1517 = vpop.permute.xlu0 %1516
        %1520 = vset.pattern.permute.xlu0 0
        %1521 = vperm.xlu0 %1520, %v1506
        %v1522 = vpop.permute.xlu0 %1521
        %1525 = vset.pattern.permute.xlu0 0
        %1526 = vperm.xlu0 %1525, %v1507
        %v1527 = vpop.permute.xlu0 %1526
        %1530 = vset.pattern.permute.xlu0 0
        %1531 = vperm.xlu0 %1530, %v1508
        %v1532 = vpop.permute.xlu0 %1531
        %v1534 = vmul.f32 %v1499, %v1512
        %v1535 = vmul.f32 %v1500, %v1517
        %v1536 = vmul.f32 %v1501, %v1522
        %v1537 = vmul.f32 %v1502, %v1527
        %v1538 = vmul.f32 %v1503, %v1532
        %v1539 = vsel %vm449, %v1534, 0.0
        %v1540 = vsel %vm449, %v1535, 0.0
        %v1541 = vadd.f32 %v1539, %v1540
        %v1542 = vsel %vm449, %v1536, 0.0
        %v1543 = vadd.f32 %v1541, %v1542
        %v1544 = vsel %vm449, %v1537, 0.0
        %v1545 = vadd.f32 %v1543, %v1544
        %v1546 = vsel %vm1426, %v1538, 0.0
        %v1547 = vadd.f32 %v1545, %v1546
        %v1548 = vrot.slane %v1547, 4
        %v1549 = vadd.f32 %v1547, %v1548
        %v1550 = vrot.slane %v1549, 2
        %v1551 = vadd.f32 %v1549, %v1550
        %v1552 = vrot.slane %v1551, 1
        %v1553 = vadd.f32 %v1551, %v1552
        %v1554 = vmul.f32 %v1553, 0.0625
        %vm1555 = vcmask 122880
        %1556 = vst.msk [vmem:[%s324] sm:$0x1] %vm1555, %v1554
        %s1557 = sand.u32 %s225, 1
        %s1558 = scalar_lea.sflag [#allocation3], %s1557
        %s1559 = sand.u32 %s225, 1
        %s1560 = scalar_lea.vmem [#allocation2], %s1559
        // Predicated region
        $region57: #{sam_mae_encoder_forward.7} parent=55 // pred_check
          %p1561 = pneg %p235
        $region58: #{sam_mae_encoder_forward.7} parent=55 // pred_check_branch
          %1563 = sbr.rel (%p1561) target = $region60
        $region59: #{sam_mae_encoder_forward.7} parent=55 // pred_region
          %s1565 = ssub.s32 16, 16
          %1566 = vsyncadd %s1558, %s1565
          %s1567 = smul.addr %s23, 16
          %s1568 = scalar_lea.hbm %s9, %s1567
          %s1570 = sshll.u32 %s1560, 4
          %s1571 = int_to_ptr.vmem [resolvable:$true] %s1570
          %1573 = dma.vmem_to_hbm [thread:$0]  %s1571, 16, %s1568, %s1558
        $region60: #{sam_mae_encoder_forward.7} parent=55 // pred_fallthru
          _
      $region56: #{sam_mae_encoder_forward.7} parent=5 // pred_fallthru
        _
      %p1574 = scmp.le.s32.totalorder 2, %s18
      // Predicated region
      $region61: #{sam_mae_encoder_forward.7} parent=5 // pred_check
        %p1575 = pneg %p1574
      $region62: #{sam_mae_encoder_forward.7} parent=5 // pred_check_branch
        %1577 = sbr.rel (%p1575) target = $region64
      $region63: #{sam_mae_encoder_forward.7} parent=5 // pred_region
        %s1578 = ssub.s32 %s18, 2
        // Predicated region
        $region65: #{sam_mae_encoder_forward.7} parent=63 // pred_check
          %p1579 = pneg %p241
        $region66: #{sam_mae_encoder_forward.7} parent=63 // pred_check_branch
          %1581 = sbr.rel (%p1579) target = $region68
        $region67: #{sam_mae_encoder_forward.7} parent=63 // pred_region
          %s1582 = sand.u32 %s226, 1
          %s1583 = scalar_lea.sflag [#allocation3], %s1582
          %s1584 = sand.u32 %s226, 1
          %s1585 = scalar_lea.vmem [#allocation2], %s1584
          %1586 = dma.done %s1583, 16
        $region68: #{sam_mae_encoder_forward.7} parent=63 // pred_fallthru
          _
      $region64: #{sam_mae_encoder_forward.7} parent=5 // pred_fallthru
        _
    $region6: #{sam_mae_encoder_forward.7} parent=1 // loop_footer
      %s22 = sadd.s32 1, %s18
    $region7: #{sam_mae_encoder_forward.7} parent=1 // loop_footer_branch
      %17 = sbr.rel target = $region3
    $region8: #{sam_mae_encoder_forward.7} parent=1 // loop_exit
      _
    %1587 = vsyncpa [#allocation3], 1
    %s1588 = scalar_lea.sflag [#allocation3], 1
    %1589 = vsyncpa %s1588, 1

// kernel: sam_mae_encoder_forward.6
$region0: #{sam_mae_encoder_forward.6}
  #allocation0 [shape = 'u32[]', space=smem, size = 0x4, offset = 0x4, fixed_abs, tag = 'smem constant byte address 0x4 - core index']
  #allocation1 [shape = 'u32[144,128]{1,0:T(1,128)}', space=vmem, size = 0x12000, scoped, tag = 'internal scratch']
  %s0 = inlined_call_operand.vmem [shape: f32[2,16,32], index: 0, kind: input, shape index: {}]
  %s1 = inlined_call_operand.vmem [shape: f32[1,32], index: 1, kind: input, shape index: {}]
  %s2 = inlined_call_operand.vmem [shape: f32[1,32], index: 2, kind: input, shape index: {}]
  %s3 = inlined_call_operand.vmem [shape: bf16[32,96], index: 3, kind: input, shape index: {}]
  %s4 = inlined_call_operand.vmem [shape: f32[1,96], index: 4, kind: input, shape index: {}]
  %s5 = inlined_call_operand.vmem [shape: bf16[4,8,16], index: 5, kind: input, shape index: {}]
  %s6 = inlined_call_operand.vmem [shape: bf16[4,8,16], index: 6, kind: input, shape index: {}]
  %s7 = inlined_call_operand.vmem [shape: f32[4,16,1], index: 7, kind: input, shape index: {}]
  %s8 = inlined_call_operand.vmem [shape: f32[4,16,1], index: 8, kind: input, shape index: {}]
  %s9 = inlined_call_operand.vmem [shape: bf16[4,8,32], index: 9, kind: input, shape index: {}]
  %s10 = inlined_call_operand.vmem [shape: f32[1,32], index: 10, kind: input, shape index: {}]
  %s11 = inlined_call_operand.vmem [shape: f32[1,32], index: 11, kind: input, shape index: {}]
  %s12 = inlined_call_operand.vmem [shape: f32[1,32], index: 12, kind: input, shape index: {}]
  %s13 = inlined_call_operand.vmem [shape: bf16[32,128], index: 13, kind: input, shape index: {}]
  %s14 = inlined_call_operand.vmem [shape: f32[1,128], index: 14, kind: input, shape index: {}]
  %s15 = inlined_call_operand.vmem [shape: bf16[128,32], index: 15, kind: input, shape index: {}]
  %s16 = inlined_call_operand.vmem [shape: f32[1,32], index: 16, kind: input, shape index: {}]
  %s17 = inlined_call_operand.vmem [shape: f32[2,16,32], index: 17, kind: output, shape index: {}]
  %s18 = sld [smem:[#allocation0]]
  $region85: #{sam_mae_encoder_forward.6} parent=0
    _
  %s20 = ssub.s32 1, %s18
  %s21 = scalar_select 0, %s20, %s18
  // Predicated region
  $region2: #{sam_mae_encoder_forward.6} parent=0 // pred_check
    _
  $region3: #{sam_mae_encoder_forward.6} parent=0 // pred_check_branch
    %23 = sbr.rel (0) target = $region5
  $region4: #{sam_mae_encoder_forward.6} parent=0 // pred_region
    _
  $region5: #{sam_mae_encoder_forward.6} parent=0 // pred_fallthru
    _
  // Predicated region
  $region6: #{sam_mae_encoder_forward.6} parent=0 // pred_check
    _
  $region7: #{sam_mae_encoder_forward.6} parent=0 // pred_check_branch
    %25 = sbr.rel (0) target = $region9
  $region8: #{sam_mae_encoder_forward.6} parent=0 // pred_region
    _
  $region9: #{sam_mae_encoder_forward.6} parent=0 // pred_fallthru
    _
  // Predicated region
  $region10: #{sam_mae_encoder_forward.6} parent=0 // pred_check
    _
  $region11: #{sam_mae_encoder_forward.6} parent=0 // pred_check_branch
    %27 = sbr.rel (0) target = $region13
  $region12: #{sam_mae_encoder_forward.6} parent=0 // pred_region
    _
  $region13: #{sam_mae_encoder_forward.6} parent=0 // pred_fallthru
    _
  // Predicated region
  $region14: #{sam_mae_encoder_forward.6} parent=0 // pred_check
    _
  $region15: #{sam_mae_encoder_forward.6} parent=0 // pred_check_branch
    %29 = sbr.rel (0) target = $region17
  $region16: #{sam_mae_encoder_forward.6} parent=0 // pred_region
    _
  $region17: #{sam_mae_encoder_forward.6} parent=0 // pred_fallthru
    _
  // Predicated region
  $region18: #{sam_mae_encoder_forward.6} parent=0 // pred_check
    _
  $region19: #{sam_mae_encoder_forward.6} parent=0 // pred_check_branch
    %31 = sbr.rel (0) target = $region21
  $region20: #{sam_mae_encoder_forward.6} parent=0 // pred_region
    _
  $region21: #{sam_mae_encoder_forward.6} parent=0 // pred_fallthru
    _
  // Predicated region
  $region22: #{sam_mae_encoder_forward.6} parent=0 // pred_check
    _
  $region23: #{sam_mae_encoder_forward.6} parent=0 // pred_check_branch
    %33 = sbr.rel (0) target = $region25
  $region24: #{sam_mae_encoder_forward.6} parent=0 // pred_region
    _
  $region25: #{sam_mae_encoder_forward.6} parent=0 // pred_fallthru
    _
  // Predicated region
  $region26: #{sam_mae_encoder_forward.6} parent=0 // pred_check
    _
  $region27: #{sam_mae_encoder_forward.6} parent=0 // pred_check_branch
    %35 = sbr.rel (0) target = $region29
  $region28: #{sam_mae_encoder_forward.6} parent=0 // pred_region
    _
  $region29: #{sam_mae_encoder_forward.6} parent=0 // pred_fallthru
    _
  // Predicated region
  $region30: #{sam_mae_encoder_forward.6} parent=0 // pred_check
    _
  $region31: #{sam_mae_encoder_forward.6} parent=0 // pred_check_branch
    %37 = sbr.rel (0) target = $region33
  $region32: #{sam_mae_encoder_forward.6} parent=0 // pred_region
    _
  $region33: #{sam_mae_encoder_forward.6} parent=0 // pred_fallthru
    _
  // Predicated region
  $region34: #{sam_mae_encoder_forward.6} parent=0 // pred_check
    _
  $region35: #{sam_mae_encoder_forward.6} parent=0 // pred_check_branch
    %39 = sbr.rel (0) target = $region37
  $region36: #{sam_mae_encoder_forward.6} parent=0 // pred_region
    _
  $region37: #{sam_mae_encoder_forward.6} parent=0 // pred_fallthru
    _
  // Predicated region
  $region38: #{sam_mae_encoder_forward.6} parent=0 // pred_check
    _
  $region39: #{sam_mae_encoder_forward.6} parent=0 // pred_check_branch
    %41 = sbr.rel (0) target = $region41
  $region40: #{sam_mae_encoder_forward.6} parent=0 // pred_region
    _
  $region41: #{sam_mae_encoder_forward.6} parent=0 // pred_fallthru
    _
  // Predicated region
  $region42: #{sam_mae_encoder_forward.6} parent=0 // pred_check
    _
  $region43: #{sam_mae_encoder_forward.6} parent=0 // pred_check_branch
    %43 = sbr.rel (0) target = $region45
  $region44: #{sam_mae_encoder_forward.6} parent=0 // pred_region
    _
  $region45: #{sam_mae_encoder_forward.6} parent=0 // pred_fallthru
    _
  // Predicated region
  $region46: #{sam_mae_encoder_forward.6} parent=0 // pred_check
    _
  $region47: #{sam_mae_encoder_forward.6} parent=0 // pred_check_branch
    %45 = sbr.rel (0) target = $region49
  $region48: #{sam_mae_encoder_forward.6} parent=0 // pred_region
    _
  $region49: #{sam_mae_encoder_forward.6} parent=0 // pred_fallthru
    _
  // Predicated region
  $region50: #{sam_mae_encoder_forward.6} parent=0 // pred_check
    _
  $region51: #{sam_mae_encoder_forward.6} parent=0 // pred_check_branch
    %47 = sbr.rel (0) target = $region53
  $region52: #{sam_mae_encoder_forward.6} parent=0 // pred_region
    _
  $region53: #{sam_mae_encoder_forward.6} parent=0 // pred_fallthru
    _
  // Predicated region
  $region54: #{sam_mae_encoder_forward.6} parent=0 // pred_check
    _
  $region55: #{sam_mae_encoder_forward.6} parent=0 // pred_check_branch
    %49 = sbr.rel (0) target = $region57
  $region56: #{sam_mae_encoder_forward.6} parent=0 // pred_region
    _
  $region57: #{sam_mae_encoder_forward.6} parent=0 // pred_fallthru
    _
  // Predicated region
  $region58: #{sam_mae_encoder_forward.6} parent=0 // pred_check
    _
  $region59: #{sam_mae_encoder_forward.6} parent=0 // pred_check_branch
    %51 = sbr.rel (0) target = $region61
  $region60: #{sam_mae_encoder_forward.6} parent=0 // pred_region
    _
  $region61: #{sam_mae_encoder_forward.6} parent=0 // pred_fallthru
    _
  // Predicated region
  $region62: #{sam_mae_encoder_forward.6} parent=0 // pred_check
    _
  $region63: #{sam_mae_encoder_forward.6} parent=0 // pred_check_branch
    %53 = sbr.rel (0) target = $region65
  $region64: #{sam_mae_encoder_forward.6} parent=0 // pred_region
    _
  $region65: #{sam_mae_encoder_forward.6} parent=0 // pred_fallthru
    _
  // Predicated region
  $region66: #{sam_mae_encoder_forward.6} parent=0 // pred_check
    _
  $region67: #{sam_mae_encoder_forward.6} parent=0 // pred_check_branch
    %55 = sbr.rel (0) target = $region69
  $region68: #{sam_mae_encoder_forward.6} parent=0 // pred_region
    _
  $region69: #{sam_mae_encoder_forward.6} parent=0 // pred_fallthru
    _
  %v57 = vld [vmem:[%s1] sm:$0x1]
  %v58 = vld [vmem:[%s2] sm:$0x1]
  %v59 = vld [vmem:[%s3] sm:$0xf]
  %v60 = vld [vmem:[%s3 + $0x4] sm:$0xf]
  %v61 = vld [vmem:[%s3 + $0x8] sm:$0xf]
  %v62 = vld [vmem:[%s3 + $0xc] sm:$0xf]
  %v63 = vld [vmem:[%s4] sm:$0x1]
  %v64 = vld [vmem:[%s10] sm:$0x1]
  %v65 = vld [vmem:[%s11] sm:$0x1]
  %v66 = vld [vmem:[%s12] sm:$0x1]
  %v67 = vld [vmem:[%s13] sm:$0xf]
  %v68 = vld [vmem:[%s13 + $0x4] sm:$0xf]
  %v69 = vld [vmem:[%s13 + $0x8] sm:$0xf]
  %v70 = vld [vmem:[%s13 + $0xc] sm:$0xf]
  %v71 = vld [vmem:[%s14] sm:$0x1]
  %v72 = vld [vmem:[%s15] sm:$0xf]
  %v73 = vld [vmem:[%s15 + $0x4] sm:$0xf]
  %v74 = vld [vmem:[%s15 + $0x8] sm:$0xf]
  %v75 = vld [vmem:[%s15 + $0xc] sm:$0xf]
  %v76 = vld [vmem:[%s15 + $0x10] sm:$0xf]
  %v77 = vld [vmem:[%s15 + $0x14] sm:$0xf]
  %v78 = vld [vmem:[%s15 + $0x18] sm:$0xf]
  %v79 = vld [vmem:[%s15 + $0x1c] sm:$0xf]
  %v80 = vld [vmem:[%s15 + $0x20] sm:$0xf]
  %v81 = vld [vmem:[%s15 + $0x24] sm:$0xf]
  %v82 = vld [vmem:[%s15 + $0x28] sm:$0xf]
  %v83 = vld [vmem:[%s15 + $0x2c] sm:$0xf]
  %v84 = vld [vmem:[%s15 + $0x30] sm:$0xf]
  %v85 = vld [vmem:[%s15 + $0x34] sm:$0xf]
  %v86 = vld [vmem:[%s15 + $0x38] sm:$0xf]
  %v87 = vld [vmem:[%s15 + $0x3c] sm:$0xf]
  %v88 = vld [vmem:[%s16] sm:$0x1]
  %v89 = vld [vmem:[%s5] sm:$0xf]
  %s90 = scalar_lea.vmem %s5, 4
  %v91 = vld [vmem:[%s90] sm:$0xf]
  %s92 = scalar_lea.vmem %s5, 8
  %v93 = vld [vmem:[%s92] sm:$0xf]
  %s94 = scalar_lea.vmem %s5, 12
  %v95 = vld [vmem:[%s94] sm:$0xf]
  %v96 = vld [vmem:[%s6] sm:$0xf]
  %s97 = scalar_lea.vmem %s6, 4
  %v98 = vld [vmem:[%s97] sm:$0xf]
  %s99 = scalar_lea.vmem %s6, 8
  %v100 = vld [vmem:[%s99] sm:$0xf]
  %s101 = scalar_lea.vmem %s6, 12
  %v102 = vld [vmem:[%s101] sm:$0xf]
  %v103 = vld [vmem:[%s7] sm:$0xff]
  %v104 = vld [vmem:[%s7 + $0x8] sm:$0xff]
  %v105 = vpack.c.bf16 %v104, %v103
  %s106 = scalar_lea.vmem %s7, 16
  %v107 = vld [vmem:[%s106] sm:$0xff]
  %v108 = vld [vmem:[%s106 + $0x8] sm:$0xff]
  %v109 = vpack.c.bf16 %v108, %v107
  %s110 = scalar_lea.vmem %s7, 32
  %v111 = vld [vmem:[%s110] sm:$0xff]
  %v112 = vld [vmem:[%s110 + $0x8] sm:$0xff]
  %v113 = vpack.c.bf16 %v112, %v111
  %s114 = scalar_lea.vmem %s7, 48
  %v115 = vld [vmem:[%s114] sm:$0xff]
  %v116 = vld [vmem:[%s114 + $0x8] sm:$0xff]
  %v117 = vpack.c.bf16 %v116, %v115
  %v118 = vld [vmem:[%s8] sm:$0xff]
  %v119 = vld [vmem:[%s8 + $0x8] sm:$0xff]
  %v120 = vpack.c.bf16 %v119, %v118
  %s121 = scalar_lea.vmem %s8, 16
  %v122 = vld [vmem:[%s121] sm:$0xff]
  %v123 = vld [vmem:[%s121 + $0x8] sm:$0xff]
  %v124 = vpack.c.bf16 %v123, %v122
  %s125 = scalar_lea.vmem %s8, 32
  %v126 = vld [vmem:[%s125] sm:$0xff]
  %v127 = vld [vmem:[%s125 + $0x8] sm:$0xff]
  %v128 = vpack.c.bf16 %v127, %v126
  %s129 = scalar_lea.vmem %s8, 48
  %v130 = vld [vmem:[%s129] sm:$0xff]
  %v131 = vld [vmem:[%s129 + $0x8] sm:$0xff]
  %v132 = vpack.c.bf16 %v131, %v130
  %v133 = vld [vmem:[%s9] sm:$0xf]
  %s134 = scalar_lea.vmem %s9, 4
  %v135 = vld [vmem:[%s134] sm:$0xf]
  %s136 = scalar_lea.vmem %s9, 8
  %v137 = vld [vmem:[%s136] sm:$0xf]
  %s138 = scalar_lea.vmem %s9, 12
  %v139 = vld [vmem:[%s138] sm:$0xf]
  loop: start=0, step=1, limit=2
  $region70: #{sam_mae_encoder_forward.6} parent=0 // loop_pre_header
    _
  $region71: #{sam_mae_encoder_forward.6} parent=0 // loop_header
    %s141 = sphi 0, %s145
    %p142 = scmp.ge.s32.totalorder %s141, 2
  $region72: #{sam_mae_encoder_forward.6} parent=0 // loop_header_branch
    %144 = sbr.rel (%p142) target = $region76
  $region73: #{sam_mae_encoder_forward.6} parent=0 // loop_body
    %s146 = smul.u32 %s141, 16
    %s147 = scalar_lea.vmem %s0, %s146
    %v148 = vld [vmem:[%s147] sm:$0xff]
    %v149 = vld [vmem:[%s147 + $0x8] sm:$0xff]
    %vm150 = vcmask 261120
    %v151 = vsel %vm150, %v148, 0.0
    %152 = vadd.xlane.f32.xlu0 %v151
    %v153 = vpop.xlane.xlu0 %152
    %v154 = vsel %vm150, %v149, 0.0
    %155 = vadd.xlane.f32.xlu0 %v154
    %v156 = vpop.xlane.xlu0 %155
    %v157 = vrcp.pop 32.0
    %v158 = vmul.f32 %v153, %v157
    %v159 = vmul.f32 %v156, %v157
    %v160 = vsub.f32 %v148, %v158
    %v161 = vsub.f32 %v149, %v159
    %v162 = vmul.f32 %v160, %v160
    %v163 = vmul.f32 %v161, %v161
    %v164 = vsel %vm150, %v162, 0.0
    %165 = vadd.xlane.f32.xlu0 %v164
    %v166 = vpop.xlane.xlu0 %165
    %v167 = vsel %vm150, %v163, 0.0
    %168 = vadd.xlane.f32.xlu0 %v167
    %v169 = vpop.xlane.xlu0 %168
    %v170 = vmul.f32 %v166, %v157
    %v171 = vmul.f32 %v169, %v157
    %v172 = vadd.f32 %v170, 1e-06
    %v173 = vadd.f32 %v171, 1e-06
    %v174 = vrsqrt.pop %v172
    %v175 = vrsqrt.pop %v173
    %v176 = vmul.f32 %v160, %v174
    %v177 = vmul.f32 %v161, %v175
    %v179 = vlaneseq
    %v180 = vshrl.u32 %v179, 7
    %v181 = vsub.s32 0, %v180
    %v182 = vrot.slane %v57, %v181
    %v184 = vmul.f32 %v176, %v182
    %v185 = vmul.f32 %v177, %v182
    %v187 = vlaneseq
    %v188 = vshrl.u32 %v187, 7
    %v189 = vsub.s32 0, %v188
    %v190 = vrot.slane %v58, %v189
    %v192 = vadd.f32 %v184, %v190
    %v193 = vadd.f32 %v185, %v190
    %v194 = vpack.c.bf16 %v193, %v192
    %v196 = vlaneseq
    %v197 = vshrl.u32 %v196, 7
    %v198 = vsub.s32 0, %v197
    %v199 = vrot.slane %v63, %v198
    %v205 = vunpack.c.l.b16 %v59
    %v206 = vunpack.c.l.b16 %v60
    %v207 = vunpack.c.l.b16 %v61
    %v208 = vunpack.c.l.b16 %v62
    %v209 = vpack.c.b16 %v206, %v205
    %v210 = vpack.c.b16 %v208, %v207
    %v214 = vsel %vm150, %v194, 0
    %216 = vmatprep.subr.bf16.mxu0 0
    %217 = vmatpush1.bf16.msra.mxu0 0
    %218 = vmatprep.subr.bf16.mxu0 0
    %219 = vmatpush1.bf16.msra.mxu0 0
    %220 = vmatprep.subr.bf16.mxu0 0
    %221 = vmatpush1.bf16.msra.mxu0 0
    %222 = vmatprep.subr.bf16.mxu0 0
    %223 = vmatpush1.bf16.msra.mxu0 0
    %224 = vmatprep.subr.bf16.mxu0 0
    %225 = vmatpush1.bf16.msra.mxu0 0
    %226 = vmatprep.subr.bf16.mxu0 0
    %227 = vmatpush1.bf16.msra.mxu0 0
    %228 = vmatprep.subr.bf16.mxu0 0
    %229 = vmatpush1.bf16.msra.mxu0 %v210
    %230 = vmatprep.subr.bf16.mxu0 0
    %231 = vmatpush1.bf16.msra.mxu0 %v209
    %232 = vmatprep.subr.bf16.mxu0 0
    %233 = vmatpush2.bf16.msra.mxu0 0
    %234 = vmatprep.subr.bf16.mxu0 0
    %235 = vmatpush2.bf16.msra.mxu0 0
    %236 = vmatprep.subr.bf16.mxu0 0
    %237 = vmatpush2.bf16.msra.mxu0 0
    %238 = vmatprep.subr.bf16.mxu0 0
    %239 = vmatpush2.bf16.msra.mxu0 0
    %240 = vmatprep.subr.bf16.mxu0 0
    %241 = vmatpush2.bf16.msra.mxu0 0
    %242 = vmatprep.subr.bf16.mxu0 0
    %243 = vmatpush2.bf16.msra.mxu0 0
    %244 = vmatprep.subr.bf16.mxu0 0
    %245 = vmatpush2.bf16.msra.mxu0 0
    %246 = vmatprep.subr.bf16.mxu0 0
    %247 = vmatpush2.bf16.msra.mxu0 0
    %248 = vmatprep.mubr.bf16.mxu0 0
    %249 = vmatmul.mubr.bf16.gmra.mxu0 %v214
    %v250 = vpop.f32.mrf.mxu0
    %v251 = vadd.f32 %v199, %v250
    %v252 = vpop.f32.mrf.mxu0
    %v253 = vpop.f32.mrf.mxu0
    %v254 = vadd.f32 %v199, %v253
    %v255 = vpop.f32.mrf.mxu0
    %256 = vdwg.mxu0
    %v257 = vpack.c.bf16 %v254, %v251
    %259 = vset.pattern.permute.xlu0 0
    %260 = vperm.xlu0 %259, %v105
    %v261 = vpop.permute.xlu0 %260
    %v263 = vmul.bf16 %v261, %v257
    %vm264 = vcmask 64512
    %v266 = vsel %vm264, %v263, 0
    %vm268 = vcmask 1043456
    %v270 = vsel %vm268, %v89, 0
    %272 = vmatprep.subr.bf16.mxu0 0
    %273 = vmatpush1.bf16.msra.mxu0 0
    %274 = vmatprep.subr.bf16.mxu0 0
    %275 = vmatpush1.bf16.msra.mxu0 0
    %276 = vmatprep.subr.bf16.mxu0 0
    %277 = vmatpush1.bf16.msra.mxu0 0
    %278 = vmatprep.subr.bf16.mxu0 0
    %279 = vmatpush1.bf16.msra.mxu0 0
    %280 = vmatprep.subr.bf16.mxu0 0
    %281 = vmatpush1.bf16.msra.mxu0 0
    %282 = vmatprep.subr.bf16.mxu0 0
    %283 = vmatpush1.bf16.msra.mxu0 0
    %284 = vmatprep.subr.bf16.mxu0 0
    %285 = vmatpush1.bf16.msra.mxu0 0
    %286 = vmatprep.subr.bf16.mxu0 0
    %287 = vmatpush1.bf16.msra.mxu0 %v270
    %288 = vmatprep.subr.bf16.mxu0 0
    %289 = vmatpush2.bf16.msra.mxu0 0
    %290 = vmatprep.subr.bf16.mxu0 0
    %291 = vmatpush2.bf16.msra.mxu0 0
    %292 = vmatprep.subr.bf16.mxu0 0
    %293 = vmatpush2.bf16.msra.mxu0 0
    %294 = vmatprep.subr.bf16.mxu0 0
    %295 = vmatpush2.bf16.msra.mxu0 0
    %296 = vmatprep.subr.bf16.mxu0 0
    %297 = vmatpush2.bf16.msra.mxu0 0
    %298 = vmatprep.subr.bf16.mxu0 0
    %299 = vmatpush2.bf16.msra.mxu0 0
    %300 = vmatprep.subr.bf16.mxu0 0
    %301 = vmatpush2.bf16.msra.mxu0 0
    %302 = vmatprep.subr.bf16.mxu0 0
    %303 = vmatpush2.bf16.msra.mxu0 0
    %304 = vmatprep.mubr.bf16.mxu0 0
    %305 = vmatmul.mubr.bf16.gmra.mxu0 %v266
    %v306 = vpop.f32.mrf.mxu0
    %v307 = vadd.f32 0.0, %v306
    %v308 = vpop.f32.mrf.mxu0
    %v309 = vpop.f32.mrf.mxu0
    %v310 = vadd.f32 0.0, %v309
    %v311 = vpop.f32.mrf.mxu0
    %312 = vdwg.mxu0
    %314 = vrot.lane.b32.xlu0 %v257, 96
    %v315 = vpop.permute.xlu0 %314
    %v317 = vsel %vm264, %v257, 0
    %v320 = vsel %vm264, %v315, 0
    %322 = vmatprep.subr.bf16.mxu0 0
    %323 = vmatpush1.bf16.xpose.msra.mxu0 0
    %324 = vmatprep.subr.bf16.mxu0 0
    %325 = vmatpush1.bf16.xpose.msra.mxu0 0
    %326 = vmatprep.subr.bf16.mxu0 0
    %327 = vmatpush1.bf16.xpose.msra.mxu0 0
    %328 = vmatprep.subr.bf16.mxu0 0
    %329 = vmatpush1.bf16.xpose.msra.mxu0 0
    %330 = vmatprep.subr.bf16.mxu0 0
    %331 = vmatpush1.bf16.xpose.msra.mxu0 0
    %332 = vmatprep.subr.bf16.mxu0 0
    %333 = vmatpush1.bf16.xpose.msra.mxu0 0
    %334 = vmatprep.subr.bf16.mxu0 0
    %335 = vmatpush1.bf16.xpose.msra.mxu0 0
    %336 = vmatprep.subr.bf16.mxu0 0
    %337 = vmatpush1.bf16.xpose.msra.mxu0 %v320
    %338 = vmatprep.subr.bf16.mxu0 0
    %339 = vmatpush2.bf16.xpose.msra.mxu0 0
    %340 = vmatprep.subr.bf16.mxu0 0
    %341 = vmatpush2.bf16.xpose.msra.mxu0 0
    %342 = vmatprep.subr.bf16.mxu0 0
    %343 = vmatpush2.bf16.xpose.msra.mxu0 0
    %344 = vmatprep.subr.bf16.mxu0 0
    %345 = vmatpush2.bf16.xpose.msra.mxu0 0
    %346 = vmatprep.subr.bf16.mxu0 0
    %347 = vmatpush2.bf16.xpose.msra.mxu0 0
    %348 = vmatprep.subr.bf16.mxu0 0
    %349 = vmatpush2.bf16.xpose.msra.mxu0 0
    %350 = vmatprep.subr.bf16.mxu0 0
    %351 = vmatpush2.bf16.xpose.msra.mxu0 0
    %352 = vmatprep.subr.bf16.mxu0 0
    %353 = vmatpush2.bf16.xpose.msra.mxu0 0
    %354 = vmatprep.mubr.bf16.mxu0 0
    %355 = vmatmul.mubr.bf16.gmra.mxu0 %v317
    %v356 = vpop.f32.mrf.mxu0
    %v357 = vadd.f32 %v307, %v356
    %v358 = vpop.f32.mrf.mxu0
    %v359 = vpop.f32.mrf.mxu0
    %v360 = vadd.f32 %v310, %v359
    %v361 = vpop.f32.mrf.mxu0
    %362 = vdwg.mxu0
    %364 = vset.pattern.permute.xlu0 0
    %365 = vperm.xlu0 %364, %v109
    %v366 = vpop.permute.xlu0 %365
    %v368 = vmul.bf16 %v366, %v257
    %v370 = vsel %vm264, %v368, 0
    %v373 = vsel %vm268, %v91, 0
    %375 = vmatprep.subr.bf16.mxu0 0
    %376 = vmatpush1.bf16.msra.mxu0 0
    %377 = vmatprep.subr.bf16.mxu0 0
    %378 = vmatpush1.bf16.msra.mxu0 0
    %379 = vmatprep.subr.bf16.mxu0 0
    %380 = vmatpush1.bf16.msra.mxu0 0
    %381 = vmatprep.subr.bf16.mxu0 0
    %382 = vmatpush1.bf16.msra.mxu0 0
    %383 = vmatprep.subr.bf16.mxu0 0
    %384 = vmatpush1.bf16.msra.mxu0 0
    %385 = vmatprep.subr.bf16.mxu0 0
    %386 = vmatpush1.bf16.msra.mxu0 0
    %387 = vmatprep.subr.bf16.mxu0 0
    %388 = vmatpush1.bf16.msra.mxu0 0
    %389 = vmatprep.subr.bf16.mxu0 0
    %390 = vmatpush1.bf16.msra.mxu0 %v373
    %391 = vmatprep.subr.bf16.mxu0 0
    %392 = vmatpush2.bf16.msra.mxu0 0
    %393 = vmatprep.subr.bf16.mxu0 0
    %394 = vmatpush2.bf16.msra.mxu0 0
    %395 = vmatprep.subr.bf16.mxu0 0
    %396 = vmatpush2.bf16.msra.mxu0 0
    %397 = vmatprep.subr.bf16.mxu0 0
    %398 = vmatpush2.bf16.msra.mxu0 0
    %399 = vmatprep.subr.bf16.mxu0 0
    %400 = vmatpush2.bf16.msra.mxu0 0
    %401 = vmatprep.subr.bf16.mxu0 0
    %402 = vmatpush2.bf16.msra.mxu0 0
    %403 = vmatprep.subr.bf16.mxu0 0
    %404 = vmatpush2.bf16.msra.mxu0 0
    %405 = vmatprep.subr.bf16.mxu0 0
    %406 = vmatpush2.bf16.msra.mxu0 0
    %407 = vmatprep.mubr.bf16.mxu0 0
    %408 = vmatmul.mubr.bf16.gmra.mxu0 %v370
    %v409 = vpop.f32.mrf.mxu0
    %v410 = vadd.f32 0.0, %v409
    %v411 = vpop.f32.mrf.mxu0
    %v412 = vpop.f32.mrf.mxu0
    %v413 = vadd.f32 0.0, %v412
    %v414 = vpop.f32.mrf.mxu0
    %415 = vdwg.mxu0
    %v416 = vadd.f32 %v357, %v410
    %v417 = vadd.f32 %v360, %v413
    %419 = vset.pattern.permute.xlu0 0
    %420 = vperm.xlu0 %419, %v113
    %v421 = vpop.permute.xlu0 %420
    %v423 = vmul.bf16 %v421, %v257
    %v425 = vsel %vm264, %v423, 0
    %v428 = vsel %vm268, %v93, 0
    %430 = vmatprep.subr.bf16.mxu0 0
    %431 = vmatpush1.bf16.msra.mxu0 0
    %432 = vmatprep.subr.bf16.mxu0 0
    %433 = vmatpush1.bf16.msra.mxu0 0
    %434 = vmatprep.subr.bf16.mxu0 0
    %435 = vmatpush1.bf16.msra.mxu0 0
    %436 = vmatprep.subr.bf16.mxu0 0
    %437 = vmatpush1.bf16.msra.mxu0 0
    %438 = vmatprep.subr.bf16.mxu0 0
    %439 = vmatpush1.bf16.msra.mxu0 0
    %440 = vmatprep.subr.bf16.mxu0 0
    %441 = vmatpush1.bf16.msra.mxu0 0
    %442 = vmatprep.subr.bf16.mxu0 0
    %443 = vmatpush1.bf16.msra.mxu0 0
    %444 = vmatprep.subr.bf16.mxu0 0
    %445 = vmatpush1.bf16.msra.mxu0 %v428
    %446 = vmatprep.subr.bf16.mxu0 0
    %447 = vmatpush2.bf16.msra.mxu0 0
    %448 = vmatprep.subr.bf16.mxu0 0
    %449 = vmatpush2.bf16.msra.mxu0 0
    %450 = vmatprep.subr.bf16.mxu0 0
    %451 = vmatpush2.bf16.msra.mxu0 0
    %452 = vmatprep.subr.bf16.mxu0 0
    %453 = vmatpush2.bf16.msra.mxu0 0
    %454 = vmatprep.subr.bf16.mxu0 0
    %455 = vmatpush2.bf16.msra.mxu0 0
    %456 = vmatprep.subr.bf16.mxu0 0
    %457 = vmatpush2.bf16.msra.mxu0 0
    %458 = vmatprep.subr.bf16.mxu0 0
    %459 = vmatpush2.bf16.msra.mxu0 0
    %460 = vmatprep.subr.bf16.mxu0 0
    %461 = vmatpush2.bf16.msra.mxu0 0
    %462 = vmatprep.mubr.bf16.mxu0 0
    %463 = vmatmul.mubr.bf16.gmra.mxu0 %v425
    %v464 = vpop.f32.mrf.mxu0
    %v465 = vadd.f32 0.0, %v464
    %v466 = vpop.f32.mrf.mxu0
    %v467 = vpop.f32.mrf.mxu0
    %v468 = vadd.f32 0.0, %v467
    %v469 = vpop.f32.mrf.mxu0
    %470 = vdwg.mxu0
    %v471 = vadd.f32 %v416, %v465
    %v472 = vadd.f32 %v417, %v468
    %474 = vset.pattern.permute.xlu0 0
    %475 = vperm.xlu0 %474, %v117
    %v476 = vpop.permute.xlu0 %475
    %v478 = vmul.bf16 %v476, %v257
    %v480 = vsel %vm264, %v478, 0
    %v483 = vsel %vm268, %v95, 0
    %485 = vmatprep.subr.bf16.mxu0 0
    %486 = vmatpush1.bf16.msra.mxu0 0
    %487 = vmatprep.subr.bf16.mxu0 0
    %488 = vmatpush1.bf16.msra.mxu0 0
    %489 = vmatprep.subr.bf16.mxu0 0
    %490 = vmatpush1.bf16.msra.mxu0 0
    %491 = vmatprep.subr.bf16.mxu0 0
    %492 = vmatpush1.bf16.msra.mxu0 0
    %493 = vmatprep.subr.bf16.mxu0 0
    %494 = vmatpush1.bf16.msra.mxu0 0
    %495 = vmatprep.subr.bf16.mxu0 0
    %496 = vmatpush1.bf16.msra.mxu0 0
    %497 = vmatprep.subr.bf16.mxu0 0
    %498 = vmatpush1.bf16.msra.mxu0 0
    %499 = vmatprep.subr.bf16.mxu0 0
    %500 = vmatpush1.bf16.msra.mxu0 %v483
    %501 = vmatprep.subr.bf16.mxu0 0
    %502 = vmatpush2.bf16.msra.mxu0 0
    %503 = vmatprep.subr.bf16.mxu0 0
    %504 = vmatpush2.bf16.msra.mxu0 0
    %505 = vmatprep.subr.bf16.mxu0 0
    %506 = vmatpush2.bf16.msra.mxu0 0
    %507 = vmatprep.subr.bf16.mxu0 0
    %508 = vmatpush2.bf16.msra.mxu0 0
    %509 = vmatprep.subr.bf16.mxu0 0
    %510 = vmatpush2.bf16.msra.mxu0 0
    %511 = vmatprep.subr.bf16.mxu0 0
    %512 = vmatpush2.bf16.msra.mxu0 0
    %513 = vmatprep.subr.bf16.mxu0 0
    %514 = vmatpush2.bf16.msra.mxu0 0
    %515 = vmatprep.subr.bf16.mxu0 0
    %516 = vmatpush2.bf16.msra.mxu0 0
    %517 = vmatprep.mubr.bf16.mxu0 0
    %518 = vmatmul.mubr.bf16.gmra.mxu0 %v480
    %v519 = vpop.f32.mrf.mxu0
    %v520 = vadd.f32 0.0, %v519
    %v521 = vpop.f32.mrf.mxu0
    %v522 = vpop.f32.mrf.mxu0
    %v523 = vadd.f32 0.0, %v522
    %v524 = vpop.f32.mrf.mxu0
    %525 = vdwg.mxu0
    %v526 = vadd.f32 %v471, %v520
    %v527 = vadd.f32 %v472, %v523
    %529 = vset.pattern.permute.xlu0 0
    %530 = vperm.xlu0 %529, %v120
    %v531 = vpop.permute.xlu0 %530
    %v533 = vmul.bf16 %v531, %v257
    %v535 = vsel %vm264, %v533, 0
    %v538 = vsel %vm268, %v96, 0
    %540 = vmatprep.subr.bf16.mxu0 0
    %541 = vmatpush1.bf16.msra.mxu0 0
    %542 = vmatprep.subr.bf16.mxu0 0
    %543 = vmatpush1.bf16.msra.mxu0 0
    %544 = vmatprep.subr.bf16.mxu0 0
    %545 = vmatpush1.bf16.msra.mxu0 0
    %546 = vmatprep.subr.bf16.mxu0 0
    %547 = vmatpush1.bf16.msra.mxu0 0
    %548 = vmatprep.subr.bf16.mxu0 0
    %549 = vmatpush1.bf16.msra.mxu0 0
    %550 = vmatprep.subr.bf16.mxu0 0
    %551 = vmatpush1.bf16.msra.mxu0 0
    %552 = vmatprep.subr.bf16.mxu0 0
    %553 = vmatpush1.bf16.msra.mxu0 0
    %554 = vmatprep.subr.bf16.mxu0 0
    %555 = vmatpush1.bf16.msra.mxu0 %v538
    %556 = vmatprep.subr.bf16.mxu0 0
    %557 = vmatpush2.bf16.msra.mxu0 0
    %558 = vmatprep.subr.bf16.mxu0 0
    %559 = vmatpush2.bf16.msra.mxu0 0
    %560 = vmatprep.subr.bf16.mxu0 0
    %561 = vmatpush2.bf16.msra.mxu0 0
    %562 = vmatprep.subr.bf16.mxu0 0
    %563 = vmatpush2.bf16.msra.mxu0 0
    %564 = vmatprep.subr.bf16.mxu0 0
    %565 = vmatpush2.bf16.msra.mxu0 0
    %566 = vmatprep.subr.bf16.mxu0 0
    %567 = vmatpush2.bf16.msra.mxu0 0
    %568 = vmatprep.subr.bf16.mxu0 0
    %569 = vmatpush2.bf16.msra.mxu0 0
    %570 = vmatprep.subr.bf16.mxu0 0
    %571 = vmatpush2.bf16.msra.mxu0 0
    %572 = vmatprep.mubr.bf16.mxu0 0
    %573 = vmatmul.mubr.bf16.gmra.mxu0 %v535
    %v574 = vpop.f32.mrf.mxu0
    %v575 = vadd.f32 0.0, %v574
    %v576 = vpop.f32.mrf.mxu0
    %v577 = vpop.f32.mrf.mxu0
    %v578 = vadd.f32 0.0, %v577
    %v579 = vpop.f32.mrf.mxu0
    %580 = vdwg.mxu0
    %v581 = vadd.f32 %v526, %v575
    %v582 = vadd.f32 %v527, %v578
    %584 = vset.pattern.permute.xlu0 0
    %585 = vperm.xlu0 %584, %v124
    %v586 = vpop.permute.xlu0 %585
    %v588 = vmul.bf16 %v586, %v257
    %v590 = vsel %vm264, %v588, 0
    %v593 = vsel %vm268, %v98, 0
    %595 = vmatprep.subr.bf16.mxu0 0
    %596 = vmatpush1.bf16.msra.mxu0 0
    %597 = vmatprep.subr.bf16.mxu0 0
    %598 = vmatpush1.bf16.msra.mxu0 0
    %599 = vmatprep.subr.bf16.mxu0 0
    %600 = vmatpush1.bf16.msra.mxu0 0
    %601 = vmatprep.subr.bf16.mxu0 0
    %602 = vmatpush1.bf16.msra.mxu0 0
    %603 = vmatprep.subr.bf16.mxu0 0
    %604 = vmatpush1.bf16.msra.mxu0 0
    %605 = vmatprep.subr.bf16.mxu0 0
    %606 = vmatpush1.bf16.msra.mxu0 0
    %607 = vmatprep.subr.bf16.mxu0 0
    %608 = vmatpush1.bf16.msra.mxu0 0
    %609 = vmatprep.subr.bf16.mxu0 0
    %610 = vmatpush1.bf16.msra.mxu0 %v593
    %611 = vmatprep.subr.bf16.mxu0 0
    %612 = vmatpush2.bf16.msra.mxu0 0
    %613 = vmatprep.subr.bf16.mxu0 0
    %614 = vmatpush2.bf16.msra.mxu0 0
    %615 = vmatprep.subr.bf16.mxu0 0
    %616 = vmatpush2.bf16.msra.mxu0 0
    %617 = vmatprep.subr.bf16.mxu0 0
    %618 = vmatpush2.bf16.msra.mxu0 0
    %619 = vmatprep.subr.bf16.mxu0 0
    %620 = vmatpush2.bf16.msra.mxu0 0
    %621 = vmatprep.subr.bf16.mxu0 0
    %622 = vmatpush2.bf16.msra.mxu0 0
    %623 = vmatprep.subr.bf16.mxu0 0
    %624 = vmatpush2.bf16.msra.mxu0 0
    %625 = vmatprep.subr.bf16.mxu0 0
    %626 = vmatpush2.bf16.msra.mxu0 0
    %627 = vmatprep.mubr.bf16.mxu0 0
    %628 = vmatmul.mubr.bf16.gmra.mxu0 %v590
    %v629 = vpop.f32.mrf.mxu0
    %v630 = vadd.f32 0.0, %v629
    %v631 = vpop.f32.mrf.mxu0
    %v632 = vpop.f32.mrf.mxu0
    %v633 = vadd.f32 0.0, %v632
    %v634 = vpop.f32.mrf.mxu0
    %635 = vdwg.mxu0
    %v636 = vadd.f32 %v581, %v630
    %v637 = vadd.f32 %v582, %v633
    %639 = vset.pattern.permute.xlu0 0
    %640 = vperm.xlu0 %639, %v128
    %v641 = vpop.permute.xlu0 %640
    %v643 = vmul.bf16 %v641, %v257
    %v645 = vsel %vm264, %v643, 0
    %v648 = vsel %vm268, %v100, 0
    %650 = vmatprep.subr.bf16.mxu0 0
    %651 = vmatpush1.bf16.msra.mxu0 0
    %652 = vmatprep.subr.bf16.mxu0 0
    %653 = vmatpush1.bf16.msra.mxu0 0
    %654 = vmatprep.subr.bf16.mxu0 0
    %655 = vmatpush1.bf16.msra.mxu0 0
    %656 = vmatprep.subr.bf16.mxu0 0
    %657 = vmatpush1.bf16.msra.mxu0 0
    %658 = vmatprep.subr.bf16.mxu0 0
    %659 = vmatpush1.bf16.msra.mxu0 0
    %660 = vmatprep.subr.bf16.mxu0 0
    %661 = vmatpush1.bf16.msra.mxu0 0
    %662 = vmatprep.subr.bf16.mxu0 0
    %663 = vmatpush1.bf16.msra.mxu0 0
    %664 = vmatprep.subr.bf16.mxu0 0
    %665 = vmatpush1.bf16.msra.mxu0 %v648
    %666 = vmatprep.subr.bf16.mxu0 0
    %667 = vmatpush2.bf16.msra.mxu0 0
    %668 = vmatprep.subr.bf16.mxu0 0
    %669 = vmatpush2.bf16.msra.mxu0 0
    %670 = vmatprep.subr.bf16.mxu0 0
    %671 = vmatpush2.bf16.msra.mxu0 0
    %672 = vmatprep.subr.bf16.mxu0 0
    %673 = vmatpush2.bf16.msra.mxu0 0
    %674 = vmatprep.subr.bf16.mxu0 0
    %675 = vmatpush2.bf16.msra.mxu0 0
    %676 = vmatprep.subr.bf16.mxu0 0
    %677 = vmatpush2.bf16.msra.mxu0 0
    %678 = vmatprep.subr.bf16.mxu0 0
    %679 = vmatpush2.bf16.msra.mxu0 0
    %680 = vmatprep.subr.bf16.mxu0 0
    %681 = vmatpush2.bf16.msra.mxu0 0
    %682 = vmatprep.mubr.bf16.mxu0 0
    %683 = vmatmul.mubr.bf16.gmra.mxu0 %v645
    %v684 = vpop.f32.mrf.mxu0
    %v685 = vadd.f32 0.0, %v684
    %v686 = vpop.f32.mrf.mxu0
    %v687 = vpop.f32.mrf.mxu0
    %v688 = vadd.f32 0.0, %v687
    %v689 = vpop.f32.mrf.mxu0
    %690 = vdwg.mxu0
    %v691 = vadd.f32 %v636, %v685
    %v692 = vadd.f32 %v637, %v688
    %694 = vset.pattern.permute.xlu0 0
    %695 = vperm.xlu0 %694, %v132
    %v696 = vpop.permute.xlu0 %695
    %v698 = vmul.bf16 %v696, %v257
    %v700 = vsel %vm264, %v698, 0
    %v703 = vsel %vm268, %v102, 0
    %705 = vmatprep.subr.bf16.mxu0 0
    %706 = vmatpush1.bf16.msra.mxu0 0
    %707 = vmatprep.subr.bf16.mxu0 0
    %708 = vmatpush1.bf16.msra.mxu0 0
    %709 = vmatprep.subr.bf16.mxu0 0
    %710 = vmatpush1.bf16.msra.mxu0 0
    %711 = vmatprep.subr.bf16.mxu0 0
    %712 = vmatpush1.bf16.msra.mxu0 0
    %713 = vmatprep.subr.bf16.mxu0 0
    %714 = vmatpush1.bf16.msra.mxu0 0
    %715 = vmatprep.subr.bf16.mxu0 0
    %716 = vmatpush1.bf16.msra.mxu0 0
    %717 = vmatprep.subr.bf16.mxu0 0
    %718 = vmatpush1.bf16.msra.mxu0 0
    %719 = vmatprep.subr.bf16.mxu0 0
    %720 = vmatpush1.bf16.msra.mxu0 %v703
    %721 = vmatprep.subr.bf16.mxu0 0
    %722 = vmatpush2.bf16.msra.mxu0 0
    %723 = vmatprep.subr.bf16.mxu0 0
    %724 = vmatpush2.bf16.msra.mxu0 0
    %725 = vmatprep.subr.bf16.mxu0 0
    %726 = vmatpush2.bf16.msra.mxu0 0
    %727 = vmatprep.subr.bf16.mxu0 0
    %728 = vmatpush2.bf16.msra.mxu0 0
    %729 = vmatprep.subr.bf16.mxu0 0
    %730 = vmatpush2.bf16.msra.mxu0 0
    %731 = vmatprep.subr.bf16.mxu0 0
    %732 = vmatpush2.bf16.msra.mxu0 0
    %733 = vmatprep.subr.bf16.mxu0 0
    %734 = vmatpush2.bf16.msra.mxu0 0
    %735 = vmatprep.subr.bf16.mxu0 0
    %736 = vmatpush2.bf16.msra.mxu0 0
    %737 = vmatprep.mubr.bf16.mxu0 0
    %738 = vmatmul.mubr.bf16.gmra.mxu0 %v700
    %v739 = vpop.f32.mrf.mxu0
    %v740 = vadd.f32 0.0, %v739
    %v741 = vpop.f32.mrf.mxu0
    %v742 = vpop.f32.mrf.mxu0
    %v743 = vadd.f32 0.0, %v742
    %v744 = vpop.f32.mrf.mxu0
    %745 = vdwg.mxu0
    %v746 = vadd.f32 %v691, %v740
    %v747 = vadd.f32 %v692, %v743
    %vm748 = vcmask 130048
    %v749 = vsel %vm748, %v746, -inf
    %750 = vmax.xlane.f32.xlu0 %v749
    %v751 = vpop.xlane.xlu0 %750
    %v752 = vsel %vm748, %v747, -inf
    %753 = vmax.xlane.f32.xlu0 %v752
    %v754 = vpop.xlane.xlu0 %753
    %v755 = vsub.f32 %v746, %v751
    %v756 = vsub.f32 %v747, %v754
    %v757 = vmul.f32 %v755, 1.442695
    %v758 = vpow.pop %v757
    %v759 = vmul.f32 %v756, 1.442695
    %v760 = vpow.pop %v759
    %v761 = vsel %vm748, %v758, 0.0
    %762 = vadd.xlane.f32.xlu0 %v761
    %v763 = vpop.xlane.xlu0 %762
    %v764 = vsel %vm748, %v760, 0.0
    %765 = vadd.xlane.f32.xlu0 %v764
    %v766 = vpop.xlane.xlu0 %765
    %v767 = vrcp.pop %v763
    %v768 = vmul.f32 %v758, %v767
    %v769 = vrcp.pop %v766
    %v770 = vmul.f32 %v760, %v769
    %v771 = vpack.c.bf16 %v770, %v768
    %772 = vrot.lane.b32.xlu0 %v257, 64
    %v773 = vpop.permute.xlu0 %772
    %v776 = vsel %vm748, %v771, 0
    %778 = vmatprep.subr.bf16.mxu0 0
    %779 = vmatpush1.bf16.msra.mxu0 0
    %780 = vmatprep.subr.bf16.mxu0 0
    %781 = vmatpush1.bf16.msra.mxu0 0
    %782 = vmatprep.subr.bf16.mxu0 0
    %783 = vmatpush1.bf16.msra.mxu0 0
    %784 = vmatprep.subr.bf16.mxu0 0
    %785 = vmatpush1.bf16.msra.mxu0 0
    %786 = vmatprep.subr.bf16.mxu0 0
    %787 = vmatpush1.bf16.msra.mxu0 0
    %788 = vmatprep.subr.bf16.mxu0 0
    %789 = vmatpush1.bf16.msra.mxu0 0
    %790 = vmatprep.subr.bf16.mxu0 0
    %791 = vmatpush1.bf16.msra.mxu0 0
    %792 = vmatprep.subr.bf16.mxu0 0
    %793 = vmatpush1.bf16.msra.mxu0 %v773
    %794 = vmatprep.subr.bf16.mxu0 0
    %795 = vmatpush2.bf16.msra.mxu0 0
    %796 = vmatprep.subr.bf16.mxu0 0
    %797 = vmatpush2.bf16.msra.mxu0 0
    %798 = vmatprep.subr.bf16.mxu0 0
    %799 = vmatpush2.bf16.msra.mxu0 0
    %800 = vmatprep.subr.bf16.mxu0 0
    %801 = vmatpush2.bf16.msra.mxu0 0
    %802 = vmatprep.subr.bf16.mxu0 0
    %803 = vmatpush2.bf16.msra.mxu0 0
    %804 = vmatprep.subr.bf16.mxu0 0
    %805 = vmatpush2.bf16.msra.mxu0 0
    %806 = vmatprep.subr.bf16.mxu0 0
    %807 = vmatpush2.bf16.msra.mxu0 0
    %808 = vmatprep.subr.bf16.mxu0 0
    %809 = vmatpush2.bf16.msra.mxu0 0
    %810 = vmatprep.mubr.bf16.mxu0 0
    %811 = vmatmul.mubr.bf16.gmra.mxu0 %v776
    %v812 = vpop.f32.mrf.mxu0
    %v813 = vadd.f32 0.0, %v812
    %v814 = vpop.f32.mrf.mxu0
    %v815 = vpop.f32.mrf.mxu0
    %v816 = vadd.f32 0.0, %v815
    %v817 = vpop.f32.mrf.mxu0
    %818 = vdwg.mxu0
    %v819 = vpack.c.bf16 %v816, %v813
    %821 = vrot.lane.b32.xlu0 %v263, 120
    %v822 = vpop.permute.xlu0 %821
    %v824 = vsel %vm264, %v822, 0
    %826 = vmatprep.subr.bf16.mxu0 0
    %827 = vmatpush1.bf16.msra.mxu0 0
    %828 = vmatprep.subr.bf16.mxu0 0
    %829 = vmatpush1.bf16.msra.mxu0 0
    %830 = vmatprep.subr.bf16.mxu0 0
    %831 = vmatpush1.bf16.msra.mxu0 0
    %832 = vmatprep.subr.bf16.mxu0 0
    %833 = vmatpush1.bf16.msra.mxu0 0
    %834 = vmatprep.subr.bf16.mxu0 0
    %835 = vmatpush1.bf16.msra.mxu0 0
    %836 = vmatprep.subr.bf16.mxu0 0
    %837 = vmatpush1.bf16.msra.mxu0 0
    %838 = vmatprep.subr.bf16.mxu0 0
    %839 = vmatpush1.bf16.msra.mxu0 0
    %840 = vmatprep.subr.bf16.mxu0 0
    %841 = vmatpush1.bf16.msra.mxu0 %v270
    %842 = vmatprep.subr.bf16.mxu0 0
    %843 = vmatpush2.bf16.msra.mxu0 0
    %844 = vmatprep.subr.bf16.mxu0 0
    %845 = vmatpush2.bf16.msra.mxu0 0
    %846 = vmatprep.subr.bf16.mxu0 0
    %847 = vmatpush2.bf16.msra.mxu0 0
    %848 = vmatprep.subr.bf16.mxu0 0
    %849 = vmatpush2.bf16.msra.mxu0 0
    %850 = vmatprep.subr.bf16.mxu0 0
    %851 = vmatpush2.bf16.msra.mxu0 0
    %852 = vmatprep.subr.bf16.mxu0 0
    %853 = vmatpush2.bf16.msra.mxu0 0
    %854 = vmatprep.subr.bf16.mxu0 0
    %855 = vmatpush2.bf16.msra.mxu0 0
    %856 = vmatprep.subr.bf16.mxu0 0
    %857 = vmatpush2.bf16.msra.mxu0 0
    %858 = vmatprep.mubr.bf16.mxu0 0
    %859 = vmatmul.mubr.bf16.gmra.mxu0 %v824
    %v860 = vpop.f32.mrf.mxu0
    %v861 = vadd.f32 0.0, %v860
    %v862 = vpop.f32.mrf.mxu0
    %v863 = vpop.f32.mrf.mxu0
    %v864 = vadd.f32 0.0, %v863
    %v865 = vpop.f32.mrf.mxu0
    %866 = vdwg.mxu0
    %867 = vrot.lane.b32.xlu0 %v257, 120
    %v868 = vpop.permute.xlu0 %867
    %869 = vrot.lane.b32.xlu0 %v257, 88
    %v870 = vpop.permute.xlu0 %869
    %v872 = vsel %vm264, %v868, 0
    %v875 = vsel %vm264, %v870, 0
    %877 = vmatprep.subr.bf16.mxu0 0
    %878 = vmatpush1.bf16.xpose.msra.mxu0 0
    %879 = vmatprep.subr.bf16.mxu0 0
    %880 = vmatpush1.bf16.xpose.msra.mxu0 0
    %881 = vmatprep.subr.bf16.mxu0 0
    %882 = vmatpush1.bf16.xpose.msra.mxu0 0
    %883 = vmatprep.subr.bf16.mxu0 0
    %884 = vmatpush1.bf16.xpose.msra.mxu0 0
    %885 = vmatprep.subr.bf16.mxu0 0
    %886 = vmatpush1.bf16.xpose.msra.mxu0 0
    %887 = vmatprep.subr.bf16.mxu0 0
    %888 = vmatpush1.bf16.xpose.msra.mxu0 0
    %889 = vmatprep.subr.bf16.mxu0 0
    %890 = vmatpush1.bf16.xpose.msra.mxu0 0
    %891 = vmatprep.subr.bf16.mxu0 0
    %892 = vmatpush1.bf16.xpose.msra.mxu0 %v875
    %893 = vmatprep.subr.bf16.mxu0 0
    %894 = vmatpush2.bf16.xpose.msra.mxu0 0
    %895 = vmatprep.subr.bf16.mxu0 0
    %896 = vmatpush2.bf16.xpose.msra.mxu0 0
    %897 = vmatprep.subr.bf16.mxu0 0
    %898 = vmatpush2.bf16.xpose.msra.mxu0 0
    %899 = vmatprep.subr.bf16.mxu0 0
    %900 = vmatpush2.bf16.xpose.msra.mxu0 0
    %901 = vmatprep.subr.bf16.mxu0 0
    %902 = vmatpush2.bf16.xpose.msra.mxu0 0
    %903 = vmatprep.subr.bf16.mxu0 0
    %904 = vmatpush2.bf16.xpose.msra.mxu0 0
    %905 = vmatprep.subr.bf16.mxu0 0
    %906 = vmatpush2.bf16.xpose.msra.mxu0 0
    %907 = vmatprep.subr.bf16.mxu0 0
    %908 = vmatpush2.bf16.xpose.msra.mxu0 0
    %909 = vmatprep.mubr.bf16.mxu0 0
    %910 = vmatmul.mubr.bf16.gmra.mxu0 %v872
    %v911 = vpop.f32.mrf.mxu0
    %v912 = vadd.f32 %v861, %v911
    %v913 = vpop.f32.mrf.mxu0
    %v914 = vpop.f32.mrf.mxu0
    %v915 = vadd.f32 %v864, %v914
    %v916 = vpop.f32.mrf.mxu0
    %917 = vdwg.mxu0
    %919 = vrot.lane.b32.xlu0 %v368, 120
    %v920 = vpop.permute.xlu0 %919
    %v922 = vsel %vm264, %v920, 0
    %924 = vmatprep.subr.bf16.mxu0 0
    %925 = vmatpush1.bf16.msra.mxu0 0
    %926 = vmatprep.subr.bf16.mxu0 0
    %927 = vmatpush1.bf16.msra.mxu0 0
    %928 = vmatprep.subr.bf16.mxu0 0
    %929 = vmatpush1.bf16.msra.mxu0 0
    %930 = vmatprep.subr.bf16.mxu0 0
    %931 = vmatpush1.bf16.msra.mxu0 0
    %932 = vmatprep.subr.bf16.mxu0 0
    %933 = vmatpush1.bf16.msra.mxu0 0
    %934 = vmatprep.subr.bf16.mxu0 0
    %935 = vmatpush1.bf16.msra.mxu0 0
    %936 = vmatprep.subr.bf16.mxu0 0
    %937 = vmatpush1.bf16.msra.mxu0 0
    %938 = vmatprep.subr.bf16.mxu0 0
    %939 = vmatpush1.bf16.msra.mxu0 %v373
    %940 = vmatprep.subr.bf16.mxu0 0
    %941 = vmatpush2.bf16.msra.mxu0 0
    %942 = vmatprep.subr.bf16.mxu0 0
    %943 = vmatpush2.bf16.msra.mxu0 0
    %944 = vmatprep.subr.bf16.mxu0 0
    %945 = vmatpush2.bf16.msra.mxu0 0
    %946 = vmatprep.subr.bf16.mxu0 0
    %947 = vmatpush2.bf16.msra.mxu0 0
    %948 = vmatprep.subr.bf16.mxu0 0
    %949 = vmatpush2.bf16.msra.mxu0 0
    %950 = vmatprep.subr.bf16.mxu0 0
    %951 = vmatpush2.bf16.msra.mxu0 0
    %952 = vmatprep.subr.bf16.mxu0 0
    %953 = vmatpush2.bf16.msra.mxu0 0
    %954 = vmatprep.subr.bf16.mxu0 0
    %955 = vmatpush2.bf16.msra.mxu0 0
    %956 = vmatprep.mubr.bf16.mxu0 0
    %957 = vmatmul.mubr.bf16.gmra.mxu0 %v922
    %v958 = vpop.f32.mrf.mxu0
    %v959 = vadd.f32 0.0, %v958
    %v960 = vpop.f32.mrf.mxu0
    %v961 = vpop.f32.mrf.mxu0
    %v962 = vadd.f32 0.0, %v961
    %v963 = vpop.f32.mrf.mxu0
    %964 = vdwg.mxu0
    %v965 = vadd.f32 %v912, %v959
    %v966 = vadd.f32 %v915, %v962
    %968 = vrot.lane.b32.xlu0 %v423, 120
    %v969 = vpop.permute.xlu0 %968
    %v971 = vsel %vm264, %v969, 0
    %973 = vmatprep.subr.bf16.mxu0 0
    %974 = vmatpush1.bf16.msra.mxu0 0
    %975 = vmatprep.subr.bf16.mxu0 0
    %976 = vmatpush1.bf16.msra.mxu0 0
    %977 = vmatprep.subr.bf16.mxu0 0
    %978 = vmatpush1.bf16.msra.mxu0 0
    %979 = vmatprep.subr.bf16.mxu0 0
    %980 = vmatpush1.bf16.msra.mxu0 0
    %981 = vmatprep.subr.bf16.mxu0 0
    %982 = vmatpush1.bf16.msra.mxu0 0
    %983 = vmatprep.subr.bf16.mxu0 0
    %984 = vmatpush1.bf16.msra.mxu0 0
    %985 = vmatprep.subr.bf16.mxu0 0
    %986 = vmatpush1.bf16.msra.mxu0 0
    %987 = vmatprep.subr.bf16.mxu0 0
    %988 = vmatpush1.bf16.msra.mxu0 %v428
    %989 = vmatprep.subr.bf16.mxu0 0
    %990 = vmatpush2.bf16.msra.mxu0 0
    %991 = vmatprep.subr.bf16.mxu0 0
    %992 = vmatpush2.bf16.msra.mxu0 0
    %993 = vmatprep.subr.bf16.mxu0 0
    %994 = vmatpush2.bf16.msra.mxu0 0
    %995 = vmatprep.subr.bf16.mxu0 0
    %996 = vmatpush2.bf16.msra.mxu0 0
    %997 = vmatprep.subr.bf16.mxu0 0
    %998 = vmatpush2.bf16.msra.mxu0 0
    %999 = vmatprep.subr.bf16.mxu0 0
    %1000 = vmatpush2.bf16.msra.mxu0 0
    %1001 = vmatprep.subr.bf16.mxu0 0
    %1002 = vmatpush2.bf16.msra.mxu0 0
    %1003 = vmatprep.subr.bf16.mxu0 0
    %1004 = vmatpush2.bf16.msra.mxu0 0
    %1005 = vmatprep.mubr.bf16.mxu0 0
    %1006 = vmatmul.mubr.bf16.gmra.mxu0 %v971
    %v1007 = vpop.f32.mrf.mxu0
    %v1008 = vadd.f32 0.0, %v1007
    %v1009 = vpop.f32.mrf.mxu0
    %v1010 = vpop.f32.mrf.mxu0
    %v1011 = vadd.f32 0.0, %v1010
    %v1012 = vpop.f32.mrf.mxu0
    %1013 = vdwg.mxu0
    %v1014 = vadd.f32 %v965, %v1008
    %v1015 = vadd.f32 %v966, %v1011
    %1017 = vrot.lane.b32.xlu0 %v478, 120
    %v1018 = vpop.permute.xlu0 %1017
    %v1020 = vsel %vm264, %v1018, 0
    %1022 = vmatprep.subr.bf16.mxu0 0
    %1023 = vmatpush1.bf16.msra.mxu0 0
    %1024 = vmatprep.subr.bf16.mxu0 0
    %1025 = vmatpush1.bf16.msra.mxu0 0
    %1026 = vmatprep.subr.bf16.mxu0 0
    %1027 = vmatpush1.bf16.msra.mxu0 0
    %1028 = vmatprep.subr.bf16.mxu0 0
    %1029 = vmatpush1.bf16.msra.mxu0 0
    %1030 = vmatprep.subr.bf16.mxu0 0
    %1031 = vmatpush1.bf16.msra.mxu0 0
    %1032 = vmatprep.subr.bf16.mxu0 0
    %1033 = vmatpush1.bf16.msra.mxu0 0
    %1034 = vmatprep.subr.bf16.mxu0 0
    %1035 = vmatpush1.bf16.msra.mxu0 0
    %1036 = vmatprep.subr.bf16.mxu0 0
    %1037 = vmatpush1.bf16.msra.mxu0 %v483
    %1038 = vmatprep.subr.bf16.mxu0 0
    %1039 = vmatpush2.bf16.msra.mxu0 0
    %1040 = vmatprep.subr.bf16.mxu0 0
    %1041 = vmatpush2.bf16.msra.mxu0 0
    %1042 = vmatprep.subr.bf16.mxu0 0
    %1043 = vmatpush2.bf16.msra.mxu0 0
    %1044 = vmatprep.subr.bf16.mxu0 0
    %1045 = vmatpush2.bf16.msra.mxu0 0
    %1046 = vmatprep.subr.bf16.mxu0 0
    %1047 = vmatpush2.bf16.msra.mxu0 0
    %1048 = vmatprep.subr.bf16.mxu0 0
    %1049 = vmatpush2.bf16.msra.mxu0 0
    %1050 = vmatprep.subr.bf16.mxu0 0
    %1051 = vmatpush2.bf16.msra.mxu0 0
    %1052 = vmatprep.subr.bf16.mxu0 0
    %1053 = vmatpush2.bf16.msra.mxu0 0
    %1054 = vmatprep.mubr.bf16.mxu0 0
    %1055 = vmatmul.mubr.bf16.gmra.mxu0 %v1020
    %v1056 = vpop.f32.mrf.mxu0
    %v1057 = vadd.f32 0.0, %v1056
    %v1058 = vpop.f32.mrf.mxu0
    %v1059 = vpop.f32.mrf.mxu0
    %v1060 = vadd.f32 0.0, %v1059
    %v1061 = vpop.f32.mrf.mxu0
    %1062 = vdwg.mxu0
    %v1063 = vadd.f32 %v1014, %v1057
    %v1064 = vadd.f32 %v1015, %v1060
    %1066 = vrot.lane.b32.xlu0 %v533, 120
    %v1067 = vpop.permute.xlu0 %1066
    %v1069 = vsel %vm264, %v1067, 0
    %1071 = vmatprep.subr.bf16.mxu0 0
    %1072 = vmatpush1.bf16.msra.mxu0 0
    %1073 = vmatprep.subr.bf16.mxu0 0
    %1074 = vmatpush1.bf16.msra.mxu0 0
    %1075 = vmatprep.subr.bf16.mxu0 0
    %1076 = vmatpush1.bf16.msra.mxu0 0
    %1077 = vmatprep.subr.bf16.mxu0 0
    %1078 = vmatpush1.bf16.msra.mxu0 0
    %1079 = vmatprep.subr.bf16.mxu0 0
    %1080 = vmatpush1.bf16.msra.mxu0 0
    %1081 = vmatprep.subr.bf16.mxu0 0
    %1082 = vmatpush1.bf16.msra.mxu0 0
    %1083 = vmatprep.subr.bf16.mxu0 0
    %1084 = vmatpush1.bf16.msra.mxu0 0
    %1085 = vmatprep.subr.bf16.mxu0 0
    %1086 = vmatpush1.bf16.msra.mxu0 %v538
    %1087 = vmatprep.subr.bf16.mxu0 0
    %1088 = vmatpush2.bf16.msra.mxu0 0
    %1089 = vmatprep.subr.bf16.mxu0 0
    %1090 = vmatpush2.bf16.msra.mxu0 0
    %1091 = vmatprep.subr.bf16.mxu0 0
    %1092 = vmatpush2.bf16.msra.mxu0 0
    %1093 = vmatprep.subr.bf16.mxu0 0
    %1094 = vmatpush2.bf16.msra.mxu0 0
    %1095 = vmatprep.subr.bf16.mxu0 0
    %1096 = vmatpush2.bf16.msra.mxu0 0
    %1097 = vmatprep.subr.bf16.mxu0 0
    %1098 = vmatpush2.bf16.msra.mxu0 0
    %1099 = vmatprep.subr.bf16.mxu0 0
    %1100 = vmatpush2.bf16.msra.mxu0 0
    %1101 = vmatprep.subr.bf16.mxu0 0
    %1102 = vmatpush2.bf16.msra.mxu0 0
    %1103 = vmatprep.mubr.bf16.mxu0 0
    %1104 = vmatmul.mubr.bf16.gmra.mxu0 %v1069
    %v1105 = vpop.f32.mrf.mxu0
    %v1106 = vadd.f32 0.0, %v1105
    %v1107 = vpop.f32.mrf.mxu0
    %v1108 = vpop.f32.mrf.mxu0
    %v1109 = vadd.f32 0.0, %v1108
    %v1110 = vpop.f32.mrf.mxu0
    %1111 = vdwg.mxu0
    %v1112 = vadd.f32 %v1063, %v1106
    %v1113 = vadd.f32 %v1064, %v1109
    %1115 = vrot.lane.b32.xlu0 %v588, 120
    %v1116 = vpop.permute.xlu0 %1115
    %v1118 = vsel %vm264, %v1116, 0
    %1120 = vmatprep.subr.bf16.mxu0 0
    %1121 = vmatpush1.bf16.msra.mxu0 0
    %1122 = vmatprep.subr.bf16.mxu0 0
    %1123 = vmatpush1.bf16.msra.mxu0 0
    %1124 = vmatprep.subr.bf16.mxu0 0
    %1125 = vmatpush1.bf16.msra.mxu0 0
    %1126 = vmatprep.subr.bf16.mxu0 0
    %1127 = vmatpush1.bf16.msra.mxu0 0
    %1128 = vmatprep.subr.bf16.mxu0 0
    %1129 = vmatpush1.bf16.msra.mxu0 0
    %1130 = vmatprep.subr.bf16.mxu0 0
    %1131 = vmatpush1.bf16.msra.mxu0 0
    %1132 = vmatprep.subr.bf16.mxu0 0
    %1133 = vmatpush1.bf16.msra.mxu0 0
    %1134 = vmatprep.subr.bf16.mxu0 0
    %1135 = vmatpush1.bf16.msra.mxu0 %v593
    %1136 = vmatprep.subr.bf16.mxu0 0
    %1137 = vmatpush2.bf16.msra.mxu0 0
    %1138 = vmatprep.subr.bf16.mxu0 0
    %1139 = vmatpush2.bf16.msra.mxu0 0
    %1140 = vmatprep.subr.bf16.mxu0 0
    %1141 = vmatpush2.bf16.msra.mxu0 0
    %1142 = vmatprep.subr.bf16.mxu0 0
    %1143 = vmatpush2.bf16.msra.mxu0 0
    %1144 = vmatprep.subr.bf16.mxu0 0
    %1145 = vmatpush2.bf16.msra.mxu0 0
    %1146 = vmatprep.subr.bf16.mxu0 0
    %1147 = vmatpush2.bf16.msra.mxu0 0
    %1148 = vmatprep.subr.bf16.mxu0 0
    %1149 = vmatpush2.bf16.msra.mxu0 0
    %1150 = vmatprep.subr.bf16.mxu0 0
    %1151 = vmatpush2.bf16.msra.mxu0 0
    %1152 = vmatprep.mubr.bf16.mxu0 0
    %1153 = vmatmul.mubr.bf16.gmra.mxu0 %v1118
    %v1154 = vpop.f32.mrf.mxu0
    %v1155 = vadd.f32 0.0, %v1154
    %v1156 = vpop.f32.mrf.mxu0
    %v1157 = vpop.f32.mrf.mxu0
    %v1158 = vadd.f32 0.0, %v1157
    %v1159 = vpop.f32.mrf.mxu0
    %1160 = vdwg.mxu0
    %v1161 = vadd.f32 %v1112, %v1155
    %v1162 = vadd.f32 %v1113, %v1158
    %1164 = vrot.lane.b32.xlu0 %v643, 120
    %v1165 = vpop.permute.xlu0 %1164
    %v1167 = vsel %vm264, %v1165, 0
    %1169 = vmatprep.subr.bf16.mxu0 0
    %1170 = vmatpush1.bf16.msra.mxu0 0
    %1171 = vmatprep.subr.bf16.mxu0 0
    %1172 = vmatpush1.bf16.msra.mxu0 0
    %1173 = vmatprep.subr.bf16.mxu0 0
    %1174 = vmatpush1.bf16.msra.mxu0 0
    %1175 = vmatprep.subr.bf16.mxu0 0
    %1176 = vmatpush1.bf16.msra.mxu0 0
    %1177 = vmatprep.subr.bf16.mxu0 0
    %1178 = vmatpush1.bf16.msra.mxu0 0
    %1179 = vmatprep.subr.bf16.mxu0 0
    %1180 = vmatpush1.bf16.msra.mxu0 0
    %1181 = vmatprep.subr.bf16.mxu0 0
    %1182 = vmatpush1.bf16.msra.mxu0 0
    %1183 = vmatprep.subr.bf16.mxu0 0
    %1184 = vmatpush1.bf16.msra.mxu0 %v648
    %1185 = vmatprep.subr.bf16.mxu0 0
    %1186 = vmatpush2.bf16.msra.mxu0 0
    %1187 = vmatprep.subr.bf16.mxu0 0
    %1188 = vmatpush2.bf16.msra.mxu0 0
    %1189 = vmatprep.subr.bf16.mxu0 0
    %1190 = vmatpush2.bf16.msra.mxu0 0
    %1191 = vmatprep.subr.bf16.mxu0 0
    %1192 = vmatpush2.bf16.msra.mxu0 0
    %1193 = vmatprep.subr.bf16.mxu0 0
    %1194 = vmatpush2.bf16.msra.mxu0 0
    %1195 = vmatprep.subr.bf16.mxu0 0
    %1196 = vmatpush2.bf16.msra.mxu0 0
    %1197 = vmatprep.subr.bf16.mxu0 0
    %1198 = vmatpush2.bf16.msra.mxu0 0
    %1199 = vmatprep.subr.bf16.mxu0 0
    %1200 = vmatpush2.bf16.msra.mxu0 0
    %1201 = vmatprep.mubr.bf16.mxu0 0
    %1202 = vmatmul.mubr.bf16.gmra.mxu0 %v1167
    %v1203 = vpop.f32.mrf.mxu0
    %v1204 = vadd.f32 0.0, %v1203
    %v1205 = vpop.f32.mrf.mxu0
    %v1206 = vpop.f32.mrf.mxu0
    %v1207 = vadd.f32 0.0, %v1206
    %v1208 = vpop.f32.mrf.mxu0
    %1209 = vdwg.mxu0
    %v1210 = vadd.f32 %v1161, %v1204
    %v1211 = vadd.f32 %v1162, %v1207
    %1213 = vrot.lane.b32.xlu0 %v698, 120
    %v1214 = vpop.permute.xlu0 %1213
    %v1216 = vsel %vm264, %v1214, 0
    %1218 = vmatprep.subr.bf16.mxu0 0
    %1219 = vmatpush1.bf16.msra.mxu0 0
    %1220 = vmatprep.subr.bf16.mxu0 0
    %1221 = vmatpush1.bf16.msra.mxu0 0
    %1222 = vmatprep.subr.bf16.mxu0 0
    %1223 = vmatpush1.bf16.msra.mxu0 0
    %1224 = vmatprep.subr.bf16.mxu0 0
    %1225 = vmatpush1.bf16.msra.mxu0 0
    %1226 = vmatprep.subr.bf16.mxu0 0
    %1227 = vmatpush1.bf16.msra.mxu0 0
    %1228 = vmatprep.subr.bf16.mxu0 0
    %1229 = vmatpush1.bf16.msra.mxu0 0
    %1230 = vmatprep.subr.bf16.mxu0 0
    %1231 = vmatpush1.bf16.msra.mxu0 0
    %1232 = vmatprep.subr.bf16.mxu0 0
    %1233 = vmatpush1.bf16.msra.mxu0 %v703
    %1234 = vmatprep.subr.bf16.mxu0 0
    %1235 = vmatpush2.bf16.msra.mxu0 0
    %1236 = vmatprep.subr.bf16.mxu0 0
    %1237 = vmatpush2.bf16.msra.mxu0 0
    %1238 = vmatprep.subr.bf16.mxu0 0
    %1239 = vmatpush2.bf16.msra.mxu0 0
    %1240 = vmatprep.subr.bf16.mxu0 0
    %1241 = vmatpush2.bf16.msra.mxu0 0
    %1242 = vmatprep.subr.bf16.mxu0 0
    %1243 = vmatpush2.bf16.msra.mxu0 0
    %1244 = vmatprep.subr.bf16.mxu0 0
    %1245 = vmatpush2.bf16.msra.mxu0 0
    %1246 = vmatprep.subr.bf16.mxu0 0
    %1247 = vmatpush2.bf16.msra.mxu0 0
    %1248 = vmatprep.subr.bf16.mxu0 0
    %1249 = vmatpush2.bf16.msra.mxu0 0
    %1250 = vmatprep.mubr.bf16.mxu0 0
    %1251 = vmatmul.mubr.bf16.gmra.mxu0 %v1216
    %v1252 = vpop.f32.mrf.mxu0
    %v1253 = vadd.f32 0.0, %v1252
    %v1254 = vpop.f32.mrf.mxu0
    %v1255 = vpop.f32.mrf.mxu0
    %v1256 = vadd.f32 0.0, %v1255
    %v1257 = vpop.f32.mrf.mxu0
    %1258 = vdwg.mxu0
    %v1259 = vadd.f32 %v1210, %v1253
    %v1260 = vadd.f32 %v1211, %v1256
    %v1261 = vsel %vm748, %v1259, -inf
    %1262 = vmax.xlane.f32.xlu0 %v1261
    %v1263 = vpop.xlane.xlu0 %1262
    %v1264 = vsel %vm748, %v1260, -inf
    %1265 = vmax.xlane.f32.xlu0 %v1264
    %v1266 = vpop.xlane.xlu0 %1265
    %v1267 = vsub.f32 %v1259, %v1263
    %v1268 = vsub.f32 %v1260, %v1266
    %v1269 = vmul.f32 %v1267, 1.442695
    %v1270 = vpow.pop %v1269
    %v1271 = vmul.f32 %v1268, 1.442695
    %v1272 = vpow.pop %v1271
    %v1273 = vsel %vm748, %v1270, 0.0
    %1274 = vadd.xlane.f32.xlu0 %v1273
    %v1275 = vpop.xlane.xlu0 %1274
    %v1276 = vsel %vm748, %v1272, 0.0
    %1277 = vadd.xlane.f32.xlu0 %v1276
    %v1278 = vpop.xlane.xlu0 %1277
    %v1279 = vrcp.pop %v1275
    %v1280 = vmul.f32 %v1270, %v1279
    %v1281 = vrcp.pop %v1278
    %v1282 = vmul.f32 %v1272, %v1281
    %v1283 = vpack.c.bf16 %v1282, %v1280
    %1284 = vrot.lane.b32.xlu0 %v257, 56
    %v1285 = vpop.permute.xlu0 %1284
    %v1288 = vsel %vm748, %v1283, 0
    %1290 = vmatprep.subr.bf16.mxu0 0
    %1291 = vmatpush1.bf16.msra.mxu0 0
    %1292 = vmatprep.subr.bf16.mxu0 0
    %1293 = vmatpush1.bf16.msra.mxu0 0
    %1294 = vmatprep.subr.bf16.mxu0 0
    %1295 = vmatpush1.bf16.msra.mxu0 0
    %1296 = vmatprep.subr.bf16.mxu0 0
    %1297 = vmatpush1.bf16.msra.mxu0 0
    %1298 = vmatprep.subr.bf16.mxu0 0
    %1299 = vmatpush1.bf16.msra.mxu0 0
    %1300 = vmatprep.subr.bf16.mxu0 0
    %1301 = vmatpush1.bf16.msra.mxu0 0
    %1302 = vmatprep.subr.bf16.mxu0 0
    %1303 = vmatpush1.bf16.msra.mxu0 0
    %1304 = vmatprep.subr.bf16.mxu0 0
    %1305 = vmatpush1.bf16.msra.mxu0 %v1285
    %1306 = vmatprep.subr.bf16.mxu0 0
    %1307 = vmatpush2.bf16.msra.mxu0 0
    %1308 = vmatprep.subr.bf16.mxu0 0
    %1309 = vmatpush2.bf16.msra.mxu0 0
    %1310 = vmatprep.subr.bf16.mxu0 0
    %1311 = vmatpush2.bf16.msra.mxu0 0
    %1312 = vmatprep.subr.bf16.mxu0 0
    %1313 = vmatpush2.bf16.msra.mxu0 0
    %1314 = vmatprep.subr.bf16.mxu0 0
    %1315 = vmatpush2.bf16.msra.mxu0 0
    %1316 = vmatprep.subr.bf16.mxu0 0
    %1317 = vmatpush2.bf16.msra.mxu0 0
    %1318 = vmatprep.subr.bf16.mxu0 0
    %1319 = vmatpush2.bf16.msra.mxu0 0
    %1320 = vmatprep.subr.bf16.mxu0 0
    %1321 = vmatpush2.bf16.msra.mxu0 0
    %1322 = vmatprep.mubr.bf16.mxu0 0
    %1323 = vmatmul.mubr.bf16.gmra.mxu0 %v1288
    %v1324 = vpop.f32.mrf.mxu0
    %v1325 = vadd.f32 0.0, %v1324
    %v1326 = vpop.f32.mrf.mxu0
    %v1327 = vpop.f32.mrf.mxu0
    %v1328 = vadd.f32 0.0, %v1327
    %v1329 = vpop.f32.mrf.mxu0
    %1330 = vdwg.mxu0
    %v1331 = vpack.c.bf16 %v1328, %v1325
    %v1333 = vsel %vm264, %v1331, 0
    %v1336 = vsel %vm268, %v135, 0
    %1338 = vmatprep.subr.bf16.mxu0 0
    %1339 = vmatpush1.bf16.msra.mxu0 0
    %1340 = vmatprep.subr.bf16.mxu0 0
    %1341 = vmatpush1.bf16.msra.mxu0 0
    %1342 = vmatprep.subr.bf16.mxu0 0
    %1343 = vmatpush1.bf16.msra.mxu0 0
    %1344 = vmatprep.subr.bf16.mxu0 0
    %1345 = vmatpush1.bf16.msra.mxu0 0
    %1346 = vmatprep.subr.bf16.mxu0 0
    %1347 = vmatpush1.bf16.msra.mxu0 0
    %1348 = vmatprep.subr.bf16.mxu0 0
    %1349 = vmatpush1.bf16.msra.mxu0 0
    %1350 = vmatprep.subr.bf16.mxu0 0
    %1351 = vmatpush1.bf16.msra.mxu0 0
    %1352 = vmatprep.subr.bf16.mxu0 0
    %1353 = vmatpush1.bf16.msra.mxu0 %v1336
    %1354 = vmatprep.subr.bf16.mxu0 0
    %1355 = vmatpush2.bf16.msra.mxu0 0
    %1356 = vmatprep.subr.bf16.mxu0 0
    %1357 = vmatpush2.bf16.msra.mxu0 0
    %1358 = vmatprep.subr.bf16.mxu0 0
    %1359 = vmatpush2.bf16.msra.mxu0 0
    %1360 = vmatprep.subr.bf16.mxu0 0
    %1361 = vmatpush2.bf16.msra.mxu0 0
    %1362 = vmatprep.subr.bf16.mxu0 0
    %1363 = vmatpush2.bf16.msra.mxu0 0
    %1364 = vmatprep.subr.bf16.mxu0 0
    %1365 = vmatpush2.bf16.msra.mxu0 0
    %1366 = vmatprep.subr.bf16.mxu0 0
    %1367 = vmatpush2.bf16.msra.mxu0 0
    %1368 = vmatprep.subr.bf16.mxu0 0
    %1369 = vmatpush2.bf16.msra.mxu0 0
    %1370 = vmatprep.mubr.bf16.mxu0 0
    %1371 = vmatmul.mubr.bf16.gmra.mxu0 %v1333
    %v1372 = vpop.f32.mrf.mxu0
    %v1373 = vadd.f32 0.0, %v1372
    %v1374 = vpop.f32.mrf.mxu0
    %v1375 = vpop.f32.mrf.mxu0
    %v1376 = vadd.f32 0.0, %v1375
    %v1377 = vpop.f32.mrf.mxu0
    %1378 = vdwg.mxu0
    %v1380 = vsel %vm264, %v819, 0
    %v1383 = vsel %vm268, %v133, 0
    %1385 = vmatprep.subr.bf16.mxu0 0
    %1386 = vmatpush1.bf16.msra.mxu0 0
    %1387 = vmatprep.subr.bf16.mxu0 0
    %1388 = vmatpush1.bf16.msra.mxu0 0
    %1389 = vmatprep.subr.bf16.mxu0 0
    %1390 = vmatpush1.bf16.msra.mxu0 0
    %1391 = vmatprep.subr.bf16.mxu0 0
    %1392 = vmatpush1.bf16.msra.mxu0 0
    %1393 = vmatprep.subr.bf16.mxu0 0
    %1394 = vmatpush1.bf16.msra.mxu0 0
    %1395 = vmatprep.subr.bf16.mxu0 0
    %1396 = vmatpush1.bf16.msra.mxu0 0
    %1397 = vmatprep.subr.bf16.mxu0 0
    %1398 = vmatpush1.bf16.msra.mxu0 0
    %1399 = vmatprep.subr.bf16.mxu0 0
    %1400 = vmatpush1.bf16.msra.mxu0 %v1383
    %1401 = vmatprep.subr.bf16.mxu0 0
    %1402 = vmatpush2.bf16.msra.mxu0 0
    %1403 = vmatprep.subr.bf16.mxu0 0
    %1404 = vmatpush2.bf16.msra.mxu0 0
    %1405 = vmatprep.subr.bf16.mxu0 0
    %1406 = vmatpush2.bf16.msra.mxu0 0
    %1407 = vmatprep.subr.bf16.mxu0 0
    %1408 = vmatpush2.bf16.msra.mxu0 0
    %1409 = vmatprep.subr.bf16.mxu0 0
    %1410 = vmatpush2.bf16.msra.mxu0 0
    %1411 = vmatprep.subr.bf16.mxu0 0
    %1412 = vmatpush2.bf16.msra.mxu0 0
    %1413 = vmatprep.subr.bf16.mxu0 0
    %1414 = vmatpush2.bf16.msra.mxu0 0
    %1415 = vmatprep.subr.bf16.mxu0 0
    %1416 = vmatpush2.bf16.msra.mxu0 0
    %1417 = vmatprep.mubr.bf16.mxu0 0
    %1418 = vmatmul.mubr.bf16.gmra.mxu0 %v1380
    %v1419 = vpop.f32.mrf.mxu0
    %v1420 = vadd.f32 %v1373, %v1419
    %v1421 = vpop.f32.mrf.mxu0
    %v1422 = vpop.f32.mrf.mxu0
    %v1423 = vadd.f32 %v1376, %v1422
    %v1424 = vpop.f32.mrf.mxu0
    %1425 = vdwg.mxu0
    %1426 = vrot.lane.b32.xlu0 %v263, 112
    %v1427 = vpop.permute.xlu0 %1426
    %v1429 = vsel %vm264, %v1427, 0
    %1431 = vmatprep.subr.bf16.mxu0 0
    %1432 = vmatpush1.bf16.msra.mxu0 0
    %1433 = vmatprep.subr.bf16.mxu0 0
    %1434 = vmatpush1.bf16.msra.mxu0 0
    %1435 = vmatprep.subr.bf16.mxu0 0
    %1436 = vmatpush1.bf16.msra.mxu0 0
    %1437 = vmatprep.subr.bf16.mxu0 0
    %1438 = vmatpush1.bf16.msra.mxu0 0
    %1439 = vmatprep.subr.bf16.mxu0 0
    %1440 = vmatpush1.bf16.msra.mxu0 0
    %1441 = vmatprep.subr.bf16.mxu0 0
    %1442 = vmatpush1.bf16.msra.mxu0 0
    %1443 = vmatprep.subr.bf16.mxu0 0
    %1444 = vmatpush1.bf16.msra.mxu0 0
    %1445 = vmatprep.subr.bf16.mxu0 0
    %1446 = vmatpush1.bf16.msra.mxu0 %v270
    %1447 = vmatprep.subr.bf16.mxu0 0
    %1448 = vmatpush2.bf16.msra.mxu0 0
    %1449 = vmatprep.subr.bf16.mxu0 0
    %1450 = vmatpush2.bf16.msra.mxu0 0
    %1451 = vmatprep.subr.bf16.mxu0 0
    %1452 = vmatpush2.bf16.msra.mxu0 0
    %1453 = vmatprep.subr.bf16.mxu0 0
    %1454 = vmatpush2.bf16.msra.mxu0 0
    %1455 = vmatprep.subr.bf16.mxu0 0
    %1456 = vmatpush2.bf16.msra.mxu0 0
    %1457 = vmatprep.subr.bf16.mxu0 0
    %1458 = vmatpush2.bf16.msra.mxu0 0
    %1459 = vmatprep.subr.bf16.mxu0 0
    %1460 = vmatpush2.bf16.msra.mxu0 0
    %1461 = vmatprep.subr.bf16.mxu0 0
    %1462 = vmatpush2.bf16.msra.mxu0 0
    %1463 = vmatprep.mubr.bf16.mxu0 0
    %1464 = vmatmul.mubr.bf16.gmra.mxu0 %v1429
    %v1465 = vpop.f32.mrf.mxu0
    %v1466 = vadd.f32 0.0, %v1465
    %v1467 = vpop.f32.mrf.mxu0
    %v1468 = vpop.f32.mrf.mxu0
    %v1469 = vadd.f32 0.0, %v1468
    %v1470 = vpop.f32.mrf.mxu0
    %1471 = vdwg.mxu0
    %1472 = vrot.lane.b32.xlu0 %v257, 112
    %v1473 = vpop.permute.xlu0 %1472
    %1474 = vrot.lane.b32.xlu0 %v257, 80
    %v1475 = vpop.permute.xlu0 %1474
    %v1477 = vsel %vm264, %v1473, 0
    %v1480 = vsel %vm264, %v1475, 0
    %1482 = vmatprep.subr.bf16.mxu0 0
    %1483 = vmatpush1.bf16.xpose.msra.mxu0 0
    %1484 = vmatprep.subr.bf16.mxu0 0
    %1485 = vmatpush1.bf16.xpose.msra.mxu0 0
    %1486 = vmatprep.subr.bf16.mxu0 0
    %1487 = vmatpush1.bf16.xpose.msra.mxu0 0
    %1488 = vmatprep.subr.bf16.mxu0 0
    %1489 = vmatpush1.bf16.xpose.msra.mxu0 0
    %1490 = vmatprep.subr.bf16.mxu0 0
    %1491 = vmatpush1.bf16.xpose.msra.mxu0 0
    %1492 = vmatprep.subr.bf16.mxu0 0
    %1493 = vmatpush1.bf16.xpose.msra.mxu0 0
    %1494 = vmatprep.subr.bf16.mxu0 0
    %1495 = vmatpush1.bf16.xpose.msra.mxu0 0
    %1496 = vmatprep.subr.bf16.mxu0 0
    %1497 = vmatpush1.bf16.xpose.msra.mxu0 %v1480
    %1498 = vmatprep.subr.bf16.mxu0 0
    %1499 = vmatpush2.bf16.xpose.msra.mxu0 0
    %1500 = vmatprep.subr.bf16.mxu0 0
    %1501 = vmatpush2.bf16.xpose.msra.mxu0 0
    %1502 = vmatprep.subr.bf16.mxu0 0
    %1503 = vmatpush2.bf16.xpose.msra.mxu0 0
    %1504 = vmatprep.subr.bf16.mxu0 0
    %1505 = vmatpush2.bf16.xpose.msra.mxu0 0
    %1506 = vmatprep.subr.bf16.mxu0 0
    %1507 = vmatpush2.bf16.xpose.msra.mxu0 0
    %1508 = vmatprep.subr.bf16.mxu0 0
    %1509 = vmatpush2.bf16.xpose.msra.mxu0 0
    %1510 = vmatprep.subr.bf16.mxu0 0
    %1511 = vmatpush2.bf16.xpose.msra.mxu0 0
    %1512 = vmatprep.subr.bf16.mxu0 0
    %1513 = vmatpush2.bf16.xpose.msra.mxu0 0
    %1514 = vmatprep.mubr.bf16.mxu0 0
    %1515 = vmatmul.mubr.bf16.gmra.mxu0 %v1477
    %v1516 = vpop.f32.mrf.mxu0
    %v1517 = vadd.f32 %v1466, %v1516
    %v1518 = vpop.f32.mrf.mxu0
    %v1519 = vpop.f32.mrf.mxu0
    %v1520 = vadd.f32 %v1469, %v1519
    %v1521 = vpop.f32.mrf.mxu0
    %1522 = vdwg.mxu0
    %1523 = vrot.lane.b32.xlu0 %v368, 112
    %v1524 = vpop.permute.xlu0 %1523
    %v1526 = vsel %vm264, %v1524, 0
    %1528 = vmatprep.subr.bf16.mxu0 0
    %1529 = vmatpush1.bf16.msra.mxu0 0
    %1530 = vmatprep.subr.bf16.mxu0 0
    %1531 = vmatpush1.bf16.msra.mxu0 0
    %1532 = vmatprep.subr.bf16.mxu0 0
    %1533 = vmatpush1.bf16.msra.mxu0 0
    %1534 = vmatprep.subr.bf16.mxu0 0
    %1535 = vmatpush1.bf16.msra.mxu0 0
    %1536 = vmatprep.subr.bf16.mxu0 0
    %1537 = vmatpush1.bf16.msra.mxu0 0
    %1538 = vmatprep.subr.bf16.mxu0 0
    %1539 = vmatpush1.bf16.msra.mxu0 0
    %1540 = vmatprep.subr.bf16.mxu0 0
    %1541 = vmatpush1.bf16.msra.mxu0 0
    %1542 = vmatprep.subr.bf16.mxu0 0
    %1543 = vmatpush1.bf16.msra.mxu0 %v373
    %1544 = vmatprep.subr.bf16.mxu0 0
    %1545 = vmatpush2.bf16.msra.mxu0 0
    %1546 = vmatprep.subr.bf16.mxu0 0
    %1547 = vmatpush2.bf16.msra.mxu0 0
    %1548 = vmatprep.subr.bf16.mxu0 0
    %1549 = vmatpush2.bf16.msra.mxu0 0
    %1550 = vmatprep.subr.bf16.mxu0 0
    %1551 = vmatpush2.bf16.msra.mxu0 0
    %1552 = vmatprep.subr.bf16.mxu0 0
    %1553 = vmatpush2.bf16.msra.mxu0 0
    %1554 = vmatprep.subr.bf16.mxu0 0
    %1555 = vmatpush2.bf16.msra.mxu0 0
    %1556 = vmatprep.subr.bf16.mxu0 0
    %1557 = vmatpush2.bf16.msra.mxu0 0
    %1558 = vmatprep.subr.bf16.mxu0 0
    %1559 = vmatpush2.bf16.msra.mxu0 0
    %1560 = vmatprep.mubr.bf16.mxu0 0
    %1561 = vmatmul.mubr.bf16.gmra.mxu0 %v1526
    %v1562 = vpop.f32.mrf.mxu0
    %v1563 = vadd.f32 0.0, %v1562
    %v1564 = vpop.f32.mrf.mxu0
    %v1565 = vpop.f32.mrf.mxu0
    %v1566 = vadd.f32 0.0, %v1565
    %v1567 = vpop.f32.mrf.mxu0
    %1568 = vdwg.mxu0
    %v1569 = vadd.f32 %v1517, %v1563
    %v1570 = vadd.f32 %v1520, %v1566
    %1571 = vrot.lane.b32.xlu0 %v423, 112
    %v1572 = vpop.permute.xlu0 %1571
    %v1574 = vsel %vm264, %v1572, 0
    %1576 = vmatprep.subr.bf16.mxu0 0
    %1577 = vmatpush1.bf16.msra.mxu0 0
    %1578 = vmatprep.subr.bf16.mxu0 0
    %1579 = vmatpush1.bf16.msra.mxu0 0
    %1580 = vmatprep.subr.bf16.mxu0 0
    %1581 = vmatpush1.bf16.msra.mxu0 0
    %1582 = vmatprep.subr.bf16.mxu0 0
    %1583 = vmatpush1.bf16.msra.mxu0 0
    %1584 = vmatprep.subr.bf16.mxu0 0
    %1585 = vmatpush1.bf16.msra.mxu0 0
    %1586 = vmatprep.subr.bf16.mxu0 0
    %1587 = vmatpush1.bf16.msra.mxu0 0
    %1588 = vmatprep.subr.bf16.mxu0 0
    %1589 = vmatpush1.bf16.msra.mxu0 0
    %1590 = vmatprep.subr.bf16.mxu0 0
    %1591 = vmatpush1.bf16.msra.mxu0 %v428
    %1592 = vmatprep.subr.bf16.mxu0 0
    %1593 = vmatpush2.bf16.msra.mxu0 0
    %1594 = vmatprep.subr.bf16.mxu0 0
    %1595 = vmatpush2.bf16.msra.mxu0 0
    %1596 = vmatprep.subr.bf16.mxu0 0
    %1597 = vmatpush2.bf16.msra.mxu0 0
    %1598 = vmatprep.subr.bf16.mxu0 0
    %1599 = vmatpush2.bf16.msra.mxu0 0
    %1600 = vmatprep.subr.bf16.mxu0 0
    %1601 = vmatpush2.bf16.msra.mxu0 0
    %1602 = vmatprep.subr.bf16.mxu0 0
    %1603 = vmatpush2.bf16.msra.mxu0 0
    %1604 = vmatprep.subr.bf16.mxu0 0
    %1605 = vmatpush2.bf16.msra.mxu0 0
    %1606 = vmatprep.subr.bf16.mxu0 0
    %1607 = vmatpush2.bf16.msra.mxu0 0
    %1608 = vmatprep.mubr.bf16.mxu0 0
    %1609 = vmatmul.mubr.bf16.gmra.mxu0 %v1574
    %v1610 = vpop.f32.mrf.mxu0
    %v1611 = vadd.f32 0.0, %v1610
    %v1612 = vpop.f32.mrf.mxu0
    %v1613 = vpop.f32.mrf.mxu0
    %v1614 = vadd.f32 0.0, %v1613
    %v1615 = vpop.f32.mrf.mxu0
    %1616 = vdwg.mxu0
    %v1617 = vadd.f32 %v1569, %v1611
    %v1618 = vadd.f32 %v1570, %v1614
    %1619 = vrot.lane.b32.xlu0 %v478, 112
    %v1620 = vpop.permute.xlu0 %1619
    %v1622 = vsel %vm264, %v1620, 0
    %1624 = vmatprep.subr.bf16.mxu0 0
    %1625 = vmatpush1.bf16.msra.mxu0 0
    %1626 = vmatprep.subr.bf16.mxu0 0
    %1627 = vmatpush1.bf16.msra.mxu0 0
    %1628 = vmatprep.subr.bf16.mxu0 0
    %1629 = vmatpush1.bf16.msra.mxu0 0
    %1630 = vmatprep.subr.bf16.mxu0 0
    %1631 = vmatpush1.bf16.msra.mxu0 0
    %1632 = vmatprep.subr.bf16.mxu0 0
    %1633 = vmatpush1.bf16.msra.mxu0 0
    %1634 = vmatprep.subr.bf16.mxu0 0
    %1635 = vmatpush1.bf16.msra.mxu0 0
    %1636 = vmatprep.subr.bf16.mxu0 0
    %1637 = vmatpush1.bf16.msra.mxu0 0
    %1638 = vmatprep.subr.bf16.mxu0 0
    %1639 = vmatpush1.bf16.msra.mxu0 %v483
    %1640 = vmatprep.subr.bf16.mxu0 0
    %1641 = vmatpush2.bf16.msra.mxu0 0
    %1642 = vmatprep.subr.bf16.mxu0 0
    %1643 = vmatpush2.bf16.msra.mxu0 0
    %1644 = vmatprep.subr.bf16.mxu0 0
    %1645 = vmatpush2.bf16.msra.mxu0 0
    %1646 = vmatprep.subr.bf16.mxu0 0
    %1647 = vmatpush2.bf16.msra.mxu0 0
    %1648 = vmatprep.subr.bf16.mxu0 0
    %1649 = vmatpush2.bf16.msra.mxu0 0
    %1650 = vmatprep.subr.bf16.mxu0 0
    %1651 = vmatpush2.bf16.msra.mxu0 0
    %1652 = vmatprep.subr.bf16.mxu0 0
    %1653 = vmatpush2.bf16.msra.mxu0 0
    %1654 = vmatprep.subr.bf16.mxu0 0
    %1655 = vmatpush2.bf16.msra.mxu0 0
    %1656 = vmatprep.mubr.bf16.mxu0 0
    %1657 = vmatmul.mubr.bf16.gmra.mxu0 %v1622
    %v1658 = vpop.f32.mrf.mxu0
    %v1659 = vadd.f32 0.0, %v1658
    %v1660 = vpop.f32.mrf.mxu0
    %v1661 = vpop.f32.mrf.mxu0
    %v1662 = vadd.f32 0.0, %v1661
    %v1663 = vpop.f32.mrf.mxu0
    %1664 = vdwg.mxu0
    %v1665 = vadd.f32 %v1617, %v1659
    %v1666 = vadd.f32 %v1618, %v1662
    %1667 = vrot.lane.b32.xlu0 %v533, 112
    %v1668 = vpop.permute.xlu0 %1667
    %v1670 = vsel %vm264, %v1668, 0
    %1672 = vmatprep.subr.bf16.mxu0 0
    %1673 = vmatpush1.bf16.msra.mxu0 0
    %1674 = vmatprep.subr.bf16.mxu0 0
    %1675 = vmatpush1.bf16.msra.mxu0 0
    %1676 = vmatprep.subr.bf16.mxu0 0
    %1677 = vmatpush1.bf16.msra.mxu0 0
    %1678 = vmatprep.subr.bf16.mxu0 0
    %1679 = vmatpush1.bf16.msra.mxu0 0
    %1680 = vmatprep.subr.bf16.mxu0 0
    %1681 = vmatpush1.bf16.msra.mxu0 0
    %1682 = vmatprep.subr.bf16.mxu0 0
    %1683 = vmatpush1.bf16.msra.mxu0 0
    %1684 = vmatprep.subr.bf16.mxu0 0
    %1685 = vmatpush1.bf16.msra.mxu0 0
    %1686 = vmatprep.subr.bf16.mxu0 0
    %1687 = vmatpush1.bf16.msra.mxu0 %v538
    %1688 = vmatprep.subr.bf16.mxu0 0
    %1689 = vmatpush2.bf16.msra.mxu0 0
    %1690 = vmatprep.subr.bf16.mxu0 0
    %1691 = vmatpush2.bf16.msra.mxu0 0
    %1692 = vmatprep.subr.bf16.mxu0 0
    %1693 = vmatpush2.bf16.msra.mxu0 0
    %1694 = vmatprep.subr.bf16.mxu0 0
    %1695 = vmatpush2.bf16.msra.mxu0 0
    %1696 = vmatprep.subr.bf16.mxu0 0
    %1697 = vmatpush2.bf16.msra.mxu0 0
    %1698 = vmatprep.subr.bf16.mxu0 0
    %1699 = vmatpush2.bf16.msra.mxu0 0
    %1700 = vmatprep.subr.bf16.mxu0 0
    %1701 = vmatpush2.bf16.msra.mxu0 0
    %1702 = vmatprep.subr.bf16.mxu0 0
    %1703 = vmatpush2.bf16.msra.mxu0 0
    %1704 = vmatprep.mubr.bf16.mxu0 0
    %1705 = vmatmul.mubr.bf16.gmra.mxu0 %v1670
    %v1706 = vpop.f32.mrf.mxu0
    %v1707 = vadd.f32 0.0, %v1706
    %v1708 = vpop.f32.mrf.mxu0
    %v1709 = vpop.f32.mrf.mxu0
    %v1710 = vadd.f32 0.0, %v1709
    %v1711 = vpop.f32.mrf.mxu0
    %1712 = vdwg.mxu0
    %v1713 = vadd.f32 %v1665, %v1707
    %v1714 = vadd.f32 %v1666, %v1710
    %1715 = vrot.lane.b32.xlu0 %v588, 112
    %v1716 = vpop.permute.xlu0 %1715
    %v1718 = vsel %vm264, %v1716, 0
    %1720 = vmatprep.subr.bf16.mxu0 0
    %1721 = vmatpush1.bf16.msra.mxu0 0
    %1722 = vmatprep.subr.bf16.mxu0 0
    %1723 = vmatpush1.bf16.msra.mxu0 0
    %1724 = vmatprep.subr.bf16.mxu0 0
    %1725 = vmatpush1.bf16.msra.mxu0 0
    %1726 = vmatprep.subr.bf16.mxu0 0
    %1727 = vmatpush1.bf16.msra.mxu0 0
    %1728 = vmatprep.subr.bf16.mxu0 0
    %1729 = vmatpush1.bf16.msra.mxu0 0
    %1730 = vmatprep.subr.bf16.mxu0 0
    %1731 = vmatpush1.bf16.msra.mxu0 0
    %1732 = vmatprep.subr.bf16.mxu0 0
    %1733 = vmatpush1.bf16.msra.mxu0 0
    %1734 = vmatprep.subr.bf16.mxu0 0
    %1735 = vmatpush1.bf16.msra.mxu0 %v593
    %1736 = vmatprep.subr.bf16.mxu0 0
    %1737 = vmatpush2.bf16.msra.mxu0 0
    %1738 = vmatprep.subr.bf16.mxu0 0
    %1739 = vmatpush2.bf16.msra.mxu0 0
    %1740 = vmatprep.subr.bf16.mxu0 0
    %1741 = vmatpush2.bf16.msra.mxu0 0
    %1742 = vmatprep.subr.bf16.mxu0 0
    %1743 = vmatpush2.bf16.msra.mxu0 0
    %1744 = vmatprep.subr.bf16.mxu0 0
    %1745 = vmatpush2.bf16.msra.mxu0 0
    %1746 = vmatprep.subr.bf16.mxu0 0
    %1747 = vmatpush2.bf16.msra.mxu0 0
    %1748 = vmatprep.subr.bf16.mxu0 0
    %1749 = vmatpush2.bf16.msra.mxu0 0
    %1750 = vmatprep.subr.bf16.mxu0 0
    %1751 = vmatpush2.bf16.msra.mxu0 0
    %1752 = vmatprep.mubr.bf16.mxu0 0
    %1753 = vmatmul.mubr.bf16.gmra.mxu0 %v1718
    %v1754 = vpop.f32.mrf.mxu0
    %v1755 = vadd.f32 0.0, %v1754
    %v1756 = vpop.f32.mrf.mxu0
    %v1757 = vpop.f32.mrf.mxu0
    %v1758 = vadd.f32 0.0, %v1757
    %v1759 = vpop.f32.mrf.mxu0
    %1760 = vdwg.mxu0
    %v1761 = vadd.f32 %v1713, %v1755
    %v1762 = vadd.f32 %v1714, %v1758
    %1763 = vrot.lane.b32.xlu0 %v643, 112
    %v1764 = vpop.permute.xlu0 %1763
    %v1766 = vsel %vm264, %v1764, 0
    %1768 = vmatprep.subr.bf16.mxu0 0
    %1769 = vmatpush1.bf16.msra.mxu0 0
    %1770 = vmatprep.subr.bf16.mxu0 0
    %1771 = vmatpush1.bf16.msra.mxu0 0
    %1772 = vmatprep.subr.bf16.mxu0 0
    %1773 = vmatpush1.bf16.msra.mxu0 0
    %1774 = vmatprep.subr.bf16.mxu0 0
    %1775 = vmatpush1.bf16.msra.mxu0 0
    %1776 = vmatprep.subr.bf16.mxu0 0
    %1777 = vmatpush1.bf16.msra.mxu0 0
    %1778 = vmatprep.subr.bf16.mxu0 0
    %1779 = vmatpush1.bf16.msra.mxu0 0
    %1780 = vmatprep.subr.bf16.mxu0 0
    %1781 = vmatpush1.bf16.msra.mxu0 0
    %1782 = vmatprep.subr.bf16.mxu0 0
    %1783 = vmatpush1.bf16.msra.mxu0 %v648
    %1784 = vmatprep.subr.bf16.mxu0 0
    %1785 = vmatpush2.bf16.msra.mxu0 0
    %1786 = vmatprep.subr.bf16.mxu0 0
    %1787 = vmatpush2.bf16.msra.mxu0 0
    %1788 = vmatprep.subr.bf16.mxu0 0
    %1789 = vmatpush2.bf16.msra.mxu0 0
    %1790 = vmatprep.subr.bf16.mxu0 0
    %1791 = vmatpush2.bf16.msra.mxu0 0
    %1792 = vmatprep.subr.bf16.mxu0 0
    %1793 = vmatpush2.bf16.msra.mxu0 0
    %1794 = vmatprep.subr.bf16.mxu0 0
    %1795 = vmatpush2.bf16.msra.mxu0 0
    %1796 = vmatprep.subr.bf16.mxu0 0
    %1797 = vmatpush2.bf16.msra.mxu0 0
    %1798 = vmatprep.subr.bf16.mxu0 0
    %1799 = vmatpush2.bf16.msra.mxu0 0
    %1800 = vmatprep.mubr.bf16.mxu0 0
    %1801 = vmatmul.mubr.bf16.gmra.mxu0 %v1766
    %v1802 = vpop.f32.mrf.mxu0
    %v1803 = vadd.f32 0.0, %v1802
    %v1804 = vpop.f32.mrf.mxu0
    %v1805 = vpop.f32.mrf.mxu0
    %v1806 = vadd.f32 0.0, %v1805
    %v1807 = vpop.f32.mrf.mxu0
    %1808 = vdwg.mxu0
    %v1809 = vadd.f32 %v1761, %v1803
    %v1810 = vadd.f32 %v1762, %v1806
    %1811 = vrot.lane.b32.xlu0 %v698, 112
    %v1812 = vpop.permute.xlu0 %1811
    %v1814 = vsel %vm264, %v1812, 0
    %1816 = vmatprep.subr.bf16.mxu0 0
    %1817 = vmatpush1.bf16.msra.mxu0 0
    %1818 = vmatprep.subr.bf16.mxu0 0
    %1819 = vmatpush1.bf16.msra.mxu0 0
    %1820 = vmatprep.subr.bf16.mxu0 0
    %1821 = vmatpush1.bf16.msra.mxu0 0
    %1822 = vmatprep.subr.bf16.mxu0 0
    %1823 = vmatpush1.bf16.msra.mxu0 0
    %1824 = vmatprep.subr.bf16.mxu0 0
    %1825 = vmatpush1.bf16.msra.mxu0 0
    %1826 = vmatprep.subr.bf16.mxu0 0
    %1827 = vmatpush1.bf16.msra.mxu0 0
    %1828 = vmatprep.subr.bf16.mxu0 0
    %1829 = vmatpush1.bf16.msra.mxu0 0
    %1830 = vmatprep.subr.bf16.mxu0 0
    %1831 = vmatpush1.bf16.msra.mxu0 %v703
    %1832 = vmatprep.subr.bf16.mxu0 0
    %1833 = vmatpush2.bf16.msra.mxu0 0
    %1834 = vmatprep.subr.bf16.mxu0 0
    %1835 = vmatpush2.bf16.msra.mxu0 0
    %1836 = vmatprep.subr.bf16.mxu0 0
    %1837 = vmatpush2.bf16.msra.mxu0 0
    %1838 = vmatprep.subr.bf16.mxu0 0
    %1839 = vmatpush2.bf16.msra.mxu0 0
    %1840 = vmatprep.subr.bf16.mxu0 0
    %1841 = vmatpush2.bf16.msra.mxu0 0
    %1842 = vmatprep.subr.bf16.mxu0 0
    %1843 = vmatpush2.bf16.msra.mxu0 0
    %1844 = vmatprep.subr.bf16.mxu0 0
    %1845 = vmatpush2.bf16.msra.mxu0 0
    %1846 = vmatprep.subr.bf16.mxu0 0
    %1847 = vmatpush2.bf16.msra.mxu0 0
    %1848 = vmatprep.mubr.bf16.mxu0 0
    %1849 = vmatmul.mubr.bf16.gmra.mxu0 %v1814
    %v1850 = vpop.f32.mrf.mxu0
    %v1851 = vadd.f32 0.0, %v1850
    %v1852 = vpop.f32.mrf.mxu0
    %v1853 = vpop.f32.mrf.mxu0
    %v1854 = vadd.f32 0.0, %v1853
    %v1855 = vpop.f32.mrf.mxu0
    %1856 = vdwg.mxu0
    %v1857 = vadd.f32 %v1809, %v1851
    %v1858 = vadd.f32 %v1810, %v1854
    %v1859 = vsel %vm748, %v1857, -inf
    %1860 = vmax.xlane.f32.xlu0 %v1859
    %v1861 = vpop.xlane.xlu0 %1860
    %v1862 = vsel %vm748, %v1858, -inf
    %1863 = vmax.xlane.f32.xlu0 %v1862
    %v1864 = vpop.xlane.xlu0 %1863
    %v1865 = vsub.f32 %v1857, %v1861
    %v1866 = vsub.f32 %v1858, %v1864
    %v1867 = vmul.f32 %v1865, 1.442695
    %v1868 = vpow.pop %v1867
    %v1869 = vmul.f32 %v1866, 1.442695
    %v1870 = vpow.pop %v1869
    %v1871 = vsel %vm748, %v1868, 0.0
    %1872 = vadd.xlane.f32.xlu0 %v1871
    %v1873 = vpop.xlane.xlu0 %1872
    %v1874 = vsel %vm748, %v1870, 0.0
    %1875 = vadd.xlane.f32.xlu0 %v1874
    %v1876 = vpop.xlane.xlu0 %1875
    %v1877 = vrcp.pop %v1873
    %v1878 = vmul.f32 %v1868, %v1877
    %v1879 = vrcp.pop %v1876
    %v1880 = vmul.f32 %v1870, %v1879
    %v1881 = vpack.c.bf16 %v1880, %v1878
    %1882 = vrot.lane.b32.xlu0 %v257, 48
    %v1883 = vpop.permute.xlu0 %1882
    %v1886 = vsel %vm748, %v1881, 0
    %1888 = vmatprep.subr.bf16.mxu0 0
    %1889 = vmatpush1.bf16.msra.mxu0 0
    %1890 = vmatprep.subr.bf16.mxu0 0
    %1891 = vmatpush1.bf16.msra.mxu0 0
    %1892 = vmatprep.subr.bf16.mxu0 0
    %1893 = vmatpush1.bf16.msra.mxu0 0
    %1894 = vmatprep.subr.bf16.mxu0 0
    %1895 = vmatpush1.bf16.msra.mxu0 0
    %1896 = vmatprep.subr.bf16.mxu0 0
    %1897 = vmatpush1.bf16.msra.mxu0 0
    %1898 = vmatprep.subr.bf16.mxu0 0
    %1899 = vmatpush1.bf16.msra.mxu0 0
    %1900 = vmatprep.subr.bf16.mxu0 0
    %1901 = vmatpush1.bf16.msra.mxu0 0
    %1902 = vmatprep.subr.bf16.mxu0 0
    %1903 = vmatpush1.bf16.msra.mxu0 %v1883
    %1904 = vmatprep.subr.bf16.mxu0 0
    %1905 = vmatpush2.bf16.msra.mxu0 0
    %1906 = vmatprep.subr.bf16.mxu0 0
    %1907 = vmatpush2.bf16.msra.mxu0 0
    %1908 = vmatprep.subr.bf16.mxu0 0
    %1909 = vmatpush2.bf16.msra.mxu0 0
    %1910 = vmatprep.subr.bf16.mxu0 0
    %1911 = vmatpush2.bf16.msra.mxu0 0
    %1912 = vmatprep.subr.bf16.mxu0 0
    %1913 = vmatpush2.bf16.msra.mxu0 0
    %1914 = vmatprep.subr.bf16.mxu0 0
    %1915 = vmatpush2.bf16.msra.mxu0 0
    %1916 = vmatprep.subr.bf16.mxu0 0
    %1917 = vmatpush2.bf16.msra.mxu0 0
    %1918 = vmatprep.subr.bf16.mxu0 0
    %1919 = vmatpush2.bf16.msra.mxu0 0
    %1920 = vmatprep.mubr.bf16.mxu0 0
    %1921 = vmatmul.mubr.bf16.gmra.mxu0 %v1886
    %v1922 = vpop.f32.mrf.mxu0
    %v1923 = vadd.f32 0.0, %v1922
    %v1924 = vpop.f32.mrf.mxu0
    %v1925 = vpop.f32.mrf.mxu0
    %v1926 = vadd.f32 0.0, %v1925
    %v1927 = vpop.f32.mrf.mxu0
    %1928 = vdwg.mxu0
    %v1929 = vpack.c.bf16 %v1926, %v1923
    %v1931 = vsel %vm264, %v1929, 0
    %v1934 = vsel %vm268, %v137, 0
    %1936 = vmatprep.subr.bf16.mxu0 0
    %1937 = vmatpush1.bf16.msra.mxu0 0
    %1938 = vmatprep.subr.bf16.mxu0 0
    %1939 = vmatpush1.bf16.msra.mxu0 0
    %1940 = vmatprep.subr.bf16.mxu0 0
    %1941 = vmatpush1.bf16.msra.mxu0 0
    %1942 = vmatprep.subr.bf16.mxu0 0
    %1943 = vmatpush1.bf16.msra.mxu0 0
    %1944 = vmatprep.subr.bf16.mxu0 0
    %1945 = vmatpush1.bf16.msra.mxu0 0
    %1946 = vmatprep.subr.bf16.mxu0 0
    %1947 = vmatpush1.bf16.msra.mxu0 0
    %1948 = vmatprep.subr.bf16.mxu0 0
    %1949 = vmatpush1.bf16.msra.mxu0 0
    %1950 = vmatprep.subr.bf16.mxu0 0
    %1951 = vmatpush1.bf16.msra.mxu0 %v1934
    %1952 = vmatprep.subr.bf16.mxu0 0
    %1953 = vmatpush2.bf16.msra.mxu0 0
    %1954 = vmatprep.subr.bf16.mxu0 0
    %1955 = vmatpush2.bf16.msra.mxu0 0
    %1956 = vmatprep.subr.bf16.mxu0 0
    %1957 = vmatpush2.bf16.msra.mxu0 0
    %1958 = vmatprep.subr.bf16.mxu0 0
    %1959 = vmatpush2.bf16.msra.mxu0 0
    %1960 = vmatprep.subr.bf16.mxu0 0
    %1961 = vmatpush2.bf16.msra.mxu0 0
    %1962 = vmatprep.subr.bf16.mxu0 0
    %1963 = vmatpush2.bf16.msra.mxu0 0
    %1964 = vmatprep.subr.bf16.mxu0 0
    %1965 = vmatpush2.bf16.msra.mxu0 0
    %1966 = vmatprep.subr.bf16.mxu0 0
    %1967 = vmatpush2.bf16.msra.mxu0 0
    %1968 = vmatprep.mubr.bf16.mxu0 0
    %1969 = vmatmul.mubr.bf16.gmra.mxu0 %v1931
    %v1970 = vpop.f32.mrf.mxu0
    %v1971 = vadd.f32 0.0, %v1970
    %v1972 = vpop.f32.mrf.mxu0
    %v1973 = vpop.f32.mrf.mxu0
    %v1974 = vadd.f32 0.0, %v1973
    %v1975 = vpop.f32.mrf.mxu0
    %1976 = vdwg.mxu0
    %v1977 = vadd.f32 %v1420, %v1971
    %v1978 = vadd.f32 %v1423, %v1974
    %1979 = vrot.lane.b32.xlu0 %v263, 104
    %v1980 = vpop.permute.xlu0 %1979
    %v1982 = vsel %vm264, %v1980, 0
    %1984 = vmatprep.subr.bf16.mxu0 0
    %1985 = vmatpush1.bf16.msra.mxu0 0
    %1986 = vmatprep.subr.bf16.mxu0 0
    %1987 = vmatpush1.bf16.msra.mxu0 0
    %1988 = vmatprep.subr.bf16.mxu0 0
    %1989 = vmatpush1.bf16.msra.mxu0 0
    %1990 = vmatprep.subr.bf16.mxu0 0
    %1991 = vmatpush1.bf16.msra.mxu0 0
    %1992 = vmatprep.subr.bf16.mxu0 0
    %1993 = vmatpush1.bf16.msra.mxu0 0
    %1994 = vmatprep.subr.bf16.mxu0 0
    %1995 = vmatpush1.bf16.msra.mxu0 0
    %1996 = vmatprep.subr.bf16.mxu0 0
    %1997 = vmatpush1.bf16.msra.mxu0 0
    %1998 = vmatprep.subr.bf16.mxu0 0
    %1999 = vmatpush1.bf16.msra.mxu0 %v270
    %2000 = vmatprep.subr.bf16.mxu0 0
    %2001 = vmatpush2.bf16.msra.mxu0 0
    %2002 = vmatprep.subr.bf16.mxu0 0
    %2003 = vmatpush2.bf16.msra.mxu0 0
    %2004 = vmatprep.subr.bf16.mxu0 0
    %2005 = vmatpush2.bf16.msra.mxu0 0
    %2006 = vmatprep.subr.bf16.mxu0 0
    %2007 = vmatpush2.bf16.msra.mxu0 0
    %2008 = vmatprep.subr.bf16.mxu0 0
    %2009 = vmatpush2.bf16.msra.mxu0 0
    %2010 = vmatprep.subr.bf16.mxu0 0
    %2011 = vmatpush2.bf16.msra.mxu0 0
    %2012 = vmatprep.subr.bf16.mxu0 0
    %2013 = vmatpush2.bf16.msra.mxu0 0
    %2014 = vmatprep.subr.bf16.mxu0 0
    %2015 = vmatpush2.bf16.msra.mxu0 0
    %2016 = vmatprep.mubr.bf16.mxu0 0
    %2017 = vmatmul.mubr.bf16.gmra.mxu0 %v1982
    %v2018 = vpop.f32.mrf.mxu0
    %v2019 = vadd.f32 0.0, %v2018
    %v2020 = vpop.f32.mrf.mxu0
    %v2021 = vpop.f32.mrf.mxu0
    %v2022 = vadd.f32 0.0, %v2021
    %v2023 = vpop.f32.mrf.mxu0
    %2024 = vdwg.mxu0
    %2025 = vrot.lane.b32.xlu0 %v257, 104
    %v2026 = vpop.permute.xlu0 %2025
    %2027 = vrot.lane.b32.xlu0 %v257, 72
    %v2028 = vpop.permute.xlu0 %2027
    %v2030 = vsel %vm264, %v2026, 0
    %v2033 = vsel %vm264, %v2028, 0
    %2035 = vmatprep.subr.bf16.mxu0 0
    %2036 = vmatpush1.bf16.xpose.msra.mxu0 0
    %2037 = vmatprep.subr.bf16.mxu0 0
    %2038 = vmatpush1.bf16.xpose.msra.mxu0 0
    %2039 = vmatprep.subr.bf16.mxu0 0
    %2040 = vmatpush1.bf16.xpose.msra.mxu0 0
    %2041 = vmatprep.subr.bf16.mxu0 0
    %2042 = vmatpush1.bf16.xpose.msra.mxu0 0
    %2043 = vmatprep.subr.bf16.mxu0 0
    %2044 = vmatpush1.bf16.xpose.msra.mxu0 0
    %2045 = vmatprep.subr.bf16.mxu0 0
    %2046 = vmatpush1.bf16.xpose.msra.mxu0 0
    %2047 = vmatprep.subr.bf16.mxu0 0
    %2048 = vmatpush1.bf16.xpose.msra.mxu0 0
    %2049 = vmatprep.subr.bf16.mxu0 0
    %2050 = vmatpush1.bf16.xpose.msra.mxu0 %v2033
    %2051 = vmatprep.subr.bf16.mxu0 0
    %2052 = vmatpush2.bf16.xpose.msra.mxu0 0
    %2053 = vmatprep.subr.bf16.mxu0 0
    %2054 = vmatpush2.bf16.xpose.msra.mxu0 0
    %2055 = vmatprep.subr.bf16.mxu0 0
    %2056 = vmatpush2.bf16.xpose.msra.mxu0 0
    %2057 = vmatprep.subr.bf16.mxu0 0
    %2058 = vmatpush2.bf16.xpose.msra.mxu0 0
    %2059 = vmatprep.subr.bf16.mxu0 0
    %2060 = vmatpush2.bf16.xpose.msra.mxu0 0
    %2061 = vmatprep.subr.bf16.mxu0 0
    %2062 = vmatpush2.bf16.xpose.msra.mxu0 0
    %2063 = vmatprep.subr.bf16.mxu0 0
    %2064 = vmatpush2.bf16.xpose.msra.mxu0 0
    %2065 = vmatprep.subr.bf16.mxu0 0
    %2066 = vmatpush2.bf16.xpose.msra.mxu0 0
    %2067 = vmatprep.mubr.bf16.mxu0 0
    %2068 = vmatmul.mubr.bf16.gmra.mxu0 %v2030
    %v2069 = vpop.f32.mrf.mxu0
    %v2070 = vadd.f32 %v2019, %v2069
    %v2071 = vpop.f32.mrf.mxu0
    %v2072 = vpop.f32.mrf.mxu0
    %v2073 = vadd.f32 %v2022, %v2072
    %v2074 = vpop.f32.mrf.mxu0
    %2075 = vdwg.mxu0
    %2076 = vrot.lane.b32.xlu0 %v368, 104
    %v2077 = vpop.permute.xlu0 %2076
    %v2079 = vsel %vm264, %v2077, 0
    %2081 = vmatprep.subr.bf16.mxu0 0
    %2082 = vmatpush1.bf16.msra.mxu0 0
    %2083 = vmatprep.subr.bf16.mxu0 0
    %2084 = vmatpush1.bf16.msra.mxu0 0
    %2085 = vmatprep.subr.bf16.mxu0 0
    %2086 = vmatpush1.bf16.msra.mxu0 0
    %2087 = vmatprep.subr.bf16.mxu0 0
    %2088 = vmatpush1.bf16.msra.mxu0 0
    %2089 = vmatprep.subr.bf16.mxu0 0
    %2090 = vmatpush1.bf16.msra.mxu0 0
    %2091 = vmatprep.subr.bf16.mxu0 0
    %2092 = vmatpush1.bf16.msra.mxu0 0
    %2093 = vmatprep.subr.bf16.mxu0 0
    %2094 = vmatpush1.bf16.msra.mxu0 0
    %2095 = vmatprep.subr.bf16.mxu0 0
    %2096 = vmatpush1.bf16.msra.mxu0 %v373
    %2097 = vmatprep.subr.bf16.mxu0 0
    %2098 = vmatpush2.bf16.msra.mxu0 0
    %2099 = vmatprep.subr.bf16.mxu0 0
    %2100 = vmatpush2.bf16.msra.mxu0 0
    %2101 = vmatprep.subr.bf16.mxu0 0
    %2102 = vmatpush2.bf16.msra.mxu0 0
    %2103 = vmatprep.subr.bf16.mxu0 0
    %2104 = vmatpush2.bf16.msra.mxu0 0
    %2105 = vmatprep.subr.bf16.mxu0 0
    %2106 = vmatpush2.bf16.msra.mxu0 0
    %2107 = vmatprep.subr.bf16.mxu0 0
    %2108 = vmatpush2.bf16.msra.mxu0 0
    %2109 = vmatprep.subr.bf16.mxu0 0
    %2110 = vmatpush2.bf16.msra.mxu0 0
    %2111 = vmatprep.subr.bf16.mxu0 0
    %2112 = vmatpush2.bf16.msra.mxu0 0
    %2113 = vmatprep.mubr.bf16.mxu0 0
    %2114 = vmatmul.mubr.bf16.gmra.mxu0 %v2079
    %v2115 = vpop.f32.mrf.mxu0
    %v2116 = vadd.f32 0.0, %v2115
    %v2117 = vpop.f32.mrf.mxu0
    %v2118 = vpop.f32.mrf.mxu0
    %v2119 = vadd.f32 0.0, %v2118
    %v2120 = vpop.f32.mrf.mxu0
    %2121 = vdwg.mxu0
    %v2122 = vadd.f32 %v2070, %v2116
    %v2123 = vadd.f32 %v2073, %v2119
    %2124 = vrot.lane.b32.xlu0 %v423, 104
    %v2125 = vpop.permute.xlu0 %2124
    %v2127 = vsel %vm264, %v2125, 0
    %2129 = vmatprep.subr.bf16.mxu0 0
    %2130 = vmatpush1.bf16.msra.mxu0 0
    %2131 = vmatprep.subr.bf16.mxu0 0
    %2132 = vmatpush1.bf16.msra.mxu0 0
    %2133 = vmatprep.subr.bf16.mxu0 0
    %2134 = vmatpush1.bf16.msra.mxu0 0
    %2135 = vmatprep.subr.bf16.mxu0 0
    %2136 = vmatpush1.bf16.msra.mxu0 0
    %2137 = vmatprep.subr.bf16.mxu0 0
    %2138 = vmatpush1.bf16.msra.mxu0 0
    %2139 = vmatprep.subr.bf16.mxu0 0
    %2140 = vmatpush1.bf16.msra.mxu0 0
    %2141 = vmatprep.subr.bf16.mxu0 0
    %2142 = vmatpush1.bf16.msra.mxu0 0
    %2143 = vmatprep.subr.bf16.mxu0 0
    %2144 = vmatpush1.bf16.msra.mxu0 %v428
    %2145 = vmatprep.subr.bf16.mxu0 0
    %2146 = vmatpush2.bf16.msra.mxu0 0
    %2147 = vmatprep.subr.bf16.mxu0 0
    %2148 = vmatpush2.bf16.msra.mxu0 0
    %2149 = vmatprep.subr.bf16.mxu0 0
    %2150 = vmatpush2.bf16.msra.mxu0 0
    %2151 = vmatprep.subr.bf16.mxu0 0
    %2152 = vmatpush2.bf16.msra.mxu0 0
    %2153 = vmatprep.subr.bf16.mxu0 0
    %2154 = vmatpush2.bf16.msra.mxu0 0
    %2155 = vmatprep.subr.bf16.mxu0 0
    %2156 = vmatpush2.bf16.msra.mxu0 0
    %2157 = vmatprep.subr.bf16.mxu0 0
    %2158 = vmatpush2.bf16.msra.mxu0 0
    %2159 = vmatprep.subr.bf16.mxu0 0
    %2160 = vmatpush2.bf16.msra.mxu0 0
    %2161 = vmatprep.mubr.bf16.mxu0 0
    %2162 = vmatmul.mubr.bf16.gmra.mxu0 %v2127
    %v2163 = vpop.f32.mrf.mxu0
    %v2164 = vadd.f32 0.0, %v2163
    %v2165 = vpop.f32.mrf.mxu0
    %v2166 = vpop.f32.mrf.mxu0
    %v2167 = vadd.f32 0.0, %v2166
    %v2168 = vpop.f32.mrf.mxu0
    %2169 = vdwg.mxu0
    %v2170 = vadd.f32 %v2122, %v2164
    %v2171 = vadd.f32 %v2123, %v2167
    %2172 = vrot.lane.b32.xlu0 %v478, 104
    %v2173 = vpop.permute.xlu0 %2172
    %v2175 = vsel %vm264, %v2173, 0
    %2177 = vmatprep.subr.bf16.mxu0 0
    %2178 = vmatpush1.bf16.msra.mxu0 0
    %2179 = vmatprep.subr.bf16.mxu0 0
    %2180 = vmatpush1.bf16.msra.mxu0 0
    %2181 = vmatprep.subr.bf16.mxu0 0
    %2182 = vmatpush1.bf16.msra.mxu0 0
    %2183 = vmatprep.subr.bf16.mxu0 0
    %2184 = vmatpush1.bf16.msra.mxu0 0
    %2185 = vmatprep.subr.bf16.mxu0 0
    %2186 = vmatpush1.bf16.msra.mxu0 0
    %2187 = vmatprep.subr.bf16.mxu0 0
    %2188 = vmatpush1.bf16.msra.mxu0 0
    %2189 = vmatprep.subr.bf16.mxu0 0
    %2190 = vmatpush1.bf16.msra.mxu0 0
    %2191 = vmatprep.subr.bf16.mxu0 0
    %2192 = vmatpush1.bf16.msra.mxu0 %v483
    %2193 = vmatprep.subr.bf16.mxu0 0
    %2194 = vmatpush2.bf16.msra.mxu0 0
    %2195 = vmatprep.subr.bf16.mxu0 0
    %2196 = vmatpush2.bf16.msra.mxu0 0
    %2197 = vmatprep.subr.bf16.mxu0 0
    %2198 = vmatpush2.bf16.msra.mxu0 0
    %2199 = vmatprep.subr.bf16.mxu0 0
    %2200 = vmatpush2.bf16.msra.mxu0 0
    %2201 = vmatprep.subr.bf16.mxu0 0
    %2202 = vmatpush2.bf16.msra.mxu0 0
    %2203 = vmatprep.subr.bf16.mxu0 0
    %2204 = vmatpush2.bf16.msra.mxu0 0
    %2205 = vmatprep.subr.bf16.mxu0 0
    %2206 = vmatpush2.bf16.msra.mxu0 0
    %2207 = vmatprep.subr.bf16.mxu0 0
    %2208 = vmatpush2.bf16.msra.mxu0 0
    %2209 = vmatprep.mubr.bf16.mxu0 0
    %2210 = vmatmul.mubr.bf16.gmra.mxu0 %v2175
    %v2211 = vpop.f32.mrf.mxu0
    %v2212 = vadd.f32 0.0, %v2211
    %v2213 = vpop.f32.mrf.mxu0
    %v2214 = vpop.f32.mrf.mxu0
    %v2215 = vadd.f32 0.0, %v2214
    %v2216 = vpop.f32.mrf.mxu0
    %2217 = vdwg.mxu0
    %v2218 = vadd.f32 %v2170, %v2212
    %v2219 = vadd.f32 %v2171, %v2215
    %2220 = vrot.lane.b32.xlu0 %v533, 104
    %v2221 = vpop.permute.xlu0 %2220
    %v2223 = vsel %vm264, %v2221, 0
    %2225 = vmatprep.subr.bf16.mxu0 0
    %2226 = vmatpush1.bf16.msra.mxu0 0
    %2227 = vmatprep.subr.bf16.mxu0 0
    %2228 = vmatpush1.bf16.msra.mxu0 0
    %2229 = vmatprep.subr.bf16.mxu0 0
    %2230 = vmatpush1.bf16.msra.mxu0 0
    %2231 = vmatprep.subr.bf16.mxu0 0
    %2232 = vmatpush1.bf16.msra.mxu0 0
    %2233 = vmatprep.subr.bf16.mxu0 0
    %2234 = vmatpush1.bf16.msra.mxu0 0
    %2235 = vmatprep.subr.bf16.mxu0 0
    %2236 = vmatpush1.bf16.msra.mxu0 0
    %2237 = vmatprep.subr.bf16.mxu0 0
    %2238 = vmatpush1.bf16.msra.mxu0 0
    %2239 = vmatprep.subr.bf16.mxu0 0
    %2240 = vmatpush1.bf16.msra.mxu0 %v538
    %2241 = vmatprep.subr.bf16.mxu0 0
    %2242 = vmatpush2.bf16.msra.mxu0 0
    %2243 = vmatprep.subr.bf16.mxu0 0
    %2244 = vmatpush2.bf16.msra.mxu0 0
    %2245 = vmatprep.subr.bf16.mxu0 0
    %2246 = vmatpush2.bf16.msra.mxu0 0
    %2247 = vmatprep.subr.bf16.mxu0 0
    %2248 = vmatpush2.bf16.msra.mxu0 0
    %2249 = vmatprep.subr.bf16.mxu0 0
    %2250 = vmatpush2.bf16.msra.mxu0 0
    %2251 = vmatprep.subr.bf16.mxu0 0
    %2252 = vmatpush2.bf16.msra.mxu0 0
    %2253 = vmatprep.subr.bf16.mxu0 0
    %2254 = vmatpush2.bf16.msra.mxu0 0
    %2255 = vmatprep.subr.bf16.mxu0 0
    %2256 = vmatpush2.bf16.msra.mxu0 0
    %2257 = vmatprep.mubr.bf16.mxu0 0
    %2258 = vmatmul.mubr.bf16.gmra.mxu0 %v2223
    %v2259 = vpop.f32.mrf.mxu0
    %v2260 = vadd.f32 0.0, %v2259
    %v2261 = vpop.f32.mrf.mxu0
    %v2262 = vpop.f32.mrf.mxu0
    %v2263 = vadd.f32 0.0, %v2262
    %v2264 = vpop.f32.mrf.mxu0
    %2265 = vdwg.mxu0
    %v2266 = vadd.f32 %v2218, %v2260
    %v2267 = vadd.f32 %v2219, %v2263
    %2268 = vrot.lane.b32.xlu0 %v588, 104
    %v2269 = vpop.permute.xlu0 %2268
    %v2271 = vsel %vm264, %v2269, 0
    %2273 = vmatprep.subr.bf16.mxu0 0
    %2274 = vmatpush1.bf16.msra.mxu0 0
    %2275 = vmatprep.subr.bf16.mxu0 0
    %2276 = vmatpush1.bf16.msra.mxu0 0
    %2277 = vmatprep.subr.bf16.mxu0 0
    %2278 = vmatpush1.bf16.msra.mxu0 0
    %2279 = vmatprep.subr.bf16.mxu0 0
    %2280 = vmatpush1.bf16.msra.mxu0 0
    %2281 = vmatprep.subr.bf16.mxu0 0
    %2282 = vmatpush1.bf16.msra.mxu0 0
    %2283 = vmatprep.subr.bf16.mxu0 0
    %2284 = vmatpush1.bf16.msra.mxu0 0
    %2285 = vmatprep.subr.bf16.mxu0 0
    %2286 = vmatpush1.bf16.msra.mxu0 0
    %2287 = vmatprep.subr.bf16.mxu0 0
    %2288 = vmatpush1.bf16.msra.mxu0 %v593
    %2289 = vmatprep.subr.bf16.mxu0 0
    %2290 = vmatpush2.bf16.msra.mxu0 0
    %2291 = vmatprep.subr.bf16.mxu0 0
    %2292 = vmatpush2.bf16.msra.mxu0 0
    %2293 = vmatprep.subr.bf16.mxu0 0
    %2294 = vmatpush2.bf16.msra.mxu0 0
    %2295 = vmatprep.subr.bf16.mxu0 0
    %2296 = vmatpush2.bf16.msra.mxu0 0
    %2297 = vmatprep.subr.bf16.mxu0 0
    %2298 = vmatpush2.bf16.msra.mxu0 0
    %2299 = vmatprep.subr.bf16.mxu0 0
    %2300 = vmatpush2.bf16.msra.mxu0 0
    %2301 = vmatprep.subr.bf16.mxu0 0
    %2302 = vmatpush2.bf16.msra.mxu0 0
    %2303 = vmatprep.subr.bf16.mxu0 0
    %2304 = vmatpush2.bf16.msra.mxu0 0
    %2305 = vmatprep.mubr.bf16.mxu0 0
    %2306 = vmatmul.mubr.bf16.gmra.mxu0 %v2271
    %v2307 = vpop.f32.mrf.mxu0
    %v2308 = vadd.f32 0.0, %v2307
    %v2309 = vpop.f32.mrf.mxu0
    %v2310 = vpop.f32.mrf.mxu0
    %v2311 = vadd.f32 0.0, %v2310
    %v2312 = vpop.f32.mrf.mxu0
    %2313 = vdwg.mxu0
    %v2314 = vadd.f32 %v2266, %v2308
    %v2315 = vadd.f32 %v2267, %v2311
    %2316 = vrot.lane.b32.xlu0 %v643, 104
    %v2317 = vpop.permute.xlu0 %2316
    %v2319 = vsel %vm264, %v2317, 0
    %2321 = vmatprep.subr.bf16.mxu0 0
    %2322 = vmatpush1.bf16.msra.mxu0 0
    %2323 = vmatprep.subr.bf16.mxu0 0
    %2324 = vmatpush1.bf16.msra.mxu0 0
    %2325 = vmatprep.subr.bf16.mxu0 0
    %2326 = vmatpush1.bf16.msra.mxu0 0
    %2327 = vmatprep.subr.bf16.mxu0 0
    %2328 = vmatpush1.bf16.msra.mxu0 0
    %2329 = vmatprep.subr.bf16.mxu0 0
    %2330 = vmatpush1.bf16.msra.mxu0 0
    %2331 = vmatprep.subr.bf16.mxu0 0
    %2332 = vmatpush1.bf16.msra.mxu0 0
    %2333 = vmatprep.subr.bf16.mxu0 0
    %2334 = vmatpush1.bf16.msra.mxu0 0
    %2335 = vmatprep.subr.bf16.mxu0 0
    %2336 = vmatpush1.bf16.msra.mxu0 %v648
    %2337 = vmatprep.subr.bf16.mxu0 0
    %2338 = vmatpush2.bf16.msra.mxu0 0
    %2339 = vmatprep.subr.bf16.mxu0 0
    %2340 = vmatpush2.bf16.msra.mxu0 0
    %2341 = vmatprep.subr.bf16.mxu0 0
    %2342 = vmatpush2.bf16.msra.mxu0 0
    %2343 = vmatprep.subr.bf16.mxu0 0
    %2344 = vmatpush2.bf16.msra.mxu0 0
    %2345 = vmatprep.subr.bf16.mxu0 0
    %2346 = vmatpush2.bf16.msra.mxu0 0
    %2347 = vmatprep.subr.bf16.mxu0 0
    %2348 = vmatpush2.bf16.msra.mxu0 0
    %2349 = vmatprep.subr.bf16.mxu0 0
    %2350 = vmatpush2.bf16.msra.mxu0 0
    %2351 = vmatprep.subr.bf16.mxu0 0
    %2352 = vmatpush2.bf16.msra.mxu0 0
    %2353 = vmatprep.mubr.bf16.mxu0 0
    %2354 = vmatmul.mubr.bf16.gmra.mxu0 %v2319
    %v2355 = vpop.f32.mrf.mxu0
    %v2356 = vadd.f32 0.0, %v2355
    %v2357 = vpop.f32.mrf.mxu0
    %v2358 = vpop.f32.mrf.mxu0
    %v2359 = vadd.f32 0.0, %v2358
    %v2360 = vpop.f32.mrf.mxu0
    %2361 = vdwg.mxu0
    %v2362 = vadd.f32 %v2314, %v2356
    %v2363 = vadd.f32 %v2315, %v2359
    %2364 = vrot.lane.b32.xlu0 %v698, 104
    %v2365 = vpop.permute.xlu0 %2364
    %v2367 = vsel %vm264, %v2365, 0
    %2369 = vmatprep.subr.bf16.mxu0 0
    %2370 = vmatpush1.bf16.msra.mxu0 0
    %2371 = vmatprep.subr.bf16.mxu0 0
    %2372 = vmatpush1.bf16.msra.mxu0 0
    %2373 = vmatprep.subr.bf16.mxu0 0
    %2374 = vmatpush1.bf16.msra.mxu0 0
    %2375 = vmatprep.subr.bf16.mxu0 0
    %2376 = vmatpush1.bf16.msra.mxu0 0
    %2377 = vmatprep.subr.bf16.mxu0 0
    %2378 = vmatpush1.bf16.msra.mxu0 0
    %2379 = vmatprep.subr.bf16.mxu0 0
    %2380 = vmatpush1.bf16.msra.mxu0 0
    %2381 = vmatprep.subr.bf16.mxu0 0
    %2382 = vmatpush1.bf16.msra.mxu0 0
    %2383 = vmatprep.subr.bf16.mxu0 0
    %2384 = vmatpush1.bf16.msra.mxu0 %v703
    %2385 = vmatprep.subr.bf16.mxu0 0
    %2386 = vmatpush2.bf16.msra.mxu0 0
    %2387 = vmatprep.subr.bf16.mxu0 0
    %2388 = vmatpush2.bf16.msra.mxu0 0
    %2389 = vmatprep.subr.bf16.mxu0 0
    %2390 = vmatpush2.bf16.msra.mxu0 0
    %2391 = vmatprep.subr.bf16.mxu0 0
    %2392 = vmatpush2.bf16.msra.mxu0 0
    %2393 = vmatprep.subr.bf16.mxu0 0
    %2394 = vmatpush2.bf16.msra.mxu0 0
    %2395 = vmatprep.subr.bf16.mxu0 0
    %2396 = vmatpush2.bf16.msra.mxu0 0
    %2397 = vmatprep.subr.bf16.mxu0 0
    %2398 = vmatpush2.bf16.msra.mxu0 0
    %2399 = vmatprep.subr.bf16.mxu0 0
    %2400 = vmatpush2.bf16.msra.mxu0 0
    %2401 = vmatprep.mubr.bf16.mxu0 0
    %2402 = vmatmul.mubr.bf16.gmra.mxu0 %v2367
    %v2403 = vpop.f32.mrf.mxu0
    %v2404 = vadd.f32 0.0, %v2403
    %v2405 = vpop.f32.mrf.mxu0
    %v2406 = vpop.f32.mrf.mxu0
    %v2407 = vadd.f32 0.0, %v2406
    %v2408 = vpop.f32.mrf.mxu0
    %2409 = vdwg.mxu0
    %v2410 = vadd.f32 %v2362, %v2404
    %v2411 = vadd.f32 %v2363, %v2407
    %v2412 = vsel %vm748, %v2410, -inf
    %2413 = vmax.xlane.f32.xlu0 %v2412
    %v2414 = vpop.xlane.xlu0 %2413
    %v2415 = vsel %vm748, %v2411, -inf
    %2416 = vmax.xlane.f32.xlu0 %v2415
    %v2417 = vpop.xlane.xlu0 %2416
    %v2418 = vsub.f32 %v2410, %v2414
    %v2419 = vsub.f32 %v2411, %v2417
    %v2420 = vmul.f32 %v2418, 1.442695
    %v2421 = vpow.pop %v2420
    %v2422 = vmul.f32 %v2419, 1.442695
    %v2423 = vpow.pop %v2422
    %v2424 = vsel %vm748, %v2421, 0.0
    %2425 = vadd.xlane.f32.xlu0 %v2424
    %v2426 = vpop.xlane.xlu0 %2425
    %v2427 = vsel %vm748, %v2423, 0.0
    %2428 = vadd.xlane.f32.xlu0 %v2427
    %v2429 = vpop.xlane.xlu0 %2428
    %v2430 = vrcp.pop %v2426
    %v2431 = vmul.f32 %v2421, %v2430
    %v2432 = vrcp.pop %v2429
    %v2433 = vmul.f32 %v2423, %v2432
    %v2434 = vpack.c.bf16 %v2433, %v2431
    %2435 = vrot.lane.b32.xlu0 %v257, 40
    %v2436 = vpop.permute.xlu0 %2435
    %v2439 = vsel %vm748, %v2434, 0
    %2441 = vmatprep.subr.bf16.mxu0 0
    %2442 = vmatpush1.bf16.msra.mxu0 0
    %2443 = vmatprep.subr.bf16.mxu0 0
    %2444 = vmatpush1.bf16.msra.mxu0 0
    %2445 = vmatprep.subr.bf16.mxu0 0
    %2446 = vmatpush1.bf16.msra.mxu0 0
    %2447 = vmatprep.subr.bf16.mxu0 0
    %2448 = vmatpush1.bf16.msra.mxu0 0
    %2449 = vmatprep.subr.bf16.mxu0 0
    %2450 = vmatpush1.bf16.msra.mxu0 0
    %2451 = vmatprep.subr.bf16.mxu0 0
    %2452 = vmatpush1.bf16.msra.mxu0 0
    %2453 = vmatprep.subr.bf16.mxu0 0
    %2454 = vmatpush1.bf16.msra.mxu0 0
    %2455 = vmatprep.subr.bf16.mxu0 0
    %2456 = vmatpush1.bf16.msra.mxu0 %v2436
    %2457 = vmatprep.subr.bf16.mxu0 0
    %2458 = vmatpush2.bf16.msra.mxu0 0
    %2459 = vmatprep.subr.bf16.mxu0 0
    %2460 = vmatpush2.bf16.msra.mxu0 0
    %2461 = vmatprep.subr.bf16.mxu0 0
    %2462 = vmatpush2.bf16.msra.mxu0 0
    %2463 = vmatprep.subr.bf16.mxu0 0
    %2464 = vmatpush2.bf16.msra.mxu0 0
    %2465 = vmatprep.subr.bf16.mxu0 0
    %2466 = vmatpush2.bf16.msra.mxu0 0
    %2467 = vmatprep.subr.bf16.mxu0 0
    %2468 = vmatpush2.bf16.msra.mxu0 0
    %2469 = vmatprep.subr.bf16.mxu0 0
    %2470 = vmatpush2.bf16.msra.mxu0 0
    %2471 = vmatprep.subr.bf16.mxu0 0
    %2472 = vmatpush2.bf16.msra.mxu0 0
    %2473 = vmatprep.mubr.bf16.mxu0 0
    %2474 = vmatmul.mubr.bf16.gmra.mxu0 %v2439
    %v2475 = vpop.f32.mrf.mxu0
    %v2476 = vadd.f32 0.0, %v2475
    %v2477 = vpop.f32.mrf.mxu0
    %v2478 = vpop.f32.mrf.mxu0
    %v2479 = vadd.f32 0.0, %v2478
    %v2480 = vpop.f32.mrf.mxu0
    %2481 = vdwg.mxu0
    %v2482 = vpack.c.bf16 %v2479, %v2476
    %v2484 = vsel %vm264, %v2482, 0
    %v2487 = vsel %vm268, %v139, 0
    %2489 = vmatprep.subr.bf16.mxu0 0
    %2490 = vmatpush1.bf16.msra.mxu0 0
    %2491 = vmatprep.subr.bf16.mxu0 0
    %2492 = vmatpush1.bf16.msra.mxu0 0
    %2493 = vmatprep.subr.bf16.mxu0 0
    %2494 = vmatpush1.bf16.msra.mxu0 0
    %2495 = vmatprep.subr.bf16.mxu0 0
    %2496 = vmatpush1.bf16.msra.mxu0 0
    %2497 = vmatprep.subr.bf16.mxu0 0
    %2498 = vmatpush1.bf16.msra.mxu0 0
    %2499 = vmatprep.subr.bf16.mxu0 0
    %2500 = vmatpush1.bf16.msra.mxu0 0
    %2501 = vmatprep.subr.bf16.mxu0 0
    %2502 = vmatpush1.bf16.msra.mxu0 0
    %2503 = vmatprep.subr.bf16.mxu0 0
    %2504 = vmatpush1.bf16.msra.mxu0 %v2487
    %2505 = vmatprep.subr.bf16.mxu0 0
    %2506 = vmatpush2.bf16.msra.mxu0 0
    %2507 = vmatprep.subr.bf16.mxu0 0
    %2508 = vmatpush2.bf16.msra.mxu0 0
    %2509 = vmatprep.subr.bf16.mxu0 0
    %2510 = vmatpush2.bf16.msra.mxu0 0
    %2511 = vmatprep.subr.bf16.mxu0 0
    %2512 = vmatpush2.bf16.msra.mxu0 0
    %2513 = vmatprep.subr.bf16.mxu0 0
    %2514 = vmatpush2.bf16.msra.mxu0 0
    %2515 = vmatprep.subr.bf16.mxu0 0
    %2516 = vmatpush2.bf16.msra.mxu0 0
    %2517 = vmatprep.subr.bf16.mxu0 0
    %2518 = vmatpush2.bf16.msra.mxu0 0
    %2519 = vmatprep.subr.bf16.mxu0 0
    %2520 = vmatpush2.bf16.msra.mxu0 0
    %2521 = vmatprep.mubr.bf16.mxu0 0
    %2522 = vmatmul.mubr.bf16.gmra.mxu0 %v2484
    %v2523 = vpop.f32.mrf.mxu0
    %v2524 = vadd.f32 0.0, %v2523
    %v2525 = vpop.f32.mrf.mxu0
    %v2526 = vpop.f32.mrf.mxu0
    %v2527 = vadd.f32 0.0, %v2526
    %v2528 = vpop.f32.mrf.mxu0
    %2529 = vdwg.mxu0
    %v2530 = vadd.f32 %v1977, %v2524
    %v2531 = vadd.f32 %v1978, %v2527
    %v2533 = vlaneseq
    %v2534 = vshrl.u32 %v2533, 7
    %v2535 = vsub.s32 0, %v2534
    %v2536 = vrot.slane %v64, %v2535
    %v2538 = vadd.f32 %v2530, %v2536
    %v2539 = vadd.f32 %v2531, %v2536
    %v2540 = vadd.f32 %v2538, %v148
    %v2541 = vadd.f32 %v2539, %v149
    %v2542 = vsel %vm150, %v2540, 0.0
    %2543 = vadd.xlane.f32.xlu0 %v2542
    %v2544 = vpop.xlane.xlu0 %2543
    %v2545 = vsel %vm150, %v2541, 0.0
    %2546 = vadd.xlane.f32.xlu0 %v2545
    %v2547 = vpop.xlane.xlu0 %2546
    %v2548 = vmul.f32 %v2544, %v157
    %v2549 = vmul.f32 %v2547, %v157
    %v2550 = vsub.f32 %v2540, %v2548
    %v2551 = vsub.f32 %v2541, %v2549
    %v2552 = vmul.f32 %v2550, %v2550
    %v2553 = vmul.f32 %v2551, %v2551
    %v2554 = vsel %vm150, %v2552, 0.0
    %2555 = vadd.xlane.f32.xlu0 %v2554
    %v2556 = vpop.xlane.xlu0 %2555
    %v2557 = vsel %vm150, %v2553, 0.0
    %2558 = vadd.xlane.f32.xlu0 %v2557
    %v2559 = vpop.xlane.xlu0 %2558
    %v2560 = vmul.f32 %v2556, %v157
    %v2561 = vmul.f32 %v2559, %v157
    %v2562 = vadd.f32 %v2560, 1e-06
    %v2563 = vadd.f32 %v2561, 1e-06
    %v2564 = vrsqrt.pop %v2562
    %v2565 = vrsqrt.pop %v2563
    %v2566 = vmul.f32 %v2550, %v2564
    %v2567 = vmul.f32 %v2551, %v2565
    %v2569 = vlaneseq
    %v2570 = vshrl.u32 %v2569, 7
    %v2571 = vsub.s32 0, %v2570
    %v2572 = vrot.slane %v65, %v2571
    %v2574 = vmul.f32 %v2566, %v2572
    %v2575 = vmul.f32 %v2567, %v2572
    %v2577 = vlaneseq
    %v2578 = vshrl.u32 %v2577, 7
    %v2579 = vsub.s32 0, %v2578
    %v2580 = vrot.slane %v66, %v2579
    %v2582 = vadd.f32 %v2574, %v2580
    %v2583 = vadd.f32 %v2575, %v2580
    %v2584 = vpack.c.bf16 %v2583, %v2582
    %v2586 = vlaneseq
    %v2587 = vshrl.u32 %v2586, 7
    %v2588 = vsub.s32 0, %v2587
    %v2589 = vrot.slane %v71, %v2588
    %v2595 = vunpack.c.l.b16 %v67
    %v2596 = vunpack.c.l.b16 %v68
    %v2597 = vunpack.c.l.b16 %v69
    %v2598 = vunpack.c.l.b16 %v70
    %v2599 = vpack.c.b16 %v2596, %v2595
    %v2600 = vpack.c.b16 %v2598, %v2597
    %v2604 = vsel %vm150, %v2584, 0
    %2606 = vmatprep.subr.bf16.mxu0 0
    %2607 = vmatpush1.bf16.msra.mxu0 0
    %2608 = vmatprep.subr.bf16.mxu0 0
    %2609 = vmatpush1.bf16.msra.mxu0 0
    %2610 = vmatprep.subr.bf16.mxu0 0
    %2611 = vmatpush1.bf16.msra.mxu0 0
    %2612 = vmatprep.subr.bf16.mxu0 0
    %2613 = vmatpush1.bf16.msra.mxu0 0
    %2614 = vmatprep.subr.bf16.mxu0 0
    %2615 = vmatpush1.bf16.msra.mxu0 0
    %2616 = vmatprep.subr.bf16.mxu0 0
    %2617 = vmatpush1.bf16.msra.mxu0 0
    %2618 = vmatprep.subr.bf16.mxu0 0
    %2619 = vmatpush1.bf16.msra.mxu0 %v2600
    %2620 = vmatprep.subr.bf16.mxu0 0
    %2621 = vmatpush1.bf16.msra.mxu0 %v2599
    %2622 = vmatprep.subr.bf16.mxu0 0
    %2623 = vmatpush2.bf16.msra.mxu0 0
    %2624 = vmatprep.subr.bf16.mxu0 0
    %2625 = vmatpush2.bf16.msra.mxu0 0
    %2626 = vmatprep.subr.bf16.mxu0 0
    %2627 = vmatpush2.bf16.msra.mxu0 0
    %2628 = vmatprep.subr.bf16.mxu0 0
    %2629 = vmatpush2.bf16.msra.mxu0 0
    %2630 = vmatprep.subr.bf16.mxu0 0
    %2631 = vmatpush2.bf16.msra.mxu0 0
    %2632 = vmatprep.subr.bf16.mxu0 0
    %2633 = vmatpush2.bf16.msra.mxu0 0
    %2634 = vmatprep.subr.bf16.mxu0 0
    %2635 = vmatpush2.bf16.msra.mxu0 0
    %2636 = vmatprep.subr.bf16.mxu0 0
    %2637 = vmatpush2.bf16.msra.mxu0 0
    %2638 = vmatprep.mubr.bf16.mxu0 0
    %2639 = vmatmul.mubr.bf16.gmra.mxu0 %v2604
    %v2640 = vpop.f32.mrf.mxu0
    %v2641 = vadd.f32 %v2589, %v2640
    %v2642 = vpop.f32.mrf.mxu0
    %v2643 = vpop.f32.mrf.mxu0
    %v2644 = vadd.f32 %v2589, %v2643
    %v2645 = vpop.f32.mrf.mxu0
    %2646 = vdwg.mxu0
    %v2647 = vmul.f32 %v2641, %v2641
    %v2648 = vmul.f32 %v2644, %v2644
    %v2649 = vmul.f32 %v2641, %v2647
    %v2650 = vmul.f32 %v2644, %v2648
    %v2651 = vmul.f32 %v2649, 0.044715
    %v2652 = vmul.f32 %v2650, 0.044715
    %v2653 = vadd.f32 %v2641, %v2651
    %v2654 = vadd.f32 %v2644, %v2652
    %v2655 = vmul.f32 %v2653, 0.7978846
    %v2656 = vmul.f32 %v2654, 0.7978846
    %v2657 = vtanh.pop %v2655
    %v2658 = vtanh.pop %v2656
    %v2659 = vadd.f32 %v2657, 1.0
    %v2660 = vadd.f32 %v2658, 1.0
    %v2661 = vmul.f32 %v2659, 0.5
    %v2662 = vmul.f32 %v2660, 0.5
    %v2663 = vmul.f32 %v2641, %v2661
    %v2664 = vmul.f32 %v2644, %v2662
    %v2665 = vpack.c.bf16 %v2664, %v2663
    %v2667 = vlaneseq
    %v2668 = vshrl.u32 %v2667, 7
    %v2669 = vsub.s32 0, %v2668
    %v2670 = vrot.slane %v88, %v2669
    %v2688 = vunpack.c.l.b16 %v72
    %v2689 = vunpack.c.l.b16 %v73
    %v2690 = vunpack.c.l.b16 %v74
    %v2691 = vunpack.c.l.b16 %v75
    %v2692 = vunpack.c.l.b16 %v76
    %v2693 = vunpack.c.l.b16 %v77
    %v2694 = vunpack.c.l.b16 %v78
    %v2695 = vunpack.c.l.b16 %v79
    %v2696 = vunpack.c.l.b16 %v80
    %v2697 = vunpack.c.l.b16 %v81
    %v2698 = vunpack.c.l.b16 %v82
    %v2699 = vunpack.c.l.b16 %v83
    %v2700 = vunpack.c.l.b16 %v84
    %v2701 = vunpack.c.l.b16 %v85
    %v2702 = vunpack.c.l.b16 %v86
    %v2703 = vunpack.c.l.b16 %v87
    %v2704 = vpack.c.b16 %v2689, %v2688
    %v2705 = vpack.c.b16 %v2691, %v2690
    %v2706 = vpack.c.b16 %v2693, %v2692
    %v2707 = vpack.c.b16 %v2695, %v2694
    %v2708 = vpack.c.b16 %v2697, %v2696
    %v2709 = vpack.c.b16 %v2699, %v2698
    %v2710 = vpack.c.b16 %v2701, %v2700
    %v2711 = vpack.c.b16 %v2703, %v2702
    %2720 = vmatprep.subr.bf16.mxu0 0
    %2721 = vmatpush1.bf16.msra.mxu0 %v2711
    %2722 = vmatprep.subr.bf16.mxu0 0
    %2723 = vmatpush1.bf16.msra.mxu0 %v2710
    %2724 = vmatprep.subr.bf16.mxu0 0
    %2725 = vmatpush1.bf16.msra.mxu0 %v2709
    %2726 = vmatprep.subr.bf16.mxu0 0
    %2727 = vmatpush1.bf16.msra.mxu0 %v2708
    %2728 = vmatprep.subr.bf16.mxu0 0
    %2729 = vmatpush1.bf16.msra.mxu0 %v2707
    %2730 = vmatprep.subr.bf16.mxu0 0
    %2731 = vmatpush1.bf16.msra.mxu0 %v2706
    %2732 = vmatprep.subr.bf16.mxu0 0
    %2733 = vmatpush1.bf16.msra.mxu0 %v2705
    %2734 = vmatprep.subr.bf16.mxu0 0
    %2735 = vmatpush1.bf16.msra.mxu0 %v2704
    %2736 = vmatprep.subr.bf16.mxu0 0
    %2737 = vmatpush2.bf16.msra.mxu0 0
    %2738 = vmatprep.subr.bf16.mxu0 0
    %2739 = vmatpush2.bf16.msra.mxu0 0
    %2740 = vmatprep.subr.bf16.mxu0 0
    %2741 = vmatpush2.bf16.msra.mxu0 0
    %2742 = vmatprep.subr.bf16.mxu0 0
    %2743 = vmatpush2.bf16.msra.mxu0 0
    %2744 = vmatprep.subr.bf16.mxu0 0
    %2745 = vmatpush2.bf16.msra.mxu0 0
    %2746 = vmatprep.subr.bf16.mxu0 0
    %2747 = vmatpush2.bf16.msra.mxu0 0
    %2748 = vmatprep.subr.bf16.mxu0 0
    %2749 = vmatpush2.bf16.msra.mxu0 0
    %2750 = vmatprep.subr.bf16.mxu0 0
    %2751 = vmatpush2.bf16.msra.mxu0 0
    %2752 = vmatprep.mubr.bf16.mxu0 0
    %2753 = vmatmul.mubr.bf16.gmra.mxu0 %v2665
    %v2754 = vpop.f32.mrf.mxu0
    %v2755 = vadd.f32 %v2670, %v2754
    %v2756 = vpop.f32.mrf.mxu0
    %v2757 = vpop.f32.mrf.mxu0
    %v2758 = vadd.f32 %v2670, %v2757
    %v2759 = vpop.f32.mrf.mxu0
    %2760 = vdwg.mxu0
    %v2761 = vadd.f32 %v2755, %v2540
    %v2762 = vadd.f32 %v2758, %v2541
    %s2763 = scalar_lea.vmem %s17, %s146
    %2764 = vst.msk [vmem:[%s2763] sm:$0xff] %vm150, %v2761
    %2765 = vst.msk [vmem:[%s2763 + $0x8] sm:$0xff] %vm150, %v2762
  $region74: #{sam_mae_encoder_forward.6} parent=0 // loop_footer
    %s145 = sadd.s32 1, %s141
  $region75: #{sam_mae_encoder_forward.6} parent=0 // loop_footer_branch
    %140 = sbr.rel target = $region71
  $region76: #{sam_mae_encoder_forward.6} parent=0 // loop_exit
    _
  // Predicated region
  $region77: #{sam_mae_encoder_forward.6} parent=0 // pred_check
    _
  $region78: #{sam_mae_encoder_forward.6} parent=0 // pred_check_branch
    %2767 = sbr.rel (0) target = $region80
  $region79: #{sam_mae_encoder_forward.6} parent=0 // pred_region
    _
  $region80: #{sam_mae_encoder_forward.6} parent=0 // pred_fallthru
    _
  // Predicated region
  $region81: #{sam_mae_encoder_forward.6} parent=0 // pred_check
    _
  $region82: #{sam_mae_encoder_forward.6} parent=0 // pred_check_branch
    %2769 = sbr.rel (0) target = $region84
  $region83: #{sam_mae_encoder_forward.6} parent=0 // pred_region
    _
  $region84: #{sam_mae_encoder_forward.6} parent=0 // pred_fallthru
    _

</llo_original>
